<compile_context>
chip_gen: v7x
topology: tpu7x:2x2x1
jax: 0.10.0
libtpu: 0.0.40
codegen_flags: <defaults>
</compile_context>

<pallas_src>
import jax
import jax.numpy as jnp
from jax.experimental import pallas as pl
from jax.experimental.pallas import tpu as pltpu

_LEFT = 8  # interior start column inside the padded scratches (sublane aligned)


def _double_conv_kernel(x_ref, w1_ref, b1_ref, w2_ref, b2_ref, o_ref,
                        xpad_ref, hpad_ref, acc_ref):
    # x_ref : (1, H, W, Cin)        one image (NHWC) per grid step
    # w*_ref: (3, 3, Cin, Cout)     conv weights in the MXU dtype
    # b*_ref: (1, Cout) f32
    # o_ref : (1, H, W, Cout)
    # xpad_ref: VMEM (H+2, W+_LEFT+1, Cin)  f32, zero-halo padded input
    # hpad_ref: VMEM (H+2, W+_LEFT+1, Cmid) f32, zero-halo padded intermediate
    # acc_ref : VMEM (H*W, Cout) f32 accumulator
    _, H, W, _ = x_ref.shape

    def zero_halo(pad_ref):
        # Only the cells the 3x3 taps can read outside the interior must be
        # zero: top/bottom halo rows plus the left/right halo columns.
        # (Columns 0.._LEFT-2 of the alignment pad are never read.)
        hp, wp, c = pad_ref.shape
        zrow = jnp.zeros((1, wp, c), pad_ref.dtype)
        pad_ref[0:1, :, :] = zrow                       # top halo row
        pad_ref[hp - 1:hp, :, :] = zrow                 # bottom halo row
        zcol = jnp.zeros((hp - 2, 1, c), pad_ref.dtype)
        pad_ref[1:hp - 1, _LEFT - 1:_LEFT, :] = zcol    # left halo column (7)
        pad_ref[1:hp - 1, wp - 1:wp, :] = zcol          # right halo column

    def conv3x3_relu(pad_ref, w_ref, b_ref):
        # 9 MXU dots with K = C reading shifted slices straight from the padded
        # scratch (no im2col concat).  Accumulate in the f32 VMEM scratch that
        # is initialized with the broadcast bias.
        c_in = pad_ref.shape[-1]
        c_out = acc_ref.shape[-1]
        acc_ref[...] = jnp.broadcast_to(b_ref[...], acc_ref.shape)
        for dy in range(3):
            for dx in range(3):
                col0 = _LEFT - 1 + dx        # dx=1 tap (and the interior) aligned
                lhs = pad_ref[dy:dy + H, col0:col0 + W, :]
                acc_ref[...] += jnp.dot(
                    lhs.reshape(H * W, c_in).astype(w_ref.dtype),
                    w_ref[dy, dx],
                    preferred_element_type=jnp.float32)
        return jnp.maximum(acc_ref[...], 0.0).reshape(H, W, c_out)

    zero_halo(xpad_ref)
    zero_halo(hpad_ref)

    # Stage 1: pad -> conv1 -> ReLU; the intermediate activation never leaves VMEM.
    xpad_ref[1:H + 1, _LEFT:_LEFT + W, :] = x_ref[0].astype(xpad_ref.dtype)
    h = conv3x3_relu(xpad_ref, w1_ref, b1_ref)

    # Stage 2: pad -> conv2 -> ReLU -> output block.
    hpad_ref[1:H + 1, _LEFT:_LEFT + W, :] = h
    y = conv3x3_relu(hpad_ref, w2_ref, b2_ref)
    o_ref[0] = y.astype(o_ref.dtype)


def prepare_params(params, mxu_dtype=jnp.bfloat16):
    """Cast/reshape the weights ONCE (call outside the per-step model path)."""
    w1, b1, w2, b2 = params
    return (w1.astype(mxu_dtype), b1.reshape(1, -1).astype(jnp.float32),
            w2.astype(mxu_dtype), b2.reshape(1, -1).astype(jnp.float32))


def double_conv_nhwc(x_nhwc, prepared_params):
    """Fused DoubleConv on an NHWC activation. prepared_params from prepare_params()."""
    w1, b1, w2, b2 = prepared_params
    N, H, W, Cin = x_nhwc.shape
    Cmid, Cout = w1.shape[-1], w2.shape[-1]
    # In DoubleConv the second conv maps out_channels -> out_channels, so the
    # shared accumulator scratch works for both stages.
    assert Cmid == Cout, "DoubleConv requires conv2: out_channels -> out_channels"

    wp = W + _LEFT + 1  # 8-column alignment pad (left halo at col 7) + right halo
    const = dict(pipeline_mode=pl.Buffered(1))  # weights/bias never change per step

    grid_spec = pltpu.PrefetchScalarGridSpec(
        num_scalar_prefetch=0,
        grid=(N,),  # one image per step; >=2 steps feeds both v7x TensorCores
        in_specs=[
            pl.BlockSpec((1, H, W, Cin), lambda n: (n, 0, 0, 0)),
            pl.BlockSpec(w1.shape, lambda n: (0, 0, 0, 0), **const),
            pl.BlockSpec(b1.shape, lambda n: (0, 0), **const),
            pl.BlockSpec(w2.shape, lambda n: (0, 0, 0, 0), **const),
            pl.BlockSpec(b2.shape, lambda n: (0, 0), **const),
        ],
        out_specs=pl.BlockSpec((1, H, W, Cout), lambda n: (n, 0, 0, 0)),
        scratch_shapes=[
            pltpu.VMEM((H + 2, wp, Cin), jnp.float32),   # padded input
            pltpu.VMEM((H + 2, wp, Cmid), jnp.float32),  # padded intermediate
            pltpu.VMEM((H * W, Cout), jnp.float32),      # f32 accumulator
        ],
    )

    # Size the scoped VMEM limit from the actual buffers (default 16/32 MiB is
    # too small for wide layers); cap below typical physical budgets.
    x_item = jnp.dtype(x_nhwc.dtype).itemsize
    w_item = jnp.dtype(w1.dtype).itemsize
    need = (4 * (H + 2) * wp * (Cin + Cmid)                 # padded scratches (f32)
            + 4 * H * W * Cout                              # accumulator
            + w_item * 9 * (Cin * Cmid + Cmid * Cout)       # weights (single-buffered)
            + 8 * (Cmid + Cout)                             # biases
            + 2 * H * W * (Cin + Cout) * x_item)            # double-buffered in/out blocks
    vmem_limit = int(min(max(2 * need, 32 * 1024 * 1024), 100 * 1024 * 1024))

    return pl.pallas_call(
        _double_conv_kernel,
        out_shape=jax.ShapeDtypeStruct((N, H, W, Cout), x_nhwc.dtype),
        grid_spec=grid_spec,
        compiler_params=pltpu.CompilerParams(
            dimension_semantics=("parallel",),
            vmem_limit_bytes=vmem_limit),
    )(x_nhwc, w1, b1, w2, b2)


def double_conv(x_nchw, params, mxu_dtype=jnp.bfloat16):
    """PyTorch-layout entry point: x (N, Cin, H, W) -> (N, Cout, H, W).

    For a full model, keep activations NHWC end-to-end and call
    double_conv_nhwc(x, prepare_params(params)) directly; the two transposes
    here are an extra HBM round-trip per call that XLA cannot hide.
    """
    x = jnp.transpose(x_nchw, (0, 2, 3, 1))                 # NCHW -> NHWC
    y = double_conv_nhwc(x, prepare_params(params, mxu_dtype))
    return jnp.transpose(y, (0, 3, 1, 2))                   # NHWC -> NCHW


def init_params(key, in_channels, out_channels, dtype=jnp.float32):
    k1, k2, k3, k4 = jax.random.split(key, 4)
    # PyTorch Conv2d weight is (Cout, Cin, 3, 3); stored here as (3, 3, Cin, Cout).
    scale1 = 1.0 / (in_channels * 9) ** 0.5
    scale2 = 1.0 / (out_channels * 9) ** 0.5
    w1 = jax.random.uniform(k1, (3, 3, in_channels, out_channels),
                            dtype, -scale1, scale1)
    b1 = jax.random.uniform(k2, (out_channels,), dtype, -scale1, scale1)
    w2 = jax.random.uniform(k3, (3, 3, out_channels, out_channels),
                            dtype, -scale2, scale2)
    b2 = jax.random.uniform(k4, (out_channels,), dtype, -scale2, scale2)
    return (w1, b1, w2, b2)


def _reference_double_conv(x_nchw, params):
    """Pure-JAX reference (NCHW conv) for the correctness check."""
    w1, b1, w2, b2 = params

    def conv(x, w, b):
        w_oihw = jnp.transpose(w, (3, 2, 0, 1))             # (3,3,Cin,Cout)->OIHW
        y = jax.lax.conv_general_dilated(
            x, w_oihw, window_strides=(1, 1), padding=((1, 1), (1, 1)),
            dimension_numbers=("NCHW", "OIHW", "NCHW"))
        return jnp.maximum(y + b[None, :, None, None], 0.0)

    return conv(conv(x_nchw, w1, b1), w2, b2)


if __name__ == "__main__":
    key = jax.random.PRNGKey(0)
    k_x, k_p = jax.random.split(key)

    N, Cin, Cout, H, W = 2, 4, 8, 16, 16
    x = jax.random.normal(k_x, (N, Cin, H, W), jnp.float32)
    params = init_params(k_p, Cin, Cout)

    ref = _reference_double_conv(x, params)

    # f32 MXU path: tight tolerance vs the f32 reference.
    out = jax.block_until_ready(double_conv(x, params, mxu_dtype=jnp.float32))
    assert out.shape == (N, Cout, H, W), out.shape
    assert jnp.allclose(out, ref, atol=1e-4, rtol=1e-4), \
        float(jnp.max(jnp.abs(out - ref)))

    # Default bf16 MXU path (fast path on v6e/v7x): looser tolerance.
    out_bf16 = jax.block_until_ready(double_conv(x, params))
    assert out_bf16.shape == (N, Cout, H, W), out_bf16.shape
    assert jnp.allclose(out_bf16, ref, atol=5e-2, rtol=5e-2), \
        float(jnp.max(jnp.abs(out_bf16 - ref)))

    print("KERNEL_OK")
</pallas_src>

<mosaic_0001>
module attributes {stable_mosaic.version = 11 : i64} {
  func.func @_double_conv_kernel(%arg0: i32, %arg1: memref<1x16x16x4xf32, #tpu.memory_space<vmem>>, %arg2: memref<3x3x4x8xf32, #tpu.memory_space<vmem>>, %arg3: memref<1x8xf32, #tpu.memory_space<vmem>>, %arg4: memref<3x3x8x8xf32, #tpu.memory_space<vmem>>, %arg5: memref<1x8xf32, #tpu.memory_space<vmem>>, %arg6: memref<1x16x16x8xf32, #tpu.memory_space<vmem>>, %arg7: memref<18x25x4xf32, #tpu.memory_space<vmem>>, %arg8: memref<18x25x8xf32, #tpu.memory_space<vmem>>, %arg9: memref<256x8xf32, #tpu.memory_space<vmem>>) attributes {dimension_semantics = [#tpu.dimension_semantics<parallel>], iteration_bounds = array<i64: 2>, scalar_prefetch = 0 : i64, scratch_operands = 3 : i64, tpu.core_type = #tpu.core_type<tc>, window_params = [{transform_indices = @transform_0, window_bounds = array<i64: 1, 16, 16, 4>}, {pipeline_mode = #tpu.pipeline_mode<synchronous>, transform_indices = @transform_1, window_bounds = array<i64: 3, 3, 4, 8>}, {pipeline_mode = #tpu.pipeline_mode<synchronous>, transform_indices = @transform_2, window_bounds = array<i64: 1, 8>}, {pipeline_mode = #tpu.pipeline_mode<synchronous>, transform_indices = @transform_3, window_bounds = array<i64: 3, 3, 8, 8>}, {pipeline_mode = #tpu.pipeline_mode<synchronous>, transform_indices = @transform_4, window_bounds = array<i64: 1, 8>}, {transform_indices = @transform_5, window_bounds = array<i64: 1, 16, 16, 8>}]} {
    %cst = arith.constant 0.000000e+00 : f32
    %0 = vector.broadcast %cst : f32 to vector<1x25x4xf32>
    %c0 = arith.constant 0 : index
    %c0_0 = arith.constant 0 : index
    %c0_1 = arith.constant 0 : index
    %1 = vector.load %arg7[%c0, %c0_0, %c0_1] : memref<18x25x4xf32, #tpu.memory_space<vmem>>, vector<1x25x4xf32>
    tpu.vector_store %arg7[%c0, %c0_0, %c0_1], %0 {strides = array<i32>} : memref<18x25x4xf32, #tpu.memory_space<vmem>>, vector<1x25x4xf32>,
    %c17 = arith.constant 17 : index
    %c0_2 = arith.constant 0 : index
    %c0_3 = arith.constant 0 : index
    %2 = vector.load %arg7[%c17, %c0_2, %c0_3] : memref<18x25x4xf32, #tpu.memory_space<vmem>>, vector<1x25x4xf32>
    tpu.vector_store %arg7[%c17, %c0_2, %c0_3], %0 {strides = array<i32>} : memref<18x25x4xf32, #tpu.memory_space<vmem>>, vector<1x25x4xf32>,
    %cst_4 = arith.constant 0.000000e+00 : f32
    %3 = vector.broadcast %cst_4 : f32 to vector<16x1x4xf32>
    %c1 = arith.constant 1 : index
    %c7 = arith.constant 7 : index
    %c0_5 = arith.constant 0 : index
    %4 = vector.load %arg7[%c1, %c7, %c0_5] : memref<18x25x4xf32, #tpu.memory_space<vmem>>, vector<16x1x4xf32>
    tpu.vector_store %arg7[%c1, %c7, %c0_5], %3 {strides = array<i32>} : memref<18x25x4xf32, #tpu.memory_space<vmem>>, vector<16x1x4xf32>,
    %c1_6 = arith.constant 1 : index
    %c24 = arith.constant 24 : index
    %c0_7 = arith.constant 0 : index
    %5 = vector.load %arg7[%c1_6, %c24, %c0_7] : memref<18x25x4xf32, #tpu.memory_space<vmem>>, vector<16x1x4xf32>
    tpu.vector_store %arg7[%c1_6, %c24, %c0_7], %3 {strides = array<i32>} : memref<18x25x4xf32, #tpu.memory_space<vmem>>, vector<16x1x4xf32>,
    %cst_8 = arith.constant 0.000000e+00 : f32
    %6 = vector.broadcast %cst_8 : f32 to vector<1x25x8xf32>
    %c0_9 = arith.constant 0 : index
    %c0_10 = arith.constant 0 : index
    %c0_11 = arith.constant 0 : index
    %7 = vector.load %arg8[%c0_9, %c0_10, %c0_11] : memref<18x25x8xf32, #tpu.memory_space<vmem>>, vector<1x25x8xf32>
    tpu.vector_store %arg8[%c0_9, %c0_10, %c0_11], %6 {strides = array<i32>} : memref<18x25x8xf32, #tpu.memory_space<vmem>>, vector<1x25x8xf32>,
    %c17_12 = arith.constant 17 : index
    %c0_13 = arith.constant 0 : index
    %c0_14 = arith.constant 0 : index
    %8 = vector.load %arg8[%c17_12, %c0_13, %c0_14] : memref<18x25x8xf32, #tpu.memory_space<vmem>>, vector<1x25x8xf32>
    tpu.vector_store %arg8[%c17_12, %c0_13, %c0_14], %6 {strides = array<i32>} : memref<18x25x8xf32, #tpu.memory_space<vmem>>, vector<1x25x8xf32>,
    %cst_15 = arith.constant 0.000000e+00 : f32
    %9 = vector.broadcast %cst_15 : f32 to vector<16x1x8xf32>
    %c1_16 = arith.constant 1 : index
    %c7_17 = arith.constant 7 : index
    %c0_18 = arith.constant 0 : index
    %10 = vector.load %arg8[%c1_16, %c7_17, %c0_18] : memref<18x25x8xf32, #tpu.memory_space<vmem>>, vector<16x1x8xf32>
    tpu.vector_store %arg8[%c1_16, %c7_17, %c0_18], %9 {strides = array<i32>} : memref<18x25x8xf32, #tpu.memory_space<vmem>>, vector<16x1x8xf32>,
    %c1_19 = arith.constant 1 : index
    %c24_20 = arith.constant 24 : index
    %c0_21 = arith.constant 0 : index
    %11 = vector.load %arg8[%c1_19, %c24_20, %c0_21] : memref<18x25x8xf32, #tpu.memory_space<vmem>>, vector<16x1x8xf32>
    tpu.vector_store %arg8[%c1_19, %c24_20, %c0_21], %9 {strides = array<i32>} : memref<18x25x8xf32, #tpu.memory_space<vmem>>, vector<16x1x8xf32>,
    %c0_22 = arith.constant 0 : index
    %c0_23 = arith.constant 0 : index
    %c0_24 = arith.constant 0 : index
    %c0_25 = arith.constant 0 : index
    %12 = vector.load %arg1[%c0_22, %c0_23, %c0_24, %c0_25] : memref<1x16x16x4xf32, #tpu.memory_space<vmem>>, vector<1x16x16x4xf32>
    %13 = vector.shape_cast %12 : vector<1x16x16x4xf32> to vector<16x16x4xf32>
    %c1_26 = arith.constant 1 : index
    %c8 = arith.constant 8 : index
    %c0_27 = arith.constant 0 : index
    %14 = vector.load %arg7[%c1_26, %c8, %c0_27] : memref<18x25x4xf32, #tpu.memory_space<vmem>>, vector<16x16x4xf32>
    tpu.vector_store %arg7[%c1_26, %c8, %c0_27], %13 {strides = array<i32>} : memref<18x25x4xf32, #tpu.memory_space<vmem>>, vector<16x16x4xf32>,
    %c0_28 = arith.constant 0 : index
    %c0_29 = arith.constant 0 : index
    %15 = vector.load %arg3[%c0_28, %c0_29] : memref<1x8xf32, #tpu.memory_space<vmem>>, vector<1x8xf32>
    %16 = vector.shape_cast %15 : vector<1x8xf32> to vector<1x8xf32>
    %17 = vector.broadcast %16 : vector<1x8xf32> to vector<256x8xf32>
    %c0_30 = arith.constant 0 : index
    %c0_31 = arith.constant 0 : index
    %18 = vector.load %arg9[%c0_30, %c0_31] : memref<256x8xf32, #tpu.memory_space<vmem>>, vector<256x8xf32>
    tpu.vector_store %arg9[%c0_30, %c0_31], %17 {strides = array<i32>} : memref<256x8xf32, #tpu.memory_space<vmem>>, vector<256x8xf32>,
    %c0_32 = arith.constant 0 : index
    %c7_33 = arith.constant 7 : index
    %c0_34 = arith.constant 0 : index
    %19 = vector.load %arg7[%c0_32, %c7_33, %c0_34] : memref<18x25x4xf32, #tpu.memory_space<vmem>>, vector<16x16x4xf32>
    %c0_35 = arith.constant 0 : index
    %c0_36 = arith.constant 0 : index
    %20 = vector.load %arg9[%c0_35, %c0_36] : memref<256x8xf32, #tpu.memory_space<vmem>>, vector<256x8xf32>
    %21 = vector.shape_cast %19 : vector<16x16x4xf32> to vector<256x4xf32>
    %c0_37 = arith.constant 0 : index
    %c0_38 = arith.constant 0 : index
    %c0_39 = arith.constant 0 : index
    %c0_40 = arith.constant 0 : index
    %22 = vector.load %arg2[%c0_37, %c0_38, %c0_39, %c0_40] : memref<3x3x4x8xf32, #tpu.memory_space<vmem>>, vector<1x1x4x8xf32>
    %23 = vector.shape_cast %22 : vector<1x1x4x8xf32> to vector<4x8xf32>
    %cst_41 = arith.constant dense<0.000000e+00> : vector<256x8xf32>
    %24 = tpu.matmul %21, %23, %cst_41 {dimension_numbers = #tpu.dot_dimension_numbers<[1], [0], [0], [1], [0, 0, 1, 1], [], []>} : vector<256x4xf32>, vector<4x8xf32>, vector<256x8xf32> -> vector<256x8xf32>
    %25 = arith.addf %20, %24 : vector<256x8xf32>
    %c0_42 = arith.constant 0 : index
    %c0_43 = arith.constant 0 : index
    %26 = vector.load %arg9[%c0_42, %c0_43] : memref<256x8xf32, #tpu.memory_space<vmem>>, vector<256x8xf32>
    tpu.vector_store %arg9[%c0_42, %c0_43], %25 {strides = array<i32>} : memref<256x8xf32, #tpu.memory_space<vmem>>, vector<256x8xf32>,
    %c0_44 = arith.constant 0 : index
    %c8_45 = arith.constant 8 : index
    %c0_46 = arith.constant 0 : index
    %27 = vector.load %arg7[%c0_44, %c8_45, %c0_46] : memref<18x25x4xf32, #tpu.memory_space<vmem>>, vector<16x16x4xf32>
    %c0_47 = arith.constant 0 : index
    %c0_48 = arith.constant 0 : index
    %28 = vector.load %arg9[%c0_47, %c0_48] : memref<256x8xf32, #tpu.memory_space<vmem>>, vector<256x8xf32>
    %29 = vector.shape_cast %27 : vector<16x16x4xf32> to vector<256x4xf32>
    %c0_49 = arith.constant 0 : index
    %c1_50 = arith.constant 1 : index
    %c0_51 = arith.constant 0 : index
    %c0_52 = arith.constant 0 : index
    %30 = vector.load %arg2[%c0_49, %c1_50, %c0_51, %c0_52] : memref<3x3x4x8xf32, #tpu.memory_space<vmem>>, vector<1x1x4x8xf32>
    %31 = vector.shape_cast %30 : vector<1x1x4x8xf32> to vector<4x8xf32>
    %cst_53 = arith.constant dense<0.000000e+00> : vector<256x8xf32>
    %32 = tpu.matmul %29, %31, %cst_53 {dimension_numbers = #tpu.dot_dimension_numbers<[1], [0], [0], [1], [0, 0, 1, 1], [], []>} : vector<256x4xf32>, vector<4x8xf32>, vector<256x8xf32> -> vector<256x8xf32>
    %33 = arith.addf %28, %32 : vector<256x8xf32>
    %c0_54 = arith.constant 0 : index
    %c0_55 = arith.constant 0 : index
    %34 = vector.load %arg9[%c0_54, %c0_55] : memref<256x8xf32, #tpu.memory_space<vmem>>, vector<256x8xf32>
    tpu.vector_store %arg9[%c0_54, %c0_55], %33 {strides = array<i32>} : memref<256x8xf32, #tpu.memory_space<vmem>>, vector<256x8xf32>,
    %c0_56 = arith.constant 0 : index
    %c9 = arith.constant 9 : index
    %c0_57 = arith.constant 0 : index
    %35 = vector.load %arg7[%c0_56, %c9, %c0_57] : memref<18x25x4xf32, #tpu.memory_space<vmem>>, vector<16x16x4xf32>
    %c0_58 = arith.constant 0 : index
    %c0_59 = arith.constant 0 : index
    %36 = vector.load %arg9[%c0_58, %c0_59] : memref<256x8xf32, #tpu.memory_space<vmem>>, vector<256x8xf32>
    %37 = vector.shape_cast %35 : vector<16x16x4xf32> to vector<256x4xf32>
    %c0_60 = arith.constant 0 : index
    %c2 = arith.constant 2 : index
    %c0_61 = arith.constant 0 : index
    %c0_62 = arith.constant 0 : index
    %38 = vector.load %arg2[%c0_60, %c2, %c0_61, %c0_62] : memref<3x3x4x8xf32, #tpu.memory_space<vmem>>, vector<1x1x4x8xf32>
    %39 = vector.shape_cast %38 : vector<1x1x4x8xf32> to vector<4x8xf32>
    %cst_63 = arith.constant dense<0.000000e+00> : vector<256x8xf32>
    %40 = tpu.matmul %37, %39, %cst_63 {dimension_numbers = #tpu.dot_dimension_numbers<[1], [0], [0], [1], [0, 0, 1, 1], [], []>} : vector<256x4xf32>, vector<4x8xf32>, vector<256x8xf32> -> vector<256x8xf32>
    %41 = arith.addf %36, %40 : vector<256x8xf32>
    %c0_64 = arith.constant 0 : index
    %c0_65 = arith.constant 0 : index
    %42 = vector.load %arg9[%c0_64, %c0_65] : memref<256x8xf32, #tpu.memory_space<vmem>>, vector<256x8xf32>
    tpu.vector_store %arg9[%c0_64, %c0_65], %41 {strides = array<i32>} : memref<256x8xf32, #tpu.memory_space<vmem>>, vector<256x8xf32>,
    %c1_66 = arith.constant 1 : index
    %c7_67 = arith.constant 7 : index
    %c0_68 = arith.constant 0 : index
    %43 = vector.load %arg7[%c1_66, %c7_67, %c0_68] : memref<18x25x4xf32, #tpu.memory_space<vmem>>, vector<16x16x4xf32>
    %c0_69 = arith.constant 0 : index
    %c0_70 = arith.constant 0 : index
    %44 = vector.load %arg9[%c0_69, %c0_70] : memref<256x8xf32, #tpu.memory_space<vmem>>, vector<256x8xf32>
    %45 = vector.shape_cast %43 : vector<16x16x4xf32> to vector<256x4xf32>
    %c1_71 = arith.constant 1 : index
    %c0_72 = arith.constant 0 : index
    %c0_73 = arith.constant 0 : index
    %c0_74 = arith.constant 0 : index
    %46 = vector.load %arg2[%c1_71, %c0_72, %c0_73, %c0_74] : memref<3x3x4x8xf32, #tpu.memory_space<vmem>>, vector<1x1x4x8xf32>
    %47 = vector.shape_cast %46 : vector<1x1x4x8xf32> to vector<4x8xf32>
    %cst_75 = arith.constant dense<0.000000e+00> : vector<256x8xf32>
    %48 = tpu.matmul %45, %47, %cst_75 {dimension_numbers = #tpu.dot_dimension_numbers<[1], [0], [0], [1], [0, 0, 1, 1], [], []>} : vector<256x4xf32>, vector<4x8xf32>, vector<256x8xf32> -> vector<256x8xf32>
    %49 = arith.addf %44, %48 : vector<256x8xf32>
    %c0_76 = arith.constant 0 : index
    %c0_77 = arith.constant 0 : index
    %50 = vector.load %arg9[%c0_76, %c0_77] : memref<256x8xf32, #tpu.memory_space<vmem>>, vector<256x8xf32>
    tpu.vector_store %arg9[%c0_76, %c0_77], %49 {strides = array<i32>} : memref<256x8xf32, #tpu.memory_space<vmem>>, vector<256x8xf32>,
    %c1_78 = arith.constant 1 : index
    %c8_79 = arith.constant 8 : index
    %c0_80 = arith.constant 0 : index
    %51 = vector.load %arg7[%c1_78, %c8_79, %c0_80] : memref<18x25x4xf32, #tpu.memory_space<vmem>>, vector<16x16x4xf32>
    %c0_81 = arith.constant 0 : index
    %c0_82 = arith.constant 0 : index
    %52 = vector.load %arg9[%c0_81, %c0_82] : memref<256x8xf32, #tpu.memory_space<vmem>>, vector<256x8xf32>
    %53 = vector.shape_cast %51 : vector<16x16x4xf32> to vector<256x4xf32>
    %c1_83 = arith.constant 1 : index
    %c1_84 = arith.constant 1 : index
    %c0_85 = arith.constant 0 : index
    %c0_86 = arith.constant 0 : index
    %54 = vector.load %arg2[%c1_83, %c1_84, %c0_85, %c0_86] : memref<3x3x4x8xf32, #tpu.memory_space<vmem>>, vector<1x1x4x8xf32>
    %55 = vector.shape_cast %54 : vector<1x1x4x8xf32> to vector<4x8xf32>
    %cst_87 = arith.constant dense<0.000000e+00> : vector<256x8xf32>
    %56 = tpu.matmul %53, %55, %cst_87 {dimension_numbers = #tpu.dot_dimension_numbers<[1], [0], [0], [1], [0, 0, 1, 1], [], []>} : vector<256x4xf32>, vector<4x8xf32>, vector<256x8xf32> -> vector<256x8xf32>
    %57 = arith.addf %52, %56 : vector<256x8xf32>
    %c0_88 = arith.constant 0 : index
    %c0_89 = arith.constant 0 : index
    %58 = vector.load %arg9[%c0_88, %c0_89] : memref<256x8xf32, #tpu.memory_space<vmem>>, vector<256x8xf32>
    tpu.vector_store %arg9[%c0_88, %c0_89], %57 {strides = array<i32>} : memref<256x8xf32, #tpu.memory_space<vmem>>, vector<256x8xf32>,
    %c1_90 = arith.constant 1 : index
    %c9_91 = arith.constant 9 : index
    %c0_92 = arith.constant 0 : index
    %59 = vector.load %arg7[%c1_90, %c9_91, %c0_92] : memref<18x25x4xf32, #tpu.memory_space<vmem>>, vector<16x16x4xf32>
    %c0_93 = arith.constant 0 : index
    %c0_94 = arith.constant 0 : index
    %60 = vector.load %arg9[%c0_93, %c0_94] : memref<256x8xf32, #tpu.memory_space<vmem>>, vector<256x8xf32>
    %61 = vector.shape_cast %59 : vector<16x16x4xf32> to vector<256x4xf32>
    %c1_95 = arith.constant 1 : index
    %c2_96 = arith.constant 2 : index
    %c0_97 = arith.constant 0 : index
    %c0_98 = arith.constant 0 : index
    %62 = vector.load %arg2[%c1_95, %c2_96, %c0_97, %c0_98] : memref<3x3x4x8xf32, #tpu.memory_space<vmem>>, vector<1x1x4x8xf32>
    %63 = vector.shape_cast %62 : vector<1x1x4x8xf32> to vector<4x8xf32>
    %cst_99 = arith.constant dense<0.000000e+00> : vector<256x8xf32>
    %64 = tpu.matmul %61, %63, %cst_99 {dimension_numbers = #tpu.dot_dimension_numbers<[1], [0], [0], [1], [0, 0, 1, 1], [], []>} : vector<256x4xf32>, vector<4x8xf32>, vector<256x8xf32> -> vector<256x8xf32>
    %65 = arith.addf %60, %64 : vector<256x8xf32>
    %c0_100 = arith.constant 0 : index
    %c0_101 = arith.constant 0 : index
    %66 = vector.load %arg9[%c0_100, %c0_101] : memref<256x8xf32, #tpu.memory_space<vmem>>, vector<256x8xf32>
    tpu.vector_store %arg9[%c0_100, %c0_101], %65 {strides = array<i32>} : memref<256x8xf32, #tpu.memory_space<vmem>>, vector<256x8xf32>,
    %c2_102 = arith.constant 2 : index
    %c7_103 = arith.constant 7 : index
    %c0_104 = arith.constant 0 : index
    %67 = vector.load %arg7[%c2_102, %c7_103, %c0_104] : memref<18x25x4xf32, #tpu.memory_space<vmem>>, vector<16x16x4xf32>
    %c0_105 = arith.constant 0 : index
    %c0_106 = arith.constant 0 : index
    %68 = vector.load %arg9[%c0_105, %c0_106] : memref<256x8xf32, #tpu.memory_space<vmem>>, vector<256x8xf32>
    %69 = vector.shape_cast %67 : vector<16x16x4xf32> to vector<256x4xf32>
    %c2_107 = arith.constant 2 : index
    %c0_108 = arith.constant 0 : index
    %c0_109 = arith.constant 0 : index
    %c0_110 = arith.constant 0 : index
    %70 = vector.load %arg2[%c2_107, %c0_108, %c0_109, %c0_110] : memref<3x3x4x8xf32, #tpu.memory_space<vmem>>, vector<1x1x4x8xf32>
    %71 = vector.shape_cast %70 : vector<1x1x4x8xf32> to vector<4x8xf32>
    %cst_111 = arith.constant dense<0.000000e+00> : vector<256x8xf32>
    %72 = tpu.matmul %69, %71, %cst_111 {dimension_numbers = #tpu.dot_dimension_numbers<[1], [0], [0], [1], [0, 0, 1, 1], [], []>} : vector<256x4xf32>, vector<4x8xf32>, vector<256x8xf32> -> vector<256x8xf32>
    %73 = arith.addf %68, %72 : vector<256x8xf32>
    %c0_112 = arith.constant 0 : index
    %c0_113 = arith.constant 0 : index
    %74 = vector.load %arg9[%c0_112, %c0_113] : memref<256x8xf32, #tpu.memory_space<vmem>>, vector<256x8xf32>
    tpu.vector_store %arg9[%c0_112, %c0_113], %73 {strides = array<i32>} : memref<256x8xf32, #tpu.memory_space<vmem>>, vector<256x8xf32>,
    %c2_114 = arith.constant 2 : index
    %c8_115 = arith.constant 8 : index
    %c0_116 = arith.constant 0 : index
    %75 = vector.load %arg7[%c2_114, %c8_115, %c0_116] : memref<18x25x4xf32, #tpu.memory_space<vmem>>, vector<16x16x4xf32>
    %c0_117 = arith.constant 0 : index
    %c0_118 = arith.constant 0 : index
    %76 = vector.load %arg9[%c0_117, %c0_118] : memref<256x8xf32, #tpu.memory_space<vmem>>, vector<256x8xf32>
    %77 = vector.shape_cast %75 : vector<16x16x4xf32> to vector<256x4xf32>
    %c2_119 = arith.constant 2 : index
    %c1_120 = arith.constant 1 : index
    %c0_121 = arith.constant 0 : index
    %c0_122 = arith.constant 0 : index
    %78 = vector.load %arg2[%c2_119, %c1_120, %c0_121, %c0_122] : memref<3x3x4x8xf32, #tpu.memory_space<vmem>>, vector<1x1x4x8xf32>
    %79 = vector.shape_cast %78 : vector<1x1x4x8xf32> to vector<4x8xf32>
    %cst_123 = arith.constant dense<0.000000e+00> : vector<256x8xf32>
    %80 = tpu.matmul %77, %79, %cst_123 {dimension_numbers = #tpu.dot_dimension_numbers<[1], [0], [0], [1], [0, 0, 1, 1], [], []>} : vector<256x4xf32>, vector<4x8xf32>, vector<256x8xf32> -> vector<256x8xf32>
    %81 = arith.addf %76, %80 : vector<256x8xf32>
    %c0_124 = arith.constant 0 : index
    %c0_125 = arith.constant 0 : index
    %82 = vector.load %arg9[%c0_124, %c0_125] : memref<256x8xf32, #tpu.memory_space<vmem>>, vector<256x8xf32>
    tpu.vector_store %arg9[%c0_124, %c0_125], %81 {strides = array<i32>} : memref<256x8xf32, #tpu.memory_space<vmem>>, vector<256x8xf32>,
    %c2_126 = arith.constant 2 : index
    %c9_127 = arith.constant 9 : index
    %c0_128 = arith.constant 0 : index
    %83 = vector.load %arg7[%c2_126, %c9_127, %c0_128] : memref<18x25x4xf32, #tpu.memory_space<vmem>>, vector<16x16x4xf32>
    %c0_129 = arith.constant 0 : index
    %c0_130 = arith.constant 0 : index
    %84 = vector.load %arg9[%c0_129, %c0_130] : memref<256x8xf32, #tpu.memory_space<vmem>>, vector<256x8xf32>
    %85 = vector.shape_cast %83 : vector<16x16x4xf32> to vector<256x4xf32>
    %c2_131 = arith.constant 2 : index
    %c2_132 = arith.constant 2 : index
    %c0_133 = arith.constant 0 : index
    %c0_134 = arith.constant 0 : index
    %86 = vector.load %arg2[%c2_131, %c2_132, %c0_133, %c0_134] : memref<3x3x4x8xf32, #tpu.memory_space<vmem>>, vector<1x1x4x8xf32>
    %87 = vector.shape_cast %86 : vector<1x1x4x8xf32> to vector<4x8xf32>
    %cst_135 = arith.constant dense<0.000000e+00> : vector<256x8xf32>
    %88 = tpu.matmul %85, %87, %cst_135 {dimension_numbers = #tpu.dot_dimension_numbers<[1], [0], [0], [1], [0, 0, 1, 1], [], []>} : vector<256x4xf32>, vector<4x8xf32>, vector<256x8xf32> -> vector<256x8xf32>
    %89 = arith.addf %84, %88 : vector<256x8xf32>
    %c0_136 = arith.constant 0 : index
    %c0_137 = arith.constant 0 : index
    %90 = vector.load %arg9[%c0_136, %c0_137] : memref<256x8xf32, #tpu.memory_space<vmem>>, vector<256x8xf32>
    tpu.vector_store %arg9[%c0_136, %c0_137], %89 {strides = array<i32>} : memref<256x8xf32, #tpu.memory_space<vmem>>, vector<256x8xf32>,
    %c0_138 = arith.constant 0 : index
    %c0_139 = arith.constant 0 : index
    %91 = vector.load %arg9[%c0_138, %c0_139] : memref<256x8xf32, #tpu.memory_space<vmem>>, vector<256x8xf32>
    %cst_140 = arith.constant 0.000000e+00 : f32
    %92 = vector.broadcast %cst_140 : f32 to vector<256x8xf32>
    %93 = arith.maximumf %91, %92 : vector<256x8xf32>
    %94 = vector.shape_cast %93 : vector<256x8xf32> to vector<16x16x8xf32>
    %c1_141 = arith.constant 1 : index
    %c8_142 = arith.constant 8 : index
    %c0_143 = arith.constant 0 : index
    %95 = vector.load %arg8[%c1_141, %c8_142, %c0_143] : memref<18x25x8xf32, #tpu.memory_space<vmem>>, vector<16x16x8xf32>
    tpu.vector_store %arg8[%c1_141, %c8_142, %c0_143], %94 {strides = array<i32>} : memref<18x25x8xf32, #tpu.memory_space<vmem>>, vector<16x16x8xf32>,
    %c0_144 = arith.constant 0 : index
    %c0_145 = arith.constant 0 : index
    %96 = vector.load %arg5[%c0_144, %c0_145] : memref<1x8xf32, #tpu.memory_space<vmem>>, vector<1x8xf32>
    %97 = vector.shape_cast %96 : vector<1x8xf32> to vector<1x8xf32>
    %98 = vector.broadcast %97 : vector<1x8xf32> to vector<256x8xf32>
    %c0_146 = arith.constant 0 : index
    %c0_147 = arith.constant 0 : index
    %99 = vector.load %arg9[%c0_146, %c0_147] : memref<256x8xf32, #tpu.memory_space<vmem>>, vector<256x8xf32>
    tpu.vector_store %arg9[%c0_146, %c0_147], %98 {strides = array<i32>} : memref<256x8xf32, #tpu.memory_space<vmem>>, vector<256x8xf32>,
    %c0_148 = arith.constant 0 : index
    %c7_149 = arith.constant 7 : index
    %c0_150 = arith.constant 0 : index
    %100 = vector.load %arg8[%c0_148, %c7_149, %c0_150] : memref<18x25x8xf32, #tpu.memory_space<vmem>>, vector<16x16x8xf32>
    %c0_151 = arith.constant 0 : index
    %c0_152 = arith.constant 0 : index
    %101 = vector.load %arg9[%c0_151, %c0_152] : memref<256x8xf32, #tpu.memory_space<vmem>>, vector<256x8xf32>
    %102 = vector.shape_cast %100 : vector<16x16x8xf32> to vector<256x8xf32>
    %c0_153 = arith.constant 0 : index
    %c0_154 = arith.constant 0 : index
    %c0_155 = arith.constant 0 : index
    %c0_156 = arith.constant 0 : index
    %103 = vector.load %arg4[%c0_153, %c0_154, %c0_155, %c0_156] : memref<3x3x8x8xf32, #tpu.memory_space<vmem>>, vector<1x1x8x8xf32>
    %104 = vector.shape_cast %103 : vector<1x1x8x8xf32> to vector<8x8xf32>
    %cst_157 = arith.constant dense<0.000000e+00> : vector<256x8xf32>
    %105 = tpu.matmul %102, %104, %cst_157 {dimension_numbers = #tpu.dot_dimension_numbers<[1], [0], [0], [1], [0, 0, 1, 1], [], []>} : vector<256x8xf32>, vector<8x8xf32>, vector<256x8xf32> -> vector<256x8xf32>
    %106 = arith.addf %101, %105 : vector<256x8xf32>
    %c0_158 = arith.constant 0 : index
    %c0_159 = arith.constant 0 : index
    %107 = vector.load %arg9[%c0_158, %c0_159] : memref<256x8xf32, #tpu.memory_space<vmem>>, vector<256x8xf32>
    tpu.vector_store %arg9[%c0_158, %c0_159], %106 {strides = array<i32>} : memref<256x8xf32, #tpu.memory_space<vmem>>, vector<256x8xf32>,
    %c0_160 = arith.constant 0 : index
    %c8_161 = arith.constant 8 : index
    %c0_162 = arith.constant 0 : index
    %108 = vector.load %arg8[%c0_160, %c8_161, %c0_162] : memref<18x25x8xf32, #tpu.memory_space<vmem>>, vector<16x16x8xf32>
    %c0_163 = arith.constant 0 : index
    %c0_164 = arith.constant 0 : index
    %109 = vector.load %arg9[%c0_163, %c0_164] : memref<256x8xf32, #tpu.memory_space<vmem>>, vector<256x8xf32>
    %110 = vector.shape_cast %108 : vector<16x16x8xf32> to vector<256x8xf32>
    %c0_165 = arith.constant 0 : index
    %c1_166 = arith.constant 1 : index
    %c0_167 = arith.constant 0 : index
    %c0_168 = arith.constant 0 : index
    %111 = vector.load %arg4[%c0_165, %c1_166, %c0_167, %c0_168] : memref<3x3x8x8xf32, #tpu.memory_space<vmem>>, vector<1x1x8x8xf32>
    %112 = vector.shape_cast %111 : vector<1x1x8x8xf32> to vector<8x8xf32>
    %cst_169 = arith.constant dense<0.000000e+00> : vector<256x8xf32>
    %113 = tpu.matmul %110, %112, %cst_169 {dimension_numbers = #tpu.dot_dimension_numbers<[1], [0], [0], [1], [0, 0, 1, 1], [], []>} : vector<256x8xf32>, vector<8x8xf32>, vector<256x8xf32> -> vector<256x8xf32>
    %114 = arith.addf %109, %113 : vector<256x8xf32>
    %c0_170 = arith.constant 0 : index
    %c0_171 = arith.constant 0 : index
    %115 = vector.load %arg9[%c0_170, %c0_171] : memref<256x8xf32, #tpu.memory_space<vmem>>, vector<256x8xf32>
    tpu.vector_store %arg9[%c0_170, %c0_171], %114 {strides = array<i32>} : memref<256x8xf32, #tpu.memory_space<vmem>>, vector<256x8xf32>,
    %c0_172 = arith.constant 0 : index
    %c9_173 = arith.constant 9 : index
    %c0_174 = arith.constant 0 : index
    %116 = vector.load %arg8[%c0_172, %c9_173, %c0_174] : memref<18x25x8xf32, #tpu.memory_space<vmem>>, vector<16x16x8xf32>
    %c0_175 = arith.constant 0 : index
    %c0_176 = arith.constant 0 : index
    %117 = vector.load %arg9[%c0_175, %c0_176] : memref<256x8xf32, #tpu.memory_space<vmem>>, vector<256x8xf32>
    %118 = vector.shape_cast %116 : vector<16x16x8xf32> to vector<256x8xf32>
    %c0_177 = arith.constant 0 : index
    %c2_178 = arith.constant 2 : index
    %c0_179 = arith.constant 0 : index
    %c0_180 = arith.constant 0 : index
    %119 = vector.load %arg4[%c0_177, %c2_178, %c0_179, %c0_180] : memref<3x3x8x8xf32, #tpu.memory_space<vmem>>, vector<1x1x8x8xf32>
    %120 = vector.shape_cast %119 : vector<1x1x8x8xf32> to vector<8x8xf32>
    %cst_181 = arith.constant dense<0.000000e+00> : vector<256x8xf32>
    %121 = tpu.matmul %118, %120, %cst_181 {dimension_numbers = #tpu.dot_dimension_numbers<[1], [0], [0], [1], [0, 0, 1, 1], [], []>} : vector<256x8xf32>, vector<8x8xf32>, vector<256x8xf32> -> vector<256x8xf32>
    %122 = arith.addf %117, %121 : vector<256x8xf32>
    %c0_182 = arith.constant 0 : index
    %c0_183 = arith.constant 0 : index
    %123 = vector.load %arg9[%c0_182, %c0_183] : memref<256x8xf32, #tpu.memory_space<vmem>>, vector<256x8xf32>
    tpu.vector_store %arg9[%c0_182, %c0_183], %122 {strides = array<i32>} : memref<256x8xf32, #tpu.memory_space<vmem>>, vector<256x8xf32>,
    %c1_184 = arith.constant 1 : index
    %c7_185 = arith.constant 7 : index
    %c0_186 = arith.constant 0 : index
    %124 = vector.load %arg8[%c1_184, %c7_185, %c0_186] : memref<18x25x8xf32, #tpu.memory_space<vmem>>, vector<16x16x8xf32>
    %c0_187 = arith.constant 0 : index
    %c0_188 = arith.constant 0 : index
    %125 = vector.load %arg9[%c0_187, %c0_188] : memref<256x8xf32, #tpu.memory_space<vmem>>, vector<256x8xf32>
    %126 = vector.shape_cast %124 : vector<16x16x8xf32> to vector<256x8xf32>
    %c1_189 = arith.constant 1 : index
    %c0_190 = arith.constant 0 : index
    %c0_191 = arith.constant 0 : index
    %c0_192 = arith.constant 0 : index
    %127 = vector.load %arg4[%c1_189, %c0_190, %c0_191, %c0_192] : memref<3x3x8x8xf32, #tpu.memory_space<vmem>>, vector<1x1x8x8xf32>
    %128 = vector.shape_cast %127 : vector<1x1x8x8xf32> to vector<8x8xf32>
    %cst_193 = arith.constant dense<0.000000e+00> : vector<256x8xf32>
    %129 = tpu.matmul %126, %128, %cst_193 {dimension_numbers = #tpu.dot_dimension_numbers<[1], [0], [0], [1], [0, 0, 1, 1], [], []>} : vector<256x8xf32>, vector<8x8xf32>, vector<256x8xf32> -> vector<256x8xf32>
    %130 = arith.addf %125, %129 : vector<256x8xf32>
    %c0_194 = arith.constant 0 : index
    %c0_195 = arith.constant 0 : index
    %131 = vector.load %arg9[%c0_194, %c0_195] : memref<256x8xf32, #tpu.memory_space<vmem>>, vector<256x8xf32>
    tpu.vector_store %arg9[%c0_194, %c0_195], %130 {strides = array<i32>} : memref<256x8xf32, #tpu.memory_space<vmem>>, vector<256x8xf32>,
    %c1_196 = arith.constant 1 : index
    %c8_197 = arith.constant 8 : index
    %c0_198 = arith.constant 0 : index
    %132 = vector.load %arg8[%c1_196, %c8_197, %c0_198] : memref<18x25x8xf32, #tpu.memory_space<vmem>>, vector<16x16x8xf32>
    %c0_199 = arith.constant 0 : index
    %c0_200 = arith.constant 0 : index
    %133 = vector.load %arg9[%c0_199, %c0_200] : memref<256x8xf32, #tpu.memory_space<vmem>>, vector<256x8xf32>
    %134 = vector.shape_cast %132 : vector<16x16x8xf32> to vector<256x8xf32>
    %c1_201 = arith.constant 1 : index
    %c1_202 = arith.constant 1 : index
    %c0_203 = arith.constant 0 : index
    %c0_204 = arith.constant 0 : index
    %135 = vector.load %arg4[%c1_201, %c1_202, %c0_203, %c0_204] : memref<3x3x8x8xf32, #tpu.memory_space<vmem>>, vector<1x1x8x8xf32>
    %136 = vector.shape_cast %135 : vector<1x1x8x8xf32> to vector<8x8xf32>
    %cst_205 = arith.constant dense<0.000000e+00> : vector<256x8xf32>
    %137 = tpu.matmul %134, %136, %cst_205 {dimension_numbers = #tpu.dot_dimension_numbers<[1], [0], [0], [1], [0, 0, 1, 1], [], []>} : vector<256x8xf32>, vector<8x8xf32>, vector<256x8xf32> -> vector<256x8xf32>
    %138 = arith.addf %133, %137 : vector<256x8xf32>
    %c0_206 = arith.constant 0 : index
    %c0_207 = arith.constant 0 : index
    %139 = vector.load %arg9[%c0_206, %c0_207] : memref<256x8xf32, #tpu.memory_space<vmem>>, vector<256x8xf32>
    tpu.vector_store %arg9[%c0_206, %c0_207], %138 {strides = array<i32>} : memref<256x8xf32, #tpu.memory_space<vmem>>, vector<256x8xf32>,
    %c1_208 = arith.constant 1 : index
    %c9_209 = arith.constant 9 : index
    %c0_210 = arith.constant 0 : index
    %140 = vector.load %arg8[%c1_208, %c9_209, %c0_210] : memref<18x25x8xf32, #tpu.memory_space<vmem>>, vector<16x16x8xf32>
    %c0_211 = arith.constant 0 : index
    %c0_212 = arith.constant 0 : index
    %141 = vector.load %arg9[%c0_211, %c0_212] : memref<256x8xf32, #tpu.memory_space<vmem>>, vector<256x8xf32>
    %142 = vector.shape_cast %140 : vector<16x16x8xf32> to vector<256x8xf32>
    %c1_213 = arith.constant 1 : index
    %c2_214 = arith.constant 2 : index
    %c0_215 = arith.constant 0 : index
    %c0_216 = arith.constant 0 : index
    %143 = vector.load %arg4[%c1_213, %c2_214, %c0_215, %c0_216] : memref<3x3x8x8xf32, #tpu.memory_space<vmem>>, vector<1x1x8x8xf32>
    %144 = vector.shape_cast %143 : vector<1x1x8x8xf32> to vector<8x8xf32>
    %cst_217 = arith.constant dense<0.000000e+00> : vector<256x8xf32>
    %145 = tpu.matmul %142, %144, %cst_217 {dimension_numbers = #tpu.dot_dimension_numbers<[1], [0], [0], [1], [0, 0, 1, 1], [], []>} : vector<256x8xf32>, vector<8x8xf32>, vector<256x8xf32> -> vector<256x8xf32>
    %146 = arith.addf %141, %145 : vector<256x8xf32>
    %c0_218 = arith.constant 0 : index
    %c0_219 = arith.constant 0 : index
    %147 = vector.load %arg9[%c0_218, %c0_219] : memref<256x8xf32, #tpu.memory_space<vmem>>, vector<256x8xf32>
    tpu.vector_store %arg9[%c0_218, %c0_219], %146 {strides = array<i32>} : memref<256x8xf32, #tpu.memory_space<vmem>>, vector<256x8xf32>,
    %c2_220 = arith.constant 2 : index
    %c7_221 = arith.constant 7 : index
    %c0_222 = arith.constant 0 : index
    %148 = vector.load %arg8[%c2_220, %c7_221, %c0_222] : memref<18x25x8xf32, #tpu.memory_space<vmem>>, vector<16x16x8xf32>
    %c0_223 = arith.constant 0 : index
    %c0_224 = arith.constant 0 : index
    %149 = vector.load %arg9[%c0_223, %c0_224] : memref<256x8xf32, #tpu.memory_space<vmem>>, vector<256x8xf32>
    %150 = vector.shape_cast %148 : vector<16x16x8xf32> to vector<256x8xf32>
    %c2_225 = arith.constant 2 : index
    %c0_226 = arith.constant 0 : index
    %c0_227 = arith.constant 0 : index
    %c0_228 = arith.constant 0 : index
    %151 = vector.load %arg4[%c2_225, %c0_226, %c0_227, %c0_228] : memref<3x3x8x8xf32, #tpu.memory_space<vmem>>, vector<1x1x8x8xf32>
    %152 = vector.shape_cast %151 : vector<1x1x8x8xf32> to vector<8x8xf32>
    %cst_229 = arith.constant dense<0.000000e+00> : vector<256x8xf32>
    %153 = tpu.matmul %150, %152, %cst_229 {dimension_numbers = #tpu.dot_dimension_numbers<[1], [0], [0], [1], [0, 0, 1, 1], [], []>} : vector<256x8xf32>, vector<8x8xf32>, vector<256x8xf32> -> vector<256x8xf32>
    %154 = arith.addf %149, %153 : vector<256x8xf32>
    %c0_230 = arith.constant 0 : index
    %c0_231 = arith.constant 0 : index
    %155 = vector.load %arg9[%c0_230, %c0_231] : memref<256x8xf32, #tpu.memory_space<vmem>>, vector<256x8xf32>
    tpu.vector_store %arg9[%c0_230, %c0_231], %154 {strides = array<i32>} : memref<256x8xf32, #tpu.memory_space<vmem>>, vector<256x8xf32>,
    %c2_232 = arith.constant 2 : index
    %c8_233 = arith.constant 8 : index
    %c0_234 = arith.constant 0 : index
    %156 = vector.load %arg8[%c2_232, %c8_233, %c0_234] : memref<18x25x8xf32, #tpu.memory_space<vmem>>, vector<16x16x8xf32>
    %c0_235 = arith.constant 0 : index
    %c0_236 = arith.constant 0 : index
    %157 = vector.load %arg9[%c0_235, %c0_236] : memref<256x8xf32, #tpu.memory_space<vmem>>, vector<256x8xf32>
    %158 = vector.shape_cast %156 : vector<16x16x8xf32> to vector<256x8xf32>
    %c2_237 = arith.constant 2 : index
    %c1_238 = arith.constant 1 : index
    %c0_239 = arith.constant 0 : index
    %c0_240 = arith.constant 0 : index
    %159 = vector.load %arg4[%c2_237, %c1_238, %c0_239, %c0_240] : memref<3x3x8x8xf32, #tpu.memory_space<vmem>>, vector<1x1x8x8xf32>
    %160 = vector.shape_cast %159 : vector<1x1x8x8xf32> to vector<8x8xf32>
    %cst_241 = arith.constant dense<0.000000e+00> : vector<256x8xf32>
    %161 = tpu.matmul %158, %160, %cst_241 {dimension_numbers = #tpu.dot_dimension_numbers<[1], [0], [0], [1], [0, 0, 1, 1], [], []>} : vector<256x8xf32>, vector<8x8xf32>, vector<256x8xf32> -> vector<256x8xf32>
    %162 = arith.addf %157, %161 : vector<256x8xf32>
    %c0_242 = arith.constant 0 : index
    %c0_243 = arith.constant 0 : index
    %163 = vector.load %arg9[%c0_242, %c0_243] : memref<256x8xf32, #tpu.memory_space<vmem>>, vector<256x8xf32>
    tpu.vector_store %arg9[%c0_242, %c0_243], %162 {strides = array<i32>} : memref<256x8xf32, #tpu.memory_space<vmem>>, vector<256x8xf32>,
    %c2_244 = arith.constant 2 : index
    %c9_245 = arith.constant 9 : index
    %c0_246 = arith.constant 0 : index
    %164 = vector.load %arg8[%c2_244, %c9_245, %c0_246] : memref<18x25x8xf32, #tpu.memory_space<vmem>>, vector<16x16x8xf32>
    %c0_247 = arith.constant 0 : index
    %c0_248 = arith.constant 0 : index
    %165 = vector.load %arg9[%c0_247, %c0_248] : memref<256x8xf32, #tpu.memory_space<vmem>>, vector<256x8xf32>
    %166 = vector.shape_cast %164 : vector<16x16x8xf32> to vector<256x8xf32>
    %c2_249 = arith.constant 2 : index
    %c2_250 = arith.constant 2 : index
    %c0_251 = arith.constant 0 : index
    %c0_252 = arith.constant 0 : index
    %167 = vector.load %arg4[%c2_249, %c2_250, %c0_251, %c0_252] : memref<3x3x8x8xf32, #tpu.memory_space<vmem>>, vector<1x1x8x8xf32>
    %168 = vector.shape_cast %167 : vector<1x1x8x8xf32> to vector<8x8xf32>
    %cst_253 = arith.constant dense<0.000000e+00> : vector<256x8xf32>
    %169 = tpu.matmul %166, %168, %cst_253 {dimension_numbers = #tpu.dot_dimension_numbers<[1], [0], [0], [1], [0, 0, 1, 1], [], []>} : vector<256x8xf32>, vector<8x8xf32>, vector<256x8xf32> -> vector<256x8xf32>
    %170 = arith.addf %165, %169 : vector<256x8xf32>
    %c0_254 = arith.constant 0 : index
    %c0_255 = arith.constant 0 : index
    %171 = vector.load %arg9[%c0_254, %c0_255] : memref<256x8xf32, #tpu.memory_space<vmem>>, vector<256x8xf32>
    tpu.vector_store %arg9[%c0_254, %c0_255], %170 {strides = array<i32>} : memref<256x8xf32, #tpu.memory_space<vmem>>, vector<256x8xf32>,
    %c0_256 = arith.constant 0 : index
    %c0_257 = arith.constant 0 : index
    %172 = vector.load %arg9[%c0_256, %c0_257] : memref<256x8xf32, #tpu.memory_space<vmem>>, vector<256x8xf32>
    %cst_258 = arith.constant 0.000000e+00 : f32
    %173 = vector.broadcast %cst_258 : f32 to vector<256x8xf32>
    %174 = arith.maximumf %172, %173 : vector<256x8xf32>
    %175 = vector.shape_cast %174 : vector<256x8xf32> to vector<16x16x8xf32>
    %c0_259 = arith.constant 0 : index
    %c0_260 = arith.constant 0 : index
    %c0_261 = arith.constant 0 : index
    %c0_262 = arith.constant 0 : index
    %176 = vector.load %arg6[%c0_259, %c0_260, %c0_261, %c0_262] : memref<1x16x16x8xf32, #tpu.memory_space<vmem>>, vector<1x16x16x8xf32>
    %177 = vector.shape_cast %176 : vector<1x16x16x8xf32> to vector<16x16x8xf32>
    %178 = vector.shape_cast %175 : vector<16x16x8xf32> to vector<1x16x16x8xf32>
    tpu.vector_store %arg6[%c0_259, %c0_260, %c0_261, %c0_262], %178 {strides = array<i32>} : memref<1x16x16x8xf32, #tpu.memory_space<vmem>>, vector<1x16x16x8xf32>,
    return
  }
  func.func @transform_0(%arg0: i32) -> (i32, i32, i32, i32) {
    %c0_i32 = arith.constant 0 : i32
    %c0_i32_0 = arith.constant 0 : i32
    %c0_i32_1 = arith.constant 0 : i32
    %c0_i32_2 = arith.constant 0 : i32
    return %arg0, %c0_i32, %c0_i32_0, %c0_i32_1 : i32, i32, i32, i32
  }
  func.func @transform_1(%arg0: i32) -> (i32, i32, i32, i32) {
    %c0_i32 = arith.constant 0 : i32
    %c0_i32_0 = arith.constant 0 : i32
    %c0_i32_1 = arith.constant 0 : i32
    %c0_i32_2 = arith.constant 0 : i32
    %c0_i32_3 = arith.constant 0 : i32
    return %c0_i32, %c0_i32_0, %c0_i32_1, %c0_i32_2 : i32, i32, i32, i32
  }
  func.func @transform_2(%arg0: i32) -> (i32, i32) {
    %c0_i32 = arith.constant 0 : i32
    %c0_i32_0 = arith.constant 0 : i32
    %c0_i32_1 = arith.constant 0 : i32
    return %c0_i32, %c0_i32_0 : i32, i32
  }
  func.func @transform_3(%arg0: i32) -> (i32, i32, i32, i32) {
    %c0_i32 = arith.constant 0 : i32
    %c0_i32_0 = arith.constant 0 : i32
    %c0_i32_1 = arith.constant 0 : i32
    %c0_i32_2 = arith.constant 0 : i32
    %c0_i32_3 = arith.constant 0 : i32
    return %c0_i32, %c0_i32_0, %c0_i32_1, %c0_i32_2 : i32, i32, i32, i32
  }
  func.func @transform_4(%arg0: i32) -> (i32, i32) {
    %c0_i32 = arith.constant 0 : i32
    %c0_i32_0 = arith.constant 0 : i32
    %c0_i32_1 = arith.constant 0 : i32
    return %c0_i32, %c0_i32_0 : i32, i32
  }
  func.func @transform_5(%arg0: i32) -> (i32, i32, i32, i32) {
    %c0_i32 = arith.constant 0 : i32
    %c0_i32_0 = arith.constant 0 : i32
    %c0_i32_1 = arith.constant 0 : i32
    %c0_i32_2 = arith.constant 0 : i32
    return %arg0, %c0_i32, %c0_i32_0, %c0_i32_1 : i32, i32, i32, i32
  }
}

</mosaic_0001>

<llo_original>
// kernel: tpu_custom_call.1
$region0: #{tpu_custom_call.1}
  #allocation0 [shape = 'u32[]', space=smem, size = 0x4, offset = 0x4, fixed_abs, tag = 'smem constant byte address 0x4 - core index']
  #allocation1 [shape = 'u32[144,128]{1,0:T(1,128)}', space=vmem, size = 0x12000, scoped, tag = 'internal scratch']
  #allocation2 [shape = 'f32[18,25,4]{2,1,0:T(8,128)}', space=vmem, size = 0x48000, scoped, tag = 'scratch operand']
  #allocation3 [shape = 'f32[18,25,8]{2,1,0:T(8,128)}', space=vmem, size = 0x48000, scoped, tag = 'scratch operand']
  #allocation4 [shape = 'f32[256,8]{1,0:T(8,128)}', space=vmem, size = 0x20000, scoped, tag = 'scratch operand']
  %s0 = inlined_call_operand.vmem [shape: f32[2,16,16,4], index: 0, kind: input, shape index: {}]
  %s1 = inlined_call_operand.vmem [shape: f32[3,3,4,8], index: 1, kind: input, shape index: {}]
  %s2 = inlined_call_operand.vmem [shape: f32[1,8], index: 2, kind: input, shape index: {}]
  %s3 = inlined_call_operand.vmem [shape: f32[3,3,8,8], index: 3, kind: input, shape index: {}]
  %s4 = inlined_call_operand.vmem [shape: f32[1,8], index: 4, kind: input, shape index: {}]
  %s5 = inlined_call_operand.vmem [shape: f32[2,16,16,8], index: 5, kind: output, shape index: {}]
  %s6 = sld [smem:[#allocation0]]
  $region53: #{tpu_custom_call.1} parent=0
    _
  %s8 = ssub.s32 1, %s6
  %s9 = scalar_select 0, %s8, %s6
  loop: start=0, step=1, limit=4
  $region2: #{tpu_custom_call.1} parent=0 // loop_pre_header
    _
  $region3: #{tpu_custom_call.1} parent=0 // loop_header
    %s11 = sphi 0, %s15
    %p12 = scmp.ge.s32.totalorder %s11, 4
    %s21 = sphi 0, %s23
    %s24 = sphi 0, %s21
    %s25 = sphi 0, %s24
    %s41 = sphi 0, %s25
    %s45 = sphi 0, %s45
    %s47 = sphi 0, %s45
    %s48 = sphi 0, %s47
    %s62 = sphi 0, %s48
    %s66 = sphi 0, %s66
    %s68 = sphi 0, %s66
    %s69 = sphi 0, %s68
    %s83 = sphi 0, %s69
    %s87 = sphi 0, %s87
    %s89 = sphi 0, %s87
    %s90 = sphi 0, %s89
    %s104 = sphi 0, %s90
    %s108 = sphi 0, %s108
    %s110 = sphi 0, %s108
    %s111 = sphi 0, %s110
    %s125 = sphi 0, %s111
    %s131 = sphi 0, %s133
    %s134 = sphi 0, %s131
    %s135 = sphi 0, %s134
    %s151 = sphi 0, %s135
  $region4: #{tpu_custom_call.1} parent=0 // loop_header_branch
    %14 = sbr.rel (%p12) target = $region8
  $region5: #{tpu_custom_call.1} parent=0 // loop_body
    %s16 = ssub.s32 %s11, 1
    %s17 = ssub.s32 %s11, 2
    %s18 = sadd.s32 %s11, 1
    %s19 = ssub.s32 %s11, %s18
    %p20 = scmp.eq.s32.totalorder %s19, 0
    %s22 = sadd.s32 %s21, 1
    %s23 = scalar_select %p20, %s21, %s22
    %p26 = pneg %p20
    %p27 = scmp.eq.s32.totalorder %s11, 1
    %p28 = por %p26, %p27
    %p29 = scmp.ne.s32.totalorder %s21, %s24
    %p30 = scmp.eq.s32.totalorder %s11, 0
    %p31 = por %p29, %p30
    %p32 = scmp.ne.s32.totalorder %s21, %s24
    %p33 = scmp.eq.s32.totalorder %s16, 1
    %p34 = por %p32, %p33
    %p35 = scmp.ne.s32.totalorder %s24, %s25
    %p36 = scmp.eq.s32.totalorder %s16, 0
    %p37 = por %p35, %p36
    %p38 = scmp.ne.s32.totalorder %s24, %s25
    %p39 = scmp.eq.s32.totalorder %s17, 1
    %p40 = por %p38, %p39
    %p42 = scmp.ne.s32.totalorder %s25, %s41
    %p43 = scmp.eq.s32.totalorder %s17, 0
    %p44 = por %p42, %p43
    %s46 = sadd.s32 %s45, 1
    %p49 = scmp.eq.s32.totalorder %s11, 1
    %p50 = scmp.ne.s32.totalorder %s45, %s47
    %p51 = scmp.eq.s32.totalorder %s11, 0
    %p52 = por %p50, %p51
    %p53 = scmp.ne.s32.totalorder %s45, %s47
    %p54 = scmp.eq.s32.totalorder %s16, 1
    %p55 = por %p53, %p54
    %p56 = scmp.ne.s32.totalorder %s47, %s48
    %p57 = scmp.eq.s32.totalorder %s16, 0
    %p58 = por %p56, %p57
    %p59 = scmp.ne.s32.totalorder %s47, %s48
    %p60 = scmp.eq.s32.totalorder %s17, 1
    %p61 = por %p59, %p60
    %p63 = scmp.ne.s32.totalorder %s48, %s62
    %p64 = scmp.eq.s32.totalorder %s17, 0
    %p65 = por %p63, %p64
    %s67 = sadd.s32 %s66, 1
    %p70 = scmp.eq.s32.totalorder %s11, 1
    %p71 = scmp.ne.s32.totalorder %s66, %s68
    %p72 = scmp.eq.s32.totalorder %s11, 0
    %p73 = por %p71, %p72
    %p74 = scmp.ne.s32.totalorder %s66, %s68
    %p75 = scmp.eq.s32.totalorder %s16, 1
    %p76 = por %p74, %p75
    %p77 = scmp.ne.s32.totalorder %s68, %s69
    %p78 = scmp.eq.s32.totalorder %s16, 0
    %p79 = por %p77, %p78
    %p80 = scmp.ne.s32.totalorder %s68, %s69
    %p81 = scmp.eq.s32.totalorder %s17, 1
    %p82 = por %p80, %p81
    %p84 = scmp.ne.s32.totalorder %s69, %s83
    %p85 = scmp.eq.s32.totalorder %s17, 0
    %p86 = por %p84, %p85
    %s88 = sadd.s32 %s87, 1
    %p91 = scmp.eq.s32.totalorder %s11, 1
    %p92 = scmp.ne.s32.totalorder %s87, %s89
    %p93 = scmp.eq.s32.totalorder %s11, 0
    %p94 = por %p92, %p93
    %p95 = scmp.ne.s32.totalorder %s87, %s89
    %p96 = scmp.eq.s32.totalorder %s16, 1
    %p97 = por %p95, %p96
    %p98 = scmp.ne.s32.totalorder %s89, %s90
    %p99 = scmp.eq.s32.totalorder %s16, 0
    %p100 = por %p98, %p99
    %p101 = scmp.ne.s32.totalorder %s89, %s90
    %p102 = scmp.eq.s32.totalorder %s17, 1
    %p103 = por %p101, %p102
    %p105 = scmp.ne.s32.totalorder %s90, %s104
    %p106 = scmp.eq.s32.totalorder %s17, 0
    %p107 = por %p105, %p106
    %s109 = sadd.s32 %s108, 1
    %p112 = scmp.eq.s32.totalorder %s11, 1
    %p113 = scmp.ne.s32.totalorder %s108, %s110
    %p114 = scmp.eq.s32.totalorder %s11, 0
    %p115 = por %p113, %p114
    %p116 = scmp.ne.s32.totalorder %s108, %s110
    %p117 = scmp.eq.s32.totalorder %s16, 1
    %p118 = por %p116, %p117
    %p119 = scmp.ne.s32.totalorder %s110, %s111
    %p120 = scmp.eq.s32.totalorder %s16, 0
    %p121 = por %p119, %p120
    %p122 = scmp.ne.s32.totalorder %s110, %s111
    %p123 = scmp.eq.s32.totalorder %s17, 1
    %p124 = por %p122, %p123
    %p126 = scmp.ne.s32.totalorder %s111, %s125
    %p127 = scmp.eq.s32.totalorder %s17, 0
    %p128 = por %p126, %p127
    %s129 = ssub.s32 %s11, %s18
    %p130 = scmp.eq.s32.totalorder %s129, 0
    %s132 = sadd.s32 %s131, 1
    %s133 = scalar_select %p130, %s131, %s132
    %p136 = pneg %p130
    %p137 = scmp.eq.s32.totalorder %s11, 1
    %p138 = por %p136, %p137
    %p139 = scmp.ne.s32.totalorder %s131, %s134
    %p140 = scmp.eq.s32.totalorder %s11, 0
    %p141 = por %p139, %p140
    %p142 = scmp.ne.s32.totalorder %s131, %s134
    %p143 = scmp.eq.s32.totalorder %s16, 1
    %p144 = por %p142, %p143
    %p145 = scmp.ne.s32.totalorder %s134, %s135
    %p146 = scmp.eq.s32.totalorder %s16, 0
    %p147 = por %p145, %p146
    %p148 = scmp.ne.s32.totalorder %s134, %s135
    %p149 = scmp.eq.s32.totalorder %s17, 1
    %p150 = por %p148, %p149
    %p152 = scmp.ne.s32.totalorder %s135, %s151
    %p153 = scmp.eq.s32.totalorder %s17, 0
    %p154 = por %p152, %p153
    %p155 = scmp.le.s32.totalorder 1, %s11
    %p156 = scmp.lt.s32.totalorder %s11, 3
    %p157 = pnand %p155, %p156
    %p158 = pneg %p157
    // Predicated region
    $region9: #{tpu_custom_call.1} parent=5 // pred_check
      _
    $region10: #{tpu_custom_call.1} parent=5 // pred_check_branch
      %160 = sbr.rel (%p157) target = $region12
    $region11: #{tpu_custom_call.1} parent=5 // pred_region
      %s161 = ssub.s32 %s11, 1
      // Predicated region
      $region13: #{tpu_custom_call.1} parent=11 // pred_check
        %p162 = pneg %p58
      $region14: #{tpu_custom_call.1} parent=11 // pred_check_branch
        %164 = sbr.rel (%p162) target = $region16
      $region15: #{tpu_custom_call.1} parent=11 // pred_region
        _
      $region16: #{tpu_custom_call.1} parent=11 // pred_fallthru
        _
      // Predicated region
      $region17: #{tpu_custom_call.1} parent=11 // pred_check
        %p165 = pneg %p79
      $region18: #{tpu_custom_call.1} parent=11 // pred_check_branch
        %167 = sbr.rel (%p165) target = $region20
      $region19: #{tpu_custom_call.1} parent=11 // pred_region
        _
      $region20: #{tpu_custom_call.1} parent=11 // pred_fallthru
        _
      // Predicated region
      $region21: #{tpu_custom_call.1} parent=11 // pred_check
        %p168 = pneg %p100
      $region22: #{tpu_custom_call.1} parent=11 // pred_check_branch
        %170 = sbr.rel (%p168) target = $region24
      $region23: #{tpu_custom_call.1} parent=11 // pred_region
        _
      $region24: #{tpu_custom_call.1} parent=11 // pred_fallthru
        _
      // Predicated region
      $region25: #{tpu_custom_call.1} parent=11 // pred_check
        %p171 = pneg %p121
      $region26: #{tpu_custom_call.1} parent=11 // pred_check_branch
        %173 = sbr.rel (%p171) target = $region28
      $region27: #{tpu_custom_call.1} parent=11 // pred_region
        _
      $region28: #{tpu_custom_call.1} parent=11 // pred_fallthru
        _
    $region12: #{tpu_custom_call.1} parent=5 // pred_fallthru
      _
    %p174 = scmp.lt.s32.totalorder %s11, 2
    // Predicated region
    $region29: #{tpu_custom_call.1} parent=5 // pred_check
      %p175 = pneg %p174
    $region30: #{tpu_custom_call.1} parent=5 // pred_check_branch
      %177 = sbr.rel (%p175) target = $region32
    $region31: #{tpu_custom_call.1} parent=5 // pred_region
      // Predicated region
      $region33: #{tpu_custom_call.1} parent=31 // pred_check
        %p178 = pneg %p31
      $region34: #{tpu_custom_call.1} parent=31 // pred_check_branch
        %180 = sbr.rel (%p178) target = $region36
      $region35: #{tpu_custom_call.1} parent=31 // pred_region
        %p181 = scmp.lt.s32.totalorder %s11, 1
        %s182 = scalar_select %p181, %s11, 1
        %s183 = smul.addr %s182, 32
        %s184 = smul.addr %s183, 8
        %s185 = scalar_lea.vmem %s0, %s184
      $region36: #{tpu_custom_call.1} parent=31 // pred_fallthru
        _
    $region32: #{tpu_custom_call.1} parent=5 // pred_fallthru
      _
    %p186 = scmp.le.s32.totalorder 1, %s11
    %p187 = scmp.lt.s32.totalorder %s11, 3
    %p188 = pnand %p186, %p187
    %p189 = pneg %p188
    // Predicated region
    $region37: #{tpu_custom_call.1} parent=5 // pred_check
      _
    $region38: #{tpu_custom_call.1} parent=5 // pred_check_branch
      %191 = sbr.rel (%p188) target = $region40
    $region39: #{tpu_custom_call.1} parent=5 // pred_region
      %s192 = ssub.s32 %s11, 1
      %p193 = scmp.lt.s32.totalorder %s16, 1
      %s194 = scalar_select %p193, %s16, 1
      %s195 = smul.addr %s194, 32
      %s196 = smul.addr %s195, 8
      %s197 = scalar_lea.vmem %s0, %s196
      %p198 = pneg %p37
      %p199 = pneg %p34
      %p200 = pneg %p58
      %p201 = pneg %p55
      %p202 = pneg %p79
      %p203 = pneg %p76
      %p204 = pneg %p100
      %p205 = pneg %p97
      %p206 = pneg %p121
      %p207 = pneg %p118
      %p208 = pneg %p147
      %p209 = pneg %p144
      %p210 = scmp.lt.s32.totalorder %s16, 1
      %s211 = scalar_select %p210, %s16, 1
      %s212 = smul.addr %s211, 32
      %s213 = smul.addr %s212, 8
      %s214 = scalar_lea.vmem %s5, %s213
      %p215 = scmp.lt.s32.totalorder %s16, 1
      %s216 = scalar_select %p215, %s16, 1
      %s217 = smul.addr %s216, 32
      %s218 = smul.addr %s217, 8
      %s219 = scalar_lea.vmem %s0, %s218
      %p220 = scmp.lt.s32.totalorder %s16, 1
      %s221 = scalar_select %p220, %s16, 1
      %s222 = smul.addr %s221, 32
      %s223 = smul.addr %s222, 8
      %s224 = scalar_lea.vmem %s5, %s223
      %vm225 = vcmask 31744
      %226 = vst.msk [vmem:[#allocation2] sm:$0xff] %vm225, 0.0
      %227 = vst.msk [vmem:[#allocation2 + $0x8] sm:$0xff] %vm225, 0.0
      %228 = vst.msk [vmem:[#allocation2 + $0x10] sm:$0xff] %vm225, 0.0
      %vm229 = vcmask 24576
      %230 = vst.msk [vmem:[#allocation2 + $0x18] sm:$0x1] %vm229, 0.0
      %s231 = scalar_lea.vmem [#allocation2], 544
      %232 = vst.msk [vmem:[%s231] sm:$0xff] %vm225, 0.0
      %233 = vst.msk [vmem:[%s231 + $0x8] sm:$0xff] %vm225, 0.0
      %234 = vst.msk [vmem:[%s231 + $0x10] sm:$0xff] %vm225, 0.0
      %235 = vst.msk [vmem:[%s231 + $0x18] sm:$0x1] %vm229, 0.0
      %s236 = scalar_lea.vmem [#allocation2], 32
      %237 = vst.msk [vmem:[%s236 + $0x7] sm:$0x1] %vm229, 0.0
      %238 = vst.msk [vmem:[%s236 + $0x27] sm:$0x1] %vm229, 0.0
      %239 = vst.msk [vmem:[%s236 + $0x47] sm:$0x1] %vm229, 0.0
      %240 = vst.msk [vmem:[%s236 + $0x67] sm:$0x1] %vm229, 0.0
      %241 = vst.msk [vmem:[%s236 + $0x87] sm:$0x1] %vm229, 0.0
      %242 = vst.msk [vmem:[%s236 + $0xa7] sm:$0x1] %vm229, 0.0
      %243 = vst.msk [vmem:[%s236 + $0xc7] sm:$0x1] %vm229, 0.0
      %244 = vst.msk [vmem:[%s236 + $0xe7] sm:$0x1] %vm229, 0.0
      %245 = vst.msk [vmem:[%s236 + $0x107] sm:$0x1] %vm229, 0.0
      %246 = vst.msk [vmem:[%s236 + $0x127] sm:$0x1] %vm229, 0.0
      %247 = vst.msk [vmem:[%s236 + $0x147] sm:$0x1] %vm229, 0.0
      %248 = vst.msk [vmem:[%s236 + $0x167] sm:$0x1] %vm229, 0.0
      %249 = vst.msk [vmem:[%s236 + $0x187] sm:$0x1] %vm229, 0.0
      %250 = vst.msk [vmem:[%s236 + $0x1a7] sm:$0x1] %vm229, 0.0
      %251 = vst.msk [vmem:[%s236 + $0x1c7] sm:$0x1] %vm229, 0.0
      %252 = vst.msk [vmem:[%s236 + $0x1e7] sm:$0x1] %vm229, 0.0
      %253 = vst.msk [vmem:[%s236 + $0x18] sm:$0x1] %vm229, 0.0
      %254 = vst.msk [vmem:[%s236 + $0x38] sm:$0x1] %vm229, 0.0
      %255 = vst.msk [vmem:[%s236 + $0x58] sm:$0x1] %vm229, 0.0
      %256 = vst.msk [vmem:[%s236 + $0x78] sm:$0x1] %vm229, 0.0
      %257 = vst.msk [vmem:[%s236 + $0x98] sm:$0x1] %vm229, 0.0
      %258 = vst.msk [vmem:[%s236 + $0xb8] sm:$0x1] %vm229, 0.0
      %259 = vst.msk [vmem:[%s236 + $0xd8] sm:$0x1] %vm229, 0.0
      %260 = vst.msk [vmem:[%s236 + $0xf8] sm:$0x1] %vm229, 0.0
      %261 = vst.msk [vmem:[%s236 + $0x118] sm:$0x1] %vm229, 0.0
      %262 = vst.msk [vmem:[%s236 + $0x138] sm:$0x1] %vm229, 0.0
      %263 = vst.msk [vmem:[%s236 + $0x158] sm:$0x1] %vm229, 0.0
      %264 = vst.msk [vmem:[%s236 + $0x178] sm:$0x1] %vm229, 0.0
      %265 = vst.msk [vmem:[%s236 + $0x198] sm:$0x1] %vm229, 0.0
      %266 = vst.msk [vmem:[%s236 + $0x1b8] sm:$0x1] %vm229, 0.0
      %267 = vst.msk [vmem:[%s236 + $0x1d8] sm:$0x1] %vm229, 0.0
      %268 = vst.msk [vmem:[%s236 + $0x1f8] sm:$0x1] %vm229, 0.0
      %vm269 = vcmask 64512
      %270 = vst.msk [vmem:[#allocation3] sm:$0xff] %vm269, 0.0
      %271 = vst.msk [vmem:[#allocation3 + $0x8] sm:$0xff] %vm269, 0.0
      %272 = vst.msk [vmem:[#allocation3 + $0x10] sm:$0xff] %vm269, 0.0
      %vm273 = vcmask 57344
      %274 = vst.msk [vmem:[#allocation3 + $0x18] sm:$0x1] %vm273, 0.0
      %s275 = scalar_lea.vmem [#allocation3], 544
      %276 = vst.msk [vmem:[%s275] sm:$0xff] %vm269, 0.0
      %277 = vst.msk [vmem:[%s275 + $0x8] sm:$0xff] %vm269, 0.0
      %278 = vst.msk [vmem:[%s275 + $0x10] sm:$0xff] %vm269, 0.0
      %279 = vst.msk [vmem:[%s275 + $0x18] sm:$0x1] %vm273, 0.0
      %s280 = scalar_lea.vmem [#allocation3], 32
      %281 = vst.msk [vmem:[%s280 + $0x7] sm:$0x1] %vm273, 0.0
      %282 = vst.msk [vmem:[%s280 + $0x27] sm:$0x1] %vm273, 0.0
      %283 = vst.msk [vmem:[%s280 + $0x47] sm:$0x1] %vm273, 0.0
      %284 = vst.msk [vmem:[%s280 + $0x67] sm:$0x1] %vm273, 0.0
      %285 = vst.msk [vmem:[%s280 + $0x87] sm:$0x1] %vm273, 0.0
      %286 = vst.msk [vmem:[%s280 + $0xa7] sm:$0x1] %vm273, 0.0
      %287 = vst.msk [vmem:[%s280 + $0xc7] sm:$0x1] %vm273, 0.0
      %288 = vst.msk [vmem:[%s280 + $0xe7] sm:$0x1] %vm273, 0.0
      %289 = vst.msk [vmem:[%s280 + $0x107] sm:$0x1] %vm273, 0.0
      %290 = vst.msk [vmem:[%s280 + $0x127] sm:$0x1] %vm273, 0.0
      %291 = vst.msk [vmem:[%s280 + $0x147] sm:$0x1] %vm273, 0.0
      %292 = vst.msk [vmem:[%s280 + $0x167] sm:$0x1] %vm273, 0.0
      %293 = vst.msk [vmem:[%s280 + $0x187] sm:$0x1] %vm273, 0.0
      %294 = vst.msk [vmem:[%s280 + $0x1a7] sm:$0x1] %vm273, 0.0
      %295 = vst.msk [vmem:[%s280 + $0x1c7] sm:$0x1] %vm273, 0.0
      %296 = vst.msk [vmem:[%s280 + $0x1e7] sm:$0x1] %vm273, 0.0
      %297 = vst.msk [vmem:[%s280 + $0x18] sm:$0x1] %vm273, 0.0
      %298 = vst.msk [vmem:[%s280 + $0x38] sm:$0x1] %vm273, 0.0
      %299 = vst.msk [vmem:[%s280 + $0x58] sm:$0x1] %vm273, 0.0
      %300 = vst.msk [vmem:[%s280 + $0x78] sm:$0x1] %vm273, 0.0
      %301 = vst.msk [vmem:[%s280 + $0x98] sm:$0x1] %vm273, 0.0
      %302 = vst.msk [vmem:[%s280 + $0xb8] sm:$0x1] %vm273, 0.0
      %303 = vst.msk [vmem:[%s280 + $0xd8] sm:$0x1] %vm273, 0.0
      %304 = vst.msk [vmem:[%s280 + $0xf8] sm:$0x1] %vm273, 0.0
      %305 = vst.msk [vmem:[%s280 + $0x118] sm:$0x1] %vm273, 0.0
      %306 = vst.msk [vmem:[%s280 + $0x138] sm:$0x1] %vm273, 0.0
      %307 = vst.msk [vmem:[%s280 + $0x158] sm:$0x1] %vm273, 0.0
      %308 = vst.msk [vmem:[%s280 + $0x178] sm:$0x1] %vm273, 0.0
      %309 = vst.msk [vmem:[%s280 + $0x198] sm:$0x1] %vm273, 0.0
      %310 = vst.msk [vmem:[%s280 + $0x1b8] sm:$0x1] %vm273, 0.0
      %311 = vst.msk [vmem:[%s280 + $0x1d8] sm:$0x1] %vm273, 0.0
      %312 = vst.msk [vmem:[%s280 + $0x1f8] sm:$0x1] %vm273, 0.0
      %v313 = vld [vmem:[%s219] sm:$0xff]
      %v314 = vld [vmem:[%s219 + $0x8] sm:$0xff]
      %v315 = vld [vmem:[%s219 + $0x10] sm:$0xff]
      %v316 = vld [vmem:[%s219 + $0x18] sm:$0xff]
      %v317 = vld [vmem:[%s219 + $0x20] sm:$0xff]
      %v318 = vld [vmem:[%s219 + $0x28] sm:$0xff]
      %v319 = vld [vmem:[%s219 + $0x30] sm:$0xff]
      %v320 = vld [vmem:[%s219 + $0x38] sm:$0xff]
      %v321 = vld [vmem:[%s219 + $0x40] sm:$0xff]
      %v322 = vld [vmem:[%s219 + $0x48] sm:$0xff]
      %v323 = vld [vmem:[%s219 + $0x50] sm:$0xff]
      %v324 = vld [vmem:[%s219 + $0x58] sm:$0xff]
      %v325 = vld [vmem:[%s219 + $0x60] sm:$0xff]
      %v326 = vld [vmem:[%s219 + $0x68] sm:$0xff]
      %v327 = vld [vmem:[%s219 + $0x70] sm:$0xff]
      %v328 = vld [vmem:[%s219 + $0x78] sm:$0xff]
      %v329 = vld [vmem:[%s219 + $0x80] sm:$0xff]
      %v330 = vld [vmem:[%s219 + $0x88] sm:$0xff]
      %v331 = vld [vmem:[%s219 + $0x90] sm:$0xff]
      %v332 = vld [vmem:[%s219 + $0x98] sm:$0xff]
      %v333 = vld [vmem:[%s219 + $0xa0] sm:$0xff]
      %v334 = vld [vmem:[%s219 + $0xa8] sm:$0xff]
      %v335 = vld [vmem:[%s219 + $0xb0] sm:$0xff]
      %v336 = vld [vmem:[%s219 + $0xb8] sm:$0xff]
      %v337 = vld [vmem:[%s219 + $0xc0] sm:$0xff]
      %v338 = vld [vmem:[%s219 + $0xc8] sm:$0xff]
      %v339 = vld [vmem:[%s219 + $0xd0] sm:$0xff]
      %v340 = vld [vmem:[%s219 + $0xd8] sm:$0xff]
      %v341 = vld [vmem:[%s219 + $0xe0] sm:$0xff]
      %v342 = vld [vmem:[%s219 + $0xe8] sm:$0xff]
      %v343 = vld [vmem:[%s219 + $0xf0] sm:$0xff]
      %v344 = vld [vmem:[%s219 + $0xf8] sm:$0xff]
      %345 = vst.msk [vmem:[%s236 + $0x8] sm:$0xff] %vm225, %v313
      %346 = vst.msk [vmem:[%s236 + $0x10] sm:$0xff] %vm225, %v314
      %347 = vst.msk [vmem:[%s236 + $0x28] sm:$0xff] %vm225, %v315
      %348 = vst.msk [vmem:[%s236 + $0x30] sm:$0xff] %vm225, %v316
      %349 = vst.msk [vmem:[%s236 + $0x48] sm:$0xff] %vm225, %v317
      %350 = vst.msk [vmem:[%s236 + $0x50] sm:$0xff] %vm225, %v318
      %351 = vst.msk [vmem:[%s236 + $0x68] sm:$0xff] %vm225, %v319
      %352 = vst.msk [vmem:[%s236 + $0x70] sm:$0xff] %vm225, %v320
      %353 = vst.msk [vmem:[%s236 + $0x88] sm:$0xff] %vm225, %v321
      %354 = vst.msk [vmem:[%s236 + $0x90] sm:$0xff] %vm225, %v322
      %355 = vst.msk [vmem:[%s236 + $0xa8] sm:$0xff] %vm225, %v323
      %356 = vst.msk [vmem:[%s236 + $0xb0] sm:$0xff] %vm225, %v324
      %357 = vst.msk [vmem:[%s236 + $0xc8] sm:$0xff] %vm225, %v325
      %358 = vst.msk [vmem:[%s236 + $0xd0] sm:$0xff] %vm225, %v326
      %359 = vst.msk [vmem:[%s236 + $0xe8] sm:$0xff] %vm225, %v327
      %360 = vst.msk [vmem:[%s236 + $0xf0] sm:$0xff] %vm225, %v328
      %361 = vst.msk [vmem:[%s236 + $0x108] sm:$0xff] %vm225, %v329
      %362 = vst.msk [vmem:[%s236 + $0x110] sm:$0xff] %vm225, %v330
      %363 = vst.msk [vmem:[%s236 + $0x128] sm:$0xff] %vm225, %v331
      %364 = vst.msk [vmem:[%s236 + $0x130] sm:$0xff] %vm225, %v332
      %365 = vst.msk [vmem:[%s236 + $0x148] sm:$0xff] %vm225, %v333
      %366 = vst.msk [vmem:[%s236 + $0x150] sm:$0xff] %vm225, %v334
      %367 = vst.msk [vmem:[%s236 + $0x168] sm:$0xff] %vm225, %v335
      %368 = vst.msk [vmem:[%s236 + $0x170] sm:$0xff] %vm225, %v336
      %369 = vst.msk [vmem:[%s236 + $0x188] sm:$0xff] %vm225, %v337
      %370 = vst.msk [vmem:[%s236 + $0x190] sm:$0xff] %vm225, %v338
      %371 = vst.msk [vmem:[%s236 + $0x1a8] sm:$0xff] %vm225, %v339
      %372 = vst.msk [vmem:[%s236 + $0x1b0] sm:$0xff] %vm225, %v340
      %373 = vst.msk [vmem:[%s236 + $0x1c8] sm:$0xff] %vm225, %v341
      %374 = vst.msk [vmem:[%s236 + $0x1d0] sm:$0xff] %vm225, %v342
      %375 = vst.msk [vmem:[%s236 + $0x1e8] sm:$0xff] %vm225, %v343
      %376 = vst.msk [vmem:[%s236 + $0x1f0] sm:$0xff] %vm225, %v344
      %v377 = vld [vmem:[%s2] sm:$0x1]
      %v379 = vlaneseq
      %v380 = vshrl.u32 %v379, 7
      %v381 = vsub.s32 0, %v380
      %v382 = vrot.slane %v377, %v381
      %384 = vst.msk [vmem:[#allocation4] sm:$0xff] %vm269, %v382
      %385 = vst.msk [vmem:[#allocation4 + $0x8] sm:$0xff] %vm269, %v382
      %386 = vst.msk [vmem:[#allocation4 + $0x10] sm:$0xff] %vm269, %v382
      %387 = vst.msk [vmem:[#allocation4 + $0x18] sm:$0xff] %vm269, %v382
      %388 = vst.msk [vmem:[#allocation4 + $0x20] sm:$0xff] %vm269, %v382
      %389 = vst.msk [vmem:[#allocation4 + $0x28] sm:$0xff] %vm269, %v382
      %390 = vst.msk [vmem:[#allocation4 + $0x30] sm:$0xff] %vm269, %v382
      %391 = vst.msk [vmem:[#allocation4 + $0x38] sm:$0xff] %vm269, %v382
      %392 = vst.msk [vmem:[#allocation4 + $0x40] sm:$0xff] %vm269, %v382
      %393 = vst.msk [vmem:[#allocation4 + $0x48] sm:$0xff] %vm269, %v382
      %394 = vst.msk [vmem:[#allocation4 + $0x50] sm:$0xff] %vm269, %v382
      %395 = vst.msk [vmem:[#allocation4 + $0x58] sm:$0xff] %vm269, %v382
      %396 = vst.msk [vmem:[#allocation4 + $0x60] sm:$0xff] %vm269, %v382
      %397 = vst.msk [vmem:[#allocation4 + $0x68] sm:$0xff] %vm269, %v382
      %398 = vst.msk [vmem:[#allocation4 + $0x70] sm:$0xff] %vm269, %v382
      %399 = vst.msk [vmem:[#allocation4 + $0x78] sm:$0xff] %vm269, %v382
      %400 = vst.msk [vmem:[#allocation4 + $0x80] sm:$0xff] %vm269, %v382
      %401 = vst.msk [vmem:[#allocation4 + $0x88] sm:$0xff] %vm269, %v382
      %402 = vst.msk [vmem:[#allocation4 + $0x90] sm:$0xff] %vm269, %v382
      %403 = vst.msk [vmem:[#allocation4 + $0x98] sm:$0xff] %vm269, %v382
      %404 = vst.msk [vmem:[#allocation4 + $0xa0] sm:$0xff] %vm269, %v382
      %405 = vst.msk [vmem:[#allocation4 + $0xa8] sm:$0xff] %vm269, %v382
      %406 = vst.msk [vmem:[#allocation4 + $0xb0] sm:$0xff] %vm269, %v382
      %407 = vst.msk [vmem:[#allocation4 + $0xb8] sm:$0xff] %vm269, %v382
      %408 = vst.msk [vmem:[#allocation4 + $0xc0] sm:$0xff] %vm269, %v382
      %409 = vst.msk [vmem:[#allocation4 + $0xc8] sm:$0xff] %vm269, %v382
      %410 = vst.msk [vmem:[#allocation4 + $0xd0] sm:$0xff] %vm269, %v382
      %411 = vst.msk [vmem:[#allocation4 + $0xd8] sm:$0xff] %vm269, %v382
      %412 = vst.msk [vmem:[#allocation4 + $0xe0] sm:$0xff] %vm269, %v382
      %413 = vst.msk [vmem:[#allocation4 + $0xe8] sm:$0xff] %vm269, %v382
      %414 = vst.msk [vmem:[#allocation4 + $0xf0] sm:$0xff] %vm269, %v382
      %415 = vst.msk [vmem:[#allocation4 + $0xf8] sm:$0xff] %vm269, %v382
      %v416 = vld [vmem:[#allocation2 + $0x7] sm:$0xff]
      %v417 = vld [vmem:[#allocation2 + $0xf] sm:$0xff]
      %v418 = vld [vmem:[#allocation2 + $0x27] sm:$0xff]
      %v419 = vld [vmem:[#allocation2 + $0x2f] sm:$0xff]
      %v420 = vld [vmem:[#allocation2 + $0x47] sm:$0xff]
      %v421 = vld [vmem:[#allocation2 + $0x4f] sm:$0xff]
      %v422 = vld [vmem:[#allocation2 + $0x67] sm:$0xff]
      %v423 = vld [vmem:[#allocation2 + $0x6f] sm:$0xff]
      %v424 = vld [vmem:[#allocation2 + $0x87] sm:$0xff]
      %v425 = vld [vmem:[#allocation2 + $0x8f] sm:$0xff]
      %v426 = vld [vmem:[#allocation2 + $0xa7] sm:$0xff]
      %v427 = vld [vmem:[#allocation2 + $0xaf] sm:$0xff]
      %v428 = vld [vmem:[#allocation2 + $0xc7] sm:$0xff]
      %v429 = vld [vmem:[#allocation2 + $0xcf] sm:$0xff]
      %v430 = vld [vmem:[#allocation2 + $0xe7] sm:$0xff]
      %v431 = vld [vmem:[#allocation2 + $0xef] sm:$0xff]
      %v432 = vld [vmem:[#allocation2 + $0x107] sm:$0xff]
      %v433 = vld [vmem:[#allocation2 + $0x10f] sm:$0xff]
      %v434 = vld [vmem:[#allocation2 + $0x127] sm:$0xff]
      %v435 = vld [vmem:[#allocation2 + $0x12f] sm:$0xff]
      %v436 = vld [vmem:[#allocation2 + $0x147] sm:$0xff]
      %v437 = vld [vmem:[#allocation2 + $0x14f] sm:$0xff]
      %v438 = vld [vmem:[#allocation2 + $0x167] sm:$0xff]
      %v439 = vld [vmem:[#allocation2 + $0x16f] sm:$0xff]
      %v440 = vld [vmem:[#allocation2 + $0x187] sm:$0xff]
      %v441 = vld [vmem:[#allocation2 + $0x18f] sm:$0xff]
      %v442 = vld [vmem:[#allocation2 + $0x1a7] sm:$0xff]
      %v443 = vld [vmem:[#allocation2 + $0x1af] sm:$0xff]
      %v444 = vld [vmem:[#allocation2 + $0x1c7] sm:$0xff]
      %v445 = vld [vmem:[#allocation2 + $0x1cf] sm:$0xff]
      %v446 = vld [vmem:[#allocation2 + $0x1e7] sm:$0xff]
      %v447 = vld [vmem:[#allocation2 + $0x1ef] sm:$0xff]
      %v448 = vld [vmem:[#allocation4] sm:$0xff]
      %v449 = vld [vmem:[#allocation4 + $0x8] sm:$0xff]
      %v450 = vld [vmem:[#allocation4 + $0x10] sm:$0xff]
      %v451 = vld [vmem:[#allocation4 + $0x18] sm:$0xff]
      %v452 = vld [vmem:[#allocation4 + $0x20] sm:$0xff]
      %v453 = vld [vmem:[#allocation4 + $0x28] sm:$0xff]
      %v454 = vld [vmem:[#allocation4 + $0x30] sm:$0xff]
      %v455 = vld [vmem:[#allocation4 + $0x38] sm:$0xff]
      %v456 = vld [vmem:[#allocation4 + $0x40] sm:$0xff]
      %v457 = vld [vmem:[#allocation4 + $0x48] sm:$0xff]
      %v458 = vld [vmem:[#allocation4 + $0x50] sm:$0xff]
      %v459 = vld [vmem:[#allocation4 + $0x58] sm:$0xff]
      %v460 = vld [vmem:[#allocation4 + $0x60] sm:$0xff]
      %v461 = vld [vmem:[#allocation4 + $0x68] sm:$0xff]
      %v462 = vld [vmem:[#allocation4 + $0x70] sm:$0xff]
      %v463 = vld [vmem:[#allocation4 + $0x78] sm:$0xff]
      %v464 = vld [vmem:[#allocation4 + $0x80] sm:$0xff]
      %v465 = vld [vmem:[#allocation4 + $0x88] sm:$0xff]
      %v466 = vld [vmem:[#allocation4 + $0x90] sm:$0xff]
      %v467 = vld [vmem:[#allocation4 + $0x98] sm:$0xff]
      %v468 = vld [vmem:[#allocation4 + $0xa0] sm:$0xff]
      %v469 = vld [vmem:[#allocation4 + $0xa8] sm:$0xff]
      %v470 = vld [vmem:[#allocation4 + $0xb0] sm:$0xff]
      %v471 = vld [vmem:[#allocation4 + $0xb8] sm:$0xff]
      %v472 = vld [vmem:[#allocation4 + $0xc0] sm:$0xff]
      %v473 = vld [vmem:[#allocation4 + $0xc8] sm:$0xff]
      %v474 = vld [vmem:[#allocation4 + $0xd0] sm:$0xff]
      %v475 = vld [vmem:[#allocation4 + $0xd8] sm:$0xff]
      %v476 = vld [vmem:[#allocation4 + $0xe0] sm:$0xff]
      %v477 = vld [vmem:[#allocation4 + $0xe8] sm:$0xff]
      %v478 = vld [vmem:[#allocation4 + $0xf0] sm:$0xff]
      %v479 = vld [vmem:[#allocation4 + $0xf8] sm:$0xff]
      %v480 = vld [vmem:[%s1] sm:$0xf]
      %v482 = vsel %vm225, %v416, 0
      %v485 = vsel %vm225, %v417, 0
      %v488 = vsel %vm225, %v418, 0
      %v491 = vsel %vm225, %v419, 0
      %v494 = vsel %vm225, %v420, 0
      %v497 = vsel %vm225, %v421, 0
      %v500 = vsel %vm225, %v422, 0
      %v503 = vsel %vm225, %v423, 0
      %v506 = vsel %vm225, %v424, 0
      %v509 = vsel %vm225, %v425, 0
      %v512 = vsel %vm225, %v426, 0
      %v515 = vsel %vm225, %v427, 0
      %v518 = vsel %vm225, %v428, 0
      %v521 = vsel %vm225, %v429, 0
      %v524 = vsel %vm225, %v430, 0
      %v527 = vsel %vm225, %v431, 0
      %v530 = vsel %vm225, %v432, 0
      %v533 = vsel %vm225, %v433, 0
      %v536 = vsel %vm225, %v434, 0
      %v539 = vsel %vm225, %v435, 0
      %v542 = vsel %vm225, %v436, 0
      %v545 = vsel %vm225, %v437, 0
      %v548 = vsel %vm225, %v438, 0
      %v551 = vsel %vm225, %v439, 0
      %v554 = vsel %vm225, %v440, 0
      %v557 = vsel %vm225, %v441, 0
      %v560 = vsel %vm225, %v442, 0
      %v563 = vsel %vm225, %v443, 0
      %v566 = vsel %vm225, %v444, 0
      %v569 = vsel %vm225, %v445, 0
      %v572 = vsel %vm225, %v446, 0
      %v575 = vsel %vm225, %v447, 0
      %vm577 = vcmask 1043456
      %v579 = vsel %vm577, %v480, 0
      %581 = vmatprep.subr.mxu0 0.0
      %582 = vmatpush1.msra.mxu0 %v579
      %583 = vmatprep.subr.mxu0 0.0
      %584 = vmatpush1.msra.mxu0 0.0
      %585 = vmatprep.subr.mxu0 0.0
      %586 = vmatpush1.msra.mxu0 0.0
      %587 = vmatprep.subr.mxu0 0.0
      %588 = vmatpush1.msra.mxu0 0.0
      %589 = vmatprep.subr.mxu0 0.0
      %590 = vmatpush1.msra.mxu0 0.0
      %591 = vmatprep.subr.mxu0 0.0
      %592 = vmatpush1.msra.mxu0 0.0
      %593 = vmatprep.subr.mxu0 0.0
      %594 = vmatpush1.msra.mxu0 0.0
      %595 = vmatprep.subr.mxu0 0.0
      %596 = vmatpush1.msra.mxu0 0.0
      %597 = vmatprep.subr.mxu0 0.0
      %598 = vmatpush1.msra.mxu0 0.0
      %599 = vmatprep.subr.mxu0 0.0
      %600 = vmatpush1.msra.mxu0 0.0
      %601 = vmatprep.subr.mxu0 0.0
      %602 = vmatpush1.msra.mxu0 0.0
      %603 = vmatprep.subr.mxu0 0.0
      %604 = vmatpush1.msra.mxu0 0.0
      %605 = vmatprep.subr.mxu0 0.0
      %606 = vmatpush1.msra.mxu0 0.0
      %607 = vmatprep.subr.mxu0 0.0
      %608 = vmatpush1.msra.mxu0 0.0
      %609 = vmatprep.subr.mxu0 0.0
      %610 = vmatpush1.msra.mxu0 0.0
      %611 = vmatprep.subr.mxu0 0.0
      %612 = vmatpush1.msra.mxu0 0.0
      %613 = vmatprep.subr.mxu0 0.0
      %614 = vmatpush1.msra.mxu0 0.0
      %615 = vmatprep.subr.mxu0 0.0
      %616 = vmatpush1.msra.mxu0 0.0
      %617 = vmatprep.subr.mxu0 0.0
      %618 = vmatpush1.msra.mxu0 0.0
      %619 = vmatprep.subr.mxu0 0.0
      %620 = vmatpush1.msra.mxu0 0.0
      %621 = vmatprep.subr.mxu0 0.0
      %622 = vmatpush1.msra.mxu0 0.0
      %623 = vmatprep.subr.mxu0 0.0
      %624 = vmatpush1.msra.mxu0 0.0
      %625 = vmatprep.subr.mxu0 0.0
      %626 = vmatpush1.msra.mxu0 0.0
      %627 = vmatprep.subr.mxu0 0.0
      %628 = vmatpush1.msra.mxu0 0.0
      %629 = vmatprep.subr.mxu0 0.0
      %630 = vmatpush1.msra.mxu0 0.0
      %631 = vmatprep.subr.mxu0 0.0
      %632 = vmatpush1.msra.mxu0 0.0
      %633 = vmatprep.subr.mxu0 0.0
      %634 = vmatpush1.msra.mxu0 0.0
      %635 = vmatprep.subr.mxu0 0.0
      %636 = vmatpush1.msra.mxu0 0.0
      %637 = vmatprep.subr.mxu0 0.0
      %638 = vmatpush1.msra.mxu0 0.0
      %639 = vmatprep.subr.mxu0 0.0
      %640 = vmatpush1.msra.mxu0 0.0
      %641 = vmatprep.subr.mxu0 0.0
      %642 = vmatpush1.msra.mxu0 0.0
      %643 = vmatprep.subr.mxu0 0.0
      %644 = vmatpush1.msra.mxu0 0.0
      %645 = vmatprep.mubr.f32.mxu0 0.0
      %646 = vmatmul.mubr.f32.gmra.mrb[0].mxu0 %v482
      %v647 = vpop.f32.mrb[0].mxu0
      %v648 = vadd.f32 0.0, %v647
      %v649 = vpop.f32.mrb[0].mxu0
      %650 = vmatprep.mubr.f32.mxu0 0.0
      %651 = vmatmul.mubr.f32.gmra.mrb[0].mxu0 %v485
      %v652 = vpop.f32.mrb[0].mxu0
      %v653 = vadd.f32 0.0, %v652
      %v654 = vpop.f32.mrb[0].mxu0
      %655 = vmatprep.mubr.f32.mxu0 0.0
      %656 = vmatmul.mubr.f32.gmra.mrb[0].mxu0 %v488
      %v657 = vpop.f32.mrb[0].mxu0
      %v658 = vadd.f32 0.0, %v657
      %v659 = vpop.f32.mrb[0].mxu0
      %660 = vmatprep.mubr.f32.mxu0 0.0
      %661 = vmatmul.mubr.f32.gmra.mrb[0].mxu0 %v491
      %v662 = vpop.f32.mrb[0].mxu0
      %v663 = vadd.f32 0.0, %v662
      %v664 = vpop.f32.mrb[0].mxu0
      %665 = vmatprep.mubr.f32.mxu0 0.0
      %666 = vmatmul.mubr.f32.gmra.mrb[0].mxu0 %v494
      %v667 = vpop.f32.mrb[0].mxu0
      %v668 = vadd.f32 0.0, %v667
      %v669 = vpop.f32.mrb[0].mxu0
      %670 = vmatprep.mubr.f32.mxu0 0.0
      %671 = vmatmul.mubr.f32.gmra.mrb[0].mxu0 %v497
      %v672 = vpop.f32.mrb[0].mxu0
      %v673 = vadd.f32 0.0, %v672
      %v674 = vpop.f32.mrb[0].mxu0
      %675 = vmatprep.mubr.f32.mxu0 0.0
      %676 = vmatmul.mubr.f32.gmra.mrb[0].mxu0 %v500
      %v677 = vpop.f32.mrb[0].mxu0
      %v678 = vadd.f32 0.0, %v677
      %v679 = vpop.f32.mrb[0].mxu0
      %680 = vmatprep.mubr.f32.mxu0 0.0
      %681 = vmatmul.mubr.f32.gmra.mrb[0].mxu0 %v503
      %v682 = vpop.f32.mrb[0].mxu0
      %v683 = vadd.f32 0.0, %v682
      %v684 = vpop.f32.mrb[0].mxu0
      %685 = vmatprep.mubr.f32.mxu0 0.0
      %686 = vmatmul.mubr.f32.gmra.mrb[0].mxu0 %v506
      %v687 = vpop.f32.mrb[0].mxu0
      %v688 = vadd.f32 0.0, %v687
      %v689 = vpop.f32.mrb[0].mxu0
      %690 = vmatprep.mubr.f32.mxu0 0.0
      %691 = vmatmul.mubr.f32.gmra.mrb[0].mxu0 %v509
      %v692 = vpop.f32.mrb[0].mxu0
      %v693 = vadd.f32 0.0, %v692
      %v694 = vpop.f32.mrb[0].mxu0
      %695 = vmatprep.mubr.f32.mxu0 0.0
      %696 = vmatmul.mubr.f32.gmra.mrb[0].mxu0 %v512
      %v697 = vpop.f32.mrb[0].mxu0
      %v698 = vadd.f32 0.0, %v697
      %v699 = vpop.f32.mrb[0].mxu0
      %700 = vmatprep.mubr.f32.mxu0 0.0
      %701 = vmatmul.mubr.f32.gmra.mrb[0].mxu0 %v515
      %v702 = vpop.f32.mrb[0].mxu0
      %v703 = vadd.f32 0.0, %v702
      %v704 = vpop.f32.mrb[0].mxu0
      %705 = vmatprep.mubr.f32.mxu0 0.0
      %706 = vmatmul.mubr.f32.gmra.mrb[0].mxu0 %v518
      %v707 = vpop.f32.mrb[0].mxu0
      %v708 = vadd.f32 0.0, %v707
      %v709 = vpop.f32.mrb[0].mxu0
      %710 = vmatprep.mubr.f32.mxu0 0.0
      %711 = vmatmul.mubr.f32.gmra.mrb[0].mxu0 %v521
      %v712 = vpop.f32.mrb[0].mxu0
      %v713 = vadd.f32 0.0, %v712
      %v714 = vpop.f32.mrb[0].mxu0
      %715 = vmatprep.mubr.f32.mxu0 0.0
      %716 = vmatmul.mubr.f32.gmra.mrb[0].mxu0 %v524
      %v717 = vpop.f32.mrb[0].mxu0
      %v718 = vadd.f32 0.0, %v717
      %v719 = vpop.f32.mrb[0].mxu0
      %720 = vmatprep.mubr.f32.mxu0 0.0
      %721 = vmatmul.mubr.f32.gmra.mrb[0].mxu0 %v527
      %v722 = vpop.f32.mrb[0].mxu0
      %v723 = vadd.f32 0.0, %v722
      %v724 = vpop.f32.mrb[0].mxu0
      %725 = vmatprep.mubr.f32.mxu0 0.0
      %726 = vmatmul.mubr.f32.gmra.mrb[0].mxu0 %v530
      %v727 = vpop.f32.mrb[0].mxu0
      %v728 = vadd.f32 0.0, %v727
      %v729 = vpop.f32.mrb[0].mxu0
      %730 = vmatprep.mubr.f32.mxu0 0.0
      %731 = vmatmul.mubr.f32.gmra.mrb[0].mxu0 %v533
      %v732 = vpop.f32.mrb[0].mxu0
      %v733 = vadd.f32 0.0, %v732
      %v734 = vpop.f32.mrb[0].mxu0
      %735 = vmatprep.mubr.f32.mxu0 0.0
      %736 = vmatmul.mubr.f32.gmra.mrb[0].mxu0 %v536
      %v737 = vpop.f32.mrb[0].mxu0
      %v738 = vadd.f32 0.0, %v737
      %v739 = vpop.f32.mrb[0].mxu0
      %740 = vmatprep.mubr.f32.mxu0 0.0
      %741 = vmatmul.mubr.f32.gmra.mrb[0].mxu0 %v539
      %v742 = vpop.f32.mrb[0].mxu0
      %v743 = vadd.f32 0.0, %v742
      %v744 = vpop.f32.mrb[0].mxu0
      %745 = vmatprep.mubr.f32.mxu0 0.0
      %746 = vmatmul.mubr.f32.gmra.mrb[0].mxu0 %v542
      %v747 = vpop.f32.mrb[0].mxu0
      %v748 = vadd.f32 0.0, %v747
      %v749 = vpop.f32.mrb[0].mxu0
      %750 = vmatprep.mubr.f32.mxu0 0.0
      %751 = vmatmul.mubr.f32.gmra.mrb[0].mxu0 %v545
      %v752 = vpop.f32.mrb[0].mxu0
      %v753 = vadd.f32 0.0, %v752
      %v754 = vpop.f32.mrb[0].mxu0
      %755 = vmatprep.mubr.f32.mxu0 0.0
      %756 = vmatmul.mubr.f32.gmra.mrb[0].mxu0 %v548
      %v757 = vpop.f32.mrb[0].mxu0
      %v758 = vadd.f32 0.0, %v757
      %v759 = vpop.f32.mrb[0].mxu0
      %760 = vmatprep.mubr.f32.mxu0 0.0
      %761 = vmatmul.mubr.f32.gmra.mrb[0].mxu0 %v551
      %v762 = vpop.f32.mrb[0].mxu0
      %v763 = vadd.f32 0.0, %v762
      %v764 = vpop.f32.mrb[0].mxu0
      %765 = vmatprep.mubr.f32.mxu0 0.0
      %766 = vmatmul.mubr.f32.gmra.mrb[0].mxu0 %v554
      %v767 = vpop.f32.mrb[0].mxu0
      %v768 = vadd.f32 0.0, %v767
      %v769 = vpop.f32.mrb[0].mxu0
      %770 = vmatprep.mubr.f32.mxu0 0.0
      %771 = vmatmul.mubr.f32.gmra.mrb[0].mxu0 %v557
      %v772 = vpop.f32.mrb[0].mxu0
      %v773 = vadd.f32 0.0, %v772
      %v774 = vpop.f32.mrb[0].mxu0
      %775 = vmatprep.mubr.f32.mxu0 0.0
      %776 = vmatmul.mubr.f32.gmra.mrb[0].mxu0 %v560
      %v777 = vpop.f32.mrb[0].mxu0
      %v778 = vadd.f32 0.0, %v777
      %v779 = vpop.f32.mrb[0].mxu0
      %780 = vmatprep.mubr.f32.mxu0 0.0
      %781 = vmatmul.mubr.f32.gmra.mrb[0].mxu0 %v563
      %v782 = vpop.f32.mrb[0].mxu0
      %v783 = vadd.f32 0.0, %v782
      %v784 = vpop.f32.mrb[0].mxu0
      %785 = vmatprep.mubr.f32.mxu0 0.0
      %786 = vmatmul.mubr.f32.gmra.mrb[0].mxu0 %v566
      %v787 = vpop.f32.mrb[0].mxu0
      %v788 = vadd.f32 0.0, %v787
      %v789 = vpop.f32.mrb[0].mxu0
      %790 = vmatprep.mubr.f32.mxu0 0.0
      %791 = vmatmul.mubr.f32.gmra.mrb[0].mxu0 %v569
      %v792 = vpop.f32.mrb[0].mxu0
      %v793 = vadd.f32 0.0, %v792
      %v794 = vpop.f32.mrb[0].mxu0
      %795 = vmatprep.mubr.f32.mxu0 0.0
      %796 = vmatmul.mubr.f32.gmra.mrb[0].mxu0 %v572
      %v797 = vpop.f32.mrb[0].mxu0
      %v798 = vadd.f32 0.0, %v797
      %v799 = vpop.f32.mrb[0].mxu0
      %800 = vmatprep.mubr.f32.mxu0 0.0
      %801 = vmatmul.mubr.f32.gmra.mrb[0].mxu0 %v575
      %v802 = vpop.f32.mrb[0].mxu0
      %v803 = vadd.f32 0.0, %v802
      %v804 = vpop.f32.mrb[0].mxu0
      %805 = vdwg.mxu0
      %v806 = vadd.f32 %v448, %v648
      %v807 = vadd.f32 %v449, %v653
      %v808 = vadd.f32 %v450, %v658
      %v809 = vadd.f32 %v451, %v663
      %v810 = vadd.f32 %v452, %v668
      %v811 = vadd.f32 %v453, %v673
      %v812 = vadd.f32 %v454, %v678
      %v813 = vadd.f32 %v455, %v683
      %v814 = vadd.f32 %v456, %v688
      %v815 = vadd.f32 %v457, %v693
      %v816 = vadd.f32 %v458, %v698
      %v817 = vadd.f32 %v459, %v703
      %v818 = vadd.f32 %v460, %v708
      %v819 = vadd.f32 %v461, %v713
      %v820 = vadd.f32 %v462, %v718
      %v821 = vadd.f32 %v463, %v723
      %v822 = vadd.f32 %v464, %v728
      %v823 = vadd.f32 %v465, %v733
      %v824 = vadd.f32 %v466, %v738
      %v825 = vadd.f32 %v467, %v743
      %v826 = vadd.f32 %v468, %v748
      %v827 = vadd.f32 %v469, %v753
      %v828 = vadd.f32 %v470, %v758
      %v829 = vadd.f32 %v471, %v763
      %v830 = vadd.f32 %v472, %v768
      %v831 = vadd.f32 %v473, %v773
      %v832 = vadd.f32 %v474, %v778
      %v833 = vadd.f32 %v475, %v783
      %v834 = vadd.f32 %v476, %v788
      %v835 = vadd.f32 %v477, %v793
      %v836 = vadd.f32 %v478, %v798
      %v837 = vadd.f32 %v479, %v803
      %838 = vst.msk [vmem:[#allocation4] sm:$0xff] %vm269, %v806
      %839 = vst.msk [vmem:[#allocation4 + $0x8] sm:$0xff] %vm269, %v807
      %840 = vst.msk [vmem:[#allocation4 + $0x10] sm:$0xff] %vm269, %v808
      %841 = vst.msk [vmem:[#allocation4 + $0x18] sm:$0xff] %vm269, %v809
      %842 = vst.msk [vmem:[#allocation4 + $0x20] sm:$0xff] %vm269, %v810
      %843 = vst.msk [vmem:[#allocation4 + $0x28] sm:$0xff] %vm269, %v811
      %844 = vst.msk [vmem:[#allocation4 + $0x30] sm:$0xff] %vm269, %v812
      %845 = vst.msk [vmem:[#allocation4 + $0x38] sm:$0xff] %vm269, %v813
      %846 = vst.msk [vmem:[#allocation4 + $0x40] sm:$0xff] %vm269, %v814
      %847 = vst.msk [vmem:[#allocation4 + $0x48] sm:$0xff] %vm269, %v815
      %848 = vst.msk [vmem:[#allocation4 + $0x50] sm:$0xff] %vm269, %v816
      %849 = vst.msk [vmem:[#allocation4 + $0x58] sm:$0xff] %vm269, %v817
      %850 = vst.msk [vmem:[#allocation4 + $0x60] sm:$0xff] %vm269, %v818
      %851 = vst.msk [vmem:[#allocation4 + $0x68] sm:$0xff] %vm269, %v819
      %852 = vst.msk [vmem:[#allocation4 + $0x70] sm:$0xff] %vm269, %v820
      %853 = vst.msk [vmem:[#allocation4 + $0x78] sm:$0xff] %vm269, %v821
      %854 = vst.msk [vmem:[#allocation4 + $0x80] sm:$0xff] %vm269, %v822
      %855 = vst.msk [vmem:[#allocation4 + $0x88] sm:$0xff] %vm269, %v823
      %856 = vst.msk [vmem:[#allocation4 + $0x90] sm:$0xff] %vm269, %v824
      %857 = vst.msk [vmem:[#allocation4 + $0x98] sm:$0xff] %vm269, %v825
      %858 = vst.msk [vmem:[#allocation4 + $0xa0] sm:$0xff] %vm269, %v826
      %859 = vst.msk [vmem:[#allocation4 + $0xa8] sm:$0xff] %vm269, %v827
      %860 = vst.msk [vmem:[#allocation4 + $0xb0] sm:$0xff] %vm269, %v828
      %861 = vst.msk [vmem:[#allocation4 + $0xb8] sm:$0xff] %vm269, %v829
      %862 = vst.msk [vmem:[#allocation4 + $0xc0] sm:$0xff] %vm269, %v830
      %863 = vst.msk [vmem:[#allocation4 + $0xc8] sm:$0xff] %vm269, %v831
      %864 = vst.msk [vmem:[#allocation4 + $0xd0] sm:$0xff] %vm269, %v832
      %865 = vst.msk [vmem:[#allocation4 + $0xd8] sm:$0xff] %vm269, %v833
      %866 = vst.msk [vmem:[#allocation4 + $0xe0] sm:$0xff] %vm269, %v834
      %867 = vst.msk [vmem:[#allocation4 + $0xe8] sm:$0xff] %vm269, %v835
      %868 = vst.msk [vmem:[#allocation4 + $0xf0] sm:$0xff] %vm269, %v836
      %869 = vst.msk [vmem:[#allocation4 + $0xf8] sm:$0xff] %vm269, %v837
      %v870 = vld [vmem:[#allocation2 + $0x8] sm:$0xff]
      %v871 = vld [vmem:[#allocation2 + $0x10] sm:$0xff]
      %v872 = vld [vmem:[#allocation2 + $0x28] sm:$0xff]
      %v873 = vld [vmem:[#allocation2 + $0x30] sm:$0xff]
      %v874 = vld [vmem:[#allocation2 + $0x48] sm:$0xff]
      %v875 = vld [vmem:[#allocation2 + $0x50] sm:$0xff]
      %v876 = vld [vmem:[#allocation2 + $0x68] sm:$0xff]
      %v877 = vld [vmem:[#allocation2 + $0x70] sm:$0xff]
      %v878 = vld [vmem:[#allocation2 + $0x88] sm:$0xff]
      %v879 = vld [vmem:[#allocation2 + $0x90] sm:$0xff]
      %v880 = vld [vmem:[#allocation2 + $0xa8] sm:$0xff]
      %v881 = vld [vmem:[#allocation2 + $0xb0] sm:$0xff]
      %v882 = vld [vmem:[#allocation2 + $0xc8] sm:$0xff]
      %v883 = vld [vmem:[#allocation2 + $0xd0] sm:$0xff]
      %v884 = vld [vmem:[#allocation2 + $0xe8] sm:$0xff]
      %v885 = vld [vmem:[#allocation2 + $0xf0] sm:$0xff]
      %v886 = vld [vmem:[#allocation2 + $0x108] sm:$0xff]
      %v887 = vld [vmem:[#allocation2 + $0x110] sm:$0xff]
      %v888 = vld [vmem:[#allocation2 + $0x128] sm:$0xff]
      %v889 = vld [vmem:[#allocation2 + $0x130] sm:$0xff]
      %v890 = vld [vmem:[#allocation2 + $0x148] sm:$0xff]
      %v891 = vld [vmem:[#allocation2 + $0x150] sm:$0xff]
      %v892 = vld [vmem:[#allocation2 + $0x168] sm:$0xff]
      %v893 = vld [vmem:[#allocation2 + $0x170] sm:$0xff]
      %v894 = vld [vmem:[#allocation2 + $0x188] sm:$0xff]
      %v895 = vld [vmem:[#allocation2 + $0x190] sm:$0xff]
      %v896 = vld [vmem:[#allocation2 + $0x1a8] sm:$0xff]
      %v897 = vld [vmem:[#allocation2 + $0x1b0] sm:$0xff]
      %v898 = vld [vmem:[#allocation2 + $0x1c8] sm:$0xff]
      %v899 = vld [vmem:[#allocation2 + $0x1d0] sm:$0xff]
      %v900 = vld [vmem:[#allocation2 + $0x1e8] sm:$0xff]
      %v901 = vld [vmem:[#allocation2 + $0x1f0] sm:$0xff]
      %v902 = vld [vmem:[#allocation4] sm:$0xff]
      %v903 = vld [vmem:[#allocation4 + $0x8] sm:$0xff]
      %v904 = vld [vmem:[#allocation4 + $0x10] sm:$0xff]
      %v905 = vld [vmem:[#allocation4 + $0x18] sm:$0xff]
      %v906 = vld [vmem:[#allocation4 + $0x20] sm:$0xff]
      %v907 = vld [vmem:[#allocation4 + $0x28] sm:$0xff]
      %v908 = vld [vmem:[#allocation4 + $0x30] sm:$0xff]
      %v909 = vld [vmem:[#allocation4 + $0x38] sm:$0xff]
      %v910 = vld [vmem:[#allocation4 + $0x40] sm:$0xff]
      %v911 = vld [vmem:[#allocation4 + $0x48] sm:$0xff]
      %v912 = vld [vmem:[#allocation4 + $0x50] sm:$0xff]
      %v913 = vld [vmem:[#allocation4 + $0x58] sm:$0xff]
      %v914 = vld [vmem:[#allocation4 + $0x60] sm:$0xff]
      %v915 = vld [vmem:[#allocation4 + $0x68] sm:$0xff]
      %v916 = vld [vmem:[#allocation4 + $0x70] sm:$0xff]
      %v917 = vld [vmem:[#allocation4 + $0x78] sm:$0xff]
      %v918 = vld [vmem:[#allocation4 + $0x80] sm:$0xff]
      %v919 = vld [vmem:[#allocation4 + $0x88] sm:$0xff]
      %v920 = vld [vmem:[#allocation4 + $0x90] sm:$0xff]
      %v921 = vld [vmem:[#allocation4 + $0x98] sm:$0xff]
      %v922 = vld [vmem:[#allocation4 + $0xa0] sm:$0xff]
      %v923 = vld [vmem:[#allocation4 + $0xa8] sm:$0xff]
      %v924 = vld [vmem:[#allocation4 + $0xb0] sm:$0xff]
      %v925 = vld [vmem:[#allocation4 + $0xb8] sm:$0xff]
      %v926 = vld [vmem:[#allocation4 + $0xc0] sm:$0xff]
      %v927 = vld [vmem:[#allocation4 + $0xc8] sm:$0xff]
      %v928 = vld [vmem:[#allocation4 + $0xd0] sm:$0xff]
      %v929 = vld [vmem:[#allocation4 + $0xd8] sm:$0xff]
      %v930 = vld [vmem:[#allocation4 + $0xe0] sm:$0xff]
      %v931 = vld [vmem:[#allocation4 + $0xe8] sm:$0xff]
      %v932 = vld [vmem:[#allocation4 + $0xf0] sm:$0xff]
      %v933 = vld [vmem:[#allocation4 + $0xf8] sm:$0xff]
      %s934 = scalar_lea.vmem %s1, 4
      %v935 = vld [vmem:[%s934] sm:$0xf]
      %v937 = vsel %vm225, %v870, 0
      %v940 = vsel %vm225, %v871, 0
      %v943 = vsel %vm225, %v872, 0
      %v946 = vsel %vm225, %v873, 0
      %v949 = vsel %vm225, %v874, 0
      %v952 = vsel %vm225, %v875, 0
      %v955 = vsel %vm225, %v876, 0
      %v958 = vsel %vm225, %v877, 0
      %v961 = vsel %vm225, %v878, 0
      %v964 = vsel %vm225, %v879, 0
      %v967 = vsel %vm225, %v880, 0
      %v970 = vsel %vm225, %v881, 0
      %v973 = vsel %vm225, %v882, 0
      %v976 = vsel %vm225, %v883, 0
      %v979 = vsel %vm225, %v884, 0
      %v982 = vsel %vm225, %v885, 0
      %v985 = vsel %vm225, %v886, 0
      %v988 = vsel %vm225, %v887, 0
      %v991 = vsel %vm225, %v888, 0
      %v994 = vsel %vm225, %v889, 0
      %v997 = vsel %vm225, %v890, 0
      %v1000 = vsel %vm225, %v891, 0
      %v1003 = vsel %vm225, %v892, 0
      %v1006 = vsel %vm225, %v893, 0
      %v1009 = vsel %vm225, %v894, 0
      %v1012 = vsel %vm225, %v895, 0
      %v1015 = vsel %vm225, %v896, 0
      %v1018 = vsel %vm225, %v897, 0
      %v1021 = vsel %vm225, %v898, 0
      %v1024 = vsel %vm225, %v899, 0
      %v1027 = vsel %vm225, %v900, 0
      %v1030 = vsel %vm225, %v901, 0
      %v1033 = vsel %vm577, %v935, 0
      %1035 = vmatprep.subr.mxu0 0.0
      %1036 = vmatpush1.msra.mxu0 %v1033
      %1037 = vmatprep.subr.mxu0 0.0
      %1038 = vmatpush1.msra.mxu0 0.0
      %1039 = vmatprep.subr.mxu0 0.0
      %1040 = vmatpush1.msra.mxu0 0.0
      %1041 = vmatprep.subr.mxu0 0.0
      %1042 = vmatpush1.msra.mxu0 0.0
      %1043 = vmatprep.subr.mxu0 0.0
      %1044 = vmatpush1.msra.mxu0 0.0
      %1045 = vmatprep.subr.mxu0 0.0
      %1046 = vmatpush1.msra.mxu0 0.0
      %1047 = vmatprep.subr.mxu0 0.0
      %1048 = vmatpush1.msra.mxu0 0.0
      %1049 = vmatprep.subr.mxu0 0.0
      %1050 = vmatpush1.msra.mxu0 0.0
      %1051 = vmatprep.subr.mxu0 0.0
      %1052 = vmatpush1.msra.mxu0 0.0
      %1053 = vmatprep.subr.mxu0 0.0
      %1054 = vmatpush1.msra.mxu0 0.0
      %1055 = vmatprep.subr.mxu0 0.0
      %1056 = vmatpush1.msra.mxu0 0.0
      %1057 = vmatprep.subr.mxu0 0.0
      %1058 = vmatpush1.msra.mxu0 0.0
      %1059 = vmatprep.subr.mxu0 0.0
      %1060 = vmatpush1.msra.mxu0 0.0
      %1061 = vmatprep.subr.mxu0 0.0
      %1062 = vmatpush1.msra.mxu0 0.0
      %1063 = vmatprep.subr.mxu0 0.0
      %1064 = vmatpush1.msra.mxu0 0.0
      %1065 = vmatprep.subr.mxu0 0.0
      %1066 = vmatpush1.msra.mxu0 0.0
      %1067 = vmatprep.subr.mxu0 0.0
      %1068 = vmatpush1.msra.mxu0 0.0
      %1069 = vmatprep.subr.mxu0 0.0
      %1070 = vmatpush1.msra.mxu0 0.0
      %1071 = vmatprep.subr.mxu0 0.0
      %1072 = vmatpush1.msra.mxu0 0.0
      %1073 = vmatprep.subr.mxu0 0.0
      %1074 = vmatpush1.msra.mxu0 0.0
      %1075 = vmatprep.subr.mxu0 0.0
      %1076 = vmatpush1.msra.mxu0 0.0
      %1077 = vmatprep.subr.mxu0 0.0
      %1078 = vmatpush1.msra.mxu0 0.0
      %1079 = vmatprep.subr.mxu0 0.0
      %1080 = vmatpush1.msra.mxu0 0.0
      %1081 = vmatprep.subr.mxu0 0.0
      %1082 = vmatpush1.msra.mxu0 0.0
      %1083 = vmatprep.subr.mxu0 0.0
      %1084 = vmatpush1.msra.mxu0 0.0
      %1085 = vmatprep.subr.mxu0 0.0
      %1086 = vmatpush1.msra.mxu0 0.0
      %1087 = vmatprep.subr.mxu0 0.0
      %1088 = vmatpush1.msra.mxu0 0.0
      %1089 = vmatprep.subr.mxu0 0.0
      %1090 = vmatpush1.msra.mxu0 0.0
      %1091 = vmatprep.subr.mxu0 0.0
      %1092 = vmatpush1.msra.mxu0 0.0
      %1093 = vmatprep.subr.mxu0 0.0
      %1094 = vmatpush1.msra.mxu0 0.0
      %1095 = vmatprep.subr.mxu0 0.0
      %1096 = vmatpush1.msra.mxu0 0.0
      %1097 = vmatprep.subr.mxu0 0.0
      %1098 = vmatpush1.msra.mxu0 0.0
      %1099 = vmatprep.mubr.f32.mxu0 0.0
      %1100 = vmatmul.mubr.f32.gmra.mrb[0].mxu0 %v937
      %v1101 = vpop.f32.mrb[0].mxu0
      %v1102 = vadd.f32 0.0, %v1101
      %v1103 = vpop.f32.mrb[0].mxu0
      %1104 = vmatprep.mubr.f32.mxu0 0.0
      %1105 = vmatmul.mubr.f32.gmra.mrb[0].mxu0 %v940
      %v1106 = vpop.f32.mrb[0].mxu0
      %v1107 = vadd.f32 0.0, %v1106
      %v1108 = vpop.f32.mrb[0].mxu0
      %1109 = vmatprep.mubr.f32.mxu0 0.0
      %1110 = vmatmul.mubr.f32.gmra.mrb[0].mxu0 %v943
      %v1111 = vpop.f32.mrb[0].mxu0
      %v1112 = vadd.f32 0.0, %v1111
      %v1113 = vpop.f32.mrb[0].mxu0
      %1114 = vmatprep.mubr.f32.mxu0 0.0
      %1115 = vmatmul.mubr.f32.gmra.mrb[0].mxu0 %v946
      %v1116 = vpop.f32.mrb[0].mxu0
      %v1117 = vadd.f32 0.0, %v1116
      %v1118 = vpop.f32.mrb[0].mxu0
      %1119 = vmatprep.mubr.f32.mxu0 0.0
      %1120 = vmatmul.mubr.f32.gmra.mrb[0].mxu0 %v949
      %v1121 = vpop.f32.mrb[0].mxu0
      %v1122 = vadd.f32 0.0, %v1121
      %v1123 = vpop.f32.mrb[0].mxu0
      %1124 = vmatprep.mubr.f32.mxu0 0.0
      %1125 = vmatmul.mubr.f32.gmra.mrb[0].mxu0 %v952
      %v1126 = vpop.f32.mrb[0].mxu0
      %v1127 = vadd.f32 0.0, %v1126
      %v1128 = vpop.f32.mrb[0].mxu0
      %1129 = vmatprep.mubr.f32.mxu0 0.0
      %1130 = vmatmul.mubr.f32.gmra.mrb[0].mxu0 %v955
      %v1131 = vpop.f32.mrb[0].mxu0
      %v1132 = vadd.f32 0.0, %v1131
      %v1133 = vpop.f32.mrb[0].mxu0
      %1134 = vmatprep.mubr.f32.mxu0 0.0
      %1135 = vmatmul.mubr.f32.gmra.mrb[0].mxu0 %v958
      %v1136 = vpop.f32.mrb[0].mxu0
      %v1137 = vadd.f32 0.0, %v1136
      %v1138 = vpop.f32.mrb[0].mxu0
      %1139 = vmatprep.mubr.f32.mxu0 0.0
      %1140 = vmatmul.mubr.f32.gmra.mrb[0].mxu0 %v961
      %v1141 = vpop.f32.mrb[0].mxu0
      %v1142 = vadd.f32 0.0, %v1141
      %v1143 = vpop.f32.mrb[0].mxu0
      %1144 = vmatprep.mubr.f32.mxu0 0.0
      %1145 = vmatmul.mubr.f32.gmra.mrb[0].mxu0 %v964
      %v1146 = vpop.f32.mrb[0].mxu0
      %v1147 = vadd.f32 0.0, %v1146
      %v1148 = vpop.f32.mrb[0].mxu0
      %1149 = vmatprep.mubr.f32.mxu0 0.0
      %1150 = vmatmul.mubr.f32.gmra.mrb[0].mxu0 %v967
      %v1151 = vpop.f32.mrb[0].mxu0
      %v1152 = vadd.f32 0.0, %v1151
      %v1153 = vpop.f32.mrb[0].mxu0
      %1154 = vmatprep.mubr.f32.mxu0 0.0
      %1155 = vmatmul.mubr.f32.gmra.mrb[0].mxu0 %v970
      %v1156 = vpop.f32.mrb[0].mxu0
      %v1157 = vadd.f32 0.0, %v1156
      %v1158 = vpop.f32.mrb[0].mxu0
      %1159 = vmatprep.mubr.f32.mxu0 0.0
      %1160 = vmatmul.mubr.f32.gmra.mrb[0].mxu0 %v973
      %v1161 = vpop.f32.mrb[0].mxu0
      %v1162 = vadd.f32 0.0, %v1161
      %v1163 = vpop.f32.mrb[0].mxu0
      %1164 = vmatprep.mubr.f32.mxu0 0.0
      %1165 = vmatmul.mubr.f32.gmra.mrb[0].mxu0 %v976
      %v1166 = vpop.f32.mrb[0].mxu0
      %v1167 = vadd.f32 0.0, %v1166
      %v1168 = vpop.f32.mrb[0].mxu0
      %1169 = vmatprep.mubr.f32.mxu0 0.0
      %1170 = vmatmul.mubr.f32.gmra.mrb[0].mxu0 %v979
      %v1171 = vpop.f32.mrb[0].mxu0
      %v1172 = vadd.f32 0.0, %v1171
      %v1173 = vpop.f32.mrb[0].mxu0
      %1174 = vmatprep.mubr.f32.mxu0 0.0
      %1175 = vmatmul.mubr.f32.gmra.mrb[0].mxu0 %v982
      %v1176 = vpop.f32.mrb[0].mxu0
      %v1177 = vadd.f32 0.0, %v1176
      %v1178 = vpop.f32.mrb[0].mxu0
      %1179 = vmatprep.mubr.f32.mxu0 0.0
      %1180 = vmatmul.mubr.f32.gmra.mrb[0].mxu0 %v985
      %v1181 = vpop.f32.mrb[0].mxu0
      %v1182 = vadd.f32 0.0, %v1181
      %v1183 = vpop.f32.mrb[0].mxu0
      %1184 = vmatprep.mubr.f32.mxu0 0.0
      %1185 = vmatmul.mubr.f32.gmra.mrb[0].mxu0 %v988
      %v1186 = vpop.f32.mrb[0].mxu0
      %v1187 = vadd.f32 0.0, %v1186
      %v1188 = vpop.f32.mrb[0].mxu0
      %1189 = vmatprep.mubr.f32.mxu0 0.0
      %1190 = vmatmul.mubr.f32.gmra.mrb[0].mxu0 %v991
      %v1191 = vpop.f32.mrb[0].mxu0
      %v1192 = vadd.f32 0.0, %v1191
      %v1193 = vpop.f32.mrb[0].mxu0
      %1194 = vmatprep.mubr.f32.mxu0 0.0
      %1195 = vmatmul.mubr.f32.gmra.mrb[0].mxu0 %v994
      %v1196 = vpop.f32.mrb[0].mxu0
      %v1197 = vadd.f32 0.0, %v1196
      %v1198 = vpop.f32.mrb[0].mxu0
      %1199 = vmatprep.mubr.f32.mxu0 0.0
      %1200 = vmatmul.mubr.f32.gmra.mrb[0].mxu0 %v997
      %v1201 = vpop.f32.mrb[0].mxu0
      %v1202 = vadd.f32 0.0, %v1201
      %v1203 = vpop.f32.mrb[0].mxu0
      %1204 = vmatprep.mubr.f32.mxu0 0.0
      %1205 = vmatmul.mubr.f32.gmra.mrb[0].mxu0 %v1000
      %v1206 = vpop.f32.mrb[0].mxu0
      %v1207 = vadd.f32 0.0, %v1206
      %v1208 = vpop.f32.mrb[0].mxu0
      %1209 = vmatprep.mubr.f32.mxu0 0.0
      %1210 = vmatmul.mubr.f32.gmra.mrb[0].mxu0 %v1003
      %v1211 = vpop.f32.mrb[0].mxu0
      %v1212 = vadd.f32 0.0, %v1211
      %v1213 = vpop.f32.mrb[0].mxu0
      %1214 = vmatprep.mubr.f32.mxu0 0.0
      %1215 = vmatmul.mubr.f32.gmra.mrb[0].mxu0 %v1006
      %v1216 = vpop.f32.mrb[0].mxu0
      %v1217 = vadd.f32 0.0, %v1216
      %v1218 = vpop.f32.mrb[0].mxu0
      %1219 = vmatprep.mubr.f32.mxu0 0.0
      %1220 = vmatmul.mubr.f32.gmra.mrb[0].mxu0 %v1009
      %v1221 = vpop.f32.mrb[0].mxu0
      %v1222 = vadd.f32 0.0, %v1221
      %v1223 = vpop.f32.mrb[0].mxu0
      %1224 = vmatprep.mubr.f32.mxu0 0.0
      %1225 = vmatmul.mubr.f32.gmra.mrb[0].mxu0 %v1012
      %v1226 = vpop.f32.mrb[0].mxu0
      %v1227 = vadd.f32 0.0, %v1226
      %v1228 = vpop.f32.mrb[0].mxu0
      %1229 = vmatprep.mubr.f32.mxu0 0.0
      %1230 = vmatmul.mubr.f32.gmra.mrb[0].mxu0 %v1015
      %v1231 = vpop.f32.mrb[0].mxu0
      %v1232 = vadd.f32 0.0, %v1231
      %v1233 = vpop.f32.mrb[0].mxu0
      %1234 = vmatprep.mubr.f32.mxu0 0.0
      %1235 = vmatmul.mubr.f32.gmra.mrb[0].mxu0 %v1018
      %v1236 = vpop.f32.mrb[0].mxu0
      %v1237 = vadd.f32 0.0, %v1236
      %v1238 = vpop.f32.mrb[0].mxu0
      %1239 = vmatprep.mubr.f32.mxu0 0.0
      %1240 = vmatmul.mubr.f32.gmra.mrb[0].mxu0 %v1021
      %v1241 = vpop.f32.mrb[0].mxu0
      %v1242 = vadd.f32 0.0, %v1241
      %v1243 = vpop.f32.mrb[0].mxu0
      %1244 = vmatprep.mubr.f32.mxu0 0.0
      %1245 = vmatmul.mubr.f32.gmra.mrb[0].mxu0 %v1024
      %v1246 = vpop.f32.mrb[0].mxu0
      %v1247 = vadd.f32 0.0, %v1246
      %v1248 = vpop.f32.mrb[0].mxu0
      %1249 = vmatprep.mubr.f32.mxu0 0.0
      %1250 = vmatmul.mubr.f32.gmra.mrb[0].mxu0 %v1027
      %v1251 = vpop.f32.mrb[0].mxu0
      %v1252 = vadd.f32 0.0, %v1251
      %v1253 = vpop.f32.mrb[0].mxu0
      %1254 = vmatprep.mubr.f32.mxu0 0.0
      %1255 = vmatmul.mubr.f32.gmra.mrb[0].mxu0 %v1030
      %v1256 = vpop.f32.mrb[0].mxu0
      %v1257 = vadd.f32 0.0, %v1256
      %v1258 = vpop.f32.mrb[0].mxu0
      %1259 = vdwg.mxu0
      %v1260 = vadd.f32 %v902, %v1102
      %v1261 = vadd.f32 %v903, %v1107
      %v1262 = vadd.f32 %v904, %v1112
      %v1263 = vadd.f32 %v905, %v1117
      %v1264 = vadd.f32 %v906, %v1122
      %v1265 = vadd.f32 %v907, %v1127
      %v1266 = vadd.f32 %v908, %v1132
      %v1267 = vadd.f32 %v909, %v1137
      %v1268 = vadd.f32 %v910, %v1142
      %v1269 = vadd.f32 %v911, %v1147
      %v1270 = vadd.f32 %v912, %v1152
      %v1271 = vadd.f32 %v913, %v1157
      %v1272 = vadd.f32 %v914, %v1162
      %v1273 = vadd.f32 %v915, %v1167
      %v1274 = vadd.f32 %v916, %v1172
      %v1275 = vadd.f32 %v917, %v1177
      %v1276 = vadd.f32 %v918, %v1182
      %v1277 = vadd.f32 %v919, %v1187
      %v1278 = vadd.f32 %v920, %v1192
      %v1279 = vadd.f32 %v921, %v1197
      %v1280 = vadd.f32 %v922, %v1202
      %v1281 = vadd.f32 %v923, %v1207
      %v1282 = vadd.f32 %v924, %v1212
      %v1283 = vadd.f32 %v925, %v1217
      %v1284 = vadd.f32 %v926, %v1222
      %v1285 = vadd.f32 %v927, %v1227
      %v1286 = vadd.f32 %v928, %v1232
      %v1287 = vadd.f32 %v929, %v1237
      %v1288 = vadd.f32 %v930, %v1242
      %v1289 = vadd.f32 %v931, %v1247
      %v1290 = vadd.f32 %v932, %v1252
      %v1291 = vadd.f32 %v933, %v1257
      %1292 = vst.msk [vmem:[#allocation4] sm:$0xff] %vm269, %v1260
      %1293 = vst.msk [vmem:[#allocation4 + $0x8] sm:$0xff] %vm269, %v1261
      %1294 = vst.msk [vmem:[#allocation4 + $0x10] sm:$0xff] %vm269, %v1262
      %1295 = vst.msk [vmem:[#allocation4 + $0x18] sm:$0xff] %vm269, %v1263
      %1296 = vst.msk [vmem:[#allocation4 + $0x20] sm:$0xff] %vm269, %v1264
      %1297 = vst.msk [vmem:[#allocation4 + $0x28] sm:$0xff] %vm269, %v1265
      %1298 = vst.msk [vmem:[#allocation4 + $0x30] sm:$0xff] %vm269, %v1266
      %1299 = vst.msk [vmem:[#allocation4 + $0x38] sm:$0xff] %vm269, %v1267
      %1300 = vst.msk [vmem:[#allocation4 + $0x40] sm:$0xff] %vm269, %v1268
      %1301 = vst.msk [vmem:[#allocation4 + $0x48] sm:$0xff] %vm269, %v1269
      %1302 = vst.msk [vmem:[#allocation4 + $0x50] sm:$0xff] %vm269, %v1270
      %1303 = vst.msk [vmem:[#allocation4 + $0x58] sm:$0xff] %vm269, %v1271
      %1304 = vst.msk [vmem:[#allocation4 + $0x60] sm:$0xff] %vm269, %v1272
      %1305 = vst.msk [vmem:[#allocation4 + $0x68] sm:$0xff] %vm269, %v1273
      %1306 = vst.msk [vmem:[#allocation4 + $0x70] sm:$0xff] %vm269, %v1274
      %1307 = vst.msk [vmem:[#allocation4 + $0x78] sm:$0xff] %vm269, %v1275
      %1308 = vst.msk [vmem:[#allocation4 + $0x80] sm:$0xff] %vm269, %v1276
      %1309 = vst.msk [vmem:[#allocation4 + $0x88] sm:$0xff] %vm269, %v1277
      %1310 = vst.msk [vmem:[#allocation4 + $0x90] sm:$0xff] %vm269, %v1278
      %1311 = vst.msk [vmem:[#allocation4 + $0x98] sm:$0xff] %vm269, %v1279
      %1312 = vst.msk [vmem:[#allocation4 + $0xa0] sm:$0xff] %vm269, %v1280
      %1313 = vst.msk [vmem:[#allocation4 + $0xa8] sm:$0xff] %vm269, %v1281
      %1314 = vst.msk [vmem:[#allocation4 + $0xb0] sm:$0xff] %vm269, %v1282
      %1315 = vst.msk [vmem:[#allocation4 + $0xb8] sm:$0xff] %vm269, %v1283
      %1316 = vst.msk [vmem:[#allocation4 + $0xc0] sm:$0xff] %vm269, %v1284
      %1317 = vst.msk [vmem:[#allocation4 + $0xc8] sm:$0xff] %vm269, %v1285
      %1318 = vst.msk [vmem:[#allocation4 + $0xd0] sm:$0xff] %vm269, %v1286
      %1319 = vst.msk [vmem:[#allocation4 + $0xd8] sm:$0xff] %vm269, %v1287
      %1320 = vst.msk [vmem:[#allocation4 + $0xe0] sm:$0xff] %vm269, %v1288
      %1321 = vst.msk [vmem:[#allocation4 + $0xe8] sm:$0xff] %vm269, %v1289
      %1322 = vst.msk [vmem:[#allocation4 + $0xf0] sm:$0xff] %vm269, %v1290
      %1323 = vst.msk [vmem:[#allocation4 + $0xf8] sm:$0xff] %vm269, %v1291
      %v1324 = vld [vmem:[#allocation2 + $0x9] sm:$0xff]
      %v1325 = vld [vmem:[#allocation2 + $0x11] sm:$0xff]
      %v1326 = vld [vmem:[#allocation2 + $0x29] sm:$0xff]
      %v1327 = vld [vmem:[#allocation2 + $0x31] sm:$0xff]
      %v1328 = vld [vmem:[#allocation2 + $0x49] sm:$0xff]
      %v1329 = vld [vmem:[#allocation2 + $0x51] sm:$0xff]
      %v1330 = vld [vmem:[#allocation2 + $0x69] sm:$0xff]
      %v1331 = vld [vmem:[#allocation2 + $0x71] sm:$0xff]
      %v1332 = vld [vmem:[#allocation2 + $0x89] sm:$0xff]
      %v1333 = vld [vmem:[#allocation2 + $0x91] sm:$0xff]
      %v1334 = vld [vmem:[#allocation2 + $0xa9] sm:$0xff]
      %v1335 = vld [vmem:[#allocation2 + $0xb1] sm:$0xff]
      %v1336 = vld [vmem:[#allocation2 + $0xc9] sm:$0xff]
      %v1337 = vld [vmem:[#allocation2 + $0xd1] sm:$0xff]
      %v1338 = vld [vmem:[#allocation2 + $0xe9] sm:$0xff]
      %v1339 = vld [vmem:[#allocation2 + $0xf1] sm:$0xff]
      %v1340 = vld [vmem:[#allocation2 + $0x109] sm:$0xff]
      %v1341 = vld [vmem:[#allocation2 + $0x111] sm:$0xff]
      %v1342 = vld [vmem:[#allocation2 + $0x129] sm:$0xff]
      %v1343 = vld [vmem:[#allocation2 + $0x131] sm:$0xff]
      %v1344 = vld [vmem:[#allocation2 + $0x149] sm:$0xff]
      %v1345 = vld [vmem:[#allocation2 + $0x151] sm:$0xff]
      %v1346 = vld [vmem:[#allocation2 + $0x169] sm:$0xff]
      %v1347 = vld [vmem:[#allocation2 + $0x171] sm:$0xff]
      %v1348 = vld [vmem:[#allocation2 + $0x189] sm:$0xff]
      %v1349 = vld [vmem:[#allocation2 + $0x191] sm:$0xff]
      %v1350 = vld [vmem:[#allocation2 + $0x1a9] sm:$0xff]
      %v1351 = vld [vmem:[#allocation2 + $0x1b1] sm:$0xff]
      %v1352 = vld [vmem:[#allocation2 + $0x1c9] sm:$0xff]
      %v1353 = vld [vmem:[#allocation2 + $0x1d1] sm:$0xff]
      %v1354 = vld [vmem:[#allocation2 + $0x1e9] sm:$0xff]
      %v1355 = vld [vmem:[#allocation2 + $0x1f1] sm:$0xff]
      %v1356 = vld [vmem:[#allocation4] sm:$0xff]
      %v1357 = vld [vmem:[#allocation4 + $0x8] sm:$0xff]
      %v1358 = vld [vmem:[#allocation4 + $0x10] sm:$0xff]
      %v1359 = vld [vmem:[#allocation4 + $0x18] sm:$0xff]
      %v1360 = vld [vmem:[#allocation4 + $0x20] sm:$0xff]
      %v1361 = vld [vmem:[#allocation4 + $0x28] sm:$0xff]
      %v1362 = vld [vmem:[#allocation4 + $0x30] sm:$0xff]
      %v1363 = vld [vmem:[#allocation4 + $0x38] sm:$0xff]
      %v1364 = vld [vmem:[#allocation4 + $0x40] sm:$0xff]
      %v1365 = vld [vmem:[#allocation4 + $0x48] sm:$0xff]
      %v1366 = vld [vmem:[#allocation4 + $0x50] sm:$0xff]
      %v1367 = vld [vmem:[#allocation4 + $0x58] sm:$0xff]
      %v1368 = vld [vmem:[#allocation4 + $0x60] sm:$0xff]
      %v1369 = vld [vmem:[#allocation4 + $0x68] sm:$0xff]
      %v1370 = vld [vmem:[#allocation4 + $0x70] sm:$0xff]
      %v1371 = vld [vmem:[#allocation4 + $0x78] sm:$0xff]
      %v1372 = vld [vmem:[#allocation4 + $0x80] sm:$0xff]
      %v1373 = vld [vmem:[#allocation4 + $0x88] sm:$0xff]
      %v1374 = vld [vmem:[#allocation4 + $0x90] sm:$0xff]
      %v1375 = vld [vmem:[#allocation4 + $0x98] sm:$0xff]
      %v1376 = vld [vmem:[#allocation4 + $0xa0] sm:$0xff]
      %v1377 = vld [vmem:[#allocation4 + $0xa8] sm:$0xff]
      %v1378 = vld [vmem:[#allocation4 + $0xb0] sm:$0xff]
      %v1379 = vld [vmem:[#allocation4 + $0xb8] sm:$0xff]
      %v1380 = vld [vmem:[#allocation4 + $0xc0] sm:$0xff]
      %v1381 = vld [vmem:[#allocation4 + $0xc8] sm:$0xff]
      %v1382 = vld [vmem:[#allocation4 + $0xd0] sm:$0xff]
      %v1383 = vld [vmem:[#allocation4 + $0xd8] sm:$0xff]
      %v1384 = vld [vmem:[#allocation4 + $0xe0] sm:$0xff]
      %v1385 = vld [vmem:[#allocation4 + $0xe8] sm:$0xff]
      %v1386 = vld [vmem:[#allocation4 + $0xf0] sm:$0xff]
      %v1387 = vld [vmem:[#allocation4 + $0xf8] sm:$0xff]
      %s1388 = scalar_lea.vmem %s1, 8
      %v1389 = vld [vmem:[%s1388] sm:$0xf]
      %v1391 = vsel %vm225, %v1324, 0
      %v1394 = vsel %vm225, %v1325, 0
      %v1397 = vsel %vm225, %v1326, 0
      %v1400 = vsel %vm225, %v1327, 0
      %v1403 = vsel %vm225, %v1328, 0
      %v1406 = vsel %vm225, %v1329, 0
      %v1409 = vsel %vm225, %v1330, 0
      %v1412 = vsel %vm225, %v1331, 0
      %v1415 = vsel %vm225, %v1332, 0
      %v1418 = vsel %vm225, %v1333, 0
      %v1421 = vsel %vm225, %v1334, 0
      %v1424 = vsel %vm225, %v1335, 0
      %v1427 = vsel %vm225, %v1336, 0
      %v1430 = vsel %vm225, %v1337, 0
      %v1433 = vsel %vm225, %v1338, 0
      %v1436 = vsel %vm225, %v1339, 0
      %v1439 = vsel %vm225, %v1340, 0
      %v1442 = vsel %vm225, %v1341, 0
      %v1445 = vsel %vm225, %v1342, 0
      %v1448 = vsel %vm225, %v1343, 0
      %v1451 = vsel %vm225, %v1344, 0
      %v1454 = vsel %vm225, %v1345, 0
      %v1457 = vsel %vm225, %v1346, 0
      %v1460 = vsel %vm225, %v1347, 0
      %v1463 = vsel %vm225, %v1348, 0
      %v1466 = vsel %vm225, %v1349, 0
      %v1469 = vsel %vm225, %v1350, 0
      %v1472 = vsel %vm225, %v1351, 0
      %v1475 = vsel %vm225, %v1352, 0
      %v1478 = vsel %vm225, %v1353, 0
      %v1481 = vsel %vm225, %v1354, 0
      %v1484 = vsel %vm225, %v1355, 0
      %v1487 = vsel %vm577, %v1389, 0
      %1489 = vmatprep.subr.mxu0 0.0
      %1490 = vmatpush1.msra.mxu0 %v1487
      %1491 = vmatprep.subr.mxu0 0.0
      %1492 = vmatpush1.msra.mxu0 0.0
      %1493 = vmatprep.subr.mxu0 0.0
      %1494 = vmatpush1.msra.mxu0 0.0
      %1495 = vmatprep.subr.mxu0 0.0
      %1496 = vmatpush1.msra.mxu0 0.0
      %1497 = vmatprep.subr.mxu0 0.0
      %1498 = vmatpush1.msra.mxu0 0.0
      %1499 = vmatprep.subr.mxu0 0.0
      %1500 = vmatpush1.msra.mxu0 0.0
      %1501 = vmatprep.subr.mxu0 0.0
      %1502 = vmatpush1.msra.mxu0 0.0
      %1503 = vmatprep.subr.mxu0 0.0
      %1504 = vmatpush1.msra.mxu0 0.0
      %1505 = vmatprep.subr.mxu0 0.0
      %1506 = vmatpush1.msra.mxu0 0.0
      %1507 = vmatprep.subr.mxu0 0.0
      %1508 = vmatpush1.msra.mxu0 0.0
      %1509 = vmatprep.subr.mxu0 0.0
      %1510 = vmatpush1.msra.mxu0 0.0
      %1511 = vmatprep.subr.mxu0 0.0
      %1512 = vmatpush1.msra.mxu0 0.0
      %1513 = vmatprep.subr.mxu0 0.0
      %1514 = vmatpush1.msra.mxu0 0.0
      %1515 = vmatprep.subr.mxu0 0.0
      %1516 = vmatpush1.msra.mxu0 0.0
      %1517 = vmatprep.subr.mxu0 0.0
      %1518 = vmatpush1.msra.mxu0 0.0
      %1519 = vmatprep.subr.mxu0 0.0
      %1520 = vmatpush1.msra.mxu0 0.0
      %1521 = vmatprep.subr.mxu0 0.0
      %1522 = vmatpush1.msra.mxu0 0.0
      %1523 = vmatprep.subr.mxu0 0.0
      %1524 = vmatpush1.msra.mxu0 0.0
      %1525 = vmatprep.subr.mxu0 0.0
      %1526 = vmatpush1.msra.mxu0 0.0
      %1527 = vmatprep.subr.mxu0 0.0
      %1528 = vmatpush1.msra.mxu0 0.0
      %1529 = vmatprep.subr.mxu0 0.0
      %1530 = vmatpush1.msra.mxu0 0.0
      %1531 = vmatprep.subr.mxu0 0.0
      %1532 = vmatpush1.msra.mxu0 0.0
      %1533 = vmatprep.subr.mxu0 0.0
      %1534 = vmatpush1.msra.mxu0 0.0
      %1535 = vmatprep.subr.mxu0 0.0
      %1536 = vmatpush1.msra.mxu0 0.0
      %1537 = vmatprep.subr.mxu0 0.0
      %1538 = vmatpush1.msra.mxu0 0.0
      %1539 = vmatprep.subr.mxu0 0.0
      %1540 = vmatpush1.msra.mxu0 0.0
      %1541 = vmatprep.subr.mxu0 0.0
      %1542 = vmatpush1.msra.mxu0 0.0
      %1543 = vmatprep.subr.mxu0 0.0
      %1544 = vmatpush1.msra.mxu0 0.0
      %1545 = vmatprep.subr.mxu0 0.0
      %1546 = vmatpush1.msra.mxu0 0.0
      %1547 = vmatprep.subr.mxu0 0.0
      %1548 = vmatpush1.msra.mxu0 0.0
      %1549 = vmatprep.subr.mxu0 0.0
      %1550 = vmatpush1.msra.mxu0 0.0
      %1551 = vmatprep.subr.mxu0 0.0
      %1552 = vmatpush1.msra.mxu0 0.0
      %1553 = vmatprep.mubr.f32.mxu0 0.0
      %1554 = vmatmul.mubr.f32.gmra.mrb[0].mxu0 %v1391
      %v1555 = vpop.f32.mrb[0].mxu0
      %v1556 = vadd.f32 0.0, %v1555
      %v1557 = vpop.f32.mrb[0].mxu0
      %1558 = vmatprep.mubr.f32.mxu0 0.0
      %1559 = vmatmul.mubr.f32.gmra.mrb[0].mxu0 %v1394
      %v1560 = vpop.f32.mrb[0].mxu0
      %v1561 = vadd.f32 0.0, %v1560
      %v1562 = vpop.f32.mrb[0].mxu0
      %1563 = vmatprep.mubr.f32.mxu0 0.0
      %1564 = vmatmul.mubr.f32.gmra.mrb[0].mxu0 %v1397
      %v1565 = vpop.f32.mrb[0].mxu0
      %v1566 = vadd.f32 0.0, %v1565
      %v1567 = vpop.f32.mrb[0].mxu0
      %1568 = vmatprep.mubr.f32.mxu0 0.0
      %1569 = vmatmul.mubr.f32.gmra.mrb[0].mxu0 %v1400
      %v1570 = vpop.f32.mrb[0].mxu0
      %v1571 = vadd.f32 0.0, %v1570
      %v1572 = vpop.f32.mrb[0].mxu0
      %1573 = vmatprep.mubr.f32.mxu0 0.0
      %1574 = vmatmul.mubr.f32.gmra.mrb[0].mxu0 %v1403
      %v1575 = vpop.f32.mrb[0].mxu0
      %v1576 = vadd.f32 0.0, %v1575
      %v1577 = vpop.f32.mrb[0].mxu0
      %1578 = vmatprep.mubr.f32.mxu0 0.0
      %1579 = vmatmul.mubr.f32.gmra.mrb[0].mxu0 %v1406
      %v1580 = vpop.f32.mrb[0].mxu0
      %v1581 = vadd.f32 0.0, %v1580
      %v1582 = vpop.f32.mrb[0].mxu0
      %1583 = vmatprep.mubr.f32.mxu0 0.0
      %1584 = vmatmul.mubr.f32.gmra.mrb[0].mxu0 %v1409
      %v1585 = vpop.f32.mrb[0].mxu0
      %v1586 = vadd.f32 0.0, %v1585
      %v1587 = vpop.f32.mrb[0].mxu0
      %1588 = vmatprep.mubr.f32.mxu0 0.0
      %1589 = vmatmul.mubr.f32.gmra.mrb[0].mxu0 %v1412
      %v1590 = vpop.f32.mrb[0].mxu0
      %v1591 = vadd.f32 0.0, %v1590
      %v1592 = vpop.f32.mrb[0].mxu0
      %1593 = vmatprep.mubr.f32.mxu0 0.0
      %1594 = vmatmul.mubr.f32.gmra.mrb[0].mxu0 %v1415
      %v1595 = vpop.f32.mrb[0].mxu0
      %v1596 = vadd.f32 0.0, %v1595
      %v1597 = vpop.f32.mrb[0].mxu0
      %1598 = vmatprep.mubr.f32.mxu0 0.0
      %1599 = vmatmul.mubr.f32.gmra.mrb[0].mxu0 %v1418
      %v1600 = vpop.f32.mrb[0].mxu0
      %v1601 = vadd.f32 0.0, %v1600
      %v1602 = vpop.f32.mrb[0].mxu0
      %1603 = vmatprep.mubr.f32.mxu0 0.0
      %1604 = vmatmul.mubr.f32.gmra.mrb[0].mxu0 %v1421
      %v1605 = vpop.f32.mrb[0].mxu0
      %v1606 = vadd.f32 0.0, %v1605
      %v1607 = vpop.f32.mrb[0].mxu0
      %1608 = vmatprep.mubr.f32.mxu0 0.0
      %1609 = vmatmul.mubr.f32.gmra.mrb[0].mxu0 %v1424
      %v1610 = vpop.f32.mrb[0].mxu0
      %v1611 = vadd.f32 0.0, %v1610
      %v1612 = vpop.f32.mrb[0].mxu0
      %1613 = vmatprep.mubr.f32.mxu0 0.0
      %1614 = vmatmul.mubr.f32.gmra.mrb[0].mxu0 %v1427
      %v1615 = vpop.f32.mrb[0].mxu0
      %v1616 = vadd.f32 0.0, %v1615
      %v1617 = vpop.f32.mrb[0].mxu0
      %1618 = vmatprep.mubr.f32.mxu0 0.0
      %1619 = vmatmul.mubr.f32.gmra.mrb[0].mxu0 %v1430
      %v1620 = vpop.f32.mrb[0].mxu0
      %v1621 = vadd.f32 0.0, %v1620
      %v1622 = vpop.f32.mrb[0].mxu0
      %1623 = vmatprep.mubr.f32.mxu0 0.0
      %1624 = vmatmul.mubr.f32.gmra.mrb[0].mxu0 %v1433
      %v1625 = vpop.f32.mrb[0].mxu0
      %v1626 = vadd.f32 0.0, %v1625
      %v1627 = vpop.f32.mrb[0].mxu0
      %1628 = vmatprep.mubr.f32.mxu0 0.0
      %1629 = vmatmul.mubr.f32.gmra.mrb[0].mxu0 %v1436
      %v1630 = vpop.f32.mrb[0].mxu0
      %v1631 = vadd.f32 0.0, %v1630
      %v1632 = vpop.f32.mrb[0].mxu0
      %1633 = vmatprep.mubr.f32.mxu0 0.0
      %1634 = vmatmul.mubr.f32.gmra.mrb[0].mxu0 %v1439
      %v1635 = vpop.f32.mrb[0].mxu0
      %v1636 = vadd.f32 0.0, %v1635
      %v1637 = vpop.f32.mrb[0].mxu0
      %1638 = vmatprep.mubr.f32.mxu0 0.0
      %1639 = vmatmul.mubr.f32.gmra.mrb[0].mxu0 %v1442
      %v1640 = vpop.f32.mrb[0].mxu0
      %v1641 = vadd.f32 0.0, %v1640
      %v1642 = vpop.f32.mrb[0].mxu0
      %1643 = vmatprep.mubr.f32.mxu0 0.0
      %1644 = vmatmul.mubr.f32.gmra.mrb[0].mxu0 %v1445
      %v1645 = vpop.f32.mrb[0].mxu0
      %v1646 = vadd.f32 0.0, %v1645
      %v1647 = vpop.f32.mrb[0].mxu0
      %1648 = vmatprep.mubr.f32.mxu0 0.0
      %1649 = vmatmul.mubr.f32.gmra.mrb[0].mxu0 %v1448
      %v1650 = vpop.f32.mrb[0].mxu0
      %v1651 = vadd.f32 0.0, %v1650
      %v1652 = vpop.f32.mrb[0].mxu0
      %1653 = vmatprep.mubr.f32.mxu0 0.0
      %1654 = vmatmul.mubr.f32.gmra.mrb[0].mxu0 %v1451
      %v1655 = vpop.f32.mrb[0].mxu0
      %v1656 = vadd.f32 0.0, %v1655
      %v1657 = vpop.f32.mrb[0].mxu0
      %1658 = vmatprep.mubr.f32.mxu0 0.0
      %1659 = vmatmul.mubr.f32.gmra.mrb[0].mxu0 %v1454
      %v1660 = vpop.f32.mrb[0].mxu0
      %v1661 = vadd.f32 0.0, %v1660
      %v1662 = vpop.f32.mrb[0].mxu0
      %1663 = vmatprep.mubr.f32.mxu0 0.0
      %1664 = vmatmul.mubr.f32.gmra.mrb[0].mxu0 %v1457
      %v1665 = vpop.f32.mrb[0].mxu0
      %v1666 = vadd.f32 0.0, %v1665
      %v1667 = vpop.f32.mrb[0].mxu0
      %1668 = vmatprep.mubr.f32.mxu0 0.0
      %1669 = vmatmul.mubr.f32.gmra.mrb[0].mxu0 %v1460
      %v1670 = vpop.f32.mrb[0].mxu0
      %v1671 = vadd.f32 0.0, %v1670
      %v1672 = vpop.f32.mrb[0].mxu0
      %1673 = vmatprep.mubr.f32.mxu0 0.0
      %1674 = vmatmul.mubr.f32.gmra.mrb[0].mxu0 %v1463
      %v1675 = vpop.f32.mrb[0].mxu0
      %v1676 = vadd.f32 0.0, %v1675
      %v1677 = vpop.f32.mrb[0].mxu0
      %1678 = vmatprep.mubr.f32.mxu0 0.0
      %1679 = vmatmul.mubr.f32.gmra.mrb[0].mxu0 %v1466
      %v1680 = vpop.f32.mrb[0].mxu0
      %v1681 = vadd.f32 0.0, %v1680
      %v1682 = vpop.f32.mrb[0].mxu0
      %1683 = vmatprep.mubr.f32.mxu0 0.0
      %1684 = vmatmul.mubr.f32.gmra.mrb[0].mxu0 %v1469
      %v1685 = vpop.f32.mrb[0].mxu0
      %v1686 = vadd.f32 0.0, %v1685
      %v1687 = vpop.f32.mrb[0].mxu0
      %1688 = vmatprep.mubr.f32.mxu0 0.0
      %1689 = vmatmul.mubr.f32.gmra.mrb[0].mxu0 %v1472
      %v1690 = vpop.f32.mrb[0].mxu0
      %v1691 = vadd.f32 0.0, %v1690
      %v1692 = vpop.f32.mrb[0].mxu0
      %1693 = vmatprep.mubr.f32.mxu0 0.0
      %1694 = vmatmul.mubr.f32.gmra.mrb[0].mxu0 %v1475
      %v1695 = vpop.f32.mrb[0].mxu0
      %v1696 = vadd.f32 0.0, %v1695
      %v1697 = vpop.f32.mrb[0].mxu0
      %1698 = vmatprep.mubr.f32.mxu0 0.0
      %1699 = vmatmul.mubr.f32.gmra.mrb[0].mxu0 %v1478
      %v1700 = vpop.f32.mrb[0].mxu0
      %v1701 = vadd.f32 0.0, %v1700
      %v1702 = vpop.f32.mrb[0].mxu0
      %1703 = vmatprep.mubr.f32.mxu0 0.0
      %1704 = vmatmul.mubr.f32.gmra.mrb[0].mxu0 %v1481
      %v1705 = vpop.f32.mrb[0].mxu0
      %v1706 = vadd.f32 0.0, %v1705
      %v1707 = vpop.f32.mrb[0].mxu0
      %1708 = vmatprep.mubr.f32.mxu0 0.0
      %1709 = vmatmul.mubr.f32.gmra.mrb[0].mxu0 %v1484
      %v1710 = vpop.f32.mrb[0].mxu0
      %v1711 = vadd.f32 0.0, %v1710
      %v1712 = vpop.f32.mrb[0].mxu0
      %1713 = vdwg.mxu0
      %v1714 = vadd.f32 %v1356, %v1556
      %v1715 = vadd.f32 %v1357, %v1561
      %v1716 = vadd.f32 %v1358, %v1566
      %v1717 = vadd.f32 %v1359, %v1571
      %v1718 = vadd.f32 %v1360, %v1576
      %v1719 = vadd.f32 %v1361, %v1581
      %v1720 = vadd.f32 %v1362, %v1586
      %v1721 = vadd.f32 %v1363, %v1591
      %v1722 = vadd.f32 %v1364, %v1596
      %v1723 = vadd.f32 %v1365, %v1601
      %v1724 = vadd.f32 %v1366, %v1606
      %v1725 = vadd.f32 %v1367, %v1611
      %v1726 = vadd.f32 %v1368, %v1616
      %v1727 = vadd.f32 %v1369, %v1621
      %v1728 = vadd.f32 %v1370, %v1626
      %v1729 = vadd.f32 %v1371, %v1631
      %v1730 = vadd.f32 %v1372, %v1636
      %v1731 = vadd.f32 %v1373, %v1641
      %v1732 = vadd.f32 %v1374, %v1646
      %v1733 = vadd.f32 %v1375, %v1651
      %v1734 = vadd.f32 %v1376, %v1656
      %v1735 = vadd.f32 %v1377, %v1661
      %v1736 = vadd.f32 %v1378, %v1666
      %v1737 = vadd.f32 %v1379, %v1671
      %v1738 = vadd.f32 %v1380, %v1676
      %v1739 = vadd.f32 %v1381, %v1681
      %v1740 = vadd.f32 %v1382, %v1686
      %v1741 = vadd.f32 %v1383, %v1691
      %v1742 = vadd.f32 %v1384, %v1696
      %v1743 = vadd.f32 %v1385, %v1701
      %v1744 = vadd.f32 %v1386, %v1706
      %v1745 = vadd.f32 %v1387, %v1711
      %1746 = vst.msk [vmem:[#allocation4] sm:$0xff] %vm269, %v1714
      %1747 = vst.msk [vmem:[#allocation4 + $0x8] sm:$0xff] %vm269, %v1715
      %1748 = vst.msk [vmem:[#allocation4 + $0x10] sm:$0xff] %vm269, %v1716
      %1749 = vst.msk [vmem:[#allocation4 + $0x18] sm:$0xff] %vm269, %v1717
      %1750 = vst.msk [vmem:[#allocation4 + $0x20] sm:$0xff] %vm269, %v1718
      %1751 = vst.msk [vmem:[#allocation4 + $0x28] sm:$0xff] %vm269, %v1719
      %1752 = vst.msk [vmem:[#allocation4 + $0x30] sm:$0xff] %vm269, %v1720
      %1753 = vst.msk [vmem:[#allocation4 + $0x38] sm:$0xff] %vm269, %v1721
      %1754 = vst.msk [vmem:[#allocation4 + $0x40] sm:$0xff] %vm269, %v1722
      %1755 = vst.msk [vmem:[#allocation4 + $0x48] sm:$0xff] %vm269, %v1723
      %1756 = vst.msk [vmem:[#allocation4 + $0x50] sm:$0xff] %vm269, %v1724
      %1757 = vst.msk [vmem:[#allocation4 + $0x58] sm:$0xff] %vm269, %v1725
      %1758 = vst.msk [vmem:[#allocation4 + $0x60] sm:$0xff] %vm269, %v1726
      %1759 = vst.msk [vmem:[#allocation4 + $0x68] sm:$0xff] %vm269, %v1727
      %1760 = vst.msk [vmem:[#allocation4 + $0x70] sm:$0xff] %vm269, %v1728
      %1761 = vst.msk [vmem:[#allocation4 + $0x78] sm:$0xff] %vm269, %v1729
      %1762 = vst.msk [vmem:[#allocation4 + $0x80] sm:$0xff] %vm269, %v1730
      %1763 = vst.msk [vmem:[#allocation4 + $0x88] sm:$0xff] %vm269, %v1731
      %1764 = vst.msk [vmem:[#allocation4 + $0x90] sm:$0xff] %vm269, %v1732
      %1765 = vst.msk [vmem:[#allocation4 + $0x98] sm:$0xff] %vm269, %v1733
      %1766 = vst.msk [vmem:[#allocation4 + $0xa0] sm:$0xff] %vm269, %v1734
      %1767 = vst.msk [vmem:[#allocation4 + $0xa8] sm:$0xff] %vm269, %v1735
      %1768 = vst.msk [vmem:[#allocation4 + $0xb0] sm:$0xff] %vm269, %v1736
      %1769 = vst.msk [vmem:[#allocation4 + $0xb8] sm:$0xff] %vm269, %v1737
      %1770 = vst.msk [vmem:[#allocation4 + $0xc0] sm:$0xff] %vm269, %v1738
      %1771 = vst.msk [vmem:[#allocation4 + $0xc8] sm:$0xff] %vm269, %v1739
      %1772 = vst.msk [vmem:[#allocation4 + $0xd0] sm:$0xff] %vm269, %v1740
      %1773 = vst.msk [vmem:[#allocation4 + $0xd8] sm:$0xff] %vm269, %v1741
      %1774 = vst.msk [vmem:[#allocation4 + $0xe0] sm:$0xff] %vm269, %v1742
      %1775 = vst.msk [vmem:[#allocation4 + $0xe8] sm:$0xff] %vm269, %v1743
      %1776 = vst.msk [vmem:[#allocation4 + $0xf0] sm:$0xff] %vm269, %v1744
      %1777 = vst.msk [vmem:[#allocation4 + $0xf8] sm:$0xff] %vm269, %v1745
      %v1778 = vld [vmem:[%s236 + $0x7] sm:$0xff]
      %v1779 = vld [vmem:[%s236 + $0xf] sm:$0xff]
      %v1780 = vld [vmem:[%s236 + $0x27] sm:$0xff]
      %v1781 = vld [vmem:[%s236 + $0x2f] sm:$0xff]
      %v1782 = vld [vmem:[%s236 + $0x47] sm:$0xff]
      %v1783 = vld [vmem:[%s236 + $0x4f] sm:$0xff]
      %v1784 = vld [vmem:[%s236 + $0x67] sm:$0xff]
      %v1785 = vld [vmem:[%s236 + $0x6f] sm:$0xff]
      %v1786 = vld [vmem:[%s236 + $0x87] sm:$0xff]
      %v1787 = vld [vmem:[%s236 + $0x8f] sm:$0xff]
      %v1788 = vld [vmem:[%s236 + $0xa7] sm:$0xff]
      %v1789 = vld [vmem:[%s236 + $0xaf] sm:$0xff]
      %v1790 = vld [vmem:[%s236 + $0xc7] sm:$0xff]
      %v1791 = vld [vmem:[%s236 + $0xcf] sm:$0xff]
      %v1792 = vld [vmem:[%s236 + $0xe7] sm:$0xff]
      %v1793 = vld [vmem:[%s236 + $0xef] sm:$0xff]
      %v1794 = vld [vmem:[%s236 + $0x107] sm:$0xff]
      %v1795 = vld [vmem:[%s236 + $0x10f] sm:$0xff]
      %v1796 = vld [vmem:[%s236 + $0x127] sm:$0xff]
      %v1797 = vld [vmem:[%s236 + $0x12f] sm:$0xff]
      %v1798 = vld [vmem:[%s236 + $0x147] sm:$0xff]
      %v1799 = vld [vmem:[%s236 + $0x14f] sm:$0xff]
      %v1800 = vld [vmem:[%s236 + $0x167] sm:$0xff]
      %v1801 = vld [vmem:[%s236 + $0x16f] sm:$0xff]
      %v1802 = vld [vmem:[%s236 + $0x187] sm:$0xff]
      %v1803 = vld [vmem:[%s236 + $0x18f] sm:$0xff]
      %v1804 = vld [vmem:[%s236 + $0x1a7] sm:$0xff]
      %v1805 = vld [vmem:[%s236 + $0x1af] sm:$0xff]
      %v1806 = vld [vmem:[%s236 + $0x1c7] sm:$0xff]
      %v1807 = vld [vmem:[%s236 + $0x1cf] sm:$0xff]
      %v1808 = vld [vmem:[%s236 + $0x1e7] sm:$0xff]
      %v1809 = vld [vmem:[%s236 + $0x1ef] sm:$0xff]
      %v1810 = vld [vmem:[#allocation4] sm:$0xff]
      %v1811 = vld [vmem:[#allocation4 + $0x8] sm:$0xff]
      %v1812 = vld [vmem:[#allocation4 + $0x10] sm:$0xff]
      %v1813 = vld [vmem:[#allocation4 + $0x18] sm:$0xff]
      %v1814 = vld [vmem:[#allocation4 + $0x20] sm:$0xff]
      %v1815 = vld [vmem:[#allocation4 + $0x28] sm:$0xff]
      %v1816 = vld [vmem:[#allocation4 + $0x30] sm:$0xff]
      %v1817 = vld [vmem:[#allocation4 + $0x38] sm:$0xff]
      %v1818 = vld [vmem:[#allocation4 + $0x40] sm:$0xff]
      %v1819 = vld [vmem:[#allocation4 + $0x48] sm:$0xff]
      %v1820 = vld [vmem:[#allocation4 + $0x50] sm:$0xff]
      %v1821 = vld [vmem:[#allocation4 + $0x58] sm:$0xff]
      %v1822 = vld [vmem:[#allocation4 + $0x60] sm:$0xff]
      %v1823 = vld [vmem:[#allocation4 + $0x68] sm:$0xff]
      %v1824 = vld [vmem:[#allocation4 + $0x70] sm:$0xff]
      %v1825 = vld [vmem:[#allocation4 + $0x78] sm:$0xff]
      %v1826 = vld [vmem:[#allocation4 + $0x80] sm:$0xff]
      %v1827 = vld [vmem:[#allocation4 + $0x88] sm:$0xff]
      %v1828 = vld [vmem:[#allocation4 + $0x90] sm:$0xff]
      %v1829 = vld [vmem:[#allocation4 + $0x98] sm:$0xff]
      %v1830 = vld [vmem:[#allocation4 + $0xa0] sm:$0xff]
      %v1831 = vld [vmem:[#allocation4 + $0xa8] sm:$0xff]
      %v1832 = vld [vmem:[#allocation4 + $0xb0] sm:$0xff]
      %v1833 = vld [vmem:[#allocation4 + $0xb8] sm:$0xff]
      %v1834 = vld [vmem:[#allocation4 + $0xc0] sm:$0xff]
      %v1835 = vld [vmem:[#allocation4 + $0xc8] sm:$0xff]
      %v1836 = vld [vmem:[#allocation4 + $0xd0] sm:$0xff]
      %v1837 = vld [vmem:[#allocation4 + $0xd8] sm:$0xff]
      %v1838 = vld [vmem:[#allocation4 + $0xe0] sm:$0xff]
      %v1839 = vld [vmem:[#allocation4 + $0xe8] sm:$0xff]
      %v1840 = vld [vmem:[#allocation4 + $0xf0] sm:$0xff]
      %v1841 = vld [vmem:[#allocation4 + $0xf8] sm:$0xff]
      %s1842 = scalar_lea.vmem %s1, 12
      %v1843 = vld [vmem:[%s1842] sm:$0xf]
      %v1845 = vsel %vm225, %v1778, 0
      %v1848 = vsel %vm225, %v1779, 0
      %v1851 = vsel %vm225, %v1780, 0
      %v1854 = vsel %vm225, %v1781, 0
      %v1857 = vsel %vm225, %v1782, 0
      %v1860 = vsel %vm225, %v1783, 0
      %v1863 = vsel %vm225, %v1784, 0
      %v1866 = vsel %vm225, %v1785, 0
      %v1869 = vsel %vm225, %v1786, 0
      %v1872 = vsel %vm225, %v1787, 0
      %v1875 = vsel %vm225, %v1788, 0
      %v1878 = vsel %vm225, %v1789, 0
      %v1881 = vsel %vm225, %v1790, 0
      %v1884 = vsel %vm225, %v1791, 0
      %v1887 = vsel %vm225, %v1792, 0
      %v1890 = vsel %vm225, %v1793, 0
      %v1893 = vsel %vm225, %v1794, 0
      %v1896 = vsel %vm225, %v1795, 0
      %v1899 = vsel %vm225, %v1796, 0
      %v1902 = vsel %vm225, %v1797, 0
      %v1905 = vsel %vm225, %v1798, 0
      %v1908 = vsel %vm225, %v1799, 0
      %v1911 = vsel %vm225, %v1800, 0
      %v1914 = vsel %vm225, %v1801, 0
      %v1917 = vsel %vm225, %v1802, 0
      %v1920 = vsel %vm225, %v1803, 0
      %v1923 = vsel %vm225, %v1804, 0
      %v1926 = vsel %vm225, %v1805, 0
      %v1929 = vsel %vm225, %v1806, 0
      %v1932 = vsel %vm225, %v1807, 0
      %v1935 = vsel %vm225, %v1808, 0
      %v1938 = vsel %vm225, %v1809, 0
      %v1941 = vsel %vm577, %v1843, 0
      %1943 = vmatprep.subr.mxu0 0.0
      %1944 = vmatpush1.msra.mxu0 %v1941
      %1945 = vmatprep.subr.mxu0 0.0
      %1946 = vmatpush1.msra.mxu0 0.0
      %1947 = vmatprep.subr.mxu0 0.0
      %1948 = vmatpush1.msra.mxu0 0.0
      %1949 = vmatprep.subr.mxu0 0.0
      %1950 = vmatpush1.msra.mxu0 0.0
      %1951 = vmatprep.subr.mxu0 0.0
      %1952 = vmatpush1.msra.mxu0 0.0
      %1953 = vmatprep.subr.mxu0 0.0
      %1954 = vmatpush1.msra.mxu0 0.0
      %1955 = vmatprep.subr.mxu0 0.0
      %1956 = vmatpush1.msra.mxu0 0.0
      %1957 = vmatprep.subr.mxu0 0.0
      %1958 = vmatpush1.msra.mxu0 0.0
      %1959 = vmatprep.subr.mxu0 0.0
      %1960 = vmatpush1.msra.mxu0 0.0
      %1961 = vmatprep.subr.mxu0 0.0
      %1962 = vmatpush1.msra.mxu0 0.0
      %1963 = vmatprep.subr.mxu0 0.0
      %1964 = vmatpush1.msra.mxu0 0.0
      %1965 = vmatprep.subr.mxu0 0.0
      %1966 = vmatpush1.msra.mxu0 0.0
      %1967 = vmatprep.subr.mxu0 0.0
      %1968 = vmatpush1.msra.mxu0 0.0
      %1969 = vmatprep.subr.mxu0 0.0
      %1970 = vmatpush1.msra.mxu0 0.0
      %1971 = vmatprep.subr.mxu0 0.0
      %1972 = vmatpush1.msra.mxu0 0.0
      %1973 = vmatprep.subr.mxu0 0.0
      %1974 = vmatpush1.msra.mxu0 0.0
      %1975 = vmatprep.subr.mxu0 0.0
      %1976 = vmatpush1.msra.mxu0 0.0
      %1977 = vmatprep.subr.mxu0 0.0
      %1978 = vmatpush1.msra.mxu0 0.0
      %1979 = vmatprep.subr.mxu0 0.0
      %1980 = vmatpush1.msra.mxu0 0.0
      %1981 = vmatprep.subr.mxu0 0.0
      %1982 = vmatpush1.msra.mxu0 0.0
      %1983 = vmatprep.subr.mxu0 0.0
      %1984 = vmatpush1.msra.mxu0 0.0
      %1985 = vmatprep.subr.mxu0 0.0
      %1986 = vmatpush1.msra.mxu0 0.0
      %1987 = vmatprep.subr.mxu0 0.0
      %1988 = vmatpush1.msra.mxu0 0.0
      %1989 = vmatprep.subr.mxu0 0.0
      %1990 = vmatpush1.msra.mxu0 0.0
      %1991 = vmatprep.subr.mxu0 0.0
      %1992 = vmatpush1.msra.mxu0 0.0
      %1993 = vmatprep.subr.mxu0 0.0
      %1994 = vmatpush1.msra.mxu0 0.0
      %1995 = vmatprep.subr.mxu0 0.0
      %1996 = vmatpush1.msra.mxu0 0.0
      %1997 = vmatprep.subr.mxu0 0.0
      %1998 = vmatpush1.msra.mxu0 0.0
      %1999 = vmatprep.subr.mxu0 0.0
      %2000 = vmatpush1.msra.mxu0 0.0
      %2001 = vmatprep.subr.mxu0 0.0
      %2002 = vmatpush1.msra.mxu0 0.0
      %2003 = vmatprep.subr.mxu0 0.0
      %2004 = vmatpush1.msra.mxu0 0.0
      %2005 = vmatprep.subr.mxu0 0.0
      %2006 = vmatpush1.msra.mxu0 0.0
      %2007 = vmatprep.mubr.f32.mxu0 0.0
      %2008 = vmatmul.mubr.f32.gmra.mrb[0].mxu0 %v1845
      %v2009 = vpop.f32.mrb[0].mxu0
      %v2010 = vadd.f32 0.0, %v2009
      %v2011 = vpop.f32.mrb[0].mxu0
      %2012 = vmatprep.mubr.f32.mxu0 0.0
      %2013 = vmatmul.mubr.f32.gmra.mrb[0].mxu0 %v1848
      %v2014 = vpop.f32.mrb[0].mxu0
      %v2015 = vadd.f32 0.0, %v2014
      %v2016 = vpop.f32.mrb[0].mxu0
      %2017 = vmatprep.mubr.f32.mxu0 0.0
      %2018 = vmatmul.mubr.f32.gmra.mrb[0].mxu0 %v1851
      %v2019 = vpop.f32.mrb[0].mxu0
      %v2020 = vadd.f32 0.0, %v2019
      %v2021 = vpop.f32.mrb[0].mxu0
      %2022 = vmatprep.mubr.f32.mxu0 0.0
      %2023 = vmatmul.mubr.f32.gmra.mrb[0].mxu0 %v1854
      %v2024 = vpop.f32.mrb[0].mxu0
      %v2025 = vadd.f32 0.0, %v2024
      %v2026 = vpop.f32.mrb[0].mxu0
      %2027 = vmatprep.mubr.f32.mxu0 0.0
      %2028 = vmatmul.mubr.f32.gmra.mrb[0].mxu0 %v1857
      %v2029 = vpop.f32.mrb[0].mxu0
      %v2030 = vadd.f32 0.0, %v2029
      %v2031 = vpop.f32.mrb[0].mxu0
      %2032 = vmatprep.mubr.f32.mxu0 0.0
      %2033 = vmatmul.mubr.f32.gmra.mrb[0].mxu0 %v1860
      %v2034 = vpop.f32.mrb[0].mxu0
      %v2035 = vadd.f32 0.0, %v2034
      %v2036 = vpop.f32.mrb[0].mxu0
      %2037 = vmatprep.mubr.f32.mxu0 0.0
      %2038 = vmatmul.mubr.f32.gmra.mrb[0].mxu0 %v1863
      %v2039 = vpop.f32.mrb[0].mxu0
      %v2040 = vadd.f32 0.0, %v2039
      %v2041 = vpop.f32.mrb[0].mxu0
      %2042 = vmatprep.mubr.f32.mxu0 0.0
      %2043 = vmatmul.mubr.f32.gmra.mrb[0].mxu0 %v1866
      %v2044 = vpop.f32.mrb[0].mxu0
      %v2045 = vadd.f32 0.0, %v2044
      %v2046 = vpop.f32.mrb[0].mxu0
      %2047 = vmatprep.mubr.f32.mxu0 0.0
      %2048 = vmatmul.mubr.f32.gmra.mrb[0].mxu0 %v1869
      %v2049 = vpop.f32.mrb[0].mxu0
      %v2050 = vadd.f32 0.0, %v2049
      %v2051 = vpop.f32.mrb[0].mxu0
      %2052 = vmatprep.mubr.f32.mxu0 0.0
      %2053 = vmatmul.mubr.f32.gmra.mrb[0].mxu0 %v1872
      %v2054 = vpop.f32.mrb[0].mxu0
      %v2055 = vadd.f32 0.0, %v2054
      %v2056 = vpop.f32.mrb[0].mxu0
      %2057 = vmatprep.mubr.f32.mxu0 0.0
      %2058 = vmatmul.mubr.f32.gmra.mrb[0].mxu0 %v1875
      %v2059 = vpop.f32.mrb[0].mxu0
      %v2060 = vadd.f32 0.0, %v2059
      %v2061 = vpop.f32.mrb[0].mxu0
      %2062 = vmatprep.mubr.f32.mxu0 0.0
      %2063 = vmatmul.mubr.f32.gmra.mrb[0].mxu0 %v1878
      %v2064 = vpop.f32.mrb[0].mxu0
      %v2065 = vadd.f32 0.0, %v2064
      %v2066 = vpop.f32.mrb[0].mxu0
      %2067 = vmatprep.mubr.f32.mxu0 0.0
      %2068 = vmatmul.mubr.f32.gmra.mrb[0].mxu0 %v1881
      %v2069 = vpop.f32.mrb[0].mxu0
      %v2070 = vadd.f32 0.0, %v2069
      %v2071 = vpop.f32.mrb[0].mxu0
      %2072 = vmatprep.mubr.f32.mxu0 0.0
      %2073 = vmatmul.mubr.f32.gmra.mrb[0].mxu0 %v1884
      %v2074 = vpop.f32.mrb[0].mxu0
      %v2075 = vadd.f32 0.0, %v2074
      %v2076 = vpop.f32.mrb[0].mxu0
      %2077 = vmatprep.mubr.f32.mxu0 0.0
      %2078 = vmatmul.mubr.f32.gmra.mrb[0].mxu0 %v1887
      %v2079 = vpop.f32.mrb[0].mxu0
      %v2080 = vadd.f32 0.0, %v2079
      %v2081 = vpop.f32.mrb[0].mxu0
      %2082 = vmatprep.mubr.f32.mxu0 0.0
      %2083 = vmatmul.mubr.f32.gmra.mrb[0].mxu0 %v1890
      %v2084 = vpop.f32.mrb[0].mxu0
      %v2085 = vadd.f32 0.0, %v2084
      %v2086 = vpop.f32.mrb[0].mxu0
      %2087 = vmatprep.mubr.f32.mxu0 0.0
      %2088 = vmatmul.mubr.f32.gmra.mrb[0].mxu0 %v1893
      %v2089 = vpop.f32.mrb[0].mxu0
      %v2090 = vadd.f32 0.0, %v2089
      %v2091 = vpop.f32.mrb[0].mxu0
      %2092 = vmatprep.mubr.f32.mxu0 0.0
      %2093 = vmatmul.mubr.f32.gmra.mrb[0].mxu0 %v1896
      %v2094 = vpop.f32.mrb[0].mxu0
      %v2095 = vadd.f32 0.0, %v2094
      %v2096 = vpop.f32.mrb[0].mxu0
      %2097 = vmatprep.mubr.f32.mxu0 0.0
      %2098 = vmatmul.mubr.f32.gmra.mrb[0].mxu0 %v1899
      %v2099 = vpop.f32.mrb[0].mxu0
      %v2100 = vadd.f32 0.0, %v2099
      %v2101 = vpop.f32.mrb[0].mxu0
      %2102 = vmatprep.mubr.f32.mxu0 0.0
      %2103 = vmatmul.mubr.f32.gmra.mrb[0].mxu0 %v1902
      %v2104 = vpop.f32.mrb[0].mxu0
      %v2105 = vadd.f32 0.0, %v2104
      %v2106 = vpop.f32.mrb[0].mxu0
      %2107 = vmatprep.mubr.f32.mxu0 0.0
      %2108 = vmatmul.mubr.f32.gmra.mrb[0].mxu0 %v1905
      %v2109 = vpop.f32.mrb[0].mxu0
      %v2110 = vadd.f32 0.0, %v2109
      %v2111 = vpop.f32.mrb[0].mxu0
      %2112 = vmatprep.mubr.f32.mxu0 0.0
      %2113 = vmatmul.mubr.f32.gmra.mrb[0].mxu0 %v1908
      %v2114 = vpop.f32.mrb[0].mxu0
      %v2115 = vadd.f32 0.0, %v2114
      %v2116 = vpop.f32.mrb[0].mxu0
      %2117 = vmatprep.mubr.f32.mxu0 0.0
      %2118 = vmatmul.mubr.f32.gmra.mrb[0].mxu0 %v1911
      %v2119 = vpop.f32.mrb[0].mxu0
      %v2120 = vadd.f32 0.0, %v2119
      %v2121 = vpop.f32.mrb[0].mxu0
      %2122 = vmatprep.mubr.f32.mxu0 0.0
      %2123 = vmatmul.mubr.f32.gmra.mrb[0].mxu0 %v1914
      %v2124 = vpop.f32.mrb[0].mxu0
      %v2125 = vadd.f32 0.0, %v2124
      %v2126 = vpop.f32.mrb[0].mxu0
      %2127 = vmatprep.mubr.f32.mxu0 0.0
      %2128 = vmatmul.mubr.f32.gmra.mrb[0].mxu0 %v1917
      %v2129 = vpop.f32.mrb[0].mxu0
      %v2130 = vadd.f32 0.0, %v2129
      %v2131 = vpop.f32.mrb[0].mxu0
      %2132 = vmatprep.mubr.f32.mxu0 0.0
      %2133 = vmatmul.mubr.f32.gmra.mrb[0].mxu0 %v1920
      %v2134 = vpop.f32.mrb[0].mxu0
      %v2135 = vadd.f32 0.0, %v2134
      %v2136 = vpop.f32.mrb[0].mxu0
      %2137 = vmatprep.mubr.f32.mxu0 0.0
      %2138 = vmatmul.mubr.f32.gmra.mrb[0].mxu0 %v1923
      %v2139 = vpop.f32.mrb[0].mxu0
      %v2140 = vadd.f32 0.0, %v2139
      %v2141 = vpop.f32.mrb[0].mxu0
      %2142 = vmatprep.mubr.f32.mxu0 0.0
      %2143 = vmatmul.mubr.f32.gmra.mrb[0].mxu0 %v1926
      %v2144 = vpop.f32.mrb[0].mxu0
      %v2145 = vadd.f32 0.0, %v2144
      %v2146 = vpop.f32.mrb[0].mxu0
      %2147 = vmatprep.mubr.f32.mxu0 0.0
      %2148 = vmatmul.mubr.f32.gmra.mrb[0].mxu0 %v1929
      %v2149 = vpop.f32.mrb[0].mxu0
      %v2150 = vadd.f32 0.0, %v2149
      %v2151 = vpop.f32.mrb[0].mxu0
      %2152 = vmatprep.mubr.f32.mxu0 0.0
      %2153 = vmatmul.mubr.f32.gmra.mrb[0].mxu0 %v1932
      %v2154 = vpop.f32.mrb[0].mxu0
      %v2155 = vadd.f32 0.0, %v2154
      %v2156 = vpop.f32.mrb[0].mxu0
      %2157 = vmatprep.mubr.f32.mxu0 0.0
      %2158 = vmatmul.mubr.f32.gmra.mrb[0].mxu0 %v1935
      %v2159 = vpop.f32.mrb[0].mxu0
      %v2160 = vadd.f32 0.0, %v2159
      %v2161 = vpop.f32.mrb[0].mxu0
      %2162 = vmatprep.mubr.f32.mxu0 0.0
      %2163 = vmatmul.mubr.f32.gmra.mrb[0].mxu0 %v1938
      %v2164 = vpop.f32.mrb[0].mxu0
      %v2165 = vadd.f32 0.0, %v2164
      %v2166 = vpop.f32.mrb[0].mxu0
      %2167 = vdwg.mxu0
      %v2168 = vadd.f32 %v1810, %v2010
      %v2169 = vadd.f32 %v1811, %v2015
      %v2170 = vadd.f32 %v1812, %v2020
      %v2171 = vadd.f32 %v1813, %v2025
      %v2172 = vadd.f32 %v1814, %v2030
      %v2173 = vadd.f32 %v1815, %v2035
      %v2174 = vadd.f32 %v1816, %v2040
      %v2175 = vadd.f32 %v1817, %v2045
      %v2176 = vadd.f32 %v1818, %v2050
      %v2177 = vadd.f32 %v1819, %v2055
      %v2178 = vadd.f32 %v1820, %v2060
      %v2179 = vadd.f32 %v1821, %v2065
      %v2180 = vadd.f32 %v1822, %v2070
      %v2181 = vadd.f32 %v1823, %v2075
      %v2182 = vadd.f32 %v1824, %v2080
      %v2183 = vadd.f32 %v1825, %v2085
      %v2184 = vadd.f32 %v1826, %v2090
      %v2185 = vadd.f32 %v1827, %v2095
      %v2186 = vadd.f32 %v1828, %v2100
      %v2187 = vadd.f32 %v1829, %v2105
      %v2188 = vadd.f32 %v1830, %v2110
      %v2189 = vadd.f32 %v1831, %v2115
      %v2190 = vadd.f32 %v1832, %v2120
      %v2191 = vadd.f32 %v1833, %v2125
      %v2192 = vadd.f32 %v1834, %v2130
      %v2193 = vadd.f32 %v1835, %v2135
      %v2194 = vadd.f32 %v1836, %v2140
      %v2195 = vadd.f32 %v1837, %v2145
      %v2196 = vadd.f32 %v1838, %v2150
      %v2197 = vadd.f32 %v1839, %v2155
      %v2198 = vadd.f32 %v1840, %v2160
      %v2199 = vadd.f32 %v1841, %v2165
      %2200 = vst.msk [vmem:[#allocation4] sm:$0xff] %vm269, %v2168
      %2201 = vst.msk [vmem:[#allocation4 + $0x8] sm:$0xff] %vm269, %v2169
      %2202 = vst.msk [vmem:[#allocation4 + $0x10] sm:$0xff] %vm269, %v2170
      %2203 = vst.msk [vmem:[#allocation4 + $0x18] sm:$0xff] %vm269, %v2171
      %2204 = vst.msk [vmem:[#allocation4 + $0x20] sm:$0xff] %vm269, %v2172
      %2205 = vst.msk [vmem:[#allocation4 + $0x28] sm:$0xff] %vm269, %v2173
      %2206 = vst.msk [vmem:[#allocation4 + $0x30] sm:$0xff] %vm269, %v2174
      %2207 = vst.msk [vmem:[#allocation4 + $0x38] sm:$0xff] %vm269, %v2175
      %2208 = vst.msk [vmem:[#allocation4 + $0x40] sm:$0xff] %vm269, %v2176
      %2209 = vst.msk [vmem:[#allocation4 + $0x48] sm:$0xff] %vm269, %v2177
      %2210 = vst.msk [vmem:[#allocation4 + $0x50] sm:$0xff] %vm269, %v2178
      %2211 = vst.msk [vmem:[#allocation4 + $0x58] sm:$0xff] %vm269, %v2179
      %2212 = vst.msk [vmem:[#allocation4 + $0x60] sm:$0xff] %vm269, %v2180
      %2213 = vst.msk [vmem:[#allocation4 + $0x68] sm:$0xff] %vm269, %v2181
      %2214 = vst.msk [vmem:[#allocation4 + $0x70] sm:$0xff] %vm269, %v2182
      %2215 = vst.msk [vmem:[#allocation4 + $0x78] sm:$0xff] %vm269, %v2183
      %2216 = vst.msk [vmem:[#allocation4 + $0x80] sm:$0xff] %vm269, %v2184
      %2217 = vst.msk [vmem:[#allocation4 + $0x88] sm:$0xff] %vm269, %v2185
      %2218 = vst.msk [vmem:[#allocation4 + $0x90] sm:$0xff] %vm269, %v2186
      %2219 = vst.msk [vmem:[#allocation4 + $0x98] sm:$0xff] %vm269, %v2187
      %2220 = vst.msk [vmem:[#allocation4 + $0xa0] sm:$0xff] %vm269, %v2188
      %2221 = vst.msk [vmem:[#allocation4 + $0xa8] sm:$0xff] %vm269, %v2189
      %2222 = vst.msk [vmem:[#allocation4 + $0xb0] sm:$0xff] %vm269, %v2190
      %2223 = vst.msk [vmem:[#allocation4 + $0xb8] sm:$0xff] %vm269, %v2191
      %2224 = vst.msk [vmem:[#allocation4 + $0xc0] sm:$0xff] %vm269, %v2192
      %2225 = vst.msk [vmem:[#allocation4 + $0xc8] sm:$0xff] %vm269, %v2193
      %2226 = vst.msk [vmem:[#allocation4 + $0xd0] sm:$0xff] %vm269, %v2194
      %2227 = vst.msk [vmem:[#allocation4 + $0xd8] sm:$0xff] %vm269, %v2195
      %2228 = vst.msk [vmem:[#allocation4 + $0xe0] sm:$0xff] %vm269, %v2196
      %2229 = vst.msk [vmem:[#allocation4 + $0xe8] sm:$0xff] %vm269, %v2197
      %2230 = vst.msk [vmem:[#allocation4 + $0xf0] sm:$0xff] %vm269, %v2198
      %2231 = vst.msk [vmem:[#allocation4 + $0xf8] sm:$0xff] %vm269, %v2199
      %v2232 = vld [vmem:[%s236 + $0x8] sm:$0xff]
      %v2233 = vld [vmem:[%s236 + $0x10] sm:$0xff]
      %v2234 = vld [vmem:[%s236 + $0x28] sm:$0xff]
      %v2235 = vld [vmem:[%s236 + $0x30] sm:$0xff]
      %v2236 = vld [vmem:[%s236 + $0x48] sm:$0xff]
      %v2237 = vld [vmem:[%s236 + $0x50] sm:$0xff]
      %v2238 = vld [vmem:[%s236 + $0x68] sm:$0xff]
      %v2239 = vld [vmem:[%s236 + $0x70] sm:$0xff]
      %v2240 = vld [vmem:[%s236 + $0x88] sm:$0xff]
      %v2241 = vld [vmem:[%s236 + $0x90] sm:$0xff]
      %v2242 = vld [vmem:[%s236 + $0xa8] sm:$0xff]
      %v2243 = vld [vmem:[%s236 + $0xb0] sm:$0xff]
      %v2244 = vld [vmem:[%s236 + $0xc8] sm:$0xff]
      %v2245 = vld [vmem:[%s236 + $0xd0] sm:$0xff]
      %v2246 = vld [vmem:[%s236 + $0xe8] sm:$0xff]
      %v2247 = vld [vmem:[%s236 + $0xf0] sm:$0xff]
      %v2248 = vld [vmem:[%s236 + $0x108] sm:$0xff]
      %v2249 = vld [vmem:[%s236 + $0x110] sm:$0xff]
      %v2250 = vld [vmem:[%s236 + $0x128] sm:$0xff]
      %v2251 = vld [vmem:[%s236 + $0x130] sm:$0xff]
      %v2252 = vld [vmem:[%s236 + $0x148] sm:$0xff]
      %v2253 = vld [vmem:[%s236 + $0x150] sm:$0xff]
      %v2254 = vld [vmem:[%s236 + $0x168] sm:$0xff]
      %v2255 = vld [vmem:[%s236 + $0x170] sm:$0xff]
      %v2256 = vld [vmem:[%s236 + $0x188] sm:$0xff]
      %v2257 = vld [vmem:[%s236 + $0x190] sm:$0xff]
      %v2258 = vld [vmem:[%s236 + $0x1a8] sm:$0xff]
      %v2259 = vld [vmem:[%s236 + $0x1b0] sm:$0xff]
      %v2260 = vld [vmem:[%s236 + $0x1c8] sm:$0xff]
      %v2261 = vld [vmem:[%s236 + $0x1d0] sm:$0xff]
      %v2262 = vld [vmem:[%s236 + $0x1e8] sm:$0xff]
      %v2263 = vld [vmem:[%s236 + $0x1f0] sm:$0xff]
      %v2264 = vld [vmem:[#allocation4] sm:$0xff]
      %v2265 = vld [vmem:[#allocation4 + $0x8] sm:$0xff]
      %v2266 = vld [vmem:[#allocation4 + $0x10] sm:$0xff]
      %v2267 = vld [vmem:[#allocation4 + $0x18] sm:$0xff]
      %v2268 = vld [vmem:[#allocation4 + $0x20] sm:$0xff]
      %v2269 = vld [vmem:[#allocation4 + $0x28] sm:$0xff]
      %v2270 = vld [vmem:[#allocation4 + $0x30] sm:$0xff]
      %v2271 = vld [vmem:[#allocation4 + $0x38] sm:$0xff]
      %v2272 = vld [vmem:[#allocation4 + $0x40] sm:$0xff]
      %v2273 = vld [vmem:[#allocation4 + $0x48] sm:$0xff]
      %v2274 = vld [vmem:[#allocation4 + $0x50] sm:$0xff]
      %v2275 = vld [vmem:[#allocation4 + $0x58] sm:$0xff]
      %v2276 = vld [vmem:[#allocation4 + $0x60] sm:$0xff]
      %v2277 = vld [vmem:[#allocation4 + $0x68] sm:$0xff]
      %v2278 = vld [vmem:[#allocation4 + $0x70] sm:$0xff]
      %v2279 = vld [vmem:[#allocation4 + $0x78] sm:$0xff]
      %v2280 = vld [vmem:[#allocation4 + $0x80] sm:$0xff]
      %v2281 = vld [vmem:[#allocation4 + $0x88] sm:$0xff]
      %v2282 = vld [vmem:[#allocation4 + $0x90] sm:$0xff]
      %v2283 = vld [vmem:[#allocation4 + $0x98] sm:$0xff]
      %v2284 = vld [vmem:[#allocation4 + $0xa0] sm:$0xff]
      %v2285 = vld [vmem:[#allocation4 + $0xa8] sm:$0xff]
      %v2286 = vld [vmem:[#allocation4 + $0xb0] sm:$0xff]
      %v2287 = vld [vmem:[#allocation4 + $0xb8] sm:$0xff]
      %v2288 = vld [vmem:[#allocation4 + $0xc0] sm:$0xff]
      %v2289 = vld [vmem:[#allocation4 + $0xc8] sm:$0xff]
      %v2290 = vld [vmem:[#allocation4 + $0xd0] sm:$0xff]
      %v2291 = vld [vmem:[#allocation4 + $0xd8] sm:$0xff]
      %v2292 = vld [vmem:[#allocation4 + $0xe0] sm:$0xff]
      %v2293 = vld [vmem:[#allocation4 + $0xe8] sm:$0xff]
      %v2294 = vld [vmem:[#allocation4 + $0xf0] sm:$0xff]
      %v2295 = vld [vmem:[#allocation4 + $0xf8] sm:$0xff]
      %s2296 = scalar_lea.vmem %s1, 16
      %v2297 = vld [vmem:[%s2296] sm:$0xf]
      %v2299 = vsel %vm225, %v2232, 0
      %v2302 = vsel %vm225, %v2233, 0
      %v2305 = vsel %vm225, %v2234, 0
      %v2308 = vsel %vm225, %v2235, 0
      %v2311 = vsel %vm225, %v2236, 0
      %v2314 = vsel %vm225, %v2237, 0
      %v2317 = vsel %vm225, %v2238, 0
      %v2320 = vsel %vm225, %v2239, 0
      %v2323 = vsel %vm225, %v2240, 0
      %v2326 = vsel %vm225, %v2241, 0
      %v2329 = vsel %vm225, %v2242, 0
      %v2332 = vsel %vm225, %v2243, 0
      %v2335 = vsel %vm225, %v2244, 0
      %v2338 = vsel %vm225, %v2245, 0
      %v2341 = vsel %vm225, %v2246, 0
      %v2344 = vsel %vm225, %v2247, 0
      %v2347 = vsel %vm225, %v2248, 0
      %v2350 = vsel %vm225, %v2249, 0
      %v2353 = vsel %vm225, %v2250, 0
      %v2356 = vsel %vm225, %v2251, 0
      %v2359 = vsel %vm225, %v2252, 0
      %v2362 = vsel %vm225, %v2253, 0
      %v2365 = vsel %vm225, %v2254, 0
      %v2368 = vsel %vm225, %v2255, 0
      %v2371 = vsel %vm225, %v2256, 0
      %v2374 = vsel %vm225, %v2257, 0
      %v2377 = vsel %vm225, %v2258, 0
      %v2380 = vsel %vm225, %v2259, 0
      %v2383 = vsel %vm225, %v2260, 0
      %v2386 = vsel %vm225, %v2261, 0
      %v2389 = vsel %vm225, %v2262, 0
      %v2392 = vsel %vm225, %v2263, 0
      %v2395 = vsel %vm577, %v2297, 0
      %2397 = vmatprep.subr.mxu0 0.0
      %2398 = vmatpush1.msra.mxu0 %v2395
      %2399 = vmatprep.subr.mxu0 0.0
      %2400 = vmatpush1.msra.mxu0 0.0
      %2401 = vmatprep.subr.mxu0 0.0
      %2402 = vmatpush1.msra.mxu0 0.0
      %2403 = vmatprep.subr.mxu0 0.0
      %2404 = vmatpush1.msra.mxu0 0.0
      %2405 = vmatprep.subr.mxu0 0.0
      %2406 = vmatpush1.msra.mxu0 0.0
      %2407 = vmatprep.subr.mxu0 0.0
      %2408 = vmatpush1.msra.mxu0 0.0
      %2409 = vmatprep.subr.mxu0 0.0
      %2410 = vmatpush1.msra.mxu0 0.0
      %2411 = vmatprep.subr.mxu0 0.0
      %2412 = vmatpush1.msra.mxu0 0.0
      %2413 = vmatprep.subr.mxu0 0.0
      %2414 = vmatpush1.msra.mxu0 0.0
      %2415 = vmatprep.subr.mxu0 0.0
      %2416 = vmatpush1.msra.mxu0 0.0
      %2417 = vmatprep.subr.mxu0 0.0
      %2418 = vmatpush1.msra.mxu0 0.0
      %2419 = vmatprep.subr.mxu0 0.0
      %2420 = vmatpush1.msra.mxu0 0.0
      %2421 = vmatprep.subr.mxu0 0.0
      %2422 = vmatpush1.msra.mxu0 0.0
      %2423 = vmatprep.subr.mxu0 0.0
      %2424 = vmatpush1.msra.mxu0 0.0
      %2425 = vmatprep.subr.mxu0 0.0
      %2426 = vmatpush1.msra.mxu0 0.0
      %2427 = vmatprep.subr.mxu0 0.0
      %2428 = vmatpush1.msra.mxu0 0.0
      %2429 = vmatprep.subr.mxu0 0.0
      %2430 = vmatpush1.msra.mxu0 0.0
      %2431 = vmatprep.subr.mxu0 0.0
      %2432 = vmatpush1.msra.mxu0 0.0
      %2433 = vmatprep.subr.mxu0 0.0
      %2434 = vmatpush1.msra.mxu0 0.0
      %2435 = vmatprep.subr.mxu0 0.0
      %2436 = vmatpush1.msra.mxu0 0.0
      %2437 = vmatprep.subr.mxu0 0.0
      %2438 = vmatpush1.msra.mxu0 0.0
      %2439 = vmatprep.subr.mxu0 0.0
      %2440 = vmatpush1.msra.mxu0 0.0
      %2441 = vmatprep.subr.mxu0 0.0
      %2442 = vmatpush1.msra.mxu0 0.0
      %2443 = vmatprep.subr.mxu0 0.0
      %2444 = vmatpush1.msra.mxu0 0.0
      %2445 = vmatprep.subr.mxu0 0.0
      %2446 = vmatpush1.msra.mxu0 0.0
      %2447 = vmatprep.subr.mxu0 0.0
      %2448 = vmatpush1.msra.mxu0 0.0
      %2449 = vmatprep.subr.mxu0 0.0
      %2450 = vmatpush1.msra.mxu0 0.0
      %2451 = vmatprep.subr.mxu0 0.0
      %2452 = vmatpush1.msra.mxu0 0.0
      %2453 = vmatprep.subr.mxu0 0.0
      %2454 = vmatpush1.msra.mxu0 0.0
      %2455 = vmatprep.subr.mxu0 0.0
      %2456 = vmatpush1.msra.mxu0 0.0
      %2457 = vmatprep.subr.mxu0 0.0
      %2458 = vmatpush1.msra.mxu0 0.0
      %2459 = vmatprep.subr.mxu0 0.0
      %2460 = vmatpush1.msra.mxu0 0.0
      %2461 = vmatprep.mubr.f32.mxu0 0.0
      %2462 = vmatmul.mubr.f32.gmra.mrb[0].mxu0 %v2299
      %v2463 = vpop.f32.mrb[0].mxu0
      %v2464 = vadd.f32 0.0, %v2463
      %v2465 = vpop.f32.mrb[0].mxu0
      %2466 = vmatprep.mubr.f32.mxu0 0.0
      %2467 = vmatmul.mubr.f32.gmra.mrb[0].mxu0 %v2302
      %v2468 = vpop.f32.mrb[0].mxu0
      %v2469 = vadd.f32 0.0, %v2468
      %v2470 = vpop.f32.mrb[0].mxu0
      %2471 = vmatprep.mubr.f32.mxu0 0.0
      %2472 = vmatmul.mubr.f32.gmra.mrb[0].mxu0 %v2305
      %v2473 = vpop.f32.mrb[0].mxu0
      %v2474 = vadd.f32 0.0, %v2473
      %v2475 = vpop.f32.mrb[0].mxu0
      %2476 = vmatprep.mubr.f32.mxu0 0.0
      %2477 = vmatmul.mubr.f32.gmra.mrb[0].mxu0 %v2308
      %v2478 = vpop.f32.mrb[0].mxu0
      %v2479 = vadd.f32 0.0, %v2478
      %v2480 = vpop.f32.mrb[0].mxu0
      %2481 = vmatprep.mubr.f32.mxu0 0.0
      %2482 = vmatmul.mubr.f32.gmra.mrb[0].mxu0 %v2311
      %v2483 = vpop.f32.mrb[0].mxu0
      %v2484 = vadd.f32 0.0, %v2483
      %v2485 = vpop.f32.mrb[0].mxu0
      %2486 = vmatprep.mubr.f32.mxu0 0.0
      %2487 = vmatmul.mubr.f32.gmra.mrb[0].mxu0 %v2314
      %v2488 = vpop.f32.mrb[0].mxu0
      %v2489 = vadd.f32 0.0, %v2488
      %v2490 = vpop.f32.mrb[0].mxu0
      %2491 = vmatprep.mubr.f32.mxu0 0.0
      %2492 = vmatmul.mubr.f32.gmra.mrb[0].mxu0 %v2317
      %v2493 = vpop.f32.mrb[0].mxu0
      %v2494 = vadd.f32 0.0, %v2493
      %v2495 = vpop.f32.mrb[0].mxu0
      %2496 = vmatprep.mubr.f32.mxu0 0.0
      %2497 = vmatmul.mubr.f32.gmra.mrb[0].mxu0 %v2320
      %v2498 = vpop.f32.mrb[0].mxu0
      %v2499 = vadd.f32 0.0, %v2498
      %v2500 = vpop.f32.mrb[0].mxu0
      %2501 = vmatprep.mubr.f32.mxu0 0.0
      %2502 = vmatmul.mubr.f32.gmra.mrb[0].mxu0 %v2323
      %v2503 = vpop.f32.mrb[0].mxu0
      %v2504 = vadd.f32 0.0, %v2503
      %v2505 = vpop.f32.mrb[0].mxu0
      %2506 = vmatprep.mubr.f32.mxu0 0.0
      %2507 = vmatmul.mubr.f32.gmra.mrb[0].mxu0 %v2326
      %v2508 = vpop.f32.mrb[0].mxu0
      %v2509 = vadd.f32 0.0, %v2508
      %v2510 = vpop.f32.mrb[0].mxu0
      %2511 = vmatprep.mubr.f32.mxu0 0.0
      %2512 = vmatmul.mubr.f32.gmra.mrb[0].mxu0 %v2329
      %v2513 = vpop.f32.mrb[0].mxu0
      %v2514 = vadd.f32 0.0, %v2513
      %v2515 = vpop.f32.mrb[0].mxu0
      %2516 = vmatprep.mubr.f32.mxu0 0.0
      %2517 = vmatmul.mubr.f32.gmra.mrb[0].mxu0 %v2332
      %v2518 = vpop.f32.mrb[0].mxu0
      %v2519 = vadd.f32 0.0, %v2518
      %v2520 = vpop.f32.mrb[0].mxu0
      %2521 = vmatprep.mubr.f32.mxu0 0.0
      %2522 = vmatmul.mubr.f32.gmra.mrb[0].mxu0 %v2335
      %v2523 = vpop.f32.mrb[0].mxu0
      %v2524 = vadd.f32 0.0, %v2523
      %v2525 = vpop.f32.mrb[0].mxu0
      %2526 = vmatprep.mubr.f32.mxu0 0.0
      %2527 = vmatmul.mubr.f32.gmra.mrb[0].mxu0 %v2338
      %v2528 = vpop.f32.mrb[0].mxu0
      %v2529 = vadd.f32 0.0, %v2528
      %v2530 = vpop.f32.mrb[0].mxu0
      %2531 = vmatprep.mubr.f32.mxu0 0.0
      %2532 = vmatmul.mubr.f32.gmra.mrb[0].mxu0 %v2341
      %v2533 = vpop.f32.mrb[0].mxu0
      %v2534 = vadd.f32 0.0, %v2533
      %v2535 = vpop.f32.mrb[0].mxu0
      %2536 = vmatprep.mubr.f32.mxu0 0.0
      %2537 = vmatmul.mubr.f32.gmra.mrb[0].mxu0 %v2344
      %v2538 = vpop.f32.mrb[0].mxu0
      %v2539 = vadd.f32 0.0, %v2538
      %v2540 = vpop.f32.mrb[0].mxu0
      %2541 = vmatprep.mubr.f32.mxu0 0.0
      %2542 = vmatmul.mubr.f32.gmra.mrb[0].mxu0 %v2347
      %v2543 = vpop.f32.mrb[0].mxu0
      %v2544 = vadd.f32 0.0, %v2543
      %v2545 = vpop.f32.mrb[0].mxu0
      %2546 = vmatprep.mubr.f32.mxu0 0.0
      %2547 = vmatmul.mubr.f32.gmra.mrb[0].mxu0 %v2350
      %v2548 = vpop.f32.mrb[0].mxu0
      %v2549 = vadd.f32 0.0, %v2548
      %v2550 = vpop.f32.mrb[0].mxu0
      %2551 = vmatprep.mubr.f32.mxu0 0.0
      %2552 = vmatmul.mubr.f32.gmra.mrb[0].mxu0 %v2353
      %v2553 = vpop.f32.mrb[0].mxu0
      %v2554 = vadd.f32 0.0, %v2553
      %v2555 = vpop.f32.mrb[0].mxu0
      %2556 = vmatprep.mubr.f32.mxu0 0.0
      %2557 = vmatmul.mubr.f32.gmra.mrb[0].mxu0 %v2356
      %v2558 = vpop.f32.mrb[0].mxu0
      %v2559 = vadd.f32 0.0, %v2558
      %v2560 = vpop.f32.mrb[0].mxu0
      %2561 = vmatprep.mubr.f32.mxu0 0.0
      %2562 = vmatmul.mubr.f32.gmra.mrb[0].mxu0 %v2359
      %v2563 = vpop.f32.mrb[0].mxu0
      %v2564 = vadd.f32 0.0, %v2563
      %v2565 = vpop.f32.mrb[0].mxu0
      %2566 = vmatprep.mubr.f32.mxu0 0.0
      %2567 = vmatmul.mubr.f32.gmra.mrb[0].mxu0 %v2362
      %v2568 = vpop.f32.mrb[0].mxu0
      %v2569 = vadd.f32 0.0, %v2568
      %v2570 = vpop.f32.mrb[0].mxu0
      %2571 = vmatprep.mubr.f32.mxu0 0.0
      %2572 = vmatmul.mubr.f32.gmra.mrb[0].mxu0 %v2365
      %v2573 = vpop.f32.mrb[0].mxu0
      %v2574 = vadd.f32 0.0, %v2573
      %v2575 = vpop.f32.mrb[0].mxu0
      %2576 = vmatprep.mubr.f32.mxu0 0.0
      %2577 = vmatmul.mubr.f32.gmra.mrb[0].mxu0 %v2368
      %v2578 = vpop.f32.mrb[0].mxu0
      %v2579 = vadd.f32 0.0, %v2578
      %v2580 = vpop.f32.mrb[0].mxu0
      %2581 = vmatprep.mubr.f32.mxu0 0.0
      %2582 = vmatmul.mubr.f32.gmra.mrb[0].mxu0 %v2371
      %v2583 = vpop.f32.mrb[0].mxu0
      %v2584 = vadd.f32 0.0, %v2583
      %v2585 = vpop.f32.mrb[0].mxu0
      %2586 = vmatprep.mubr.f32.mxu0 0.0
      %2587 = vmatmul.mubr.f32.gmra.mrb[0].mxu0 %v2374
      %v2588 = vpop.f32.mrb[0].mxu0
      %v2589 = vadd.f32 0.0, %v2588
      %v2590 = vpop.f32.mrb[0].mxu0
      %2591 = vmatprep.mubr.f32.mxu0 0.0
      %2592 = vmatmul.mubr.f32.gmra.mrb[0].mxu0 %v2377
      %v2593 = vpop.f32.mrb[0].mxu0
      %v2594 = vadd.f32 0.0, %v2593
      %v2595 = vpop.f32.mrb[0].mxu0
      %2596 = vmatprep.mubr.f32.mxu0 0.0
      %2597 = vmatmul.mubr.f32.gmra.mrb[0].mxu0 %v2380
      %v2598 = vpop.f32.mrb[0].mxu0
      %v2599 = vadd.f32 0.0, %v2598
      %v2600 = vpop.f32.mrb[0].mxu0
      %2601 = vmatprep.mubr.f32.mxu0 0.0
      %2602 = vmatmul.mubr.f32.gmra.mrb[0].mxu0 %v2383
      %v2603 = vpop.f32.mrb[0].mxu0
      %v2604 = vadd.f32 0.0, %v2603
      %v2605 = vpop.f32.mrb[0].mxu0
      %2606 = vmatprep.mubr.f32.mxu0 0.0
      %2607 = vmatmul.mubr.f32.gmra.mrb[0].mxu0 %v2386
      %v2608 = vpop.f32.mrb[0].mxu0
      %v2609 = vadd.f32 0.0, %v2608
      %v2610 = vpop.f32.mrb[0].mxu0
      %2611 = vmatprep.mubr.f32.mxu0 0.0
      %2612 = vmatmul.mubr.f32.gmra.mrb[0].mxu0 %v2389
      %v2613 = vpop.f32.mrb[0].mxu0
      %v2614 = vadd.f32 0.0, %v2613
      %v2615 = vpop.f32.mrb[0].mxu0
      %2616 = vmatprep.mubr.f32.mxu0 0.0
      %2617 = vmatmul.mubr.f32.gmra.mrb[0].mxu0 %v2392
      %v2618 = vpop.f32.mrb[0].mxu0
      %v2619 = vadd.f32 0.0, %v2618
      %v2620 = vpop.f32.mrb[0].mxu0
      %2621 = vdwg.mxu0
      %v2622 = vadd.f32 %v2264, %v2464
      %v2623 = vadd.f32 %v2265, %v2469
      %v2624 = vadd.f32 %v2266, %v2474
      %v2625 = vadd.f32 %v2267, %v2479
      %v2626 = vadd.f32 %v2268, %v2484
      %v2627 = vadd.f32 %v2269, %v2489
      %v2628 = vadd.f32 %v2270, %v2494
      %v2629 = vadd.f32 %v2271, %v2499
      %v2630 = vadd.f32 %v2272, %v2504
      %v2631 = vadd.f32 %v2273, %v2509
      %v2632 = vadd.f32 %v2274, %v2514
      %v2633 = vadd.f32 %v2275, %v2519
      %v2634 = vadd.f32 %v2276, %v2524
      %v2635 = vadd.f32 %v2277, %v2529
      %v2636 = vadd.f32 %v2278, %v2534
      %v2637 = vadd.f32 %v2279, %v2539
      %v2638 = vadd.f32 %v2280, %v2544
      %v2639 = vadd.f32 %v2281, %v2549
      %v2640 = vadd.f32 %v2282, %v2554
      %v2641 = vadd.f32 %v2283, %v2559
      %v2642 = vadd.f32 %v2284, %v2564
      %v2643 = vadd.f32 %v2285, %v2569
      %v2644 = vadd.f32 %v2286, %v2574
      %v2645 = vadd.f32 %v2287, %v2579
      %v2646 = vadd.f32 %v2288, %v2584
      %v2647 = vadd.f32 %v2289, %v2589
      %v2648 = vadd.f32 %v2290, %v2594
      %v2649 = vadd.f32 %v2291, %v2599
      %v2650 = vadd.f32 %v2292, %v2604
      %v2651 = vadd.f32 %v2293, %v2609
      %v2652 = vadd.f32 %v2294, %v2614
      %v2653 = vadd.f32 %v2295, %v2619
      %2654 = vst.msk [vmem:[#allocation4] sm:$0xff] %vm269, %v2622
      %2655 = vst.msk [vmem:[#allocation4 + $0x8] sm:$0xff] %vm269, %v2623
      %2656 = vst.msk [vmem:[#allocation4 + $0x10] sm:$0xff] %vm269, %v2624
      %2657 = vst.msk [vmem:[#allocation4 + $0x18] sm:$0xff] %vm269, %v2625
      %2658 = vst.msk [vmem:[#allocation4 + $0x20] sm:$0xff] %vm269, %v2626
      %2659 = vst.msk [vmem:[#allocation4 + $0x28] sm:$0xff] %vm269, %v2627
      %2660 = vst.msk [vmem:[#allocation4 + $0x30] sm:$0xff] %vm269, %v2628
      %2661 = vst.msk [vmem:[#allocation4 + $0x38] sm:$0xff] %vm269, %v2629
      %2662 = vst.msk [vmem:[#allocation4 + $0x40] sm:$0xff] %vm269, %v2630
      %2663 = vst.msk [vmem:[#allocation4 + $0x48] sm:$0xff] %vm269, %v2631
      %2664 = vst.msk [vmem:[#allocation4 + $0x50] sm:$0xff] %vm269, %v2632
      %2665 = vst.msk [vmem:[#allocation4 + $0x58] sm:$0xff] %vm269, %v2633
      %2666 = vst.msk [vmem:[#allocation4 + $0x60] sm:$0xff] %vm269, %v2634
      %2667 = vst.msk [vmem:[#allocation4 + $0x68] sm:$0xff] %vm269, %v2635
      %2668 = vst.msk [vmem:[#allocation4 + $0x70] sm:$0xff] %vm269, %v2636
      %2669 = vst.msk [vmem:[#allocation4 + $0x78] sm:$0xff] %vm269, %v2637
      %2670 = vst.msk [vmem:[#allocation4 + $0x80] sm:$0xff] %vm269, %v2638
      %2671 = vst.msk [vmem:[#allocation4 + $0x88] sm:$0xff] %vm269, %v2639
      %2672 = vst.msk [vmem:[#allocation4 + $0x90] sm:$0xff] %vm269, %v2640
      %2673 = vst.msk [vmem:[#allocation4 + $0x98] sm:$0xff] %vm269, %v2641
      %2674 = vst.msk [vmem:[#allocation4 + $0xa0] sm:$0xff] %vm269, %v2642
      %2675 = vst.msk [vmem:[#allocation4 + $0xa8] sm:$0xff] %vm269, %v2643
      %2676 = vst.msk [vmem:[#allocation4 + $0xb0] sm:$0xff] %vm269, %v2644
      %2677 = vst.msk [vmem:[#allocation4 + $0xb8] sm:$0xff] %vm269, %v2645
      %2678 = vst.msk [vmem:[#allocation4 + $0xc0] sm:$0xff] %vm269, %v2646
      %2679 = vst.msk [vmem:[#allocation4 + $0xc8] sm:$0xff] %vm269, %v2647
      %2680 = vst.msk [vmem:[#allocation4 + $0xd0] sm:$0xff] %vm269, %v2648
      %2681 = vst.msk [vmem:[#allocation4 + $0xd8] sm:$0xff] %vm269, %v2649
      %2682 = vst.msk [vmem:[#allocation4 + $0xe0] sm:$0xff] %vm269, %v2650
      %2683 = vst.msk [vmem:[#allocation4 + $0xe8] sm:$0xff] %vm269, %v2651
      %2684 = vst.msk [vmem:[#allocation4 + $0xf0] sm:$0xff] %vm269, %v2652
      %2685 = vst.msk [vmem:[#allocation4 + $0xf8] sm:$0xff] %vm269, %v2653
      %v2686 = vld [vmem:[%s236 + $0x9] sm:$0xff]
      %v2687 = vld [vmem:[%s236 + $0x11] sm:$0xff]
      %v2688 = vld [vmem:[%s236 + $0x29] sm:$0xff]
      %v2689 = vld [vmem:[%s236 + $0x31] sm:$0xff]
      %v2690 = vld [vmem:[%s236 + $0x49] sm:$0xff]
      %v2691 = vld [vmem:[%s236 + $0x51] sm:$0xff]
      %v2692 = vld [vmem:[%s236 + $0x69] sm:$0xff]
      %v2693 = vld [vmem:[%s236 + $0x71] sm:$0xff]
      %v2694 = vld [vmem:[%s236 + $0x89] sm:$0xff]
      %v2695 = vld [vmem:[%s236 + $0x91] sm:$0xff]
      %v2696 = vld [vmem:[%s236 + $0xa9] sm:$0xff]
      %v2697 = vld [vmem:[%s236 + $0xb1] sm:$0xff]
      %v2698 = vld [vmem:[%s236 + $0xc9] sm:$0xff]
      %v2699 = vld [vmem:[%s236 + $0xd1] sm:$0xff]
      %v2700 = vld [vmem:[%s236 + $0xe9] sm:$0xff]
      %v2701 = vld [vmem:[%s236 + $0xf1] sm:$0xff]
      %v2702 = vld [vmem:[%s236 + $0x109] sm:$0xff]
      %v2703 = vld [vmem:[%s236 + $0x111] sm:$0xff]
      %v2704 = vld [vmem:[%s236 + $0x129] sm:$0xff]
      %v2705 = vld [vmem:[%s236 + $0x131] sm:$0xff]
      %v2706 = vld [vmem:[%s236 + $0x149] sm:$0xff]
      %v2707 = vld [vmem:[%s236 + $0x151] sm:$0xff]
      %v2708 = vld [vmem:[%s236 + $0x169] sm:$0xff]
      %v2709 = vld [vmem:[%s236 + $0x171] sm:$0xff]
      %v2710 = vld [vmem:[%s236 + $0x189] sm:$0xff]
      %v2711 = vld [vmem:[%s236 + $0x191] sm:$0xff]
      %v2712 = vld [vmem:[%s236 + $0x1a9] sm:$0xff]
      %v2713 = vld [vmem:[%s236 + $0x1b1] sm:$0xff]
      %v2714 = vld [vmem:[%s236 + $0x1c9] sm:$0xff]
      %v2715 = vld [vmem:[%s236 + $0x1d1] sm:$0xff]
      %v2716 = vld [vmem:[%s236 + $0x1e9] sm:$0xff]
      %v2717 = vld [vmem:[%s236 + $0x1f1] sm:$0xff]
      %v2718 = vld [vmem:[#allocation4] sm:$0xff]
      %v2719 = vld [vmem:[#allocation4 + $0x8] sm:$0xff]
      %v2720 = vld [vmem:[#allocation4 + $0x10] sm:$0xff]
      %v2721 = vld [vmem:[#allocation4 + $0x18] sm:$0xff]
      %v2722 = vld [vmem:[#allocation4 + $0x20] sm:$0xff]
      %v2723 = vld [vmem:[#allocation4 + $0x28] sm:$0xff]
      %v2724 = vld [vmem:[#allocation4 + $0x30] sm:$0xff]
      %v2725 = vld [vmem:[#allocation4 + $0x38] sm:$0xff]
      %v2726 = vld [vmem:[#allocation4 + $0x40] sm:$0xff]
      %v2727 = vld [vmem:[#allocation4 + $0x48] sm:$0xff]
      %v2728 = vld [vmem:[#allocation4 + $0x50] sm:$0xff]
      %v2729 = vld [vmem:[#allocation4 + $0x58] sm:$0xff]
      %v2730 = vld [vmem:[#allocation4 + $0x60] sm:$0xff]
      %v2731 = vld [vmem:[#allocation4 + $0x68] sm:$0xff]
      %v2732 = vld [vmem:[#allocation4 + $0x70] sm:$0xff]
      %v2733 = vld [vmem:[#allocation4 + $0x78] sm:$0xff]
      %v2734 = vld [vmem:[#allocation4 + $0x80] sm:$0xff]
      %v2735 = vld [vmem:[#allocation4 + $0x88] sm:$0xff]
      %v2736 = vld [vmem:[#allocation4 + $0x90] sm:$0xff]
      %v2737 = vld [vmem:[#allocation4 + $0x98] sm:$0xff]
      %v2738 = vld [vmem:[#allocation4 + $0xa0] sm:$0xff]
      %v2739 = vld [vmem:[#allocation4 + $0xa8] sm:$0xff]
      %v2740 = vld [vmem:[#allocation4 + $0xb0] sm:$0xff]
      %v2741 = vld [vmem:[#allocation4 + $0xb8] sm:$0xff]
      %v2742 = vld [vmem:[#allocation4 + $0xc0] sm:$0xff]
      %v2743 = vld [vmem:[#allocation4 + $0xc8] sm:$0xff]
      %v2744 = vld [vmem:[#allocation4 + $0xd0] sm:$0xff]
      %v2745 = vld [vmem:[#allocation4 + $0xd8] sm:$0xff]
      %v2746 = vld [vmem:[#allocation4 + $0xe0] sm:$0xff]
      %v2747 = vld [vmem:[#allocation4 + $0xe8] sm:$0xff]
      %v2748 = vld [vmem:[#allocation4 + $0xf0] sm:$0xff]
      %v2749 = vld [vmem:[#allocation4 + $0xf8] sm:$0xff]
      %s2750 = scalar_lea.vmem %s1, 20
      %v2751 = vld [vmem:[%s2750] sm:$0xf]
      %v2753 = vsel %vm225, %v2686, 0
      %v2756 = vsel %vm225, %v2687, 0
      %v2759 = vsel %vm225, %v2688, 0
      %v2762 = vsel %vm225, %v2689, 0
      %v2765 = vsel %vm225, %v2690, 0
      %v2768 = vsel %vm225, %v2691, 0
      %v2771 = vsel %vm225, %v2692, 0
      %v2774 = vsel %vm225, %v2693, 0
      %v2777 = vsel %vm225, %v2694, 0
      %v2780 = vsel %vm225, %v2695, 0
      %v2783 = vsel %vm225, %v2696, 0
      %v2786 = vsel %vm225, %v2697, 0
      %v2789 = vsel %vm225, %v2698, 0
      %v2792 = vsel %vm225, %v2699, 0
      %v2795 = vsel %vm225, %v2700, 0
      %v2798 = vsel %vm225, %v2701, 0
      %v2801 = vsel %vm225, %v2702, 0
      %v2804 = vsel %vm225, %v2703, 0
      %v2807 = vsel %vm225, %v2704, 0
      %v2810 = vsel %vm225, %v2705, 0
      %v2813 = vsel %vm225, %v2706, 0
      %v2816 = vsel %vm225, %v2707, 0
      %v2819 = vsel %vm225, %v2708, 0
      %v2822 = vsel %vm225, %v2709, 0
      %v2825 = vsel %vm225, %v2710, 0
      %v2828 = vsel %vm225, %v2711, 0
      %v2831 = vsel %vm225, %v2712, 0
      %v2834 = vsel %vm225, %v2713, 0
      %v2837 = vsel %vm225, %v2714, 0
      %v2840 = vsel %vm225, %v2715, 0
      %v2843 = vsel %vm225, %v2716, 0
      %v2846 = vsel %vm225, %v2717, 0
      %v2849 = vsel %vm577, %v2751, 0
      %2851 = vmatprep.subr.mxu0 0.0
      %2852 = vmatpush1.msra.mxu0 %v2849
      %2853 = vmatprep.subr.mxu0 0.0
      %2854 = vmatpush1.msra.mxu0 0.0
      %2855 = vmatprep.subr.mxu0 0.0
      %2856 = vmatpush1.msra.mxu0 0.0
      %2857 = vmatprep.subr.mxu0 0.0
      %2858 = vmatpush1.msra.mxu0 0.0
      %2859 = vmatprep.subr.mxu0 0.0
      %2860 = vmatpush1.msra.mxu0 0.0
      %2861 = vmatprep.subr.mxu0 0.0
      %2862 = vmatpush1.msra.mxu0 0.0
      %2863 = vmatprep.subr.mxu0 0.0
      %2864 = vmatpush1.msra.mxu0 0.0
      %2865 = vmatprep.subr.mxu0 0.0
      %2866 = vmatpush1.msra.mxu0 0.0
      %2867 = vmatprep.subr.mxu0 0.0
      %2868 = vmatpush1.msra.mxu0 0.0
      %2869 = vmatprep.subr.mxu0 0.0
      %2870 = vmatpush1.msra.mxu0 0.0
      %2871 = vmatprep.subr.mxu0 0.0
      %2872 = vmatpush1.msra.mxu0 0.0
      %2873 = vmatprep.subr.mxu0 0.0
      %2874 = vmatpush1.msra.mxu0 0.0
      %2875 = vmatprep.subr.mxu0 0.0
      %2876 = vmatpush1.msra.mxu0 0.0
      %2877 = vmatprep.subr.mxu0 0.0
      %2878 = vmatpush1.msra.mxu0 0.0
      %2879 = vmatprep.subr.mxu0 0.0
      %2880 = vmatpush1.msra.mxu0 0.0
      %2881 = vmatprep.subr.mxu0 0.0
      %2882 = vmatpush1.msra.mxu0 0.0
      %2883 = vmatprep.subr.mxu0 0.0
      %2884 = vmatpush1.msra.mxu0 0.0
      %2885 = vmatprep.subr.mxu0 0.0
      %2886 = vmatpush1.msra.mxu0 0.0
      %2887 = vmatprep.subr.mxu0 0.0
      %2888 = vmatpush1.msra.mxu0 0.0
      %2889 = vmatprep.subr.mxu0 0.0
      %2890 = vmatpush1.msra.mxu0 0.0
      %2891 = vmatprep.subr.mxu0 0.0
      %2892 = vmatpush1.msra.mxu0 0.0
      %2893 = vmatprep.subr.mxu0 0.0
      %2894 = vmatpush1.msra.mxu0 0.0
      %2895 = vmatprep.subr.mxu0 0.0
      %2896 = vmatpush1.msra.mxu0 0.0
      %2897 = vmatprep.subr.mxu0 0.0
      %2898 = vmatpush1.msra.mxu0 0.0
      %2899 = vmatprep.subr.mxu0 0.0
      %2900 = vmatpush1.msra.mxu0 0.0
      %2901 = vmatprep.subr.mxu0 0.0
      %2902 = vmatpush1.msra.mxu0 0.0
      %2903 = vmatprep.subr.mxu0 0.0
      %2904 = vmatpush1.msra.mxu0 0.0
      %2905 = vmatprep.subr.mxu0 0.0
      %2906 = vmatpush1.msra.mxu0 0.0
      %2907 = vmatprep.subr.mxu0 0.0
      %2908 = vmatpush1.msra.mxu0 0.0
      %2909 = vmatprep.subr.mxu0 0.0
      %2910 = vmatpush1.msra.mxu0 0.0
      %2911 = vmatprep.subr.mxu0 0.0
      %2912 = vmatpush1.msra.mxu0 0.0
      %2913 = vmatprep.subr.mxu0 0.0
      %2914 = vmatpush1.msra.mxu0 0.0
      %2915 = vmatprep.mubr.f32.mxu0 0.0
      %2916 = vmatmul.mubr.f32.gmra.mrb[0].mxu0 %v2753
      %v2917 = vpop.f32.mrb[0].mxu0
      %v2918 = vadd.f32 0.0, %v2917
      %v2919 = vpop.f32.mrb[0].mxu0
      %2920 = vmatprep.mubr.f32.mxu0 0.0
      %2921 = vmatmul.mubr.f32.gmra.mrb[0].mxu0 %v2756
      %v2922 = vpop.f32.mrb[0].mxu0
      %v2923 = vadd.f32 0.0, %v2922
      %v2924 = vpop.f32.mrb[0].mxu0
      %2925 = vmatprep.mubr.f32.mxu0 0.0
      %2926 = vmatmul.mubr.f32.gmra.mrb[0].mxu0 %v2759
      %v2927 = vpop.f32.mrb[0].mxu0
      %v2928 = vadd.f32 0.0, %v2927
      %v2929 = vpop.f32.mrb[0].mxu0
      %2930 = vmatprep.mubr.f32.mxu0 0.0
      %2931 = vmatmul.mubr.f32.gmra.mrb[0].mxu0 %v2762
      %v2932 = vpop.f32.mrb[0].mxu0
      %v2933 = vadd.f32 0.0, %v2932
      %v2934 = vpop.f32.mrb[0].mxu0
      %2935 = vmatprep.mubr.f32.mxu0 0.0
      %2936 = vmatmul.mubr.f32.gmra.mrb[0].mxu0 %v2765
      %v2937 = vpop.f32.mrb[0].mxu0
      %v2938 = vadd.f32 0.0, %v2937
      %v2939 = vpop.f32.mrb[0].mxu0
      %2940 = vmatprep.mubr.f32.mxu0 0.0
      %2941 = vmatmul.mubr.f32.gmra.mrb[0].mxu0 %v2768
      %v2942 = vpop.f32.mrb[0].mxu0
      %v2943 = vadd.f32 0.0, %v2942
      %v2944 = vpop.f32.mrb[0].mxu0
      %2945 = vmatprep.mubr.f32.mxu0 0.0
      %2946 = vmatmul.mubr.f32.gmra.mrb[0].mxu0 %v2771
      %v2947 = vpop.f32.mrb[0].mxu0
      %v2948 = vadd.f32 0.0, %v2947
      %v2949 = vpop.f32.mrb[0].mxu0
      %2950 = vmatprep.mubr.f32.mxu0 0.0
      %2951 = vmatmul.mubr.f32.gmra.mrb[0].mxu0 %v2774
      %v2952 = vpop.f32.mrb[0].mxu0
      %v2953 = vadd.f32 0.0, %v2952
      %v2954 = vpop.f32.mrb[0].mxu0
      %2955 = vmatprep.mubr.f32.mxu0 0.0
      %2956 = vmatmul.mubr.f32.gmra.mrb[0].mxu0 %v2777
      %v2957 = vpop.f32.mrb[0].mxu0
      %v2958 = vadd.f32 0.0, %v2957
      %v2959 = vpop.f32.mrb[0].mxu0
      %2960 = vmatprep.mubr.f32.mxu0 0.0
      %2961 = vmatmul.mubr.f32.gmra.mrb[0].mxu0 %v2780
      %v2962 = vpop.f32.mrb[0].mxu0
      %v2963 = vadd.f32 0.0, %v2962
      %v2964 = vpop.f32.mrb[0].mxu0
      %2965 = vmatprep.mubr.f32.mxu0 0.0
      %2966 = vmatmul.mubr.f32.gmra.mrb[0].mxu0 %v2783
      %v2967 = vpop.f32.mrb[0].mxu0
      %v2968 = vadd.f32 0.0, %v2967
      %v2969 = vpop.f32.mrb[0].mxu0
      %2970 = vmatprep.mubr.f32.mxu0 0.0
      %2971 = vmatmul.mubr.f32.gmra.mrb[0].mxu0 %v2786
      %v2972 = vpop.f32.mrb[0].mxu0
      %v2973 = vadd.f32 0.0, %v2972
      %v2974 = vpop.f32.mrb[0].mxu0
      %2975 = vmatprep.mubr.f32.mxu0 0.0
      %2976 = vmatmul.mubr.f32.gmra.mrb[0].mxu0 %v2789
      %v2977 = vpop.f32.mrb[0].mxu0
      %v2978 = vadd.f32 0.0, %v2977
      %v2979 = vpop.f32.mrb[0].mxu0
      %2980 = vmatprep.mubr.f32.mxu0 0.0
      %2981 = vmatmul.mubr.f32.gmra.mrb[0].mxu0 %v2792
      %v2982 = vpop.f32.mrb[0].mxu0
      %v2983 = vadd.f32 0.0, %v2982
      %v2984 = vpop.f32.mrb[0].mxu0
      %2985 = vmatprep.mubr.f32.mxu0 0.0
      %2986 = vmatmul.mubr.f32.gmra.mrb[0].mxu0 %v2795
      %v2987 = vpop.f32.mrb[0].mxu0
      %v2988 = vadd.f32 0.0, %v2987
      %v2989 = vpop.f32.mrb[0].mxu0
      %2990 = vmatprep.mubr.f32.mxu0 0.0
      %2991 = vmatmul.mubr.f32.gmra.mrb[0].mxu0 %v2798
      %v2992 = vpop.f32.mrb[0].mxu0
      %v2993 = vadd.f32 0.0, %v2992
      %v2994 = vpop.f32.mrb[0].mxu0
      %2995 = vmatprep.mubr.f32.mxu0 0.0
      %2996 = vmatmul.mubr.f32.gmra.mrb[0].mxu0 %v2801
      %v2997 = vpop.f32.mrb[0].mxu0
      %v2998 = vadd.f32 0.0, %v2997
      %v2999 = vpop.f32.mrb[0].mxu0
      %3000 = vmatprep.mubr.f32.mxu0 0.0
      %3001 = vmatmul.mubr.f32.gmra.mrb[0].mxu0 %v2804
      %v3002 = vpop.f32.mrb[0].mxu0
      %v3003 = vadd.f32 0.0, %v3002
      %v3004 = vpop.f32.mrb[0].mxu0
      %3005 = vmatprep.mubr.f32.mxu0 0.0
      %3006 = vmatmul.mubr.f32.gmra.mrb[0].mxu0 %v2807
      %v3007 = vpop.f32.mrb[0].mxu0
      %v3008 = vadd.f32 0.0, %v3007
      %v3009 = vpop.f32.mrb[0].mxu0
      %3010 = vmatprep.mubr.f32.mxu0 0.0
      %3011 = vmatmul.mubr.f32.gmra.mrb[0].mxu0 %v2810
      %v3012 = vpop.f32.mrb[0].mxu0
      %v3013 = vadd.f32 0.0, %v3012
      %v3014 = vpop.f32.mrb[0].mxu0
      %3015 = vmatprep.mubr.f32.mxu0 0.0
      %3016 = vmatmul.mubr.f32.gmra.mrb[0].mxu0 %v2813
      %v3017 = vpop.f32.mrb[0].mxu0
      %v3018 = vadd.f32 0.0, %v3017
      %v3019 = vpop.f32.mrb[0].mxu0
      %3020 = vmatprep.mubr.f32.mxu0 0.0
      %3021 = vmatmul.mubr.f32.gmra.mrb[0].mxu0 %v2816
      %v3022 = vpop.f32.mrb[0].mxu0
      %v3023 = vadd.f32 0.0, %v3022
      %v3024 = vpop.f32.mrb[0].mxu0
      %3025 = vmatprep.mubr.f32.mxu0 0.0
      %3026 = vmatmul.mubr.f32.gmra.mrb[0].mxu0 %v2819
      %v3027 = vpop.f32.mrb[0].mxu0
      %v3028 = vadd.f32 0.0, %v3027
      %v3029 = vpop.f32.mrb[0].mxu0
      %3030 = vmatprep.mubr.f32.mxu0 0.0
      %3031 = vmatmul.mubr.f32.gmra.mrb[0].mxu0 %v2822
      %v3032 = vpop.f32.mrb[0].mxu0
      %v3033 = vadd.f32 0.0, %v3032
      %v3034 = vpop.f32.mrb[0].mxu0
      %3035 = vmatprep.mubr.f32.mxu0 0.0
      %3036 = vmatmul.mubr.f32.gmra.mrb[0].mxu0 %v2825
      %v3037 = vpop.f32.mrb[0].mxu0
      %v3038 = vadd.f32 0.0, %v3037
      %v3039 = vpop.f32.mrb[0].mxu0
      %3040 = vmatprep.mubr.f32.mxu0 0.0
      %3041 = vmatmul.mubr.f32.gmra.mrb[0].mxu0 %v2828
      %v3042 = vpop.f32.mrb[0].mxu0
      %v3043 = vadd.f32 0.0, %v3042
      %v3044 = vpop.f32.mrb[0].mxu0
      %3045 = vmatprep.mubr.f32.mxu0 0.0
      %3046 = vmatmul.mubr.f32.gmra.mrb[0].mxu0 %v2831
      %v3047 = vpop.f32.mrb[0].mxu0
      %v3048 = vadd.f32 0.0, %v3047
      %v3049 = vpop.f32.mrb[0].mxu0
      %3050 = vmatprep.mubr.f32.mxu0 0.0
      %3051 = vmatmul.mubr.f32.gmra.mrb[0].mxu0 %v2834
      %v3052 = vpop.f32.mrb[0].mxu0
      %v3053 = vadd.f32 0.0, %v3052
      %v3054 = vpop.f32.mrb[0].mxu0
      %3055 = vmatprep.mubr.f32.mxu0 0.0
      %3056 = vmatmul.mubr.f32.gmra.mrb[0].mxu0 %v2837
      %v3057 = vpop.f32.mrb[0].mxu0
      %v3058 = vadd.f32 0.0, %v3057
      %v3059 = vpop.f32.mrb[0].mxu0
      %3060 = vmatprep.mubr.f32.mxu0 0.0
      %3061 = vmatmul.mubr.f32.gmra.mrb[0].mxu0 %v2840
      %v3062 = vpop.f32.mrb[0].mxu0
      %v3063 = vadd.f32 0.0, %v3062
      %v3064 = vpop.f32.mrb[0].mxu0
      %3065 = vmatprep.mubr.f32.mxu0 0.0
      %3066 = vmatmul.mubr.f32.gmra.mrb[0].mxu0 %v2843
      %v3067 = vpop.f32.mrb[0].mxu0
      %v3068 = vadd.f32 0.0, %v3067
      %v3069 = vpop.f32.mrb[0].mxu0
      %3070 = vmatprep.mubr.f32.mxu0 0.0
      %3071 = vmatmul.mubr.f32.gmra.mrb[0].mxu0 %v2846
      %v3072 = vpop.f32.mrb[0].mxu0
      %v3073 = vadd.f32 0.0, %v3072
      %v3074 = vpop.f32.mrb[0].mxu0
      %3075 = vdwg.mxu0
      %v3076 = vadd.f32 %v2718, %v2918
      %v3077 = vadd.f32 %v2719, %v2923
      %v3078 = vadd.f32 %v2720, %v2928
      %v3079 = vadd.f32 %v2721, %v2933
      %v3080 = vadd.f32 %v2722, %v2938
      %v3081 = vadd.f32 %v2723, %v2943
      %v3082 = vadd.f32 %v2724, %v2948
      %v3083 = vadd.f32 %v2725, %v2953
      %v3084 = vadd.f32 %v2726, %v2958
      %v3085 = vadd.f32 %v2727, %v2963
      %v3086 = vadd.f32 %v2728, %v2968
      %v3087 = vadd.f32 %v2729, %v2973
      %v3088 = vadd.f32 %v2730, %v2978
      %v3089 = vadd.f32 %v2731, %v2983
      %v3090 = vadd.f32 %v2732, %v2988
      %v3091 = vadd.f32 %v2733, %v2993
      %v3092 = vadd.f32 %v2734, %v2998
      %v3093 = vadd.f32 %v2735, %v3003
      %v3094 = vadd.f32 %v2736, %v3008
      %v3095 = vadd.f32 %v2737, %v3013
      %v3096 = vadd.f32 %v2738, %v3018
      %v3097 = vadd.f32 %v2739, %v3023
      %v3098 = vadd.f32 %v2740, %v3028
      %v3099 = vadd.f32 %v2741, %v3033
      %v3100 = vadd.f32 %v2742, %v3038
      %v3101 = vadd.f32 %v2743, %v3043
      %v3102 = vadd.f32 %v2744, %v3048
      %v3103 = vadd.f32 %v2745, %v3053
      %v3104 = vadd.f32 %v2746, %v3058
      %v3105 = vadd.f32 %v2747, %v3063
      %v3106 = vadd.f32 %v2748, %v3068
      %v3107 = vadd.f32 %v2749, %v3073
      %3108 = vst.msk [vmem:[#allocation4] sm:$0xff] %vm269, %v3076
      %3109 = vst.msk [vmem:[#allocation4 + $0x8] sm:$0xff] %vm269, %v3077
      %3110 = vst.msk [vmem:[#allocation4 + $0x10] sm:$0xff] %vm269, %v3078
      %3111 = vst.msk [vmem:[#allocation4 + $0x18] sm:$0xff] %vm269, %v3079
      %3112 = vst.msk [vmem:[#allocation4 + $0x20] sm:$0xff] %vm269, %v3080
      %3113 = vst.msk [vmem:[#allocation4 + $0x28] sm:$0xff] %vm269, %v3081
      %3114 = vst.msk [vmem:[#allocation4 + $0x30] sm:$0xff] %vm269, %v3082
      %3115 = vst.msk [vmem:[#allocation4 + $0x38] sm:$0xff] %vm269, %v3083
      %3116 = vst.msk [vmem:[#allocation4 + $0x40] sm:$0xff] %vm269, %v3084
      %3117 = vst.msk [vmem:[#allocation4 + $0x48] sm:$0xff] %vm269, %v3085
      %3118 = vst.msk [vmem:[#allocation4 + $0x50] sm:$0xff] %vm269, %v3086
      %3119 = vst.msk [vmem:[#allocation4 + $0x58] sm:$0xff] %vm269, %v3087
      %3120 = vst.msk [vmem:[#allocation4 + $0x60] sm:$0xff] %vm269, %v3088
      %3121 = vst.msk [vmem:[#allocation4 + $0x68] sm:$0xff] %vm269, %v3089
      %3122 = vst.msk [vmem:[#allocation4 + $0x70] sm:$0xff] %vm269, %v3090
      %3123 = vst.msk [vmem:[#allocation4 + $0x78] sm:$0xff] %vm269, %v3091
      %3124 = vst.msk [vmem:[#allocation4 + $0x80] sm:$0xff] %vm269, %v3092
      %3125 = vst.msk [vmem:[#allocation4 + $0x88] sm:$0xff] %vm269, %v3093
      %3126 = vst.msk [vmem:[#allocation4 + $0x90] sm:$0xff] %vm269, %v3094
      %3127 = vst.msk [vmem:[#allocation4 + $0x98] sm:$0xff] %vm269, %v3095
      %3128 = vst.msk [vmem:[#allocation4 + $0xa0] sm:$0xff] %vm269, %v3096
      %3129 = vst.msk [vmem:[#allocation4 + $0xa8] sm:$0xff] %vm269, %v3097
      %3130 = vst.msk [vmem:[#allocation4 + $0xb0] sm:$0xff] %vm269, %v3098
      %3131 = vst.msk [vmem:[#allocation4 + $0xb8] sm:$0xff] %vm269, %v3099
      %3132 = vst.msk [vmem:[#allocation4 + $0xc0] sm:$0xff] %vm269, %v3100
      %3133 = vst.msk [vmem:[#allocation4 + $0xc8] sm:$0xff] %vm269, %v3101
      %3134 = vst.msk [vmem:[#allocation4 + $0xd0] sm:$0xff] %vm269, %v3102
      %3135 = vst.msk [vmem:[#allocation4 + $0xd8] sm:$0xff] %vm269, %v3103
      %3136 = vst.msk [vmem:[#allocation4 + $0xe0] sm:$0xff] %vm269, %v3104
      %3137 = vst.msk [vmem:[#allocation4 + $0xe8] sm:$0xff] %vm269, %v3105
      %3138 = vst.msk [vmem:[#allocation4 + $0xf0] sm:$0xff] %vm269, %v3106
      %3139 = vst.msk [vmem:[#allocation4 + $0xf8] sm:$0xff] %vm269, %v3107
      %s3140 = scalar_lea.vmem [#allocation2], 64
      %v3141 = vld [vmem:[%s3140 + $0x7] sm:$0xff]
      %v3142 = vld [vmem:[%s3140 + $0xf] sm:$0xff]
      %v3143 = vld [vmem:[%s3140 + $0x27] sm:$0xff]
      %v3144 = vld [vmem:[%s3140 + $0x2f] sm:$0xff]
      %v3145 = vld [vmem:[%s3140 + $0x47] sm:$0xff]
      %v3146 = vld [vmem:[%s3140 + $0x4f] sm:$0xff]
      %v3147 = vld [vmem:[%s3140 + $0x67] sm:$0xff]
      %v3148 = vld [vmem:[%s3140 + $0x6f] sm:$0xff]
      %v3149 = vld [vmem:[%s3140 + $0x87] sm:$0xff]
      %v3150 = vld [vmem:[%s3140 + $0x8f] sm:$0xff]
      %v3151 = vld [vmem:[%s3140 + $0xa7] sm:$0xff]
      %v3152 = vld [vmem:[%s3140 + $0xaf] sm:$0xff]
      %v3153 = vld [vmem:[%s3140 + $0xc7] sm:$0xff]
      %v3154 = vld [vmem:[%s3140 + $0xcf] sm:$0xff]
      %v3155 = vld [vmem:[%s3140 + $0xe7] sm:$0xff]
      %v3156 = vld [vmem:[%s3140 + $0xef] sm:$0xff]
      %v3157 = vld [vmem:[%s3140 + $0x107] sm:$0xff]
      %v3158 = vld [vmem:[%s3140 + $0x10f] sm:$0xff]
      %v3159 = vld [vmem:[%s3140 + $0x127] sm:$0xff]
      %v3160 = vld [vmem:[%s3140 + $0x12f] sm:$0xff]
      %v3161 = vld [vmem:[%s3140 + $0x147] sm:$0xff]
      %v3162 = vld [vmem:[%s3140 + $0x14f] sm:$0xff]
      %v3163 = vld [vmem:[%s3140 + $0x167] sm:$0xff]
      %v3164 = vld [vmem:[%s3140 + $0x16f] sm:$0xff]
      %v3165 = vld [vmem:[%s3140 + $0x187] sm:$0xff]
      %v3166 = vld [vmem:[%s3140 + $0x18f] sm:$0xff]
      %v3167 = vld [vmem:[%s3140 + $0x1a7] sm:$0xff]
      %v3168 = vld [vmem:[%s3140 + $0x1af] sm:$0xff]
      %v3169 = vld [vmem:[%s3140 + $0x1c7] sm:$0xff]
      %v3170 = vld [vmem:[%s3140 + $0x1cf] sm:$0xff]
      %v3171 = vld [vmem:[%s3140 + $0x1e7] sm:$0xff]
      %v3172 = vld [vmem:[%s3140 + $0x1ef] sm:$0xff]
      %v3173 = vld [vmem:[#allocation4] sm:$0xff]
      %v3174 = vld [vmem:[#allocation4 + $0x8] sm:$0xff]
      %v3175 = vld [vmem:[#allocation4 + $0x10] sm:$0xff]
      %v3176 = vld [vmem:[#allocation4 + $0x18] sm:$0xff]
      %v3177 = vld [vmem:[#allocation4 + $0x20] sm:$0xff]
      %v3178 = vld [vmem:[#allocation4 + $0x28] sm:$0xff]
      %v3179 = vld [vmem:[#allocation4 + $0x30] sm:$0xff]
      %v3180 = vld [vmem:[#allocation4 + $0x38] sm:$0xff]
      %v3181 = vld [vmem:[#allocation4 + $0x40] sm:$0xff]
      %v3182 = vld [vmem:[#allocation4 + $0x48] sm:$0xff]
      %v3183 = vld [vmem:[#allocation4 + $0x50] sm:$0xff]
      %v3184 = vld [vmem:[#allocation4 + $0x58] sm:$0xff]
      %v3185 = vld [vmem:[#allocation4 + $0x60] sm:$0xff]
      %v3186 = vld [vmem:[#allocation4 + $0x68] sm:$0xff]
      %v3187 = vld [vmem:[#allocation4 + $0x70] sm:$0xff]
      %v3188 = vld [vmem:[#allocation4 + $0x78] sm:$0xff]
      %v3189 = vld [vmem:[#allocation4 + $0x80] sm:$0xff]
      %v3190 = vld [vmem:[#allocation4 + $0x88] sm:$0xff]
      %v3191 = vld [vmem:[#allocation4 + $0x90] sm:$0xff]
      %v3192 = vld [vmem:[#allocation4 + $0x98] sm:$0xff]
      %v3193 = vld [vmem:[#allocation4 + $0xa0] sm:$0xff]
      %v3194 = vld [vmem:[#allocation4 + $0xa8] sm:$0xff]
      %v3195 = vld [vmem:[#allocation4 + $0xb0] sm:$0xff]
      %v3196 = vld [vmem:[#allocation4 + $0xb8] sm:$0xff]
      %v3197 = vld [vmem:[#allocation4 + $0xc0] sm:$0xff]
      %v3198 = vld [vmem:[#allocation4 + $0xc8] sm:$0xff]
      %v3199 = vld [vmem:[#allocation4 + $0xd0] sm:$0xff]
      %v3200 = vld [vmem:[#allocation4 + $0xd8] sm:$0xff]
      %v3201 = vld [vmem:[#allocation4 + $0xe0] sm:$0xff]
      %v3202 = vld [vmem:[#allocation4 + $0xe8] sm:$0xff]
      %v3203 = vld [vmem:[#allocation4 + $0xf0] sm:$0xff]
      %v3204 = vld [vmem:[#allocation4 + $0xf8] sm:$0xff]
      %s3205 = scalar_lea.vmem %s1, 24
      %v3206 = vld [vmem:[%s3205] sm:$0xf]
      %v3208 = vsel %vm225, %v3141, 0
      %v3211 = vsel %vm225, %v3142, 0
      %v3214 = vsel %vm225, %v3143, 0
      %v3217 = vsel %vm225, %v3144, 0
      %v3220 = vsel %vm225, %v3145, 0
      %v3223 = vsel %vm225, %v3146, 0
      %v3226 = vsel %vm225, %v3147, 0
      %v3229 = vsel %vm225, %v3148, 0
      %v3232 = vsel %vm225, %v3149, 0
      %v3235 = vsel %vm225, %v3150, 0
      %v3238 = vsel %vm225, %v3151, 0
      %v3241 = vsel %vm225, %v3152, 0
      %v3244 = vsel %vm225, %v3153, 0
      %v3247 = vsel %vm225, %v3154, 0
      %v3250 = vsel %vm225, %v3155, 0
      %v3253 = vsel %vm225, %v3156, 0
      %v3256 = vsel %vm225, %v3157, 0
      %v3259 = vsel %vm225, %v3158, 0
      %v3262 = vsel %vm225, %v3159, 0
      %v3265 = vsel %vm225, %v3160, 0
      %v3268 = vsel %vm225, %v3161, 0
      %v3271 = vsel %vm225, %v3162, 0
      %v3274 = vsel %vm225, %v3163, 0
      %v3277 = vsel %vm225, %v3164, 0
      %v3280 = vsel %vm225, %v3165, 0
      %v3283 = vsel %vm225, %v3166, 0
      %v3286 = vsel %vm225, %v3167, 0
      %v3289 = vsel %vm225, %v3168, 0
      %v3292 = vsel %vm225, %v3169, 0
      %v3295 = vsel %vm225, %v3170, 0
      %v3298 = vsel %vm225, %v3171, 0
      %v3301 = vsel %vm225, %v3172, 0
      %v3304 = vsel %vm577, %v3206, 0
      %3306 = vmatprep.subr.mxu0 0.0
      %3307 = vmatpush1.msra.mxu0 %v3304
      %3308 = vmatprep.subr.mxu0 0.0
      %3309 = vmatpush1.msra.mxu0 0.0
      %3310 = vmatprep.subr.mxu0 0.0
      %3311 = vmatpush1.msra.mxu0 0.0
      %3312 = vmatprep.subr.mxu0 0.0
      %3313 = vmatpush1.msra.mxu0 0.0
      %3314 = vmatprep.subr.mxu0 0.0
      %3315 = vmatpush1.msra.mxu0 0.0
      %3316 = vmatprep.subr.mxu0 0.0
      %3317 = vmatpush1.msra.mxu0 0.0
      %3318 = vmatprep.subr.mxu0 0.0
      %3319 = vmatpush1.msra.mxu0 0.0
      %3320 = vmatprep.subr.mxu0 0.0
      %3321 = vmatpush1.msra.mxu0 0.0
      %3322 = vmatprep.subr.mxu0 0.0
      %3323 = vmatpush1.msra.mxu0 0.0
      %3324 = vmatprep.subr.mxu0 0.0
      %3325 = vmatpush1.msra.mxu0 0.0
      %3326 = vmatprep.subr.mxu0 0.0
      %3327 = vmatpush1.msra.mxu0 0.0
      %3328 = vmatprep.subr.mxu0 0.0
      %3329 = vmatpush1.msra.mxu0 0.0
      %3330 = vmatprep.subr.mxu0 0.0
      %3331 = vmatpush1.msra.mxu0 0.0
      %3332 = vmatprep.subr.mxu0 0.0
      %3333 = vmatpush1.msra.mxu0 0.0
      %3334 = vmatprep.subr.mxu0 0.0
      %3335 = vmatpush1.msra.mxu0 0.0
      %3336 = vmatprep.subr.mxu0 0.0
      %3337 = vmatpush1.msra.mxu0 0.0
      %3338 = vmatprep.subr.mxu0 0.0
      %3339 = vmatpush1.msra.mxu0 0.0
      %3340 = vmatprep.subr.mxu0 0.0
      %3341 = vmatpush1.msra.mxu0 0.0
      %3342 = vmatprep.subr.mxu0 0.0
      %3343 = vmatpush1.msra.mxu0 0.0
      %3344 = vmatprep.subr.mxu0 0.0
      %3345 = vmatpush1.msra.mxu0 0.0
      %3346 = vmatprep.subr.mxu0 0.0
      %3347 = vmatpush1.msra.mxu0 0.0
      %3348 = vmatprep.subr.mxu0 0.0
      %3349 = vmatpush1.msra.mxu0 0.0
      %3350 = vmatprep.subr.mxu0 0.0
      %3351 = vmatpush1.msra.mxu0 0.0
      %3352 = vmatprep.subr.mxu0 0.0
      %3353 = vmatpush1.msra.mxu0 0.0
      %3354 = vmatprep.subr.mxu0 0.0
      %3355 = vmatpush1.msra.mxu0 0.0
      %3356 = vmatprep.subr.mxu0 0.0
      %3357 = vmatpush1.msra.mxu0 0.0
      %3358 = vmatprep.subr.mxu0 0.0
      %3359 = vmatpush1.msra.mxu0 0.0
      %3360 = vmatprep.subr.mxu0 0.0
      %3361 = vmatpush1.msra.mxu0 0.0
      %3362 = vmatprep.subr.mxu0 0.0
      %3363 = vmatpush1.msra.mxu0 0.0
      %3364 = vmatprep.subr.mxu0 0.0
      %3365 = vmatpush1.msra.mxu0 0.0
      %3366 = vmatprep.subr.mxu0 0.0
      %3367 = vmatpush1.msra.mxu0 0.0
      %3368 = vmatprep.subr.mxu0 0.0
      %3369 = vmatpush1.msra.mxu0 0.0
      %3370 = vmatprep.mubr.f32.mxu0 0.0
      %3371 = vmatmul.mubr.f32.gmra.mrb[0].mxu0 %v3208
      %v3372 = vpop.f32.mrb[0].mxu0
      %v3373 = vadd.f32 0.0, %v3372
      %v3374 = vpop.f32.mrb[0].mxu0
      %3375 = vmatprep.mubr.f32.mxu0 0.0
      %3376 = vmatmul.mubr.f32.gmra.mrb[0].mxu0 %v3211
      %v3377 = vpop.f32.mrb[0].mxu0
      %v3378 = vadd.f32 0.0, %v3377
      %v3379 = vpop.f32.mrb[0].mxu0
      %3380 = vmatprep.mubr.f32.mxu0 0.0
      %3381 = vmatmul.mubr.f32.gmra.mrb[0].mxu0 %v3214
      %v3382 = vpop.f32.mrb[0].mxu0
      %v3383 = vadd.f32 0.0, %v3382
      %v3384 = vpop.f32.mrb[0].mxu0
      %3385 = vmatprep.mubr.f32.mxu0 0.0
      %3386 = vmatmul.mubr.f32.gmra.mrb[0].mxu0 %v3217
      %v3387 = vpop.f32.mrb[0].mxu0
      %v3388 = vadd.f32 0.0, %v3387
      %v3389 = vpop.f32.mrb[0].mxu0
      %3390 = vmatprep.mubr.f32.mxu0 0.0
      %3391 = vmatmul.mubr.f32.gmra.mrb[0].mxu0 %v3220
      %v3392 = vpop.f32.mrb[0].mxu0
      %v3393 = vadd.f32 0.0, %v3392
      %v3394 = vpop.f32.mrb[0].mxu0
      %3395 = vmatprep.mubr.f32.mxu0 0.0
      %3396 = vmatmul.mubr.f32.gmra.mrb[0].mxu0 %v3223
      %v3397 = vpop.f32.mrb[0].mxu0
      %v3398 = vadd.f32 0.0, %v3397
      %v3399 = vpop.f32.mrb[0].mxu0
      %3400 = vmatprep.mubr.f32.mxu0 0.0
      %3401 = vmatmul.mubr.f32.gmra.mrb[0].mxu0 %v3226
      %v3402 = vpop.f32.mrb[0].mxu0
      %v3403 = vadd.f32 0.0, %v3402
      %v3404 = vpop.f32.mrb[0].mxu0
      %3405 = vmatprep.mubr.f32.mxu0 0.0
      %3406 = vmatmul.mubr.f32.gmra.mrb[0].mxu0 %v3229
      %v3407 = vpop.f32.mrb[0].mxu0
      %v3408 = vadd.f32 0.0, %v3407
      %v3409 = vpop.f32.mrb[0].mxu0
      %3410 = vmatprep.mubr.f32.mxu0 0.0
      %3411 = vmatmul.mubr.f32.gmra.mrb[0].mxu0 %v3232
      %v3412 = vpop.f32.mrb[0].mxu0
      %v3413 = vadd.f32 0.0, %v3412
      %v3414 = vpop.f32.mrb[0].mxu0
      %3415 = vmatprep.mubr.f32.mxu0 0.0
      %3416 = vmatmul.mubr.f32.gmra.mrb[0].mxu0 %v3235
      %v3417 = vpop.f32.mrb[0].mxu0
      %v3418 = vadd.f32 0.0, %v3417
      %v3419 = vpop.f32.mrb[0].mxu0
      %3420 = vmatprep.mubr.f32.mxu0 0.0
      %3421 = vmatmul.mubr.f32.gmra.mrb[0].mxu0 %v3238
      %v3422 = vpop.f32.mrb[0].mxu0
      %v3423 = vadd.f32 0.0, %v3422
      %v3424 = vpop.f32.mrb[0].mxu0
      %3425 = vmatprep.mubr.f32.mxu0 0.0
      %3426 = vmatmul.mubr.f32.gmra.mrb[0].mxu0 %v3241
      %v3427 = vpop.f32.mrb[0].mxu0
      %v3428 = vadd.f32 0.0, %v3427
      %v3429 = vpop.f32.mrb[0].mxu0
      %3430 = vmatprep.mubr.f32.mxu0 0.0
      %3431 = vmatmul.mubr.f32.gmra.mrb[0].mxu0 %v3244
      %v3432 = vpop.f32.mrb[0].mxu0
      %v3433 = vadd.f32 0.0, %v3432
      %v3434 = vpop.f32.mrb[0].mxu0
      %3435 = vmatprep.mubr.f32.mxu0 0.0
      %3436 = vmatmul.mubr.f32.gmra.mrb[0].mxu0 %v3247
      %v3437 = vpop.f32.mrb[0].mxu0
      %v3438 = vadd.f32 0.0, %v3437
      %v3439 = vpop.f32.mrb[0].mxu0
      %3440 = vmatprep.mubr.f32.mxu0 0.0
      %3441 = vmatmul.mubr.f32.gmra.mrb[0].mxu0 %v3250
      %v3442 = vpop.f32.mrb[0].mxu0
      %v3443 = vadd.f32 0.0, %v3442
      %v3444 = vpop.f32.mrb[0].mxu0
      %3445 = vmatprep.mubr.f32.mxu0 0.0
      %3446 = vmatmul.mubr.f32.gmra.mrb[0].mxu0 %v3253
      %v3447 = vpop.f32.mrb[0].mxu0
      %v3448 = vadd.f32 0.0, %v3447
      %v3449 = vpop.f32.mrb[0].mxu0
      %3450 = vmatprep.mubr.f32.mxu0 0.0
      %3451 = vmatmul.mubr.f32.gmra.mrb[0].mxu0 %v3256
      %v3452 = vpop.f32.mrb[0].mxu0
      %v3453 = vadd.f32 0.0, %v3452
      %v3454 = vpop.f32.mrb[0].mxu0
      %3455 = vmatprep.mubr.f32.mxu0 0.0
      %3456 = vmatmul.mubr.f32.gmra.mrb[0].mxu0 %v3259
      %v3457 = vpop.f32.mrb[0].mxu0
      %v3458 = vadd.f32 0.0, %v3457
      %v3459 = vpop.f32.mrb[0].mxu0
      %3460 = vmatprep.mubr.f32.mxu0 0.0
      %3461 = vmatmul.mubr.f32.gmra.mrb[0].mxu0 %v3262
      %v3462 = vpop.f32.mrb[0].mxu0
      %v3463 = vadd.f32 0.0, %v3462
      %v3464 = vpop.f32.mrb[0].mxu0
      %3465 = vmatprep.mubr.f32.mxu0 0.0
      %3466 = vmatmul.mubr.f32.gmra.mrb[0].mxu0 %v3265
      %v3467 = vpop.f32.mrb[0].mxu0
      %v3468 = vadd.f32 0.0, %v3467
      %v3469 = vpop.f32.mrb[0].mxu0
      %3470 = vmatprep.mubr.f32.mxu0 0.0
      %3471 = vmatmul.mubr.f32.gmra.mrb[0].mxu0 %v3268
      %v3472 = vpop.f32.mrb[0].mxu0
      %v3473 = vadd.f32 0.0, %v3472
      %v3474 = vpop.f32.mrb[0].mxu0
      %3475 = vmatprep.mubr.f32.mxu0 0.0
      %3476 = vmatmul.mubr.f32.gmra.mrb[0].mxu0 %v3271
      %v3477 = vpop.f32.mrb[0].mxu0
      %v3478 = vadd.f32 0.0, %v3477
      %v3479 = vpop.f32.mrb[0].mxu0
      %3480 = vmatprep.mubr.f32.mxu0 0.0
      %3481 = vmatmul.mubr.f32.gmra.mrb[0].mxu0 %v3274
      %v3482 = vpop.f32.mrb[0].mxu0
      %v3483 = vadd.f32 0.0, %v3482
      %v3484 = vpop.f32.mrb[0].mxu0
      %3485 = vmatprep.mubr.f32.mxu0 0.0
      %3486 = vmatmul.mubr.f32.gmra.mrb[0].mxu0 %v3277
      %v3487 = vpop.f32.mrb[0].mxu0
      %v3488 = vadd.f32 0.0, %v3487
      %v3489 = vpop.f32.mrb[0].mxu0
      %3490 = vmatprep.mubr.f32.mxu0 0.0
      %3491 = vmatmul.mubr.f32.gmra.mrb[0].mxu0 %v3280
      %v3492 = vpop.f32.mrb[0].mxu0
      %v3493 = vadd.f32 0.0, %v3492
      %v3494 = vpop.f32.mrb[0].mxu0
      %3495 = vmatprep.mubr.f32.mxu0 0.0
      %3496 = vmatmul.mubr.f32.gmra.mrb[0].mxu0 %v3283
      %v3497 = vpop.f32.mrb[0].mxu0
      %v3498 = vadd.f32 0.0, %v3497
      %v3499 = vpop.f32.mrb[0].mxu0
      %3500 = vmatprep.mubr.f32.mxu0 0.0
      %3501 = vmatmul.mubr.f32.gmra.mrb[0].mxu0 %v3286
      %v3502 = vpop.f32.mrb[0].mxu0
      %v3503 = vadd.f32 0.0, %v3502
      %v3504 = vpop.f32.mrb[0].mxu0
      %3505 = vmatprep.mubr.f32.mxu0 0.0
      %3506 = vmatmul.mubr.f32.gmra.mrb[0].mxu0 %v3289
      %v3507 = vpop.f32.mrb[0].mxu0
      %v3508 = vadd.f32 0.0, %v3507
      %v3509 = vpop.f32.mrb[0].mxu0
      %3510 = vmatprep.mubr.f32.mxu0 0.0
      %3511 = vmatmul.mubr.f32.gmra.mrb[0].mxu0 %v3292
      %v3512 = vpop.f32.mrb[0].mxu0
      %v3513 = vadd.f32 0.0, %v3512
      %v3514 = vpop.f32.mrb[0].mxu0
      %3515 = vmatprep.mubr.f32.mxu0 0.0
      %3516 = vmatmul.mubr.f32.gmra.mrb[0].mxu0 %v3295
      %v3517 = vpop.f32.mrb[0].mxu0
      %v3518 = vadd.f32 0.0, %v3517
      %v3519 = vpop.f32.mrb[0].mxu0
      %3520 = vmatprep.mubr.f32.mxu0 0.0
      %3521 = vmatmul.mubr.f32.gmra.mrb[0].mxu0 %v3298
      %v3522 = vpop.f32.mrb[0].mxu0
      %v3523 = vadd.f32 0.0, %v3522
      %v3524 = vpop.f32.mrb[0].mxu0
      %3525 = vmatprep.mubr.f32.mxu0 0.0
      %3526 = vmatmul.mubr.f32.gmra.mrb[0].mxu0 %v3301
      %v3527 = vpop.f32.mrb[0].mxu0
      %v3528 = vadd.f32 0.0, %v3527
      %v3529 = vpop.f32.mrb[0].mxu0
      %3530 = vdwg.mxu0
      %v3531 = vadd.f32 %v3173, %v3373
      %v3532 = vadd.f32 %v3174, %v3378
      %v3533 = vadd.f32 %v3175, %v3383
      %v3534 = vadd.f32 %v3176, %v3388
      %v3535 = vadd.f32 %v3177, %v3393
      %v3536 = vadd.f32 %v3178, %v3398
      %v3537 = vadd.f32 %v3179, %v3403
      %v3538 = vadd.f32 %v3180, %v3408
      %v3539 = vadd.f32 %v3181, %v3413
      %v3540 = vadd.f32 %v3182, %v3418
      %v3541 = vadd.f32 %v3183, %v3423
      %v3542 = vadd.f32 %v3184, %v3428
      %v3543 = vadd.f32 %v3185, %v3433
      %v3544 = vadd.f32 %v3186, %v3438
      %v3545 = vadd.f32 %v3187, %v3443
      %v3546 = vadd.f32 %v3188, %v3448
      %v3547 = vadd.f32 %v3189, %v3453
      %v3548 = vadd.f32 %v3190, %v3458
      %v3549 = vadd.f32 %v3191, %v3463
      %v3550 = vadd.f32 %v3192, %v3468
      %v3551 = vadd.f32 %v3193, %v3473
      %v3552 = vadd.f32 %v3194, %v3478
      %v3553 = vadd.f32 %v3195, %v3483
      %v3554 = vadd.f32 %v3196, %v3488
      %v3555 = vadd.f32 %v3197, %v3493
      %v3556 = vadd.f32 %v3198, %v3498
      %v3557 = vadd.f32 %v3199, %v3503
      %v3558 = vadd.f32 %v3200, %v3508
      %v3559 = vadd.f32 %v3201, %v3513
      %v3560 = vadd.f32 %v3202, %v3518
      %v3561 = vadd.f32 %v3203, %v3523
      %v3562 = vadd.f32 %v3204, %v3528
      %3563 = vst.msk [vmem:[#allocation4] sm:$0xff] %vm269, %v3531
      %3564 = vst.msk [vmem:[#allocation4 + $0x8] sm:$0xff] %vm269, %v3532
      %3565 = vst.msk [vmem:[#allocation4 + $0x10] sm:$0xff] %vm269, %v3533
      %3566 = vst.msk [vmem:[#allocation4 + $0x18] sm:$0xff] %vm269, %v3534
      %3567 = vst.msk [vmem:[#allocation4 + $0x20] sm:$0xff] %vm269, %v3535
      %3568 = vst.msk [vmem:[#allocation4 + $0x28] sm:$0xff] %vm269, %v3536
      %3569 = vst.msk [vmem:[#allocation4 + $0x30] sm:$0xff] %vm269, %v3537
      %3570 = vst.msk [vmem:[#allocation4 + $0x38] sm:$0xff] %vm269, %v3538
      %3571 = vst.msk [vmem:[#allocation4 + $0x40] sm:$0xff] %vm269, %v3539
      %3572 = vst.msk [vmem:[#allocation4 + $0x48] sm:$0xff] %vm269, %v3540
      %3573 = vst.msk [vmem:[#allocation4 + $0x50] sm:$0xff] %vm269, %v3541
      %3574 = vst.msk [vmem:[#allocation4 + $0x58] sm:$0xff] %vm269, %v3542
      %3575 = vst.msk [vmem:[#allocation4 + $0x60] sm:$0xff] %vm269, %v3543
      %3576 = vst.msk [vmem:[#allocation4 + $0x68] sm:$0xff] %vm269, %v3544
      %3577 = vst.msk [vmem:[#allocation4 + $0x70] sm:$0xff] %vm269, %v3545
      %3578 = vst.msk [vmem:[#allocation4 + $0x78] sm:$0xff] %vm269, %v3546
      %3579 = vst.msk [vmem:[#allocation4 + $0x80] sm:$0xff] %vm269, %v3547
      %3580 = vst.msk [vmem:[#allocation4 + $0x88] sm:$0xff] %vm269, %v3548
      %3581 = vst.msk [vmem:[#allocation4 + $0x90] sm:$0xff] %vm269, %v3549
      %3582 = vst.msk [vmem:[#allocation4 + $0x98] sm:$0xff] %vm269, %v3550
      %3583 = vst.msk [vmem:[#allocation4 + $0xa0] sm:$0xff] %vm269, %v3551
      %3584 = vst.msk [vmem:[#allocation4 + $0xa8] sm:$0xff] %vm269, %v3552
      %3585 = vst.msk [vmem:[#allocation4 + $0xb0] sm:$0xff] %vm269, %v3553
      %3586 = vst.msk [vmem:[#allocation4 + $0xb8] sm:$0xff] %vm269, %v3554
      %3587 = vst.msk [vmem:[#allocation4 + $0xc0] sm:$0xff] %vm269, %v3555
      %3588 = vst.msk [vmem:[#allocation4 + $0xc8] sm:$0xff] %vm269, %v3556
      %3589 = vst.msk [vmem:[#allocation4 + $0xd0] sm:$0xff] %vm269, %v3557
      %3590 = vst.msk [vmem:[#allocation4 + $0xd8] sm:$0xff] %vm269, %v3558
      %3591 = vst.msk [vmem:[#allocation4 + $0xe0] sm:$0xff] %vm269, %v3559
      %3592 = vst.msk [vmem:[#allocation4 + $0xe8] sm:$0xff] %vm269, %v3560
      %3593 = vst.msk [vmem:[#allocation4 + $0xf0] sm:$0xff] %vm269, %v3561
      %3594 = vst.msk [vmem:[#allocation4 + $0xf8] sm:$0xff] %vm269, %v3562
      %v3595 = vld [vmem:[%s3140 + $0x8] sm:$0xff]
      %v3596 = vld [vmem:[%s3140 + $0x10] sm:$0xff]
      %v3597 = vld [vmem:[%s3140 + $0x28] sm:$0xff]
      %v3598 = vld [vmem:[%s3140 + $0x30] sm:$0xff]
      %v3599 = vld [vmem:[%s3140 + $0x48] sm:$0xff]
      %v3600 = vld [vmem:[%s3140 + $0x50] sm:$0xff]
      %v3601 = vld [vmem:[%s3140 + $0x68] sm:$0xff]
      %v3602 = vld [vmem:[%s3140 + $0x70] sm:$0xff]
      %v3603 = vld [vmem:[%s3140 + $0x88] sm:$0xff]
      %v3604 = vld [vmem:[%s3140 + $0x90] sm:$0xff]
      %v3605 = vld [vmem:[%s3140 + $0xa8] sm:$0xff]
      %v3606 = vld [vmem:[%s3140 + $0xb0] sm:$0xff]
      %v3607 = vld [vmem:[%s3140 + $0xc8] sm:$0xff]
      %v3608 = vld [vmem:[%s3140 + $0xd0] sm:$0xff]
      %v3609 = vld [vmem:[%s3140 + $0xe8] sm:$0xff]
      %v3610 = vld [vmem:[%s3140 + $0xf0] sm:$0xff]
      %v3611 = vld [vmem:[%s3140 + $0x108] sm:$0xff]
      %v3612 = vld [vmem:[%s3140 + $0x110] sm:$0xff]
      %v3613 = vld [vmem:[%s3140 + $0x128] sm:$0xff]
      %v3614 = vld [vmem:[%s3140 + $0x130] sm:$0xff]
      %v3615 = vld [vmem:[%s3140 + $0x148] sm:$0xff]
      %v3616 = vld [vmem:[%s3140 + $0x150] sm:$0xff]
      %v3617 = vld [vmem:[%s3140 + $0x168] sm:$0xff]
      %v3618 = vld [vmem:[%s3140 + $0x170] sm:$0xff]
      %v3619 = vld [vmem:[%s3140 + $0x188] sm:$0xff]
      %v3620 = vld [vmem:[%s3140 + $0x190] sm:$0xff]
      %v3621 = vld [vmem:[%s3140 + $0x1a8] sm:$0xff]
      %v3622 = vld [vmem:[%s3140 + $0x1b0] sm:$0xff]
      %v3623 = vld [vmem:[%s3140 + $0x1c8] sm:$0xff]
      %v3624 = vld [vmem:[%s3140 + $0x1d0] sm:$0xff]
      %v3625 = vld [vmem:[%s3140 + $0x1e8] sm:$0xff]
      %v3626 = vld [vmem:[%s3140 + $0x1f0] sm:$0xff]
      %v3627 = vld [vmem:[#allocation4] sm:$0xff]
      %v3628 = vld [vmem:[#allocation4 + $0x8] sm:$0xff]
      %v3629 = vld [vmem:[#allocation4 + $0x10] sm:$0xff]
      %v3630 = vld [vmem:[#allocation4 + $0x18] sm:$0xff]
      %v3631 = vld [vmem:[#allocation4 + $0x20] sm:$0xff]
      %v3632 = vld [vmem:[#allocation4 + $0x28] sm:$0xff]
      %v3633 = vld [vmem:[#allocation4 + $0x30] sm:$0xff]
      %v3634 = vld [vmem:[#allocation4 + $0x38] sm:$0xff]
      %v3635 = vld [vmem:[#allocation4 + $0x40] sm:$0xff]
      %v3636 = vld [vmem:[#allocation4 + $0x48] sm:$0xff]
      %v3637 = vld [vmem:[#allocation4 + $0x50] sm:$0xff]
      %v3638 = vld [vmem:[#allocation4 + $0x58] sm:$0xff]
      %v3639 = vld [vmem:[#allocation4 + $0x60] sm:$0xff]
      %v3640 = vld [vmem:[#allocation4 + $0x68] sm:$0xff]
      %v3641 = vld [vmem:[#allocation4 + $0x70] sm:$0xff]
      %v3642 = vld [vmem:[#allocation4 + $0x78] sm:$0xff]
      %v3643 = vld [vmem:[#allocation4 + $0x80] sm:$0xff]
      %v3644 = vld [vmem:[#allocation4 + $0x88] sm:$0xff]
      %v3645 = vld [vmem:[#allocation4 + $0x90] sm:$0xff]
      %v3646 = vld [vmem:[#allocation4 + $0x98] sm:$0xff]
      %v3647 = vld [vmem:[#allocation4 + $0xa0] sm:$0xff]
      %v3648 = vld [vmem:[#allocation4 + $0xa8] sm:$0xff]
      %v3649 = vld [vmem:[#allocation4 + $0xb0] sm:$0xff]
      %v3650 = vld [vmem:[#allocation4 + $0xb8] sm:$0xff]
      %v3651 = vld [vmem:[#allocation4 + $0xc0] sm:$0xff]
      %v3652 = vld [vmem:[#allocation4 + $0xc8] sm:$0xff]
      %v3653 = vld [vmem:[#allocation4 + $0xd0] sm:$0xff]
      %v3654 = vld [vmem:[#allocation4 + $0xd8] sm:$0xff]
      %v3655 = vld [vmem:[#allocation4 + $0xe0] sm:$0xff]
      %v3656 = vld [vmem:[#allocation4 + $0xe8] sm:$0xff]
      %v3657 = vld [vmem:[#allocation4 + $0xf0] sm:$0xff]
      %v3658 = vld [vmem:[#allocation4 + $0xf8] sm:$0xff]
      %s3659 = scalar_lea.vmem %s1, 28
      %v3660 = vld [vmem:[%s3659] sm:$0xf]
      %v3662 = vsel %vm225, %v3595, 0
      %v3665 = vsel %vm225, %v3596, 0
      %v3668 = vsel %vm225, %v3597, 0
      %v3671 = vsel %vm225, %v3598, 0
      %v3674 = vsel %vm225, %v3599, 0
      %v3677 = vsel %vm225, %v3600, 0
      %v3680 = vsel %vm225, %v3601, 0
      %v3683 = vsel %vm225, %v3602, 0
      %v3686 = vsel %vm225, %v3603, 0
      %v3689 = vsel %vm225, %v3604, 0
      %v3692 = vsel %vm225, %v3605, 0
      %v3695 = vsel %vm225, %v3606, 0
      %v3698 = vsel %vm225, %v3607, 0
      %v3701 = vsel %vm225, %v3608, 0
      %v3704 = vsel %vm225, %v3609, 0
      %v3707 = vsel %vm225, %v3610, 0
      %v3710 = vsel %vm225, %v3611, 0
      %v3713 = vsel %vm225, %v3612, 0
      %v3716 = vsel %vm225, %v3613, 0
      %v3719 = vsel %vm225, %v3614, 0
      %v3722 = vsel %vm225, %v3615, 0
      %v3725 = vsel %vm225, %v3616, 0
      %v3728 = vsel %vm225, %v3617, 0
      %v3731 = vsel %vm225, %v3618, 0
      %v3734 = vsel %vm225, %v3619, 0
      %v3737 = vsel %vm225, %v3620, 0
      %v3740 = vsel %vm225, %v3621, 0
      %v3743 = vsel %vm225, %v3622, 0
      %v3746 = vsel %vm225, %v3623, 0
      %v3749 = vsel %vm225, %v3624, 0
      %v3752 = vsel %vm225, %v3625, 0
      %v3755 = vsel %vm225, %v3626, 0
      %v3758 = vsel %vm577, %v3660, 0
      %3760 = vmatprep.subr.mxu0 0.0
      %3761 = vmatpush1.msra.mxu0 %v3758
      %3762 = vmatprep.subr.mxu0 0.0
      %3763 = vmatpush1.msra.mxu0 0.0
      %3764 = vmatprep.subr.mxu0 0.0
      %3765 = vmatpush1.msra.mxu0 0.0
      %3766 = vmatprep.subr.mxu0 0.0
      %3767 = vmatpush1.msra.mxu0 0.0
      %3768 = vmatprep.subr.mxu0 0.0
      %3769 = vmatpush1.msra.mxu0 0.0
      %3770 = vmatprep.subr.mxu0 0.0
      %3771 = vmatpush1.msra.mxu0 0.0
      %3772 = vmatprep.subr.mxu0 0.0
      %3773 = vmatpush1.msra.mxu0 0.0
      %3774 = vmatprep.subr.mxu0 0.0
      %3775 = vmatpush1.msra.mxu0 0.0
      %3776 = vmatprep.subr.mxu0 0.0
      %3777 = vmatpush1.msra.mxu0 0.0
      %3778 = vmatprep.subr.mxu0 0.0
      %3779 = vmatpush1.msra.mxu0 0.0
      %3780 = vmatprep.subr.mxu0 0.0
      %3781 = vmatpush1.msra.mxu0 0.0
      %3782 = vmatprep.subr.mxu0 0.0
      %3783 = vmatpush1.msra.mxu0 0.0
      %3784 = vmatprep.subr.mxu0 0.0
      %3785 = vmatpush1.msra.mxu0 0.0
      %3786 = vmatprep.subr.mxu0 0.0
      %3787 = vmatpush1.msra.mxu0 0.0
      %3788 = vmatprep.subr.mxu0 0.0
      %3789 = vmatpush1.msra.mxu0 0.0
      %3790 = vmatprep.subr.mxu0 0.0
      %3791 = vmatpush1.msra.mxu0 0.0
      %3792 = vmatprep.subr.mxu0 0.0
      %3793 = vmatpush1.msra.mxu0 0.0
      %3794 = vmatprep.subr.mxu0 0.0
      %3795 = vmatpush1.msra.mxu0 0.0
      %3796 = vmatprep.subr.mxu0 0.0
      %3797 = vmatpush1.msra.mxu0 0.0
      %3798 = vmatprep.subr.mxu0 0.0
      %3799 = vmatpush1.msra.mxu0 0.0
      %3800 = vmatprep.subr.mxu0 0.0
      %3801 = vmatpush1.msra.mxu0 0.0
      %3802 = vmatprep.subr.mxu0 0.0
      %3803 = vmatpush1.msra.mxu0 0.0
      %3804 = vmatprep.subr.mxu0 0.0
      %3805 = vmatpush1.msra.mxu0 0.0
      %3806 = vmatprep.subr.mxu0 0.0
      %3807 = vmatpush1.msra.mxu0 0.0
      %3808 = vmatprep.subr.mxu0 0.0
      %3809 = vmatpush1.msra.mxu0 0.0
      %3810 = vmatprep.subr.mxu0 0.0
      %3811 = vmatpush1.msra.mxu0 0.0
      %3812 = vmatprep.subr.mxu0 0.0
      %3813 = vmatpush1.msra.mxu0 0.0
      %3814 = vmatprep.subr.mxu0 0.0
      %3815 = vmatpush1.msra.mxu0 0.0
      %3816 = vmatprep.subr.mxu0 0.0
      %3817 = vmatpush1.msra.mxu0 0.0
      %3818 = vmatprep.subr.mxu0 0.0
      %3819 = vmatpush1.msra.mxu0 0.0
      %3820 = vmatprep.subr.mxu0 0.0
      %3821 = vmatpush1.msra.mxu0 0.0
      %3822 = vmatprep.subr.mxu0 0.0
      %3823 = vmatpush1.msra.mxu0 0.0
      %3824 = vmatprep.mubr.f32.mxu0 0.0
      %3825 = vmatmul.mubr.f32.gmra.mrb[0].mxu0 %v3662
      %v3826 = vpop.f32.mrb[0].mxu0
      %v3827 = vadd.f32 0.0, %v3826
      %v3828 = vpop.f32.mrb[0].mxu0
      %3829 = vmatprep.mubr.f32.mxu0 0.0
      %3830 = vmatmul.mubr.f32.gmra.mrb[0].mxu0 %v3665
      %v3831 = vpop.f32.mrb[0].mxu0
      %v3832 = vadd.f32 0.0, %v3831
      %v3833 = vpop.f32.mrb[0].mxu0
      %3834 = vmatprep.mubr.f32.mxu0 0.0
      %3835 = vmatmul.mubr.f32.gmra.mrb[0].mxu0 %v3668
      %v3836 = vpop.f32.mrb[0].mxu0
      %v3837 = vadd.f32 0.0, %v3836
      %v3838 = vpop.f32.mrb[0].mxu0
      %3839 = vmatprep.mubr.f32.mxu0 0.0
      %3840 = vmatmul.mubr.f32.gmra.mrb[0].mxu0 %v3671
      %v3841 = vpop.f32.mrb[0].mxu0
      %v3842 = vadd.f32 0.0, %v3841
      %v3843 = vpop.f32.mrb[0].mxu0
      %3844 = vmatprep.mubr.f32.mxu0 0.0
      %3845 = vmatmul.mubr.f32.gmra.mrb[0].mxu0 %v3674
      %v3846 = vpop.f32.mrb[0].mxu0
      %v3847 = vadd.f32 0.0, %v3846
      %v3848 = vpop.f32.mrb[0].mxu0
      %3849 = vmatprep.mubr.f32.mxu0 0.0
      %3850 = vmatmul.mubr.f32.gmra.mrb[0].mxu0 %v3677
      %v3851 = vpop.f32.mrb[0].mxu0
      %v3852 = vadd.f32 0.0, %v3851
      %v3853 = vpop.f32.mrb[0].mxu0
      %3854 = vmatprep.mubr.f32.mxu0 0.0
      %3855 = vmatmul.mubr.f32.gmra.mrb[0].mxu0 %v3680
      %v3856 = vpop.f32.mrb[0].mxu0
      %v3857 = vadd.f32 0.0, %v3856
      %v3858 = vpop.f32.mrb[0].mxu0
      %3859 = vmatprep.mubr.f32.mxu0 0.0
      %3860 = vmatmul.mubr.f32.gmra.mrb[0].mxu0 %v3683
      %v3861 = vpop.f32.mrb[0].mxu0
      %v3862 = vadd.f32 0.0, %v3861
      %v3863 = vpop.f32.mrb[0].mxu0
      %3864 = vmatprep.mubr.f32.mxu0 0.0
      %3865 = vmatmul.mubr.f32.gmra.mrb[0].mxu0 %v3686
      %v3866 = vpop.f32.mrb[0].mxu0
      %v3867 = vadd.f32 0.0, %v3866
      %v3868 = vpop.f32.mrb[0].mxu0
      %3869 = vmatprep.mubr.f32.mxu0 0.0
      %3870 = vmatmul.mubr.f32.gmra.mrb[0].mxu0 %v3689
      %v3871 = vpop.f32.mrb[0].mxu0
      %v3872 = vadd.f32 0.0, %v3871
      %v3873 = vpop.f32.mrb[0].mxu0
      %3874 = vmatprep.mubr.f32.mxu0 0.0
      %3875 = vmatmul.mubr.f32.gmra.mrb[0].mxu0 %v3692
      %v3876 = vpop.f32.mrb[0].mxu0
      %v3877 = vadd.f32 0.0, %v3876
      %v3878 = vpop.f32.mrb[0].mxu0
      %3879 = vmatprep.mubr.f32.mxu0 0.0
      %3880 = vmatmul.mubr.f32.gmra.mrb[0].mxu0 %v3695
      %v3881 = vpop.f32.mrb[0].mxu0
      %v3882 = vadd.f32 0.0, %v3881
      %v3883 = vpop.f32.mrb[0].mxu0
      %3884 = vmatprep.mubr.f32.mxu0 0.0
      %3885 = vmatmul.mubr.f32.gmra.mrb[0].mxu0 %v3698
      %v3886 = vpop.f32.mrb[0].mxu0
      %v3887 = vadd.f32 0.0, %v3886
      %v3888 = vpop.f32.mrb[0].mxu0
      %3889 = vmatprep.mubr.f32.mxu0 0.0
      %3890 = vmatmul.mubr.f32.gmra.mrb[0].mxu0 %v3701
      %v3891 = vpop.f32.mrb[0].mxu0
      %v3892 = vadd.f32 0.0, %v3891
      %v3893 = vpop.f32.mrb[0].mxu0
      %3894 = vmatprep.mubr.f32.mxu0 0.0
      %3895 = vmatmul.mubr.f32.gmra.mrb[0].mxu0 %v3704
      %v3896 = vpop.f32.mrb[0].mxu0
      %v3897 = vadd.f32 0.0, %v3896
      %v3898 = vpop.f32.mrb[0].mxu0
      %3899 = vmatprep.mubr.f32.mxu0 0.0
      %3900 = vmatmul.mubr.f32.gmra.mrb[0].mxu0 %v3707
      %v3901 = vpop.f32.mrb[0].mxu0
      %v3902 = vadd.f32 0.0, %v3901
      %v3903 = vpop.f32.mrb[0].mxu0
      %3904 = vmatprep.mubr.f32.mxu0 0.0
      %3905 = vmatmul.mubr.f32.gmra.mrb[0].mxu0 %v3710
      %v3906 = vpop.f32.mrb[0].mxu0
      %v3907 = vadd.f32 0.0, %v3906
      %v3908 = vpop.f32.mrb[0].mxu0
      %3909 = vmatprep.mubr.f32.mxu0 0.0
      %3910 = vmatmul.mubr.f32.gmra.mrb[0].mxu0 %v3713
      %v3911 = vpop.f32.mrb[0].mxu0
      %v3912 = vadd.f32 0.0, %v3911
      %v3913 = vpop.f32.mrb[0].mxu0
      %3914 = vmatprep.mubr.f32.mxu0 0.0
      %3915 = vmatmul.mubr.f32.gmra.mrb[0].mxu0 %v3716
      %v3916 = vpop.f32.mrb[0].mxu0
      %v3917 = vadd.f32 0.0, %v3916
      %v3918 = vpop.f32.mrb[0].mxu0
      %3919 = vmatprep.mubr.f32.mxu0 0.0
      %3920 = vmatmul.mubr.f32.gmra.mrb[0].mxu0 %v3719
      %v3921 = vpop.f32.mrb[0].mxu0
      %v3922 = vadd.f32 0.0, %v3921
      %v3923 = vpop.f32.mrb[0].mxu0
      %3924 = vmatprep.mubr.f32.mxu0 0.0
      %3925 = vmatmul.mubr.f32.gmra.mrb[0].mxu0 %v3722
      %v3926 = vpop.f32.mrb[0].mxu0
      %v3927 = vadd.f32 0.0, %v3926
      %v3928 = vpop.f32.mrb[0].mxu0
      %3929 = vmatprep.mubr.f32.mxu0 0.0
      %3930 = vmatmul.mubr.f32.gmra.mrb[0].mxu0 %v3725
      %v3931 = vpop.f32.mrb[0].mxu0
      %v3932 = vadd.f32 0.0, %v3931
      %v3933 = vpop.f32.mrb[0].mxu0
      %3934 = vmatprep.mubr.f32.mxu0 0.0
      %3935 = vmatmul.mubr.f32.gmra.mrb[0].mxu0 %v3728
      %v3936 = vpop.f32.mrb[0].mxu0
      %v3937 = vadd.f32 0.0, %v3936
      %v3938 = vpop.f32.mrb[0].mxu0
      %3939 = vmatprep.mubr.f32.mxu0 0.0
      %3940 = vmatmul.mubr.f32.gmra.mrb[0].mxu0 %v3731
      %v3941 = vpop.f32.mrb[0].mxu0
      %v3942 = vadd.f32 0.0, %v3941
      %v3943 = vpop.f32.mrb[0].mxu0
      %3944 = vmatprep.mubr.f32.mxu0 0.0
      %3945 = vmatmul.mubr.f32.gmra.mrb[0].mxu0 %v3734
      %v3946 = vpop.f32.mrb[0].mxu0
      %v3947 = vadd.f32 0.0, %v3946
      %v3948 = vpop.f32.mrb[0].mxu0
      %3949 = vmatprep.mubr.f32.mxu0 0.0
      %3950 = vmatmul.mubr.f32.gmra.mrb[0].mxu0 %v3737
      %v3951 = vpop.f32.mrb[0].mxu0
      %v3952 = vadd.f32 0.0, %v3951
      %v3953 = vpop.f32.mrb[0].mxu0
      %3954 = vmatprep.mubr.f32.mxu0 0.0
      %3955 = vmatmul.mubr.f32.gmra.mrb[0].mxu0 %v3740
      %v3956 = vpop.f32.mrb[0].mxu0
      %v3957 = vadd.f32 0.0, %v3956
      %v3958 = vpop.f32.mrb[0].mxu0
      %3959 = vmatprep.mubr.f32.mxu0 0.0
      %3960 = vmatmul.mubr.f32.gmra.mrb[0].mxu0 %v3743
      %v3961 = vpop.f32.mrb[0].mxu0
      %v3962 = vadd.f32 0.0, %v3961
      %v3963 = vpop.f32.mrb[0].mxu0
      %3964 = vmatprep.mubr.f32.mxu0 0.0
      %3965 = vmatmul.mubr.f32.gmra.mrb[0].mxu0 %v3746
      %v3966 = vpop.f32.mrb[0].mxu0
      %v3967 = vadd.f32 0.0, %v3966
      %v3968 = vpop.f32.mrb[0].mxu0
      %3969 = vmatprep.mubr.f32.mxu0 0.0
      %3970 = vmatmul.mubr.f32.gmra.mrb[0].mxu0 %v3749
      %v3971 = vpop.f32.mrb[0].mxu0
      %v3972 = vadd.f32 0.0, %v3971
      %v3973 = vpop.f32.mrb[0].mxu0
      %3974 = vmatprep.mubr.f32.mxu0 0.0
      %3975 = vmatmul.mubr.f32.gmra.mrb[0].mxu0 %v3752
      %v3976 = vpop.f32.mrb[0].mxu0
      %v3977 = vadd.f32 0.0, %v3976
      %v3978 = vpop.f32.mrb[0].mxu0
      %3979 = vmatprep.mubr.f32.mxu0 0.0
      %3980 = vmatmul.mubr.f32.gmra.mrb[0].mxu0 %v3755
      %v3981 = vpop.f32.mrb[0].mxu0
      %v3982 = vadd.f32 0.0, %v3981
      %v3983 = vpop.f32.mrb[0].mxu0
      %3984 = vdwg.mxu0
      %v3985 = vadd.f32 %v3627, %v3827
      %v3986 = vadd.f32 %v3628, %v3832
      %v3987 = vadd.f32 %v3629, %v3837
      %v3988 = vadd.f32 %v3630, %v3842
      %v3989 = vadd.f32 %v3631, %v3847
      %v3990 = vadd.f32 %v3632, %v3852
      %v3991 = vadd.f32 %v3633, %v3857
      %v3992 = vadd.f32 %v3634, %v3862
      %v3993 = vadd.f32 %v3635, %v3867
      %v3994 = vadd.f32 %v3636, %v3872
      %v3995 = vadd.f32 %v3637, %v3877
      %v3996 = vadd.f32 %v3638, %v3882
      %v3997 = vadd.f32 %v3639, %v3887
      %v3998 = vadd.f32 %v3640, %v3892
      %v3999 = vadd.f32 %v3641, %v3897
      %v4000 = vadd.f32 %v3642, %v3902
      %v4001 = vadd.f32 %v3643, %v3907
      %v4002 = vadd.f32 %v3644, %v3912
      %v4003 = vadd.f32 %v3645, %v3917
      %v4004 = vadd.f32 %v3646, %v3922
      %v4005 = vadd.f32 %v3647, %v3927
      %v4006 = vadd.f32 %v3648, %v3932
      %v4007 = vadd.f32 %v3649, %v3937
      %v4008 = vadd.f32 %v3650, %v3942
      %v4009 = vadd.f32 %v3651, %v3947
      %v4010 = vadd.f32 %v3652, %v3952
      %v4011 = vadd.f32 %v3653, %v3957
      %v4012 = vadd.f32 %v3654, %v3962
      %v4013 = vadd.f32 %v3655, %v3967
      %v4014 = vadd.f32 %v3656, %v3972
      %v4015 = vadd.f32 %v3657, %v3977
      %v4016 = vadd.f32 %v3658, %v3982
      %4017 = vst.msk [vmem:[#allocation4] sm:$0xff] %vm269, %v3985
      %4018 = vst.msk [vmem:[#allocation4 + $0x8] sm:$0xff] %vm269, %v3986
      %4019 = vst.msk [vmem:[#allocation4 + $0x10] sm:$0xff] %vm269, %v3987
      %4020 = vst.msk [vmem:[#allocation4 + $0x18] sm:$0xff] %vm269, %v3988
      %4021 = vst.msk [vmem:[#allocation4 + $0x20] sm:$0xff] %vm269, %v3989
      %4022 = vst.msk [vmem:[#allocation4 + $0x28] sm:$0xff] %vm269, %v3990
      %4023 = vst.msk [vmem:[#allocation4 + $0x30] sm:$0xff] %vm269, %v3991
      %4024 = vst.msk [vmem:[#allocation4 + $0x38] sm:$0xff] %vm269, %v3992
      %4025 = vst.msk [vmem:[#allocation4 + $0x40] sm:$0xff] %vm269, %v3993
      %4026 = vst.msk [vmem:[#allocation4 + $0x48] sm:$0xff] %vm269, %v3994
      %4027 = vst.msk [vmem:[#allocation4 + $0x50] sm:$0xff] %vm269, %v3995
      %4028 = vst.msk [vmem:[#allocation4 + $0x58] sm:$0xff] %vm269, %v3996
      %4029 = vst.msk [vmem:[#allocation4 + $0x60] sm:$0xff] %vm269, %v3997
      %4030 = vst.msk [vmem:[#allocation4 + $0x68] sm:$0xff] %vm269, %v3998
      %4031 = vst.msk [vmem:[#allocation4 + $0x70] sm:$0xff] %vm269, %v3999
      %4032 = vst.msk [vmem:[#allocation4 + $0x78] sm:$0xff] %vm269, %v4000
      %4033 = vst.msk [vmem:[#allocation4 + $0x80] sm:$0xff] %vm269, %v4001
      %4034 = vst.msk [vmem:[#allocation4 + $0x88] sm:$0xff] %vm269, %v4002
      %4035 = vst.msk [vmem:[#allocation4 + $0x90] sm:$0xff] %vm269, %v4003
      %4036 = vst.msk [vmem:[#allocation4 + $0x98] sm:$0xff] %vm269, %v4004
      %4037 = vst.msk [vmem:[#allocation4 + $0xa0] sm:$0xff] %vm269, %v4005
      %4038 = vst.msk [vmem:[#allocation4 + $0xa8] sm:$0xff] %vm269, %v4006
      %4039 = vst.msk [vmem:[#allocation4 + $0xb0] sm:$0xff] %vm269, %v4007
      %4040 = vst.msk [vmem:[#allocation4 + $0xb8] sm:$0xff] %vm269, %v4008
      %4041 = vst.msk [vmem:[#allocation4 + $0xc0] sm:$0xff] %vm269, %v4009
      %4042 = vst.msk [vmem:[#allocation4 + $0xc8] sm:$0xff] %vm269, %v4010
      %4043 = vst.msk [vmem:[#allocation4 + $0xd0] sm:$0xff] %vm269, %v4011
      %4044 = vst.msk [vmem:[#allocation4 + $0xd8] sm:$0xff] %vm269, %v4012
      %4045 = vst.msk [vmem:[#allocation4 + $0xe0] sm:$0xff] %vm269, %v4013
      %4046 = vst.msk [vmem:[#allocation4 + $0xe8] sm:$0xff] %vm269, %v4014
      %4047 = vst.msk [vmem:[#allocation4 + $0xf0] sm:$0xff] %vm269, %v4015
      %4048 = vst.msk [vmem:[#allocation4 + $0xf8] sm:$0xff] %vm269, %v4016
      %v4049 = vld [vmem:[%s3140 + $0x9] sm:$0xff]
      %v4050 = vld [vmem:[%s3140 + $0x11] sm:$0xff]
      %v4051 = vld [vmem:[%s3140 + $0x29] sm:$0xff]
      %v4052 = vld [vmem:[%s3140 + $0x31] sm:$0xff]
      %v4053 = vld [vmem:[%s3140 + $0x49] sm:$0xff]
      %v4054 = vld [vmem:[%s3140 + $0x51] sm:$0xff]
      %v4055 = vld [vmem:[%s3140 + $0x69] sm:$0xff]
      %v4056 = vld [vmem:[%s3140 + $0x71] sm:$0xff]
      %v4057 = vld [vmem:[%s3140 + $0x89] sm:$0xff]
      %v4058 = vld [vmem:[%s3140 + $0x91] sm:$0xff]
      %v4059 = vld [vmem:[%s3140 + $0xa9] sm:$0xff]
      %v4060 = vld [vmem:[%s3140 + $0xb1] sm:$0xff]
      %v4061 = vld [vmem:[%s3140 + $0xc9] sm:$0xff]
      %v4062 = vld [vmem:[%s3140 + $0xd1] sm:$0xff]
      %v4063 = vld [vmem:[%s3140 + $0xe9] sm:$0xff]
      %v4064 = vld [vmem:[%s3140 + $0xf1] sm:$0xff]
      %v4065 = vld [vmem:[%s3140 + $0x109] sm:$0xff]
      %v4066 = vld [vmem:[%s3140 + $0x111] sm:$0xff]
      %v4067 = vld [vmem:[%s3140 + $0x129] sm:$0xff]
      %v4068 = vld [vmem:[%s3140 + $0x131] sm:$0xff]
      %v4069 = vld [vmem:[%s3140 + $0x149] sm:$0xff]
      %v4070 = vld [vmem:[%s3140 + $0x151] sm:$0xff]
      %v4071 = vld [vmem:[%s3140 + $0x169] sm:$0xff]
      %v4072 = vld [vmem:[%s3140 + $0x171] sm:$0xff]
      %v4073 = vld [vmem:[%s3140 + $0x189] sm:$0xff]
      %v4074 = vld [vmem:[%s3140 + $0x191] sm:$0xff]
      %v4075 = vld [vmem:[%s3140 + $0x1a9] sm:$0xff]
      %v4076 = vld [vmem:[%s3140 + $0x1b1] sm:$0xff]
      %v4077 = vld [vmem:[%s3140 + $0x1c9] sm:$0xff]
      %v4078 = vld [vmem:[%s3140 + $0x1d1] sm:$0xff]
      %v4079 = vld [vmem:[%s3140 + $0x1e9] sm:$0xff]
      %v4080 = vld [vmem:[%s3140 + $0x1f1] sm:$0xff]
      %v4081 = vld [vmem:[#allocation4] sm:$0xff]
      %v4082 = vld [vmem:[#allocation4 + $0x8] sm:$0xff]
      %v4083 = vld [vmem:[#allocation4 + $0x10] sm:$0xff]
      %v4084 = vld [vmem:[#allocation4 + $0x18] sm:$0xff]
      %v4085 = vld [vmem:[#allocation4 + $0x20] sm:$0xff]
      %v4086 = vld [vmem:[#allocation4 + $0x28] sm:$0xff]
      %v4087 = vld [vmem:[#allocation4 + $0x30] sm:$0xff]
      %v4088 = vld [vmem:[#allocation4 + $0x38] sm:$0xff]
      %v4089 = vld [vmem:[#allocation4 + $0x40] sm:$0xff]
      %v4090 = vld [vmem:[#allocation4 + $0x48] sm:$0xff]
      %v4091 = vld [vmem:[#allocation4 + $0x50] sm:$0xff]
      %v4092 = vld [vmem:[#allocation4 + $0x58] sm:$0xff]
      %v4093 = vld [vmem:[#allocation4 + $0x60] sm:$0xff]
      %v4094 = vld [vmem:[#allocation4 + $0x68] sm:$0xff]
      %v4095 = vld [vmem:[#allocation4 + $0x70] sm:$0xff]
      %v4096 = vld [vmem:[#allocation4 + $0x78] sm:$0xff]
      %v4097 = vld [vmem:[#allocation4 + $0x80] sm:$0xff]
      %v4098 = vld [vmem:[#allocation4 + $0x88] sm:$0xff]
      %v4099 = vld [vmem:[#allocation4 + $0x90] sm:$0xff]
      %v4100 = vld [vmem:[#allocation4 + $0x98] sm:$0xff]
      %v4101 = vld [vmem:[#allocation4 + $0xa0] sm:$0xff]
      %v4102 = vld [vmem:[#allocation4 + $0xa8] sm:$0xff]
      %v4103 = vld [vmem:[#allocation4 + $0xb0] sm:$0xff]
      %v4104 = vld [vmem:[#allocation4 + $0xb8] sm:$0xff]
      %v4105 = vld [vmem:[#allocation4 + $0xc0] sm:$0xff]
      %v4106 = vld [vmem:[#allocation4 + $0xc8] sm:$0xff]
      %v4107 = vld [vmem:[#allocation4 + $0xd0] sm:$0xff]
      %v4108 = vld [vmem:[#allocation4 + $0xd8] sm:$0xff]
      %v4109 = vld [vmem:[#allocation4 + $0xe0] sm:$0xff]
      %v4110 = vld [vmem:[#allocation4 + $0xe8] sm:$0xff]
      %v4111 = vld [vmem:[#allocation4 + $0xf0] sm:$0xff]
      %v4112 = vld [vmem:[#allocation4 + $0xf8] sm:$0xff]
      %s4113 = scalar_lea.vmem %s1, 32
      %v4114 = vld [vmem:[%s4113] sm:$0xf]
      %v4116 = vsel %vm225, %v4049, 0
      %v4119 = vsel %vm225, %v4050, 0
      %v4122 = vsel %vm225, %v4051, 0
      %v4125 = vsel %vm225, %v4052, 0
      %v4128 = vsel %vm225, %v4053, 0
      %v4131 = vsel %vm225, %v4054, 0
      %v4134 = vsel %vm225, %v4055, 0
      %v4137 = vsel %vm225, %v4056, 0
      %v4140 = vsel %vm225, %v4057, 0
      %v4143 = vsel %vm225, %v4058, 0
      %v4146 = vsel %vm225, %v4059, 0
      %v4149 = vsel %vm225, %v4060, 0
      %v4152 = vsel %vm225, %v4061, 0
      %v4155 = vsel %vm225, %v4062, 0
      %v4158 = vsel %vm225, %v4063, 0
      %v4161 = vsel %vm225, %v4064, 0
      %v4164 = vsel %vm225, %v4065, 0
      %v4167 = vsel %vm225, %v4066, 0
      %v4170 = vsel %vm225, %v4067, 0
      %v4173 = vsel %vm225, %v4068, 0
      %v4176 = vsel %vm225, %v4069, 0
      %v4179 = vsel %vm225, %v4070, 0
      %v4182 = vsel %vm225, %v4071, 0
      %v4185 = vsel %vm225, %v4072, 0
      %v4188 = vsel %vm225, %v4073, 0
      %v4191 = vsel %vm225, %v4074, 0
      %v4194 = vsel %vm225, %v4075, 0
      %v4197 = vsel %vm225, %v4076, 0
      %v4200 = vsel %vm225, %v4077, 0
      %v4203 = vsel %vm225, %v4078, 0
      %v4206 = vsel %vm225, %v4079, 0
      %v4209 = vsel %vm225, %v4080, 0
      %v4212 = vsel %vm577, %v4114, 0
      %4214 = vmatprep.subr.mxu0 0.0
      %4215 = vmatpush1.msra.mxu0 %v4212
      %4216 = vmatprep.subr.mxu0 0.0
      %4217 = vmatpush1.msra.mxu0 0.0
      %4218 = vmatprep.subr.mxu0 0.0
      %4219 = vmatpush1.msra.mxu0 0.0
      %4220 = vmatprep.subr.mxu0 0.0
      %4221 = vmatpush1.msra.mxu0 0.0
      %4222 = vmatprep.subr.mxu0 0.0
      %4223 = vmatpush1.msra.mxu0 0.0
      %4224 = vmatprep.subr.mxu0 0.0
      %4225 = vmatpush1.msra.mxu0 0.0
      %4226 = vmatprep.subr.mxu0 0.0
      %4227 = vmatpush1.msra.mxu0 0.0
      %4228 = vmatprep.subr.mxu0 0.0
      %4229 = vmatpush1.msra.mxu0 0.0
      %4230 = vmatprep.subr.mxu0 0.0
      %4231 = vmatpush1.msra.mxu0 0.0
      %4232 = vmatprep.subr.mxu0 0.0
      %4233 = vmatpush1.msra.mxu0 0.0
      %4234 = vmatprep.subr.mxu0 0.0
      %4235 = vmatpush1.msra.mxu0 0.0
      %4236 = vmatprep.subr.mxu0 0.0
      %4237 = vmatpush1.msra.mxu0 0.0
      %4238 = vmatprep.subr.mxu0 0.0
      %4239 = vmatpush1.msra.mxu0 0.0
      %4240 = vmatprep.subr.mxu0 0.0
      %4241 = vmatpush1.msra.mxu0 0.0
      %4242 = vmatprep.subr.mxu0 0.0
      %4243 = vmatpush1.msra.mxu0 0.0
      %4244 = vmatprep.subr.mxu0 0.0
      %4245 = vmatpush1.msra.mxu0 0.0
      %4246 = vmatprep.subr.mxu0 0.0
      %4247 = vmatpush1.msra.mxu0 0.0
      %4248 = vmatprep.subr.mxu0 0.0
      %4249 = vmatpush1.msra.mxu0 0.0
      %4250 = vmatprep.subr.mxu0 0.0
      %4251 = vmatpush1.msra.mxu0 0.0
      %4252 = vmatprep.subr.mxu0 0.0
      %4253 = vmatpush1.msra.mxu0 0.0
      %4254 = vmatprep.subr.mxu0 0.0
      %4255 = vmatpush1.msra.mxu0 0.0
      %4256 = vmatprep.subr.mxu0 0.0
      %4257 = vmatpush1.msra.mxu0 0.0
      %4258 = vmatprep.subr.mxu0 0.0
      %4259 = vmatpush1.msra.mxu0 0.0
      %4260 = vmatprep.subr.mxu0 0.0
      %4261 = vmatpush1.msra.mxu0 0.0
      %4262 = vmatprep.subr.mxu0 0.0
      %4263 = vmatpush1.msra.mxu0 0.0
      %4264 = vmatprep.subr.mxu0 0.0
      %4265 = vmatpush1.msra.mxu0 0.0
      %4266 = vmatprep.subr.mxu0 0.0
      %4267 = vmatpush1.msra.mxu0 0.0
      %4268 = vmatprep.subr.mxu0 0.0
      %4269 = vmatpush1.msra.mxu0 0.0
      %4270 = vmatprep.subr.mxu0 0.0
      %4271 = vmatpush1.msra.mxu0 0.0
      %4272 = vmatprep.subr.mxu0 0.0
      %4273 = vmatpush1.msra.mxu0 0.0
      %4274 = vmatprep.subr.mxu0 0.0
      %4275 = vmatpush1.msra.mxu0 0.0
      %4276 = vmatprep.subr.mxu0 0.0
      %4277 = vmatpush1.msra.mxu0 0.0
      %4278 = vmatprep.mubr.f32.mxu0 0.0
      %4279 = vmatmul.mubr.f32.gmra.mrb[0].mxu0 %v4116
      %v4280 = vpop.f32.mrb[0].mxu0
      %v4281 = vadd.f32 0.0, %v4280
      %v4282 = vpop.f32.mrb[0].mxu0
      %4283 = vmatprep.mubr.f32.mxu0 0.0
      %4284 = vmatmul.mubr.f32.gmra.mrb[0].mxu0 %v4119
      %v4285 = vpop.f32.mrb[0].mxu0
      %v4286 = vadd.f32 0.0, %v4285
      %v4287 = vpop.f32.mrb[0].mxu0
      %4288 = vmatprep.mubr.f32.mxu0 0.0
      %4289 = vmatmul.mubr.f32.gmra.mrb[0].mxu0 %v4122
      %v4290 = vpop.f32.mrb[0].mxu0
      %v4291 = vadd.f32 0.0, %v4290
      %v4292 = vpop.f32.mrb[0].mxu0
      %4293 = vmatprep.mubr.f32.mxu0 0.0
      %4294 = vmatmul.mubr.f32.gmra.mrb[0].mxu0 %v4125
      %v4295 = vpop.f32.mrb[0].mxu0
      %v4296 = vadd.f32 0.0, %v4295
      %v4297 = vpop.f32.mrb[0].mxu0
      %4298 = vmatprep.mubr.f32.mxu0 0.0
      %4299 = vmatmul.mubr.f32.gmra.mrb[0].mxu0 %v4128
      %v4300 = vpop.f32.mrb[0].mxu0
      %v4301 = vadd.f32 0.0, %v4300
      %v4302 = vpop.f32.mrb[0].mxu0
      %4303 = vmatprep.mubr.f32.mxu0 0.0
      %4304 = vmatmul.mubr.f32.gmra.mrb[0].mxu0 %v4131
      %v4305 = vpop.f32.mrb[0].mxu0
      %v4306 = vadd.f32 0.0, %v4305
      %v4307 = vpop.f32.mrb[0].mxu0
      %4308 = vmatprep.mubr.f32.mxu0 0.0
      %4309 = vmatmul.mubr.f32.gmra.mrb[0].mxu0 %v4134
      %v4310 = vpop.f32.mrb[0].mxu0
      %v4311 = vadd.f32 0.0, %v4310
      %v4312 = vpop.f32.mrb[0].mxu0
      %4313 = vmatprep.mubr.f32.mxu0 0.0
      %4314 = vmatmul.mubr.f32.gmra.mrb[0].mxu0 %v4137
      %v4315 = vpop.f32.mrb[0].mxu0
      %v4316 = vadd.f32 0.0, %v4315
      %v4317 = vpop.f32.mrb[0].mxu0
      %4318 = vmatprep.mubr.f32.mxu0 0.0
      %4319 = vmatmul.mubr.f32.gmra.mrb[0].mxu0 %v4140
      %v4320 = vpop.f32.mrb[0].mxu0
      %v4321 = vadd.f32 0.0, %v4320
      %v4322 = vpop.f32.mrb[0].mxu0
      %4323 = vmatprep.mubr.f32.mxu0 0.0
      %4324 = vmatmul.mubr.f32.gmra.mrb[0].mxu0 %v4143
      %v4325 = vpop.f32.mrb[0].mxu0
      %v4326 = vadd.f32 0.0, %v4325
      %v4327 = vpop.f32.mrb[0].mxu0
      %4328 = vmatprep.mubr.f32.mxu0 0.0
      %4329 = vmatmul.mubr.f32.gmra.mrb[0].mxu0 %v4146
      %v4330 = vpop.f32.mrb[0].mxu0
      %v4331 = vadd.f32 0.0, %v4330
      %v4332 = vpop.f32.mrb[0].mxu0
      %4333 = vmatprep.mubr.f32.mxu0 0.0
      %4334 = vmatmul.mubr.f32.gmra.mrb[0].mxu0 %v4149
      %v4335 = vpop.f32.mrb[0].mxu0
      %v4336 = vadd.f32 0.0, %v4335
      %v4337 = vpop.f32.mrb[0].mxu0
      %4338 = vmatprep.mubr.f32.mxu0 0.0
      %4339 = vmatmul.mubr.f32.gmra.mrb[0].mxu0 %v4152
      %v4340 = vpop.f32.mrb[0].mxu0
      %v4341 = vadd.f32 0.0, %v4340
      %v4342 = vpop.f32.mrb[0].mxu0
      %4343 = vmatprep.mubr.f32.mxu0 0.0
      %4344 = vmatmul.mubr.f32.gmra.mrb[0].mxu0 %v4155
      %v4345 = vpop.f32.mrb[0].mxu0
      %v4346 = vadd.f32 0.0, %v4345
      %v4347 = vpop.f32.mrb[0].mxu0
      %4348 = vmatprep.mubr.f32.mxu0 0.0
      %4349 = vmatmul.mubr.f32.gmra.mrb[0].mxu0 %v4158
      %v4350 = vpop.f32.mrb[0].mxu0
      %v4351 = vadd.f32 0.0, %v4350
      %v4352 = vpop.f32.mrb[0].mxu0
      %4353 = vmatprep.mubr.f32.mxu0 0.0
      %4354 = vmatmul.mubr.f32.gmra.mrb[0].mxu0 %v4161
      %v4355 = vpop.f32.mrb[0].mxu0
      %v4356 = vadd.f32 0.0, %v4355
      %v4357 = vpop.f32.mrb[0].mxu0
      %4358 = vmatprep.mubr.f32.mxu0 0.0
      %4359 = vmatmul.mubr.f32.gmra.mrb[0].mxu0 %v4164
      %v4360 = vpop.f32.mrb[0].mxu0
      %v4361 = vadd.f32 0.0, %v4360
      %v4362 = vpop.f32.mrb[0].mxu0
      %4363 = vmatprep.mubr.f32.mxu0 0.0
      %4364 = vmatmul.mubr.f32.gmra.mrb[0].mxu0 %v4167
      %v4365 = vpop.f32.mrb[0].mxu0
      %v4366 = vadd.f32 0.0, %v4365
      %v4367 = vpop.f32.mrb[0].mxu0
      %4368 = vmatprep.mubr.f32.mxu0 0.0
      %4369 = vmatmul.mubr.f32.gmra.mrb[0].mxu0 %v4170
      %v4370 = vpop.f32.mrb[0].mxu0
      %v4371 = vadd.f32 0.0, %v4370
      %v4372 = vpop.f32.mrb[0].mxu0
      %4373 = vmatprep.mubr.f32.mxu0 0.0
      %4374 = vmatmul.mubr.f32.gmra.mrb[0].mxu0 %v4173
      %v4375 = vpop.f32.mrb[0].mxu0
      %v4376 = vadd.f32 0.0, %v4375
      %v4377 = vpop.f32.mrb[0].mxu0
      %4378 = vmatprep.mubr.f32.mxu0 0.0
      %4379 = vmatmul.mubr.f32.gmra.mrb[0].mxu0 %v4176
      %v4380 = vpop.f32.mrb[0].mxu0
      %v4381 = vadd.f32 0.0, %v4380
      %v4382 = vpop.f32.mrb[0].mxu0
      %4383 = vmatprep.mubr.f32.mxu0 0.0
      %4384 = vmatmul.mubr.f32.gmra.mrb[0].mxu0 %v4179
      %v4385 = vpop.f32.mrb[0].mxu0
      %v4386 = vadd.f32 0.0, %v4385
      %v4387 = vpop.f32.mrb[0].mxu0
      %4388 = vmatprep.mubr.f32.mxu0 0.0
      %4389 = vmatmul.mubr.f32.gmra.mrb[0].mxu0 %v4182
      %v4390 = vpop.f32.mrb[0].mxu0
      %v4391 = vadd.f32 0.0, %v4390
      %v4392 = vpop.f32.mrb[0].mxu0
      %4393 = vmatprep.mubr.f32.mxu0 0.0
      %4394 = vmatmul.mubr.f32.gmra.mrb[0].mxu0 %v4185
      %v4395 = vpop.f32.mrb[0].mxu0
      %v4396 = vadd.f32 0.0, %v4395
      %v4397 = vpop.f32.mrb[0].mxu0
      %4398 = vmatprep.mubr.f32.mxu0 0.0
      %4399 = vmatmul.mubr.f32.gmra.mrb[0].mxu0 %v4188
      %v4400 = vpop.f32.mrb[0].mxu0
      %v4401 = vadd.f32 0.0, %v4400
      %v4402 = vpop.f32.mrb[0].mxu0
      %4403 = vmatprep.mubr.f32.mxu0 0.0
      %4404 = vmatmul.mubr.f32.gmra.mrb[0].mxu0 %v4191
      %v4405 = vpop.f32.mrb[0].mxu0
      %v4406 = vadd.f32 0.0, %v4405
      %v4407 = vpop.f32.mrb[0].mxu0
      %4408 = vmatprep.mubr.f32.mxu0 0.0
      %4409 = vmatmul.mubr.f32.gmra.mrb[0].mxu0 %v4194
      %v4410 = vpop.f32.mrb[0].mxu0
      %v4411 = vadd.f32 0.0, %v4410
      %v4412 = vpop.f32.mrb[0].mxu0
      %4413 = vmatprep.mubr.f32.mxu0 0.0
      %4414 = vmatmul.mubr.f32.gmra.mrb[0].mxu0 %v4197
      %v4415 = vpop.f32.mrb[0].mxu0
      %v4416 = vadd.f32 0.0, %v4415
      %v4417 = vpop.f32.mrb[0].mxu0
      %4418 = vmatprep.mubr.f32.mxu0 0.0
      %4419 = vmatmul.mubr.f32.gmra.mrb[0].mxu0 %v4200
      %v4420 = vpop.f32.mrb[0].mxu0
      %v4421 = vadd.f32 0.0, %v4420
      %v4422 = vpop.f32.mrb[0].mxu0
      %4423 = vmatprep.mubr.f32.mxu0 0.0
      %4424 = vmatmul.mubr.f32.gmra.mrb[0].mxu0 %v4203
      %v4425 = vpop.f32.mrb[0].mxu0
      %v4426 = vadd.f32 0.0, %v4425
      %v4427 = vpop.f32.mrb[0].mxu0
      %4428 = vmatprep.mubr.f32.mxu0 0.0
      %4429 = vmatmul.mubr.f32.gmra.mrb[0].mxu0 %v4206
      %v4430 = vpop.f32.mrb[0].mxu0
      %v4431 = vadd.f32 0.0, %v4430
      %v4432 = vpop.f32.mrb[0].mxu0
      %4433 = vmatprep.mubr.f32.mxu0 0.0
      %4434 = vmatmul.mubr.f32.gmra.mrb[0].mxu0 %v4209
      %v4435 = vpop.f32.mrb[0].mxu0
      %v4436 = vadd.f32 0.0, %v4435
      %v4437 = vpop.f32.mrb[0].mxu0
      %4438 = vdwg.mxu0
      %v4439 = vadd.f32 %v4081, %v4281
      %v4440 = vadd.f32 %v4082, %v4286
      %v4441 = vadd.f32 %v4083, %v4291
      %v4442 = vadd.f32 %v4084, %v4296
      %v4443 = vadd.f32 %v4085, %v4301
      %v4444 = vadd.f32 %v4086, %v4306
      %v4445 = vadd.f32 %v4087, %v4311
      %v4446 = vadd.f32 %v4088, %v4316
      %v4447 = vadd.f32 %v4089, %v4321
      %v4448 = vadd.f32 %v4090, %v4326
      %v4449 = vadd.f32 %v4091, %v4331
      %v4450 = vadd.f32 %v4092, %v4336
      %v4451 = vadd.f32 %v4093, %v4341
      %v4452 = vadd.f32 %v4094, %v4346
      %v4453 = vadd.f32 %v4095, %v4351
      %v4454 = vadd.f32 %v4096, %v4356
      %v4455 = vadd.f32 %v4097, %v4361
      %v4456 = vadd.f32 %v4098, %v4366
      %v4457 = vadd.f32 %v4099, %v4371
      %v4458 = vadd.f32 %v4100, %v4376
      %v4459 = vadd.f32 %v4101, %v4381
      %v4460 = vadd.f32 %v4102, %v4386
      %v4461 = vadd.f32 %v4103, %v4391
      %v4462 = vadd.f32 %v4104, %v4396
      %v4463 = vadd.f32 %v4105, %v4401
      %v4464 = vadd.f32 %v4106, %v4406
      %v4465 = vadd.f32 %v4107, %v4411
      %v4466 = vadd.f32 %v4108, %v4416
      %v4467 = vadd.f32 %v4109, %v4421
      %v4468 = vadd.f32 %v4110, %v4426
      %v4469 = vadd.f32 %v4111, %v4431
      %v4470 = vadd.f32 %v4112, %v4436
      %4471 = vst.msk [vmem:[#allocation4] sm:$0xff] %vm269, %v4439
      %4472 = vst.msk [vmem:[#allocation4 + $0x8] sm:$0xff] %vm269, %v4440
      %4473 = vst.msk [vmem:[#allocation4 + $0x10] sm:$0xff] %vm269, %v4441
      %4474 = vst.msk [vmem:[#allocation4 + $0x18] sm:$0xff] %vm269, %v4442
      %4475 = vst.msk [vmem:[#allocation4 + $0x20] sm:$0xff] %vm269, %v4443
      %4476 = vst.msk [vmem:[#allocation4 + $0x28] sm:$0xff] %vm269, %v4444
      %4477 = vst.msk [vmem:[#allocation4 + $0x30] sm:$0xff] %vm269, %v4445
      %4478 = vst.msk [vmem:[#allocation4 + $0x38] sm:$0xff] %vm269, %v4446
      %4479 = vst.msk [vmem:[#allocation4 + $0x40] sm:$0xff] %vm269, %v4447
      %4480 = vst.msk [vmem:[#allocation4 + $0x48] sm:$0xff] %vm269, %v4448
      %4481 = vst.msk [vmem:[#allocation4 + $0x50] sm:$0xff] %vm269, %v4449
      %4482 = vst.msk [vmem:[#allocation4 + $0x58] sm:$0xff] %vm269, %v4450
      %4483 = vst.msk [vmem:[#allocation4 + $0x60] sm:$0xff] %vm269, %v4451
      %4484 = vst.msk [vmem:[#allocation4 + $0x68] sm:$0xff] %vm269, %v4452
      %4485 = vst.msk [vmem:[#allocation4 + $0x70] sm:$0xff] %vm269, %v4453
      %4486 = vst.msk [vmem:[#allocation4 + $0x78] sm:$0xff] %vm269, %v4454
      %4487 = vst.msk [vmem:[#allocation4 + $0x80] sm:$0xff] %vm269, %v4455
      %4488 = vst.msk [vmem:[#allocation4 + $0x88] sm:$0xff] %vm269, %v4456
      %4489 = vst.msk [vmem:[#allocation4 + $0x90] sm:$0xff] %vm269, %v4457
      %4490 = vst.msk [vmem:[#allocation4 + $0x98] sm:$0xff] %vm269, %v4458
      %4491 = vst.msk [vmem:[#allocation4 + $0xa0] sm:$0xff] %vm269, %v4459
      %4492 = vst.msk [vmem:[#allocation4 + $0xa8] sm:$0xff] %vm269, %v4460
      %4493 = vst.msk [vmem:[#allocation4 + $0xb0] sm:$0xff] %vm269, %v4461
      %4494 = vst.msk [vmem:[#allocation4 + $0xb8] sm:$0xff] %vm269, %v4462
      %4495 = vst.msk [vmem:[#allocation4 + $0xc0] sm:$0xff] %vm269, %v4463
      %4496 = vst.msk [vmem:[#allocation4 + $0xc8] sm:$0xff] %vm269, %v4464
      %4497 = vst.msk [vmem:[#allocation4 + $0xd0] sm:$0xff] %vm269, %v4465
      %4498 = vst.msk [vmem:[#allocation4 + $0xd8] sm:$0xff] %vm269, %v4466
      %4499 = vst.msk [vmem:[#allocation4 + $0xe0] sm:$0xff] %vm269, %v4467
      %4500 = vst.msk [vmem:[#allocation4 + $0xe8] sm:$0xff] %vm269, %v4468
      %4501 = vst.msk [vmem:[#allocation4 + $0xf0] sm:$0xff] %vm269, %v4469
      %4502 = vst.msk [vmem:[#allocation4 + $0xf8] sm:$0xff] %vm269, %v4470
      %v4503 = vld [vmem:[#allocation4] sm:$0xff]
      %v4504 = vld [vmem:[#allocation4 + $0x8] sm:$0xff]
      %v4505 = vld [vmem:[#allocation4 + $0x10] sm:$0xff]
      %v4506 = vld [vmem:[#allocation4 + $0x18] sm:$0xff]
      %v4507 = vld [vmem:[#allocation4 + $0x20] sm:$0xff]
      %v4508 = vld [vmem:[#allocation4 + $0x28] sm:$0xff]
      %v4509 = vld [vmem:[#allocation4 + $0x30] sm:$0xff]
      %v4510 = vld [vmem:[#allocation4 + $0x38] sm:$0xff]
      %v4511 = vld [vmem:[#allocation4 + $0x40] sm:$0xff]
      %v4512 = vld [vmem:[#allocation4 + $0x48] sm:$0xff]
      %v4513 = vld [vmem:[#allocation4 + $0x50] sm:$0xff]
      %v4514 = vld [vmem:[#allocation4 + $0x58] sm:$0xff]
      %v4515 = vld [vmem:[#allocation4 + $0x60] sm:$0xff]
      %v4516 = vld [vmem:[#allocation4 + $0x68] sm:$0xff]
      %v4517 = vld [vmem:[#allocation4 + $0x70] sm:$0xff]
      %v4518 = vld [vmem:[#allocation4 + $0x78] sm:$0xff]
      %v4519 = vld [vmem:[#allocation4 + $0x80] sm:$0xff]
      %v4520 = vld [vmem:[#allocation4 + $0x88] sm:$0xff]
      %v4521 = vld [vmem:[#allocation4 + $0x90] sm:$0xff]
      %v4522 = vld [vmem:[#allocation4 + $0x98] sm:$0xff]
      %v4523 = vld [vmem:[#allocation4 + $0xa0] sm:$0xff]
      %v4524 = vld [vmem:[#allocation4 + $0xa8] sm:$0xff]
      %v4525 = vld [vmem:[#allocation4 + $0xb0] sm:$0xff]
      %v4526 = vld [vmem:[#allocation4 + $0xb8] sm:$0xff]
      %v4527 = vld [vmem:[#allocation4 + $0xc0] sm:$0xff]
      %v4528 = vld [vmem:[#allocation4 + $0xc8] sm:$0xff]
      %v4529 = vld [vmem:[#allocation4 + $0xd0] sm:$0xff]
      %v4530 = vld [vmem:[#allocation4 + $0xd8] sm:$0xff]
      %v4531 = vld [vmem:[#allocation4 + $0xe0] sm:$0xff]
      %v4532 = vld [vmem:[#allocation4 + $0xe8] sm:$0xff]
      %v4533 = vld [vmem:[#allocation4 + $0xf0] sm:$0xff]
      %v4534 = vld [vmem:[#allocation4 + $0xf8] sm:$0xff]
      %v4535 = vmax.f32 %v4503, 0.0
      %v4536 = vmax.f32 %v4504, 0.0
      %v4537 = vmax.f32 %v4505, 0.0
      %v4538 = vmax.f32 %v4506, 0.0
      %v4539 = vmax.f32 %v4507, 0.0
      %v4540 = vmax.f32 %v4508, 0.0
      %v4541 = vmax.f32 %v4509, 0.0
      %v4542 = vmax.f32 %v4510, 0.0
      %v4543 = vmax.f32 %v4511, 0.0
      %v4544 = vmax.f32 %v4512, 0.0
      %v4545 = vmax.f32 %v4513, 0.0
      %v4546 = vmax.f32 %v4514, 0.0
      %v4547 = vmax.f32 %v4515, 0.0
      %v4548 = vmax.f32 %v4516, 0.0
      %v4549 = vmax.f32 %v4517, 0.0
      %v4550 = vmax.f32 %v4518, 0.0
      %v4551 = vmax.f32 %v4519, 0.0
      %v4552 = vmax.f32 %v4520, 0.0
      %v4553 = vmax.f32 %v4521, 0.0
      %v4554 = vmax.f32 %v4522, 0.0
      %v4555 = vmax.f32 %v4523, 0.0
      %v4556 = vmax.f32 %v4524, 0.0
      %v4557 = vmax.f32 %v4525, 0.0
      %v4558 = vmax.f32 %v4526, 0.0
      %v4559 = vmax.f32 %v4527, 0.0
      %v4560 = vmax.f32 %v4528, 0.0
      %v4561 = vmax.f32 %v4529, 0.0
      %v4562 = vmax.f32 %v4530, 0.0
      %v4563 = vmax.f32 %v4531, 0.0
      %v4564 = vmax.f32 %v4532, 0.0
      %v4565 = vmax.f32 %v4533, 0.0
      %v4566 = vmax.f32 %v4534, 0.0
      %4567 = vst.msk [vmem:[%s280 + $0x8] sm:$0xff] %vm269, %v4535
      %4568 = vst.msk [vmem:[%s280 + $0x10] sm:$0xff] %vm269, %v4536
      %4569 = vst.msk [vmem:[%s280 + $0x28] sm:$0xff] %vm269, %v4537
      %4570 = vst.msk [vmem:[%s280 + $0x30] sm:$0xff] %vm269, %v4538
      %4571 = vst.msk [vmem:[%s280 + $0x48] sm:$0xff] %vm269, %v4539
      %4572 = vst.msk [vmem:[%s280 + $0x50] sm:$0xff] %vm269, %v4540
      %4573 = vst.msk [vmem:[%s280 + $0x68] sm:$0xff] %vm269, %v4541
      %4574 = vst.msk [vmem:[%s280 + $0x70] sm:$0xff] %vm269, %v4542
      %4575 = vst.msk [vmem:[%s280 + $0x88] sm:$0xff] %vm269, %v4543
      %4576 = vst.msk [vmem:[%s280 + $0x90] sm:$0xff] %vm269, %v4544
      %4577 = vst.msk [vmem:[%s280 + $0xa8] sm:$0xff] %vm269, %v4545
      %4578 = vst.msk [vmem:[%s280 + $0xb0] sm:$0xff] %vm269, %v4546
      %4579 = vst.msk [vmem:[%s280 + $0xc8] sm:$0xff] %vm269, %v4547
      %4580 = vst.msk [vmem:[%s280 + $0xd0] sm:$0xff] %vm269, %v4548
      %4581 = vst.msk [vmem:[%s280 + $0xe8] sm:$0xff] %vm269, %v4549
      %4582 = vst.msk [vmem:[%s280 + $0xf0] sm:$0xff] %vm269, %v4550
      %4583 = vst.msk [vmem:[%s280 + $0x108] sm:$0xff] %vm269, %v4551
      %4584 = vst.msk [vmem:[%s280 + $0x110] sm:$0xff] %vm269, %v4552
      %4585 = vst.msk [vmem:[%s280 + $0x128] sm:$0xff] %vm269, %v4553
      %4586 = vst.msk [vmem:[%s280 + $0x130] sm:$0xff] %vm269, %v4554
      %4587 = vst.msk [vmem:[%s280 + $0x148] sm:$0xff] %vm269, %v4555
      %4588 = vst.msk [vmem:[%s280 + $0x150] sm:$0xff] %vm269, %v4556
      %4589 = vst.msk [vmem:[%s280 + $0x168] sm:$0xff] %vm269, %v4557
      %4590 = vst.msk [vmem:[%s280 + $0x170] sm:$0xff] %vm269, %v4558
      %4591 = vst.msk [vmem:[%s280 + $0x188] sm:$0xff] %vm269, %v4559
      %4592 = vst.msk [vmem:[%s280 + $0x190] sm:$0xff] %vm269, %v4560
      %4593 = vst.msk [vmem:[%s280 + $0x1a8] sm:$0xff] %vm269, %v4561
      %4594 = vst.msk [vmem:[%s280 + $0x1b0] sm:$0xff] %vm269, %v4562
      %4595 = vst.msk [vmem:[%s280 + $0x1c8] sm:$0xff] %vm269, %v4563
      %4596 = vst.msk [vmem:[%s280 + $0x1d0] sm:$0xff] %vm269, %v4564
      %4597 = vst.msk [vmem:[%s280 + $0x1e8] sm:$0xff] %vm269, %v4565
      %4598 = vst.msk [vmem:[%s280 + $0x1f0] sm:$0xff] %vm269, %v4566
      %v4599 = vld [vmem:[%s4] sm:$0x1]
      %v4601 = vlaneseq
      %v4602 = vshrl.u32 %v4601, 7
      %v4603 = vsub.s32 0, %v4602
      %v4604 = vrot.slane %v4599, %v4603
      %4606 = vst.msk [vmem:[#allocation4] sm:$0xff] %vm269, %v4604
      %4607 = vst.msk [vmem:[#allocation4 + $0x8] sm:$0xff] %vm269, %v4604
      %4608 = vst.msk [vmem:[#allocation4 + $0x10] sm:$0xff] %vm269, %v4604
      %4609 = vst.msk [vmem:[#allocation4 + $0x18] sm:$0xff] %vm269, %v4604
      %4610 = vst.msk [vmem:[#allocation4 + $0x20] sm:$0xff] %vm269, %v4604
      %4611 = vst.msk [vmem:[#allocation4 + $0x28] sm:$0xff] %vm269, %v4604
      %4612 = vst.msk [vmem:[#allocation4 + $0x30] sm:$0xff] %vm269, %v4604
      %4613 = vst.msk [vmem:[#allocation4 + $0x38] sm:$0xff] %vm269, %v4604
      %4614 = vst.msk [vmem:[#allocation4 + $0x40] sm:$0xff] %vm269, %v4604
      %4615 = vst.msk [vmem:[#allocation4 + $0x48] sm:$0xff] %vm269, %v4604
      %4616 = vst.msk [vmem:[#allocation4 + $0x50] sm:$0xff] %vm269, %v4604
      %4617 = vst.msk [vmem:[#allocation4 + $0x58] sm:$0xff] %vm269, %v4604
      %4618 = vst.msk [vmem:[#allocation4 + $0x60] sm:$0xff] %vm269, %v4604
      %4619 = vst.msk [vmem:[#allocation4 + $0x68] sm:$0xff] %vm269, %v4604
      %4620 = vst.msk [vmem:[#allocation4 + $0x70] sm:$0xff] %vm269, %v4604
      %4621 = vst.msk [vmem:[#allocation4 + $0x78] sm:$0xff] %vm269, %v4604
      %4622 = vst.msk [vmem:[#allocation4 + $0x80] sm:$0xff] %vm269, %v4604
      %4623 = vst.msk [vmem:[#allocation4 + $0x88] sm:$0xff] %vm269, %v4604
      %4624 = vst.msk [vmem:[#allocation4 + $0x90] sm:$0xff] %vm269, %v4604
      %4625 = vst.msk [vmem:[#allocation4 + $0x98] sm:$0xff] %vm269, %v4604
      %4626 = vst.msk [vmem:[#allocation4 + $0xa0] sm:$0xff] %vm269, %v4604
      %4627 = vst.msk [vmem:[#allocation4 + $0xa8] sm:$0xff] %vm269, %v4604
      %4628 = vst.msk [vmem:[#allocation4 + $0xb0] sm:$0xff] %vm269, %v4604
      %4629 = vst.msk [vmem:[#allocation4 + $0xb8] sm:$0xff] %vm269, %v4604
      %4630 = vst.msk [vmem:[#allocation4 + $0xc0] sm:$0xff] %vm269, %v4604
      %4631 = vst.msk [vmem:[#allocation4 + $0xc8] sm:$0xff] %vm269, %v4604
      %4632 = vst.msk [vmem:[#allocation4 + $0xd0] sm:$0xff] %vm269, %v4604
      %4633 = vst.msk [vmem:[#allocation4 + $0xd8] sm:$0xff] %vm269, %v4604
      %4634 = vst.msk [vmem:[#allocation4 + $0xe0] sm:$0xff] %vm269, %v4604
      %4635 = vst.msk [vmem:[#allocation4 + $0xe8] sm:$0xff] %vm269, %v4604
      %4636 = vst.msk [vmem:[#allocation4 + $0xf0] sm:$0xff] %vm269, %v4604
      %4637 = vst.msk [vmem:[#allocation4 + $0xf8] sm:$0xff] %vm269, %v4604
      %v4638 = vld [vmem:[#allocation3 + $0x7] sm:$0xff]
      %v4639 = vld [vmem:[#allocation3 + $0xf] sm:$0xff]
      %v4640 = vld [vmem:[#allocation3 + $0x27] sm:$0xff]
      %v4641 = vld [vmem:[#allocation3 + $0x2f] sm:$0xff]
      %v4642 = vld [vmem:[#allocation3 + $0x47] sm:$0xff]
      %v4643 = vld [vmem:[#allocation3 + $0x4f] sm:$0xff]
      %v4644 = vld [vmem:[#allocation3 + $0x67] sm:$0xff]
      %v4645 = vld [vmem:[#allocation3 + $0x6f] sm:$0xff]
      %v4646 = vld [vmem:[#allocation3 + $0x87] sm:$0xff]
      %v4647 = vld [vmem:[#allocation3 + $0x8f] sm:$0xff]
      %v4648 = vld [vmem:[#allocation3 + $0xa7] sm:$0xff]
      %v4649 = vld [vmem:[#allocation3 + $0xaf] sm:$0xff]
      %v4650 = vld [vmem:[#allocation3 + $0xc7] sm:$0xff]
      %v4651 = vld [vmem:[#allocation3 + $0xcf] sm:$0xff]
      %v4652 = vld [vmem:[#allocation3 + $0xe7] sm:$0xff]
      %v4653 = vld [vmem:[#allocation3 + $0xef] sm:$0xff]
      %v4654 = vld [vmem:[#allocation3 + $0x107] sm:$0xff]
      %v4655 = vld [vmem:[#allocation3 + $0x10f] sm:$0xff]
      %v4656 = vld [vmem:[#allocation3 + $0x127] sm:$0xff]
      %v4657 = vld [vmem:[#allocation3 + $0x12f] sm:$0xff]
      %v4658 = vld [vmem:[#allocation3 + $0x147] sm:$0xff]
      %v4659 = vld [vmem:[#allocation3 + $0x14f] sm:$0xff]
      %v4660 = vld [vmem:[#allocation3 + $0x167] sm:$0xff]
      %v4661 = vld [vmem:[#allocation3 + $0x16f] sm:$0xff]
      %v4662 = vld [vmem:[#allocation3 + $0x187] sm:$0xff]
      %v4663 = vld [vmem:[#allocation3 + $0x18f] sm:$0xff]
      %v4664 = vld [vmem:[#allocation3 + $0x1a7] sm:$0xff]
      %v4665 = vld [vmem:[#allocation3 + $0x1af] sm:$0xff]
      %v4666 = vld [vmem:[#allocation3 + $0x1c7] sm:$0xff]
      %v4667 = vld [vmem:[#allocation3 + $0x1cf] sm:$0xff]
      %v4668 = vld [vmem:[#allocation3 + $0x1e7] sm:$0xff]
      %v4669 = vld [vmem:[#allocation3 + $0x1ef] sm:$0xff]
      %v4670 = vld [vmem:[#allocation4] sm:$0xff]
      %v4671 = vld [vmem:[#allocation4 + $0x8] sm:$0xff]
      %v4672 = vld [vmem:[#allocation4 + $0x10] sm:$0xff]
      %v4673 = vld [vmem:[#allocation4 + $0x18] sm:$0xff]
      %v4674 = vld [vmem:[#allocation4 + $0x20] sm:$0xff]
      %v4675 = vld [vmem:[#allocation4 + $0x28] sm:$0xff]
      %v4676 = vld [vmem:[#allocation4 + $0x30] sm:$0xff]
      %v4677 = vld [vmem:[#allocation4 + $0x38] sm:$0xff]
      %v4678 = vld [vmem:[#allocation4 + $0x40] sm:$0xff]
      %v4679 = vld [vmem:[#allocation4 + $0x48] sm:$0xff]
      %v4680 = vld [vmem:[#allocation4 + $0x50] sm:$0xff]
      %v4681 = vld [vmem:[#allocation4 + $0x58] sm:$0xff]
      %v4682 = vld [vmem:[#allocation4 + $0x60] sm:$0xff]
      %v4683 = vld [vmem:[#allocation4 + $0x68] sm:$0xff]
      %v4684 = vld [vmem:[#allocation4 + $0x70] sm:$0xff]
      %v4685 = vld [vmem:[#allocation4 + $0x78] sm:$0xff]
      %v4686 = vld [vmem:[#allocation4 + $0x80] sm:$0xff]
      %v4687 = vld [vmem:[#allocation4 + $0x88] sm:$0xff]
      %v4688 = vld [vmem:[#allocation4 + $0x90] sm:$0xff]
      %v4689 = vld [vmem:[#allocation4 + $0x98] sm:$0xff]
      %v4690 = vld [vmem:[#allocation4 + $0xa0] sm:$0xff]
      %v4691 = vld [vmem:[#allocation4 + $0xa8] sm:$0xff]
      %v4692 = vld [vmem:[#allocation4 + $0xb0] sm:$0xff]
      %v4693 = vld [vmem:[#allocation4 + $0xb8] sm:$0xff]
      %v4694 = vld [vmem:[#allocation4 + $0xc0] sm:$0xff]
      %v4695 = vld [vmem:[#allocation4 + $0xc8] sm:$0xff]
      %v4696 = vld [vmem:[#allocation4 + $0xd0] sm:$0xff]
      %v4697 = vld [vmem:[#allocation4 + $0xd8] sm:$0xff]
      %v4698 = vld [vmem:[#allocation4 + $0xe0] sm:$0xff]
      %v4699 = vld [vmem:[#allocation4 + $0xe8] sm:$0xff]
      %v4700 = vld [vmem:[#allocation4 + $0xf0] sm:$0xff]
      %v4701 = vld [vmem:[#allocation4 + $0xf8] sm:$0xff]
      %v4702 = vld [vmem:[%s3] sm:$0xff]
      %v4704 = vsel %vm269, %v4638, 0
      %v4707 = vsel %vm269, %v4639, 0
      %v4710 = vsel %vm269, %v4640, 0
      %v4713 = vsel %vm269, %v4641, 0
      %v4716 = vsel %vm269, %v4642, 0
      %v4719 = vsel %vm269, %v4643, 0
      %v4722 = vsel %vm269, %v4644, 0
      %v4725 = vsel %vm269, %v4645, 0
      %v4728 = vsel %vm269, %v4646, 0
      %v4731 = vsel %vm269, %v4647, 0
      %v4734 = vsel %vm269, %v4648, 0
      %v4737 = vsel %vm269, %v4649, 0
      %v4740 = vsel %vm269, %v4650, 0
      %v4743 = vsel %vm269, %v4651, 0
      %v4746 = vsel %vm269, %v4652, 0
      %v4749 = vsel %vm269, %v4653, 0
      %v4752 = vsel %vm269, %v4654, 0
      %v4755 = vsel %vm269, %v4655, 0
      %v4758 = vsel %vm269, %v4656, 0
      %v4761 = vsel %vm269, %v4657, 0
      %v4764 = vsel %vm269, %v4658, 0
      %v4767 = vsel %vm269, %v4659, 0
      %v4770 = vsel %vm269, %v4660, 0
      %v4773 = vsel %vm269, %v4661, 0
      %v4776 = vsel %vm269, %v4662, 0
      %v4779 = vsel %vm269, %v4663, 0
      %v4782 = vsel %vm269, %v4664, 0
      %v4785 = vsel %vm269, %v4665, 0
      %v4788 = vsel %vm269, %v4666, 0
      %v4791 = vsel %vm269, %v4667, 0
      %v4794 = vsel %vm269, %v4668, 0
      %v4797 = vsel %vm269, %v4669, 0
      %4799 = vmatprep.subr.mxu0 0.0
      %4800 = vmatpush1.msra.mxu0 %v4702
      %4801 = vmatprep.subr.mxu0 0.0
      %4802 = vmatpush1.msra.mxu0 0.0
      %4803 = vmatprep.subr.mxu0 0.0
      %4804 = vmatpush1.msra.mxu0 0.0
      %4805 = vmatprep.subr.mxu0 0.0
      %4806 = vmatpush1.msra.mxu0 0.0
      %4807 = vmatprep.subr.mxu0 0.0
      %4808 = vmatpush1.msra.mxu0 0.0
      %4809 = vmatprep.subr.mxu0 0.0
      %4810 = vmatpush1.msra.mxu0 0.0
      %4811 = vmatprep.subr.mxu0 0.0
      %4812 = vmatpush1.msra.mxu0 0.0
      %4813 = vmatprep.subr.mxu0 0.0
      %4814 = vmatpush1.msra.mxu0 0.0
      %4815 = vmatprep.subr.mxu0 0.0
      %4816 = vmatpush1.msra.mxu0 0.0
      %4817 = vmatprep.subr.mxu0 0.0
      %4818 = vmatpush1.msra.mxu0 0.0
      %4819 = vmatprep.subr.mxu0 0.0
      %4820 = vmatpush1.msra.mxu0 0.0
      %4821 = vmatprep.subr.mxu0 0.0
      %4822 = vmatpush1.msra.mxu0 0.0
      %4823 = vmatprep.subr.mxu0 0.0
      %4824 = vmatpush1.msra.mxu0 0.0
      %4825 = vmatprep.subr.mxu0 0.0
      %4826 = vmatpush1.msra.mxu0 0.0
      %4827 = vmatprep.subr.mxu0 0.0
      %4828 = vmatpush1.msra.mxu0 0.0
      %4829 = vmatprep.subr.mxu0 0.0
      %4830 = vmatpush1.msra.mxu0 0.0
      %4831 = vmatprep.subr.mxu0 0.0
      %4832 = vmatpush1.msra.mxu0 0.0
      %4833 = vmatprep.subr.mxu0 0.0
      %4834 = vmatpush1.msra.mxu0 0.0
      %4835 = vmatprep.subr.mxu0 0.0
      %4836 = vmatpush1.msra.mxu0 0.0
      %4837 = vmatprep.subr.mxu0 0.0
      %4838 = vmatpush1.msra.mxu0 0.0
      %4839 = vmatprep.subr.mxu0 0.0
      %4840 = vmatpush1.msra.mxu0 0.0
      %4841 = vmatprep.subr.mxu0 0.0
      %4842 = vmatpush1.msra.mxu0 0.0
      %4843 = vmatprep.subr.mxu0 0.0
      %4844 = vmatpush1.msra.mxu0 0.0
      %4845 = vmatprep.subr.mxu0 0.0
      %4846 = vmatpush1.msra.mxu0 0.0
      %4847 = vmatprep.subr.mxu0 0.0
      %4848 = vmatpush1.msra.mxu0 0.0
      %4849 = vmatprep.subr.mxu0 0.0
      %4850 = vmatpush1.msra.mxu0 0.0
      %4851 = vmatprep.subr.mxu0 0.0
      %4852 = vmatpush1.msra.mxu0 0.0
      %4853 = vmatprep.subr.mxu0 0.0
      %4854 = vmatpush1.msra.mxu0 0.0
      %4855 = vmatprep.subr.mxu0 0.0
      %4856 = vmatpush1.msra.mxu0 0.0
      %4857 = vmatprep.subr.mxu0 0.0
      %4858 = vmatpush1.msra.mxu0 0.0
      %4859 = vmatprep.subr.mxu0 0.0
      %4860 = vmatpush1.msra.mxu0 0.0
      %4861 = vmatprep.subr.mxu0 0.0
      %4862 = vmatpush1.msra.mxu0 0.0
      %4863 = vmatprep.mubr.f32.mxu0 0.0
      %4864 = vmatmul.mubr.f32.gmra.mrb[0].mxu0 %v4704
      %v4865 = vpop.f32.mrb[0].mxu0
      %v4866 = vadd.f32 0.0, %v4865
      %v4867 = vpop.f32.mrb[0].mxu0
      %4868 = vmatprep.mubr.f32.mxu0 0.0
      %4869 = vmatmul.mubr.f32.gmra.mrb[0].mxu0 %v4707
      %v4870 = vpop.f32.mrb[0].mxu0
      %v4871 = vadd.f32 0.0, %v4870
      %v4872 = vpop.f32.mrb[0].mxu0
      %4873 = vmatprep.mubr.f32.mxu0 0.0
      %4874 = vmatmul.mubr.f32.gmra.mrb[0].mxu0 %v4710
      %v4875 = vpop.f32.mrb[0].mxu0
      %v4876 = vadd.f32 0.0, %v4875
      %v4877 = vpop.f32.mrb[0].mxu0
      %4878 = vmatprep.mubr.f32.mxu0 0.0
      %4879 = vmatmul.mubr.f32.gmra.mrb[0].mxu0 %v4713
      %v4880 = vpop.f32.mrb[0].mxu0
      %v4881 = vadd.f32 0.0, %v4880
      %v4882 = vpop.f32.mrb[0].mxu0
      %4883 = vmatprep.mubr.f32.mxu0 0.0
      %4884 = vmatmul.mubr.f32.gmra.mrb[0].mxu0 %v4716
      %v4885 = vpop.f32.mrb[0].mxu0
      %v4886 = vadd.f32 0.0, %v4885
      %v4887 = vpop.f32.mrb[0].mxu0
      %4888 = vmatprep.mubr.f32.mxu0 0.0
      %4889 = vmatmul.mubr.f32.gmra.mrb[0].mxu0 %v4719
      %v4890 = vpop.f32.mrb[0].mxu0
      %v4891 = vadd.f32 0.0, %v4890
      %v4892 = vpop.f32.mrb[0].mxu0
      %4893 = vmatprep.mubr.f32.mxu0 0.0
      %4894 = vmatmul.mubr.f32.gmra.mrb[0].mxu0 %v4722
      %v4895 = vpop.f32.mrb[0].mxu0
      %v4896 = vadd.f32 0.0, %v4895
      %v4897 = vpop.f32.mrb[0].mxu0
      %4898 = vmatprep.mubr.f32.mxu0 0.0
      %4899 = vmatmul.mubr.f32.gmra.mrb[0].mxu0 %v4725
      %v4900 = vpop.f32.mrb[0].mxu0
      %v4901 = vadd.f32 0.0, %v4900
      %v4902 = vpop.f32.mrb[0].mxu0
      %4903 = vmatprep.mubr.f32.mxu0 0.0
      %4904 = vmatmul.mubr.f32.gmra.mrb[0].mxu0 %v4728
      %v4905 = vpop.f32.mrb[0].mxu0
      %v4906 = vadd.f32 0.0, %v4905
      %v4907 = vpop.f32.mrb[0].mxu0
      %4908 = vmatprep.mubr.f32.mxu0 0.0
      %4909 = vmatmul.mubr.f32.gmra.mrb[0].mxu0 %v4731
      %v4910 = vpop.f32.mrb[0].mxu0
      %v4911 = vadd.f32 0.0, %v4910
      %v4912 = vpop.f32.mrb[0].mxu0
      %4913 = vmatprep.mubr.f32.mxu0 0.0
      %4914 = vmatmul.mubr.f32.gmra.mrb[0].mxu0 %v4734
      %v4915 = vpop.f32.mrb[0].mxu0
      %v4916 = vadd.f32 0.0, %v4915
      %v4917 = vpop.f32.mrb[0].mxu0
      %4918 = vmatprep.mubr.f32.mxu0 0.0
      %4919 = vmatmul.mubr.f32.gmra.mrb[0].mxu0 %v4737
      %v4920 = vpop.f32.mrb[0].mxu0
      %v4921 = vadd.f32 0.0, %v4920
      %v4922 = vpop.f32.mrb[0].mxu0
      %4923 = vmatprep.mubr.f32.mxu0 0.0
      %4924 = vmatmul.mubr.f32.gmra.mrb[0].mxu0 %v4740
      %v4925 = vpop.f32.mrb[0].mxu0
      %v4926 = vadd.f32 0.0, %v4925
      %v4927 = vpop.f32.mrb[0].mxu0
      %4928 = vmatprep.mubr.f32.mxu0 0.0
      %4929 = vmatmul.mubr.f32.gmra.mrb[0].mxu0 %v4743
      %v4930 = vpop.f32.mrb[0].mxu0
      %v4931 = vadd.f32 0.0, %v4930
      %v4932 = vpop.f32.mrb[0].mxu0
      %4933 = vmatprep.mubr.f32.mxu0 0.0
      %4934 = vmatmul.mubr.f32.gmra.mrb[0].mxu0 %v4746
      %v4935 = vpop.f32.mrb[0].mxu0
      %v4936 = vadd.f32 0.0, %v4935
      %v4937 = vpop.f32.mrb[0].mxu0
      %4938 = vmatprep.mubr.f32.mxu0 0.0
      %4939 = vmatmul.mubr.f32.gmra.mrb[0].mxu0 %v4749
      %v4940 = vpop.f32.mrb[0].mxu0
      %v4941 = vadd.f32 0.0, %v4940
      %v4942 = vpop.f32.mrb[0].mxu0
      %4943 = vmatprep.mubr.f32.mxu0 0.0
      %4944 = vmatmul.mubr.f32.gmra.mrb[0].mxu0 %v4752
      %v4945 = vpop.f32.mrb[0].mxu0
      %v4946 = vadd.f32 0.0, %v4945
      %v4947 = vpop.f32.mrb[0].mxu0
      %4948 = vmatprep.mubr.f32.mxu0 0.0
      %4949 = vmatmul.mubr.f32.gmra.mrb[0].mxu0 %v4755
      %v4950 = vpop.f32.mrb[0].mxu0
      %v4951 = vadd.f32 0.0, %v4950
      %v4952 = vpop.f32.mrb[0].mxu0
      %4953 = vmatprep.mubr.f32.mxu0 0.0
      %4954 = vmatmul.mubr.f32.gmra.mrb[0].mxu0 %v4758
      %v4955 = vpop.f32.mrb[0].mxu0
      %v4956 = vadd.f32 0.0, %v4955
      %v4957 = vpop.f32.mrb[0].mxu0
      %4958 = vmatprep.mubr.f32.mxu0 0.0
      %4959 = vmatmul.mubr.f32.gmra.mrb[0].mxu0 %v4761
      %v4960 = vpop.f32.mrb[0].mxu0
      %v4961 = vadd.f32 0.0, %v4960
      %v4962 = vpop.f32.mrb[0].mxu0
      %4963 = vmatprep.mubr.f32.mxu0 0.0
      %4964 = vmatmul.mubr.f32.gmra.mrb[0].mxu0 %v4764
      %v4965 = vpop.f32.mrb[0].mxu0
      %v4966 = vadd.f32 0.0, %v4965
      %v4967 = vpop.f32.mrb[0].mxu0
      %4968 = vmatprep.mubr.f32.mxu0 0.0
      %4969 = vmatmul.mubr.f32.gmra.mrb[0].mxu0 %v4767
      %v4970 = vpop.f32.mrb[0].mxu0
      %v4971 = vadd.f32 0.0, %v4970
      %v4972 = vpop.f32.mrb[0].mxu0
      %4973 = vmatprep.mubr.f32.mxu0 0.0
      %4974 = vmatmul.mubr.f32.gmra.mrb[0].mxu0 %v4770
      %v4975 = vpop.f32.mrb[0].mxu0
      %v4976 = vadd.f32 0.0, %v4975
      %v4977 = vpop.f32.mrb[0].mxu0
      %4978 = vmatprep.mubr.f32.mxu0 0.0
      %4979 = vmatmul.mubr.f32.gmra.mrb[0].mxu0 %v4773
      %v4980 = vpop.f32.mrb[0].mxu0
      %v4981 = vadd.f32 0.0, %v4980
      %v4982 = vpop.f32.mrb[0].mxu0
      %4983 = vmatprep.mubr.f32.mxu0 0.0
      %4984 = vmatmul.mubr.f32.gmra.mrb[0].mxu0 %v4776
      %v4985 = vpop.f32.mrb[0].mxu0
      %v4986 = vadd.f32 0.0, %v4985
      %v4987 = vpop.f32.mrb[0].mxu0
      %4988 = vmatprep.mubr.f32.mxu0 0.0
      %4989 = vmatmul.mubr.f32.gmra.mrb[0].mxu0 %v4779
      %v4990 = vpop.f32.mrb[0].mxu0
      %v4991 = vadd.f32 0.0, %v4990
      %v4992 = vpop.f32.mrb[0].mxu0
      %4993 = vmatprep.mubr.f32.mxu0 0.0
      %4994 = vmatmul.mubr.f32.gmra.mrb[0].mxu0 %v4782
      %v4995 = vpop.f32.mrb[0].mxu0
      %v4996 = vadd.f32 0.0, %v4995
      %v4997 = vpop.f32.mrb[0].mxu0
      %4998 = vmatprep.mubr.f32.mxu0 0.0
      %4999 = vmatmul.mubr.f32.gmra.mrb[0].mxu0 %v4785
      %v5000 = vpop.f32.mrb[0].mxu0
      %v5001 = vadd.f32 0.0, %v5000
      %v5002 = vpop.f32.mrb[0].mxu0
      %5003 = vmatprep.mubr.f32.mxu0 0.0
      %5004 = vmatmul.mubr.f32.gmra.mrb[0].mxu0 %v4788
      %v5005 = vpop.f32.mrb[0].mxu0
      %v5006 = vadd.f32 0.0, %v5005
      %v5007 = vpop.f32.mrb[0].mxu0
      %5008 = vmatprep.mubr.f32.mxu0 0.0
      %5009 = vmatmul.mubr.f32.gmra.mrb[0].mxu0 %v4791
      %v5010 = vpop.f32.mrb[0].mxu0
      %v5011 = vadd.f32 0.0, %v5010
      %v5012 = vpop.f32.mrb[0].mxu0
      %5013 = vmatprep.mubr.f32.mxu0 0.0
      %5014 = vmatmul.mubr.f32.gmra.mrb[0].mxu0 %v4794
      %v5015 = vpop.f32.mrb[0].mxu0
      %v5016 = vadd.f32 0.0, %v5015
      %v5017 = vpop.f32.mrb[0].mxu0
      %5018 = vmatprep.mubr.f32.mxu0 0.0
      %5019 = vmatmul.mubr.f32.gmra.mrb[0].mxu0 %v4797
      %v5020 = vpop.f32.mrb[0].mxu0
      %v5021 = vadd.f32 0.0, %v5020
      %v5022 = vpop.f32.mrb[0].mxu0
      %5023 = vdwg.mxu0
      %v5024 = vadd.f32 %v4670, %v4866
      %v5025 = vadd.f32 %v4671, %v4871
      %v5026 = vadd.f32 %v4672, %v4876
      %v5027 = vadd.f32 %v4673, %v4881
      %v5028 = vadd.f32 %v4674, %v4886
      %v5029 = vadd.f32 %v4675, %v4891
      %v5030 = vadd.f32 %v4676, %v4896
      %v5031 = vadd.f32 %v4677, %v4901
      %v5032 = vadd.f32 %v4678, %v4906
      %v5033 = vadd.f32 %v4679, %v4911
      %v5034 = vadd.f32 %v4680, %v4916
      %v5035 = vadd.f32 %v4681, %v4921
      %v5036 = vadd.f32 %v4682, %v4926
      %v5037 = vadd.f32 %v4683, %v4931
      %v5038 = vadd.f32 %v4684, %v4936
      %v5039 = vadd.f32 %v4685, %v4941
      %v5040 = vadd.f32 %v4686, %v4946
      %v5041 = vadd.f32 %v4687, %v4951
      %v5042 = vadd.f32 %v4688, %v4956
      %v5043 = vadd.f32 %v4689, %v4961
      %v5044 = vadd.f32 %v4690, %v4966
      %v5045 = vadd.f32 %v4691, %v4971
      %v5046 = vadd.f32 %v4692, %v4976
      %v5047 = vadd.f32 %v4693, %v4981
      %v5048 = vadd.f32 %v4694, %v4986
      %v5049 = vadd.f32 %v4695, %v4991
      %v5050 = vadd.f32 %v4696, %v4996
      %v5051 = vadd.f32 %v4697, %v5001
      %v5052 = vadd.f32 %v4698, %v5006
      %v5053 = vadd.f32 %v4699, %v5011
      %v5054 = vadd.f32 %v4700, %v5016
      %v5055 = vadd.f32 %v4701, %v5021
      %5056 = vst.msk [vmem:[#allocation4] sm:$0xff] %vm269, %v5024
      %5057 = vst.msk [vmem:[#allocation4 + $0x8] sm:$0xff] %vm269, %v5025
      %5058 = vst.msk [vmem:[#allocation4 + $0x10] sm:$0xff] %vm269, %v5026
      %5059 = vst.msk [vmem:[#allocation4 + $0x18] sm:$0xff] %vm269, %v5027
      %5060 = vst.msk [vmem:[#allocation4 + $0x20] sm:$0xff] %vm269, %v5028
      %5061 = vst.msk [vmem:[#allocation4 + $0x28] sm:$0xff] %vm269, %v5029
      %5062 = vst.msk [vmem:[#allocation4 + $0x30] sm:$0xff] %vm269, %v5030
      %5063 = vst.msk [vmem:[#allocation4 + $0x38] sm:$0xff] %vm269, %v5031
      %5064 = vst.msk [vmem:[#allocation4 + $0x40] sm:$0xff] %vm269, %v5032
      %5065 = vst.msk [vmem:[#allocation4 + $0x48] sm:$0xff] %vm269, %v5033
      %5066 = vst.msk [vmem:[#allocation4 + $0x50] sm:$0xff] %vm269, %v5034
      %5067 = vst.msk [vmem:[#allocation4 + $0x58] sm:$0xff] %vm269, %v5035
      %5068 = vst.msk [vmem:[#allocation4 + $0x60] sm:$0xff] %vm269, %v5036
      %5069 = vst.msk [vmem:[#allocation4 + $0x68] sm:$0xff] %vm269, %v5037
      %5070 = vst.msk [vmem:[#allocation4 + $0x70] sm:$0xff] %vm269, %v5038
      %5071 = vst.msk [vmem:[#allocation4 + $0x78] sm:$0xff] %vm269, %v5039
      %5072 = vst.msk [vmem:[#allocation4 + $0x80] sm:$0xff] %vm269, %v5040
      %5073 = vst.msk [vmem:[#allocation4 + $0x88] sm:$0xff] %vm269, %v5041
      %5074 = vst.msk [vmem:[#allocation4 + $0x90] sm:$0xff] %vm269, %v5042
      %5075 = vst.msk [vmem:[#allocation4 + $0x98] sm:$0xff] %vm269, %v5043
      %5076 = vst.msk [vmem:[#allocation4 + $0xa0] sm:$0xff] %vm269, %v5044
      %5077 = vst.msk [vmem:[#allocation4 + $0xa8] sm:$0xff] %vm269, %v5045
      %5078 = vst.msk [vmem:[#allocation4 + $0xb0] sm:$0xff] %vm269, %v5046
      %5079 = vst.msk [vmem:[#allocation4 + $0xb8] sm:$0xff] %vm269, %v5047
      %5080 = vst.msk [vmem:[#allocation4 + $0xc0] sm:$0xff] %vm269, %v5048
      %5081 = vst.msk [vmem:[#allocation4 + $0xc8] sm:$0xff] %vm269, %v5049
      %5082 = vst.msk [vmem:[#allocation4 + $0xd0] sm:$0xff] %vm269, %v5050
      %5083 = vst.msk [vmem:[#allocation4 + $0xd8] sm:$0xff] %vm269, %v5051
      %5084 = vst.msk [vmem:[#allocation4 + $0xe0] sm:$0xff] %vm269, %v5052
      %5085 = vst.msk [vmem:[#allocation4 + $0xe8] sm:$0xff] %vm269, %v5053
      %5086 = vst.msk [vmem:[#allocation4 + $0xf0] sm:$0xff] %vm269, %v5054
      %5087 = vst.msk [vmem:[#allocation4 + $0xf8] sm:$0xff] %vm269, %v5055
      %v5088 = vld [vmem:[#allocation3 + $0x8] sm:$0xff]
      %v5089 = vld [vmem:[#allocation3 + $0x10] sm:$0xff]
      %v5090 = vld [vmem:[#allocation3 + $0x28] sm:$0xff]
      %v5091 = vld [vmem:[#allocation3 + $0x30] sm:$0xff]
      %v5092 = vld [vmem:[#allocation3 + $0x48] sm:$0xff]
      %v5093 = vld [vmem:[#allocation3 + $0x50] sm:$0xff]
      %v5094 = vld [vmem:[#allocation3 + $0x68] sm:$0xff]
      %v5095 = vld [vmem:[#allocation3 + $0x70] sm:$0xff]
      %v5096 = vld [vmem:[#allocation3 + $0x88] sm:$0xff]
      %v5097 = vld [vmem:[#allocation3 + $0x90] sm:$0xff]
      %v5098 = vld [vmem:[#allocation3 + $0xa8] sm:$0xff]
      %v5099 = vld [vmem:[#allocation3 + $0xb0] sm:$0xff]
      %v5100 = vld [vmem:[#allocation3 + $0xc8] sm:$0xff]
      %v5101 = vld [vmem:[#allocation3 + $0xd0] sm:$0xff]
      %v5102 = vld [vmem:[#allocation3 + $0xe8] sm:$0xff]
      %v5103 = vld [vmem:[#allocation3 + $0xf0] sm:$0xff]
      %v5104 = vld [vmem:[#allocation3 + $0x108] sm:$0xff]
      %v5105 = vld [vmem:[#allocation3 + $0x110] sm:$0xff]
      %v5106 = vld [vmem:[#allocation3 + $0x128] sm:$0xff]
      %v5107 = vld [vmem:[#allocation3 + $0x130] sm:$0xff]
      %v5108 = vld [vmem:[#allocation3 + $0x148] sm:$0xff]
      %v5109 = vld [vmem:[#allocation3 + $0x150] sm:$0xff]
      %v5110 = vld [vmem:[#allocation3 + $0x168] sm:$0xff]
      %v5111 = vld [vmem:[#allocation3 + $0x170] sm:$0xff]
      %v5112 = vld [vmem:[#allocation3 + $0x188] sm:$0xff]
      %v5113 = vld [vmem:[#allocation3 + $0x190] sm:$0xff]
      %v5114 = vld [vmem:[#allocation3 + $0x1a8] sm:$0xff]
      %v5115 = vld [vmem:[#allocation3 + $0x1b0] sm:$0xff]
      %v5116 = vld [vmem:[#allocation3 + $0x1c8] sm:$0xff]
      %v5117 = vld [vmem:[#allocation3 + $0x1d0] sm:$0xff]
      %v5118 = vld [vmem:[#allocation3 + $0x1e8] sm:$0xff]
      %v5119 = vld [vmem:[#allocation3 + $0x1f0] sm:$0xff]
      %v5120 = vld [vmem:[#allocation4] sm:$0xff]
      %v5121 = vld [vmem:[#allocation4 + $0x8] sm:$0xff]
      %v5122 = vld [vmem:[#allocation4 + $0x10] sm:$0xff]
      %v5123 = vld [vmem:[#allocation4 + $0x18] sm:$0xff]
      %v5124 = vld [vmem:[#allocation4 + $0x20] sm:$0xff]
      %v5125 = vld [vmem:[#allocation4 + $0x28] sm:$0xff]
      %v5126 = vld [vmem:[#allocation4 + $0x30] sm:$0xff]
      %v5127 = vld [vmem:[#allocation4 + $0x38] sm:$0xff]
      %v5128 = vld [vmem:[#allocation4 + $0x40] sm:$0xff]
      %v5129 = vld [vmem:[#allocation4 + $0x48] sm:$0xff]
      %v5130 = vld [vmem:[#allocation4 + $0x50] sm:$0xff]
      %v5131 = vld [vmem:[#allocation4 + $0x58] sm:$0xff]
      %v5132 = vld [vmem:[#allocation4 + $0x60] sm:$0xff]
      %v5133 = vld [vmem:[#allocation4 + $0x68] sm:$0xff]
      %v5134 = vld [vmem:[#allocation4 + $0x70] sm:$0xff]
      %v5135 = vld [vmem:[#allocation4 + $0x78] sm:$0xff]
      %v5136 = vld [vmem:[#allocation4 + $0x80] sm:$0xff]
      %v5137 = vld [vmem:[#allocation4 + $0x88] sm:$0xff]
      %v5138 = vld [vmem:[#allocation4 + $0x90] sm:$0xff]
      %v5139 = vld [vmem:[#allocation4 + $0x98] sm:$0xff]
      %v5140 = vld [vmem:[#allocation4 + $0xa0] sm:$0xff]
      %v5141 = vld [vmem:[#allocation4 + $0xa8] sm:$0xff]
      %v5142 = vld [vmem:[#allocation4 + $0xb0] sm:$0xff]
      %v5143 = vld [vmem:[#allocation4 + $0xb8] sm:$0xff]
      %v5144 = vld [vmem:[#allocation4 + $0xc0] sm:$0xff]
      %v5145 = vld [vmem:[#allocation4 + $0xc8] sm:$0xff]
      %v5146 = vld [vmem:[#allocation4 + $0xd0] sm:$0xff]
      %v5147 = vld [vmem:[#allocation4 + $0xd8] sm:$0xff]
      %v5148 = vld [vmem:[#allocation4 + $0xe0] sm:$0xff]
      %v5149 = vld [vmem:[#allocation4 + $0xe8] sm:$0xff]
      %v5150 = vld [vmem:[#allocation4 + $0xf0] sm:$0xff]
      %v5151 = vld [vmem:[#allocation4 + $0xf8] sm:$0xff]
      %s5152 = scalar_lea.vmem %s3, 8
      %v5153 = vld [vmem:[%s5152] sm:$0xff]
      %v5155 = vsel %vm269, %v5088, 0
      %v5158 = vsel %vm269, %v5089, 0
      %v5161 = vsel %vm269, %v5090, 0
      %v5164 = vsel %vm269, %v5091, 0
      %v5167 = vsel %vm269, %v5092, 0
      %v5170 = vsel %vm269, %v5093, 0
      %v5173 = vsel %vm269, %v5094, 0
      %v5176 = vsel %vm269, %v5095, 0
      %v5179 = vsel %vm269, %v5096, 0
      %v5182 = vsel %vm269, %v5097, 0
      %v5185 = vsel %vm269, %v5098, 0
      %v5188 = vsel %vm269, %v5099, 0
      %v5191 = vsel %vm269, %v5100, 0
      %v5194 = vsel %vm269, %v5101, 0
      %v5197 = vsel %vm269, %v5102, 0
      %v5200 = vsel %vm269, %v5103, 0
      %v5203 = vsel %vm269, %v5104, 0
      %v5206 = vsel %vm269, %v5105, 0
      %v5209 = vsel %vm269, %v5106, 0
      %v5212 = vsel %vm269, %v5107, 0
      %v5215 = vsel %vm269, %v5108, 0
      %v5218 = vsel %vm269, %v5109, 0
      %v5221 = vsel %vm269, %v5110, 0
      %v5224 = vsel %vm269, %v5111, 0
      %v5227 = vsel %vm269, %v5112, 0
      %v5230 = vsel %vm269, %v5113, 0
      %v5233 = vsel %vm269, %v5114, 0
      %v5236 = vsel %vm269, %v5115, 0
      %v5239 = vsel %vm269, %v5116, 0
      %v5242 = vsel %vm269, %v5117, 0
      %v5245 = vsel %vm269, %v5118, 0
      %v5248 = vsel %vm269, %v5119, 0
      %5250 = vmatprep.subr.mxu0 0.0
      %5251 = vmatpush1.msra.mxu0 %v5153
      %5252 = vmatprep.subr.mxu0 0.0
      %5253 = vmatpush1.msra.mxu0 0.0
      %5254 = vmatprep.subr.mxu0 0.0
      %5255 = vmatpush1.msra.mxu0 0.0
      %5256 = vmatprep.subr.mxu0 0.0
      %5257 = vmatpush1.msra.mxu0 0.0
      %5258 = vmatprep.subr.mxu0 0.0
      %5259 = vmatpush1.msra.mxu0 0.0
      %5260 = vmatprep.subr.mxu0 0.0
      %5261 = vmatpush1.msra.mxu0 0.0
      %5262 = vmatprep.subr.mxu0 0.0
      %5263 = vmatpush1.msra.mxu0 0.0
      %5264 = vmatprep.subr.mxu0 0.0
      %5265 = vmatpush1.msra.mxu0 0.0
      %5266 = vmatprep.subr.mxu0 0.0
      %5267 = vmatpush1.msra.mxu0 0.0
      %5268 = vmatprep.subr.mxu0 0.0
      %5269 = vmatpush1.msra.mxu0 0.0
      %5270 = vmatprep.subr.mxu0 0.0
      %5271 = vmatpush1.msra.mxu0 0.0
      %5272 = vmatprep.subr.mxu0 0.0
      %5273 = vmatpush1.msra.mxu0 0.0
      %5274 = vmatprep.subr.mxu0 0.0
      %5275 = vmatpush1.msra.mxu0 0.0
      %5276 = vmatprep.subr.mxu0 0.0
      %5277 = vmatpush1.msra.mxu0 0.0
      %5278 = vmatprep.subr.mxu0 0.0
      %5279 = vmatpush1.msra.mxu0 0.0
      %5280 = vmatprep.subr.mxu0 0.0
      %5281 = vmatpush1.msra.mxu0 0.0
      %5282 = vmatprep.subr.mxu0 0.0
      %5283 = vmatpush1.msra.mxu0 0.0
      %5284 = vmatprep.subr.mxu0 0.0
      %5285 = vmatpush1.msra.mxu0 0.0
      %5286 = vmatprep.subr.mxu0 0.0
      %5287 = vmatpush1.msra.mxu0 0.0
      %5288 = vmatprep.subr.mxu0 0.0
      %5289 = vmatpush1.msra.mxu0 0.0
      %5290 = vmatprep.subr.mxu0 0.0
      %5291 = vmatpush1.msra.mxu0 0.0
      %5292 = vmatprep.subr.mxu0 0.0
      %5293 = vmatpush1.msra.mxu0 0.0
      %5294 = vmatprep.subr.mxu0 0.0
      %5295 = vmatpush1.msra.mxu0 0.0
      %5296 = vmatprep.subr.mxu0 0.0
      %5297 = vmatpush1.msra.mxu0 0.0
      %5298 = vmatprep.subr.mxu0 0.0
      %5299 = vmatpush1.msra.mxu0 0.0
      %5300 = vmatprep.subr.mxu0 0.0
      %5301 = vmatpush1.msra.mxu0 0.0
      %5302 = vmatprep.subr.mxu0 0.0
      %5303 = vmatpush1.msra.mxu0 0.0
      %5304 = vmatprep.subr.mxu0 0.0
      %5305 = vmatpush1.msra.mxu0 0.0
      %5306 = vmatprep.subr.mxu0 0.0
      %5307 = vmatpush1.msra.mxu0 0.0
      %5308 = vmatprep.subr.mxu0 0.0
      %5309 = vmatpush1.msra.mxu0 0.0
      %5310 = vmatprep.subr.mxu0 0.0
      %5311 = vmatpush1.msra.mxu0 0.0
      %5312 = vmatprep.subr.mxu0 0.0
      %5313 = vmatpush1.msra.mxu0 0.0
      %5314 = vmatprep.mubr.f32.mxu0 0.0
      %5315 = vmatmul.mubr.f32.gmra.mrb[0].mxu0 %v5155
      %v5316 = vpop.f32.mrb[0].mxu0
      %v5317 = vadd.f32 0.0, %v5316
      %v5318 = vpop.f32.mrb[0].mxu0
      %5319 = vmatprep.mubr.f32.mxu0 0.0
      %5320 = vmatmul.mubr.f32.gmra.mrb[0].mxu0 %v5158
      %v5321 = vpop.f32.mrb[0].mxu0
      %v5322 = vadd.f32 0.0, %v5321
      %v5323 = vpop.f32.mrb[0].mxu0
      %5324 = vmatprep.mubr.f32.mxu0 0.0
      %5325 = vmatmul.mubr.f32.gmra.mrb[0].mxu0 %v5161
      %v5326 = vpop.f32.mrb[0].mxu0
      %v5327 = vadd.f32 0.0, %v5326
      %v5328 = vpop.f32.mrb[0].mxu0
      %5329 = vmatprep.mubr.f32.mxu0 0.0
      %5330 = vmatmul.mubr.f32.gmra.mrb[0].mxu0 %v5164
      %v5331 = vpop.f32.mrb[0].mxu0
      %v5332 = vadd.f32 0.0, %v5331
      %v5333 = vpop.f32.mrb[0].mxu0
      %5334 = vmatprep.mubr.f32.mxu0 0.0
      %5335 = vmatmul.mubr.f32.gmra.mrb[0].mxu0 %v5167
      %v5336 = vpop.f32.mrb[0].mxu0
      %v5337 = vadd.f32 0.0, %v5336
      %v5338 = vpop.f32.mrb[0].mxu0
      %5339 = vmatprep.mubr.f32.mxu0 0.0
      %5340 = vmatmul.mubr.f32.gmra.mrb[0].mxu0 %v5170
      %v5341 = vpop.f32.mrb[0].mxu0
      %v5342 = vadd.f32 0.0, %v5341
      %v5343 = vpop.f32.mrb[0].mxu0
      %5344 = vmatprep.mubr.f32.mxu0 0.0
      %5345 = vmatmul.mubr.f32.gmra.mrb[0].mxu0 %v5173
      %v5346 = vpop.f32.mrb[0].mxu0
      %v5347 = vadd.f32 0.0, %v5346
      %v5348 = vpop.f32.mrb[0].mxu0
      %5349 = vmatprep.mubr.f32.mxu0 0.0
      %5350 = vmatmul.mubr.f32.gmra.mrb[0].mxu0 %v5176
      %v5351 = vpop.f32.mrb[0].mxu0
      %v5352 = vadd.f32 0.0, %v5351
      %v5353 = vpop.f32.mrb[0].mxu0
      %5354 = vmatprep.mubr.f32.mxu0 0.0
      %5355 = vmatmul.mubr.f32.gmra.mrb[0].mxu0 %v5179
      %v5356 = vpop.f32.mrb[0].mxu0
      %v5357 = vadd.f32 0.0, %v5356
      %v5358 = vpop.f32.mrb[0].mxu0
      %5359 = vmatprep.mubr.f32.mxu0 0.0
      %5360 = vmatmul.mubr.f32.gmra.mrb[0].mxu0 %v5182
      %v5361 = vpop.f32.mrb[0].mxu0
      %v5362 = vadd.f32 0.0, %v5361
      %v5363 = vpop.f32.mrb[0].mxu0
      %5364 = vmatprep.mubr.f32.mxu0 0.0
      %5365 = vmatmul.mubr.f32.gmra.mrb[0].mxu0 %v5185
      %v5366 = vpop.f32.mrb[0].mxu0
      %v5367 = vadd.f32 0.0, %v5366
      %v5368 = vpop.f32.mrb[0].mxu0
      %5369 = vmatprep.mubr.f32.mxu0 0.0
      %5370 = vmatmul.mubr.f32.gmra.mrb[0].mxu0 %v5188
      %v5371 = vpop.f32.mrb[0].mxu0
      %v5372 = vadd.f32 0.0, %v5371
      %v5373 = vpop.f32.mrb[0].mxu0
      %5374 = vmatprep.mubr.f32.mxu0 0.0
      %5375 = vmatmul.mubr.f32.gmra.mrb[0].mxu0 %v5191
      %v5376 = vpop.f32.mrb[0].mxu0
      %v5377 = vadd.f32 0.0, %v5376
      %v5378 = vpop.f32.mrb[0].mxu0
      %5379 = vmatprep.mubr.f32.mxu0 0.0
      %5380 = vmatmul.mubr.f32.gmra.mrb[0].mxu0 %v5194
      %v5381 = vpop.f32.mrb[0].mxu0
      %v5382 = vadd.f32 0.0, %v5381
      %v5383 = vpop.f32.mrb[0].mxu0
      %5384 = vmatprep.mubr.f32.mxu0 0.0
      %5385 = vmatmul.mubr.f32.gmra.mrb[0].mxu0 %v5197
      %v5386 = vpop.f32.mrb[0].mxu0
      %v5387 = vadd.f32 0.0, %v5386
      %v5388 = vpop.f32.mrb[0].mxu0
      %5389 = vmatprep.mubr.f32.mxu0 0.0
      %5390 = vmatmul.mubr.f32.gmra.mrb[0].mxu0 %v5200
      %v5391 = vpop.f32.mrb[0].mxu0
      %v5392 = vadd.f32 0.0, %v5391
      %v5393 = vpop.f32.mrb[0].mxu0
      %5394 = vmatprep.mubr.f32.mxu0 0.0
      %5395 = vmatmul.mubr.f32.gmra.mrb[0].mxu0 %v5203
      %v5396 = vpop.f32.mrb[0].mxu0
      %v5397 = vadd.f32 0.0, %v5396
      %v5398 = vpop.f32.mrb[0].mxu0
      %5399 = vmatprep.mubr.f32.mxu0 0.0
      %5400 = vmatmul.mubr.f32.gmra.mrb[0].mxu0 %v5206
      %v5401 = vpop.f32.mrb[0].mxu0
      %v5402 = vadd.f32 0.0, %v5401
      %v5403 = vpop.f32.mrb[0].mxu0
      %5404 = vmatprep.mubr.f32.mxu0 0.0
      %5405 = vmatmul.mubr.f32.gmra.mrb[0].mxu0 %v5209
      %v5406 = vpop.f32.mrb[0].mxu0
      %v5407 = vadd.f32 0.0, %v5406
      %v5408 = vpop.f32.mrb[0].mxu0
      %5409 = vmatprep.mubr.f32.mxu0 0.0
      %5410 = vmatmul.mubr.f32.gmra.mrb[0].mxu0 %v5212
      %v5411 = vpop.f32.mrb[0].mxu0
      %v5412 = vadd.f32 0.0, %v5411
      %v5413 = vpop.f32.mrb[0].mxu0
      %5414 = vmatprep.mubr.f32.mxu0 0.0
      %5415 = vmatmul.mubr.f32.gmra.mrb[0].mxu0 %v5215
      %v5416 = vpop.f32.mrb[0].mxu0
      %v5417 = vadd.f32 0.0, %v5416
      %v5418 = vpop.f32.mrb[0].mxu0
      %5419 = vmatprep.mubr.f32.mxu0 0.0
      %5420 = vmatmul.mubr.f32.gmra.mrb[0].mxu0 %v5218
      %v5421 = vpop.f32.mrb[0].mxu0
      %v5422 = vadd.f32 0.0, %v5421
      %v5423 = vpop.f32.mrb[0].mxu0
      %5424 = vmatprep.mubr.f32.mxu0 0.0
      %5425 = vmatmul.mubr.f32.gmra.mrb[0].mxu0 %v5221
      %v5426 = vpop.f32.mrb[0].mxu0
      %v5427 = vadd.f32 0.0, %v5426
      %v5428 = vpop.f32.mrb[0].mxu0
      %5429 = vmatprep.mubr.f32.mxu0 0.0
      %5430 = vmatmul.mubr.f32.gmra.mrb[0].mxu0 %v5224
      %v5431 = vpop.f32.mrb[0].mxu0
      %v5432 = vadd.f32 0.0, %v5431
      %v5433 = vpop.f32.mrb[0].mxu0
      %5434 = vmatprep.mubr.f32.mxu0 0.0
      %5435 = vmatmul.mubr.f32.gmra.mrb[0].mxu0 %v5227
      %v5436 = vpop.f32.mrb[0].mxu0
      %v5437 = vadd.f32 0.0, %v5436
      %v5438 = vpop.f32.mrb[0].mxu0
      %5439 = vmatprep.mubr.f32.mxu0 0.0
      %5440 = vmatmul.mubr.f32.gmra.mrb[0].mxu0 %v5230
      %v5441 = vpop.f32.mrb[0].mxu0
      %v5442 = vadd.f32 0.0, %v5441
      %v5443 = vpop.f32.mrb[0].mxu0
      %5444 = vmatprep.mubr.f32.mxu0 0.0
      %5445 = vmatmul.mubr.f32.gmra.mrb[0].mxu0 %v5233
      %v5446 = vpop.f32.mrb[0].mxu0
      %v5447 = vadd.f32 0.0, %v5446
      %v5448 = vpop.f32.mrb[0].mxu0
      %5449 = vmatprep.mubr.f32.mxu0 0.0
      %5450 = vmatmul.mubr.f32.gmra.mrb[0].mxu0 %v5236
      %v5451 = vpop.f32.mrb[0].mxu0
      %v5452 = vadd.f32 0.0, %v5451
      %v5453 = vpop.f32.mrb[0].mxu0
      %5454 = vmatprep.mubr.f32.mxu0 0.0
      %5455 = vmatmul.mubr.f32.gmra.mrb[0].mxu0 %v5239
      %v5456 = vpop.f32.mrb[0].mxu0
      %v5457 = vadd.f32 0.0, %v5456
      %v5458 = vpop.f32.mrb[0].mxu0
      %5459 = vmatprep.mubr.f32.mxu0 0.0
      %5460 = vmatmul.mubr.f32.gmra.mrb[0].mxu0 %v5242
      %v5461 = vpop.f32.mrb[0].mxu0
      %v5462 = vadd.f32 0.0, %v5461
      %v5463 = vpop.f32.mrb[0].mxu0
      %5464 = vmatprep.mubr.f32.mxu0 0.0
      %5465 = vmatmul.mubr.f32.gmra.mrb[0].mxu0 %v5245
      %v5466 = vpop.f32.mrb[0].mxu0
      %v5467 = vadd.f32 0.0, %v5466
      %v5468 = vpop.f32.mrb[0].mxu0
      %5469 = vmatprep.mubr.f32.mxu0 0.0
      %5470 = vmatmul.mubr.f32.gmra.mrb[0].mxu0 %v5248
      %v5471 = vpop.f32.mrb[0].mxu0
      %v5472 = vadd.f32 0.0, %v5471
      %v5473 = vpop.f32.mrb[0].mxu0
      %5474 = vdwg.mxu0
      %v5475 = vadd.f32 %v5120, %v5317
      %v5476 = vadd.f32 %v5121, %v5322
      %v5477 = vadd.f32 %v5122, %v5327
      %v5478 = vadd.f32 %v5123, %v5332
      %v5479 = vadd.f32 %v5124, %v5337
      %v5480 = vadd.f32 %v5125, %v5342
      %v5481 = vadd.f32 %v5126, %v5347
      %v5482 = vadd.f32 %v5127, %v5352
      %v5483 = vadd.f32 %v5128, %v5357
      %v5484 = vadd.f32 %v5129, %v5362
      %v5485 = vadd.f32 %v5130, %v5367
      %v5486 = vadd.f32 %v5131, %v5372
      %v5487 = vadd.f32 %v5132, %v5377
      %v5488 = vadd.f32 %v5133, %v5382
      %v5489 = vadd.f32 %v5134, %v5387
      %v5490 = vadd.f32 %v5135, %v5392
      %v5491 = vadd.f32 %v5136, %v5397
      %v5492 = vadd.f32 %v5137, %v5402
      %v5493 = vadd.f32 %v5138, %v5407
      %v5494 = vadd.f32 %v5139, %v5412
      %v5495 = vadd.f32 %v5140, %v5417
      %v5496 = vadd.f32 %v5141, %v5422
      %v5497 = vadd.f32 %v5142, %v5427
      %v5498 = vadd.f32 %v5143, %v5432
      %v5499 = vadd.f32 %v5144, %v5437
      %v5500 = vadd.f32 %v5145, %v5442
      %v5501 = vadd.f32 %v5146, %v5447
      %v5502 = vadd.f32 %v5147, %v5452
      %v5503 = vadd.f32 %v5148, %v5457
      %v5504 = vadd.f32 %v5149, %v5462
      %v5505 = vadd.f32 %v5150, %v5467
      %v5506 = vadd.f32 %v5151, %v5472
      %5507 = vst.msk [vmem:[#allocation4] sm:$0xff] %vm269, %v5475
      %5508 = vst.msk [vmem:[#allocation4 + $0x8] sm:$0xff] %vm269, %v5476
      %5509 = vst.msk [vmem:[#allocation4 + $0x10] sm:$0xff] %vm269, %v5477
      %5510 = vst.msk [vmem:[#allocation4 + $0x18] sm:$0xff] %vm269, %v5478
      %5511 = vst.msk [vmem:[#allocation4 + $0x20] sm:$0xff] %vm269, %v5479
      %5512 = vst.msk [vmem:[#allocation4 + $0x28] sm:$0xff] %vm269, %v5480
      %5513 = vst.msk [vmem:[#allocation4 + $0x30] sm:$0xff] %vm269, %v5481
      %5514 = vst.msk [vmem:[#allocation4 + $0x38] sm:$0xff] %vm269, %v5482
      %5515 = vst.msk [vmem:[#allocation4 + $0x40] sm:$0xff] %vm269, %v5483
      %5516 = vst.msk [vmem:[#allocation4 + $0x48] sm:$0xff] %vm269, %v5484
      %5517 = vst.msk [vmem:[#allocation4 + $0x50] sm:$0xff] %vm269, %v5485
      %5518 = vst.msk [vmem:[#allocation4 + $0x58] sm:$0xff] %vm269, %v5486
      %5519 = vst.msk [vmem:[#allocation4 + $0x60] sm:$0xff] %vm269, %v5487
      %5520 = vst.msk [vmem:[#allocation4 + $0x68] sm:$0xff] %vm269, %v5488
      %5521 = vst.msk [vmem:[#allocation4 + $0x70] sm:$0xff] %vm269, %v5489
      %5522 = vst.msk [vmem:[#allocation4 + $0x78] sm:$0xff] %vm269, %v5490
      %5523 = vst.msk [vmem:[#allocation4 + $0x80] sm:$0xff] %vm269, %v5491
      %5524 = vst.msk [vmem:[#allocation4 + $0x88] sm:$0xff] %vm269, %v5492
      %5525 = vst.msk [vmem:[#allocation4 + $0x90] sm:$0xff] %vm269, %v5493
      %5526 = vst.msk [vmem:[#allocation4 + $0x98] sm:$0xff] %vm269, %v5494
      %5527 = vst.msk [vmem:[#allocation4 + $0xa0] sm:$0xff] %vm269, %v5495
      %5528 = vst.msk [vmem:[#allocation4 + $0xa8] sm:$0xff] %vm269, %v5496
      %5529 = vst.msk [vmem:[#allocation4 + $0xb0] sm:$0xff] %vm269, %v5497
      %5530 = vst.msk [vmem:[#allocation4 + $0xb8] sm:$0xff] %vm269, %v5498
      %5531 = vst.msk [vmem:[#allocation4 + $0xc0] sm:$0xff] %vm269, %v5499
      %5532 = vst.msk [vmem:[#allocation4 + $0xc8] sm:$0xff] %vm269, %v5500
      %5533 = vst.msk [vmem:[#allocation4 + $0xd0] sm:$0xff] %vm269, %v5501
      %5534 = vst.msk [vmem:[#allocation4 + $0xd8] sm:$0xff] %vm269, %v5502
      %5535 = vst.msk [vmem:[#allocation4 + $0xe0] sm:$0xff] %vm269, %v5503
      %5536 = vst.msk [vmem:[#allocation4 + $0xe8] sm:$0xff] %vm269, %v5504
      %5537 = vst.msk [vmem:[#allocation4 + $0xf0] sm:$0xff] %vm269, %v5505
      %5538 = vst.msk [vmem:[#allocation4 + $0xf8] sm:$0xff] %vm269, %v5506
      %v5539 = vld [vmem:[#allocation3 + $0x9] sm:$0xff]
      %v5540 = vld [vmem:[#allocation3 + $0x11] sm:$0xff]
      %v5541 = vld [vmem:[#allocation3 + $0x29] sm:$0xff]
      %v5542 = vld [vmem:[#allocation3 + $0x31] sm:$0xff]
      %v5543 = vld [vmem:[#allocation3 + $0x49] sm:$0xff]
      %v5544 = vld [vmem:[#allocation3 + $0x51] sm:$0xff]
      %v5545 = vld [vmem:[#allocation3 + $0x69] sm:$0xff]
      %v5546 = vld [vmem:[#allocation3 + $0x71] sm:$0xff]
      %v5547 = vld [vmem:[#allocation3 + $0x89] sm:$0xff]
      %v5548 = vld [vmem:[#allocation3 + $0x91] sm:$0xff]
      %v5549 = vld [vmem:[#allocation3 + $0xa9] sm:$0xff]
      %v5550 = vld [vmem:[#allocation3 + $0xb1] sm:$0xff]
      %v5551 = vld [vmem:[#allocation3 + $0xc9] sm:$0xff]
      %v5552 = vld [vmem:[#allocation3 + $0xd1] sm:$0xff]
      %v5553 = vld [vmem:[#allocation3 + $0xe9] sm:$0xff]
      %v5554 = vld [vmem:[#allocation3 + $0xf1] sm:$0xff]
      %v5555 = vld [vmem:[#allocation3 + $0x109] sm:$0xff]
      %v5556 = vld [vmem:[#allocation3 + $0x111] sm:$0xff]
      %v5557 = vld [vmem:[#allocation3 + $0x129] sm:$0xff]
      %v5558 = vld [vmem:[#allocation3 + $0x131] sm:$0xff]
      %v5559 = vld [vmem:[#allocation3 + $0x149] sm:$0xff]
      %v5560 = vld [vmem:[#allocation3 + $0x151] sm:$0xff]
      %v5561 = vld [vmem:[#allocation3 + $0x169] sm:$0xff]
      %v5562 = vld [vmem:[#allocation3 + $0x171] sm:$0xff]
      %v5563 = vld [vmem:[#allocation3 + $0x189] sm:$0xff]
      %v5564 = vld [vmem:[#allocation3 + $0x191] sm:$0xff]
      %v5565 = vld [vmem:[#allocation3 + $0x1a9] sm:$0xff]
      %v5566 = vld [vmem:[#allocation3 + $0x1b1] sm:$0xff]
      %v5567 = vld [vmem:[#allocation3 + $0x1c9] sm:$0xff]
      %v5568 = vld [vmem:[#allocation3 + $0x1d1] sm:$0xff]
      %v5569 = vld [vmem:[#allocation3 + $0x1e9] sm:$0xff]
      %v5570 = vld [vmem:[#allocation3 + $0x1f1] sm:$0xff]
      %v5571 = vld [vmem:[#allocation4] sm:$0xff]
      %v5572 = vld [vmem:[#allocation4 + $0x8] sm:$0xff]
      %v5573 = vld [vmem:[#allocation4 + $0x10] sm:$0xff]
      %v5574 = vld [vmem:[#allocation4 + $0x18] sm:$0xff]
      %v5575 = vld [vmem:[#allocation4 + $0x20] sm:$0xff]
      %v5576 = vld [vmem:[#allocation4 + $0x28] sm:$0xff]
      %v5577 = vld [vmem:[#allocation4 + $0x30] sm:$0xff]
      %v5578 = vld [vmem:[#allocation4 + $0x38] sm:$0xff]
      %v5579 = vld [vmem:[#allocation4 + $0x40] sm:$0xff]
      %v5580 = vld [vmem:[#allocation4 + $0x48] sm:$0xff]
      %v5581 = vld [vmem:[#allocation4 + $0x50] sm:$0xff]
      %v5582 = vld [vmem:[#allocation4 + $0x58] sm:$0xff]
      %v5583 = vld [vmem:[#allocation4 + $0x60] sm:$0xff]
      %v5584 = vld [vmem:[#allocation4 + $0x68] sm:$0xff]
      %v5585 = vld [vmem:[#allocation4 + $0x70] sm:$0xff]
      %v5586 = vld [vmem:[#allocation4 + $0x78] sm:$0xff]
      %v5587 = vld [vmem:[#allocation4 + $0x80] sm:$0xff]
      %v5588 = vld [vmem:[#allocation4 + $0x88] sm:$0xff]
      %v5589 = vld [vmem:[#allocation4 + $0x90] sm:$0xff]
      %v5590 = vld [vmem:[#allocation4 + $0x98] sm:$0xff]
      %v5591 = vld [vmem:[#allocation4 + $0xa0] sm:$0xff]
      %v5592 = vld [vmem:[#allocation4 + $0xa8] sm:$0xff]
      %v5593 = vld [vmem:[#allocation4 + $0xb0] sm:$0xff]
      %v5594 = vld [vmem:[#allocation4 + $0xb8] sm:$0xff]
      %v5595 = vld [vmem:[#allocation4 + $0xc0] sm:$0xff]
      %v5596 = vld [vmem:[#allocation4 + $0xc8] sm:$0xff]
      %v5597 = vld [vmem:[#allocation4 + $0xd0] sm:$0xff]
      %v5598 = vld [vmem:[#allocation4 + $0xd8] sm:$0xff]
      %v5599 = vld [vmem:[#allocation4 + $0xe0] sm:$0xff]
      %v5600 = vld [vmem:[#allocation4 + $0xe8] sm:$0xff]
      %v5601 = vld [vmem:[#allocation4 + $0xf0] sm:$0xff]
      %v5602 = vld [vmem:[#allocation4 + $0xf8] sm:$0xff]
      %s5603 = scalar_lea.vmem %s3, 16
      %v5604 = vld [vmem:[%s5603] sm:$0xff]
      %v5606 = vsel %vm269, %v5539, 0
      %v5609 = vsel %vm269, %v5540, 0
      %v5612 = vsel %vm269, %v5541, 0
      %v5615 = vsel %vm269, %v5542, 0
      %v5618 = vsel %vm269, %v5543, 0
      %v5621 = vsel %vm269, %v5544, 0
      %v5624 = vsel %vm269, %v5545, 0
      %v5627 = vsel %vm269, %v5546, 0
      %v5630 = vsel %vm269, %v5547, 0
      %v5633 = vsel %vm269, %v5548, 0
      %v5636 = vsel %vm269, %v5549, 0
      %v5639 = vsel %vm269, %v5550, 0
      %v5642 = vsel %vm269, %v5551, 0
      %v5645 = vsel %vm269, %v5552, 0
      %v5648 = vsel %vm269, %v5553, 0
      %v5651 = vsel %vm269, %v5554, 0
      %v5654 = vsel %vm269, %v5555, 0
      %v5657 = vsel %vm269, %v5556, 0
      %v5660 = vsel %vm269, %v5557, 0
      %v5663 = vsel %vm269, %v5558, 0
      %v5666 = vsel %vm269, %v5559, 0
      %v5669 = vsel %vm269, %v5560, 0
      %v5672 = vsel %vm269, %v5561, 0
      %v5675 = vsel %vm269, %v5562, 0
      %v5678 = vsel %vm269, %v5563, 0
      %v5681 = vsel %vm269, %v5564, 0
      %v5684 = vsel %vm269, %v5565, 0
      %v5687 = vsel %vm269, %v5566, 0
      %v5690 = vsel %vm269, %v5567, 0
      %v5693 = vsel %vm269, %v5568, 0
      %v5696 = vsel %vm269, %v5569, 0
      %v5699 = vsel %vm269, %v5570, 0
      %5701 = vmatprep.subr.mxu0 0.0
      %5702 = vmatpush1.msra.mxu0 %v5604
      %5703 = vmatprep.subr.mxu0 0.0
      %5704 = vmatpush1.msra.mxu0 0.0
      %5705 = vmatprep.subr.mxu0 0.0
      %5706 = vmatpush1.msra.mxu0 0.0
      %5707 = vmatprep.subr.mxu0 0.0
      %5708 = vmatpush1.msra.mxu0 0.0
      %5709 = vmatprep.subr.mxu0 0.0
      %5710 = vmatpush1.msra.mxu0 0.0
      %5711 = vmatprep.subr.mxu0 0.0
      %5712 = vmatpush1.msra.mxu0 0.0
      %5713 = vmatprep.subr.mxu0 0.0
      %5714 = vmatpush1.msra.mxu0 0.0
      %5715 = vmatprep.subr.mxu0 0.0
      %5716 = vmatpush1.msra.mxu0 0.0
      %5717 = vmatprep.subr.mxu0 0.0
      %5718 = vmatpush1.msra.mxu0 0.0
      %5719 = vmatprep.subr.mxu0 0.0
      %5720 = vmatpush1.msra.mxu0 0.0
      %5721 = vmatprep.subr.mxu0 0.0
      %5722 = vmatpush1.msra.mxu0 0.0
      %5723 = vmatprep.subr.mxu0 0.0
      %5724 = vmatpush1.msra.mxu0 0.0
      %5725 = vmatprep.subr.mxu0 0.0
      %5726 = vmatpush1.msra.mxu0 0.0
      %5727 = vmatprep.subr.mxu0 0.0
      %5728 = vmatpush1.msra.mxu0 0.0
      %5729 = vmatprep.subr.mxu0 0.0
      %5730 = vmatpush1.msra.mxu0 0.0
      %5731 = vmatprep.subr.mxu0 0.0
      %5732 = vmatpush1.msra.mxu0 0.0
      %5733 = vmatprep.subr.mxu0 0.0
      %5734 = vmatpush1.msra.mxu0 0.0
      %5735 = vmatprep.subr.mxu0 0.0
      %5736 = vmatpush1.msra.mxu0 0.0
      %5737 = vmatprep.subr.mxu0 0.0
      %5738 = vmatpush1.msra.mxu0 0.0
      %5739 = vmatprep.subr.mxu0 0.0
      %5740 = vmatpush1.msra.mxu0 0.0
      %5741 = vmatprep.subr.mxu0 0.0
      %5742 = vmatpush1.msra.mxu0 0.0
      %5743 = vmatprep.subr.mxu0 0.0
      %5744 = vmatpush1.msra.mxu0 0.0
      %5745 = vmatprep.subr.mxu0 0.0
      %5746 = vmatpush1.msra.mxu0 0.0
      %5747 = vmatprep.subr.mxu0 0.0
      %5748 = vmatpush1.msra.mxu0 0.0
      %5749 = vmatprep.subr.mxu0 0.0
      %5750 = vmatpush1.msra.mxu0 0.0
      %5751 = vmatprep.subr.mxu0 0.0
      %5752 = vmatpush1.msra.mxu0 0.0
      %5753 = vmatprep.subr.mxu0 0.0
      %5754 = vmatpush1.msra.mxu0 0.0
      %5755 = vmatprep.subr.mxu0 0.0
      %5756 = vmatpush1.msra.mxu0 0.0
      %5757 = vmatprep.subr.mxu0 0.0
      %5758 = vmatpush1.msra.mxu0 0.0
      %5759 = vmatprep.subr.mxu0 0.0
      %5760 = vmatpush1.msra.mxu0 0.0
      %5761 = vmatprep.subr.mxu0 0.0
      %5762 = vmatpush1.msra.mxu0 0.0
      %5763 = vmatprep.subr.mxu0 0.0
      %5764 = vmatpush1.msra.mxu0 0.0
      %5765 = vmatprep.mubr.f32.mxu0 0.0
      %5766 = vmatmul.mubr.f32.gmra.mrb[0].mxu0 %v5606
      %v5767 = vpop.f32.mrb[0].mxu0
      %v5768 = vadd.f32 0.0, %v5767
      %v5769 = vpop.f32.mrb[0].mxu0
      %5770 = vmatprep.mubr.f32.mxu0 0.0
      %5771 = vmatmul.mubr.f32.gmra.mrb[0].mxu0 %v5609
      %v5772 = vpop.f32.mrb[0].mxu0
      %v5773 = vadd.f32 0.0, %v5772
      %v5774 = vpop.f32.mrb[0].mxu0
      %5775 = vmatprep.mubr.f32.mxu0 0.0
      %5776 = vmatmul.mubr.f32.gmra.mrb[0].mxu0 %v5612
      %v5777 = vpop.f32.mrb[0].mxu0
      %v5778 = vadd.f32 0.0, %v5777
      %v5779 = vpop.f32.mrb[0].mxu0
      %5780 = vmatprep.mubr.f32.mxu0 0.0
      %5781 = vmatmul.mubr.f32.gmra.mrb[0].mxu0 %v5615
      %v5782 = vpop.f32.mrb[0].mxu0
      %v5783 = vadd.f32 0.0, %v5782
      %v5784 = vpop.f32.mrb[0].mxu0
      %5785 = vmatprep.mubr.f32.mxu0 0.0
      %5786 = vmatmul.mubr.f32.gmra.mrb[0].mxu0 %v5618
      %v5787 = vpop.f32.mrb[0].mxu0
      %v5788 = vadd.f32 0.0, %v5787
      %v5789 = vpop.f32.mrb[0].mxu0
      %5790 = vmatprep.mubr.f32.mxu0 0.0
      %5791 = vmatmul.mubr.f32.gmra.mrb[0].mxu0 %v5621
      %v5792 = vpop.f32.mrb[0].mxu0
      %v5793 = vadd.f32 0.0, %v5792
      %v5794 = vpop.f32.mrb[0].mxu0
      %5795 = vmatprep.mubr.f32.mxu0 0.0
      %5796 = vmatmul.mubr.f32.gmra.mrb[0].mxu0 %v5624
      %v5797 = vpop.f32.mrb[0].mxu0
      %v5798 = vadd.f32 0.0, %v5797
      %v5799 = vpop.f32.mrb[0].mxu0
      %5800 = vmatprep.mubr.f32.mxu0 0.0
      %5801 = vmatmul.mubr.f32.gmra.mrb[0].mxu0 %v5627
      %v5802 = vpop.f32.mrb[0].mxu0
      %v5803 = vadd.f32 0.0, %v5802
      %v5804 = vpop.f32.mrb[0].mxu0
      %5805 = vmatprep.mubr.f32.mxu0 0.0
      %5806 = vmatmul.mubr.f32.gmra.mrb[0].mxu0 %v5630
      %v5807 = vpop.f32.mrb[0].mxu0
      %v5808 = vadd.f32 0.0, %v5807
      %v5809 = vpop.f32.mrb[0].mxu0
      %5810 = vmatprep.mubr.f32.mxu0 0.0
      %5811 = vmatmul.mubr.f32.gmra.mrb[0].mxu0 %v5633
      %v5812 = vpop.f32.mrb[0].mxu0
      %v5813 = vadd.f32 0.0, %v5812
      %v5814 = vpop.f32.mrb[0].mxu0
      %5815 = vmatprep.mubr.f32.mxu0 0.0
      %5816 = vmatmul.mubr.f32.gmra.mrb[0].mxu0 %v5636
      %v5817 = vpop.f32.mrb[0].mxu0
      %v5818 = vadd.f32 0.0, %v5817
      %v5819 = vpop.f32.mrb[0].mxu0
      %5820 = vmatprep.mubr.f32.mxu0 0.0
      %5821 = vmatmul.mubr.f32.gmra.mrb[0].mxu0 %v5639
      %v5822 = vpop.f32.mrb[0].mxu0
      %v5823 = vadd.f32 0.0, %v5822
      %v5824 = vpop.f32.mrb[0].mxu0
      %5825 = vmatprep.mubr.f32.mxu0 0.0
      %5826 = vmatmul.mubr.f32.gmra.mrb[0].mxu0 %v5642
      %v5827 = vpop.f32.mrb[0].mxu0
      %v5828 = vadd.f32 0.0, %v5827
      %v5829 = vpop.f32.mrb[0].mxu0
      %5830 = vmatprep.mubr.f32.mxu0 0.0
      %5831 = vmatmul.mubr.f32.gmra.mrb[0].mxu0 %v5645
      %v5832 = vpop.f32.mrb[0].mxu0
      %v5833 = vadd.f32 0.0, %v5832
      %v5834 = vpop.f32.mrb[0].mxu0
      %5835 = vmatprep.mubr.f32.mxu0 0.0
      %5836 = vmatmul.mubr.f32.gmra.mrb[0].mxu0 %v5648
      %v5837 = vpop.f32.mrb[0].mxu0
      %v5838 = vadd.f32 0.0, %v5837
      %v5839 = vpop.f32.mrb[0].mxu0
      %5840 = vmatprep.mubr.f32.mxu0 0.0
      %5841 = vmatmul.mubr.f32.gmra.mrb[0].mxu0 %v5651
      %v5842 = vpop.f32.mrb[0].mxu0
      %v5843 = vadd.f32 0.0, %v5842
      %v5844 = vpop.f32.mrb[0].mxu0
      %5845 = vmatprep.mubr.f32.mxu0 0.0
      %5846 = vmatmul.mubr.f32.gmra.mrb[0].mxu0 %v5654
      %v5847 = vpop.f32.mrb[0].mxu0
      %v5848 = vadd.f32 0.0, %v5847
      %v5849 = vpop.f32.mrb[0].mxu0
      %5850 = vmatprep.mubr.f32.mxu0 0.0
      %5851 = vmatmul.mubr.f32.gmra.mrb[0].mxu0 %v5657
      %v5852 = vpop.f32.mrb[0].mxu0
      %v5853 = vadd.f32 0.0, %v5852
      %v5854 = vpop.f32.mrb[0].mxu0
      %5855 = vmatprep.mubr.f32.mxu0 0.0
      %5856 = vmatmul.mubr.f32.gmra.mrb[0].mxu0 %v5660
      %v5857 = vpop.f32.mrb[0].mxu0
      %v5858 = vadd.f32 0.0, %v5857
      %v5859 = vpop.f32.mrb[0].mxu0
      %5860 = vmatprep.mubr.f32.mxu0 0.0
      %5861 = vmatmul.mubr.f32.gmra.mrb[0].mxu0 %v5663
      %v5862 = vpop.f32.mrb[0].mxu0
      %v5863 = vadd.f32 0.0, %v5862
      %v5864 = vpop.f32.mrb[0].mxu0
      %5865 = vmatprep.mubr.f32.mxu0 0.0
      %5866 = vmatmul.mubr.f32.gmra.mrb[0].mxu0 %v5666
      %v5867 = vpop.f32.mrb[0].mxu0
      %v5868 = vadd.f32 0.0, %v5867
      %v5869 = vpop.f32.mrb[0].mxu0
      %5870 = vmatprep.mubr.f32.mxu0 0.0
      %5871 = vmatmul.mubr.f32.gmra.mrb[0].mxu0 %v5669
      %v5872 = vpop.f32.mrb[0].mxu0
      %v5873 = vadd.f32 0.0, %v5872
      %v5874 = vpop.f32.mrb[0].mxu0
      %5875 = vmatprep.mubr.f32.mxu0 0.0
      %5876 = vmatmul.mubr.f32.gmra.mrb[0].mxu0 %v5672
      %v5877 = vpop.f32.mrb[0].mxu0
      %v5878 = vadd.f32 0.0, %v5877
      %v5879 = vpop.f32.mrb[0].mxu0
      %5880 = vmatprep.mubr.f32.mxu0 0.0
      %5881 = vmatmul.mubr.f32.gmra.mrb[0].mxu0 %v5675
      %v5882 = vpop.f32.mrb[0].mxu0
      %v5883 = vadd.f32 0.0, %v5882
      %v5884 = vpop.f32.mrb[0].mxu0
      %5885 = vmatprep.mubr.f32.mxu0 0.0
      %5886 = vmatmul.mubr.f32.gmra.mrb[0].mxu0 %v5678
      %v5887 = vpop.f32.mrb[0].mxu0
      %v5888 = vadd.f32 0.0, %v5887
      %v5889 = vpop.f32.mrb[0].mxu0
      %5890 = vmatprep.mubr.f32.mxu0 0.0
      %5891 = vmatmul.mubr.f32.gmra.mrb[0].mxu0 %v5681
      %v5892 = vpop.f32.mrb[0].mxu0
      %v5893 = vadd.f32 0.0, %v5892
      %v5894 = vpop.f32.mrb[0].mxu0
      %5895 = vmatprep.mubr.f32.mxu0 0.0
      %5896 = vmatmul.mubr.f32.gmra.mrb[0].mxu0 %v5684
      %v5897 = vpop.f32.mrb[0].mxu0
      %v5898 = vadd.f32 0.0, %v5897
      %v5899 = vpop.f32.mrb[0].mxu0
      %5900 = vmatprep.mubr.f32.mxu0 0.0
      %5901 = vmatmul.mubr.f32.gmra.mrb[0].mxu0 %v5687
      %v5902 = vpop.f32.mrb[0].mxu0
      %v5903 = vadd.f32 0.0, %v5902
      %v5904 = vpop.f32.mrb[0].mxu0
      %5905 = vmatprep.mubr.f32.mxu0 0.0
      %5906 = vmatmul.mubr.f32.gmra.mrb[0].mxu0 %v5690
      %v5907 = vpop.f32.mrb[0].mxu0
      %v5908 = vadd.f32 0.0, %v5907
      %v5909 = vpop.f32.mrb[0].mxu0
      %5910 = vmatprep.mubr.f32.mxu0 0.0
      %5911 = vmatmul.mubr.f32.gmra.mrb[0].mxu0 %v5693
      %v5912 = vpop.f32.mrb[0].mxu0
      %v5913 = vadd.f32 0.0, %v5912
      %v5914 = vpop.f32.mrb[0].mxu0
      %5915 = vmatprep.mubr.f32.mxu0 0.0
      %5916 = vmatmul.mubr.f32.gmra.mrb[0].mxu0 %v5696
      %v5917 = vpop.f32.mrb[0].mxu0
      %v5918 = vadd.f32 0.0, %v5917
      %v5919 = vpop.f32.mrb[0].mxu0
      %5920 = vmatprep.mubr.f32.mxu0 0.0
      %5921 = vmatmul.mubr.f32.gmra.mrb[0].mxu0 %v5699
      %v5922 = vpop.f32.mrb[0].mxu0
      %v5923 = vadd.f32 0.0, %v5922
      %v5924 = vpop.f32.mrb[0].mxu0
      %5925 = vdwg.mxu0
      %v5926 = vadd.f32 %v5571, %v5768
      %v5927 = vadd.f32 %v5572, %v5773
      %v5928 = vadd.f32 %v5573, %v5778
      %v5929 = vadd.f32 %v5574, %v5783
      %v5930 = vadd.f32 %v5575, %v5788
      %v5931 = vadd.f32 %v5576, %v5793
      %v5932 = vadd.f32 %v5577, %v5798
      %v5933 = vadd.f32 %v5578, %v5803
      %v5934 = vadd.f32 %v5579, %v5808
      %v5935 = vadd.f32 %v5580, %v5813
      %v5936 = vadd.f32 %v5581, %v5818
      %v5937 = vadd.f32 %v5582, %v5823
      %v5938 = vadd.f32 %v5583, %v5828
      %v5939 = vadd.f32 %v5584, %v5833
      %v5940 = vadd.f32 %v5585, %v5838
      %v5941 = vadd.f32 %v5586, %v5843
      %v5942 = vadd.f32 %v5587, %v5848
      %v5943 = vadd.f32 %v5588, %v5853
      %v5944 = vadd.f32 %v5589, %v5858
      %v5945 = vadd.f32 %v5590, %v5863
      %v5946 = vadd.f32 %v5591, %v5868
      %v5947 = vadd.f32 %v5592, %v5873
      %v5948 = vadd.f32 %v5593, %v5878
      %v5949 = vadd.f32 %v5594, %v5883
      %v5950 = vadd.f32 %v5595, %v5888
      %v5951 = vadd.f32 %v5596, %v5893
      %v5952 = vadd.f32 %v5597, %v5898
      %v5953 = vadd.f32 %v5598, %v5903
      %v5954 = vadd.f32 %v5599, %v5908
      %v5955 = vadd.f32 %v5600, %v5913
      %v5956 = vadd.f32 %v5601, %v5918
      %v5957 = vadd.f32 %v5602, %v5923
      %5958 = vst.msk [vmem:[#allocation4] sm:$0xff] %vm269, %v5926
      %5959 = vst.msk [vmem:[#allocation4 + $0x8] sm:$0xff] %vm269, %v5927
      %5960 = vst.msk [vmem:[#allocation4 + $0x10] sm:$0xff] %vm269, %v5928
      %5961 = vst.msk [vmem:[#allocation4 + $0x18] sm:$0xff] %vm269, %v5929
      %5962 = vst.msk [vmem:[#allocation4 + $0x20] sm:$0xff] %vm269, %v5930
      %5963 = vst.msk [vmem:[#allocation4 + $0x28] sm:$0xff] %vm269, %v5931
      %5964 = vst.msk [vmem:[#allocation4 + $0x30] sm:$0xff] %vm269, %v5932
      %5965 = vst.msk [vmem:[#allocation4 + $0x38] sm:$0xff] %vm269, %v5933
      %5966 = vst.msk [vmem:[#allocation4 + $0x40] sm:$0xff] %vm269, %v5934
      %5967 = vst.msk [vmem:[#allocation4 + $0x48] sm:$0xff] %vm269, %v5935
      %5968 = vst.msk [vmem:[#allocation4 + $0x50] sm:$0xff] %vm269, %v5936
      %5969 = vst.msk [vmem:[#allocation4 + $0x58] sm:$0xff] %vm269, %v5937
      %5970 = vst.msk [vmem:[#allocation4 + $0x60] sm:$0xff] %vm269, %v5938
      %5971 = vst.msk [vmem:[#allocation4 + $0x68] sm:$0xff] %vm269, %v5939
      %5972 = vst.msk [vmem:[#allocation4 + $0x70] sm:$0xff] %vm269, %v5940
      %5973 = vst.msk [vmem:[#allocation4 + $0x78] sm:$0xff] %vm269, %v5941
      %5974 = vst.msk [vmem:[#allocation4 + $0x80] sm:$0xff] %vm269, %v5942
      %5975 = vst.msk [vmem:[#allocation4 + $0x88] sm:$0xff] %vm269, %v5943
      %5976 = vst.msk [vmem:[#allocation4 + $0x90] sm:$0xff] %vm269, %v5944
      %5977 = vst.msk [vmem:[#allocation4 + $0x98] sm:$0xff] %vm269, %v5945
      %5978 = vst.msk [vmem:[#allocation4 + $0xa0] sm:$0xff] %vm269, %v5946
      %5979 = vst.msk [vmem:[#allocation4 + $0xa8] sm:$0xff] %vm269, %v5947
      %5980 = vst.msk [vmem:[#allocation4 + $0xb0] sm:$0xff] %vm269, %v5948
      %5981 = vst.msk [vmem:[#allocation4 + $0xb8] sm:$0xff] %vm269, %v5949
      %5982 = vst.msk [vmem:[#allocation4 + $0xc0] sm:$0xff] %vm269, %v5950
      %5983 = vst.msk [vmem:[#allocation4 + $0xc8] sm:$0xff] %vm269, %v5951
      %5984 = vst.msk [vmem:[#allocation4 + $0xd0] sm:$0xff] %vm269, %v5952
      %5985 = vst.msk [vmem:[#allocation4 + $0xd8] sm:$0xff] %vm269, %v5953
      %5986 = vst.msk [vmem:[#allocation4 + $0xe0] sm:$0xff] %vm269, %v5954
      %5987 = vst.msk [vmem:[#allocation4 + $0xe8] sm:$0xff] %vm269, %v5955
      %5988 = vst.msk [vmem:[#allocation4 + $0xf0] sm:$0xff] %vm269, %v5956
      %5989 = vst.msk [vmem:[#allocation4 + $0xf8] sm:$0xff] %vm269, %v5957
      %v5990 = vld [vmem:[%s280 + $0x7] sm:$0xff]
      %v5991 = vld [vmem:[%s280 + $0xf] sm:$0xff]
      %v5992 = vld [vmem:[%s280 + $0x27] sm:$0xff]
      %v5993 = vld [vmem:[%s280 + $0x2f] sm:$0xff]
      %v5994 = vld [vmem:[%s280 + $0x47] sm:$0xff]
      %v5995 = vld [vmem:[%s280 + $0x4f] sm:$0xff]
      %v5996 = vld [vmem:[%s280 + $0x67] sm:$0xff]
      %v5997 = vld [vmem:[%s280 + $0x6f] sm:$0xff]
      %v5998 = vld [vmem:[%s280 + $0x87] sm:$0xff]
      %v5999 = vld [vmem:[%s280 + $0x8f] sm:$0xff]
      %v6000 = vld [vmem:[%s280 + $0xa7] sm:$0xff]
      %v6001 = vld [vmem:[%s280 + $0xaf] sm:$0xff]
      %v6002 = vld [vmem:[%s280 + $0xc7] sm:$0xff]
      %v6003 = vld [vmem:[%s280 + $0xcf] sm:$0xff]
      %v6004 = vld [vmem:[%s280 + $0xe7] sm:$0xff]
      %v6005 = vld [vmem:[%s280 + $0xef] sm:$0xff]
      %v6006 = vld [vmem:[%s280 + $0x107] sm:$0xff]
      %v6007 = vld [vmem:[%s280 + $0x10f] sm:$0xff]
      %v6008 = vld [vmem:[%s280 + $0x127] sm:$0xff]
      %v6009 = vld [vmem:[%s280 + $0x12f] sm:$0xff]
      %v6010 = vld [vmem:[%s280 + $0x147] sm:$0xff]
      %v6011 = vld [vmem:[%s280 + $0x14f] sm:$0xff]
      %v6012 = vld [vmem:[%s280 + $0x167] sm:$0xff]
      %v6013 = vld [vmem:[%s280 + $0x16f] sm:$0xff]
      %v6014 = vld [vmem:[%s280 + $0x187] sm:$0xff]
      %v6015 = vld [vmem:[%s280 + $0x18f] sm:$0xff]
      %v6016 = vld [vmem:[%s280 + $0x1a7] sm:$0xff]
      %v6017 = vld [vmem:[%s280 + $0x1af] sm:$0xff]
      %v6018 = vld [vmem:[%s280 + $0x1c7] sm:$0xff]
      %v6019 = vld [vmem:[%s280 + $0x1cf] sm:$0xff]
      %v6020 = vld [vmem:[%s280 + $0x1e7] sm:$0xff]
      %v6021 = vld [vmem:[%s280 + $0x1ef] sm:$0xff]
      %v6022 = vld [vmem:[#allocation4] sm:$0xff]
      %v6023 = vld [vmem:[#allocation4 + $0x8] sm:$0xff]
      %v6024 = vld [vmem:[#allocation4 + $0x10] sm:$0xff]
      %v6025 = vld [vmem:[#allocation4 + $0x18] sm:$0xff]
      %v6026 = vld [vmem:[#allocation4 + $0x20] sm:$0xff]
      %v6027 = vld [vmem:[#allocation4 + $0x28] sm:$0xff]
      %v6028 = vld [vmem:[#allocation4 + $0x30] sm:$0xff]
      %v6029 = vld [vmem:[#allocation4 + $0x38] sm:$0xff]
      %v6030 = vld [vmem:[#allocation4 + $0x40] sm:$0xff]
      %v6031 = vld [vmem:[#allocation4 + $0x48] sm:$0xff]
      %v6032 = vld [vmem:[#allocation4 + $0x50] sm:$0xff]
      %v6033 = vld [vmem:[#allocation4 + $0x58] sm:$0xff]
      %v6034 = vld [vmem:[#allocation4 + $0x60] sm:$0xff]
      %v6035 = vld [vmem:[#allocation4 + $0x68] sm:$0xff]
      %v6036 = vld [vmem:[#allocation4 + $0x70] sm:$0xff]
      %v6037 = vld [vmem:[#allocation4 + $0x78] sm:$0xff]
      %v6038 = vld [vmem:[#allocation4 + $0x80] sm:$0xff]
      %v6039 = vld [vmem:[#allocation4 + $0x88] sm:$0xff]
      %v6040 = vld [vmem:[#allocation4 + $0x90] sm:$0xff]
      %v6041 = vld [vmem:[#allocation4 + $0x98] sm:$0xff]
      %v6042 = vld [vmem:[#allocation4 + $0xa0] sm:$0xff]
      %v6043 = vld [vmem:[#allocation4 + $0xa8] sm:$0xff]
      %v6044 = vld [vmem:[#allocation4 + $0xb0] sm:$0xff]
      %v6045 = vld [vmem:[#allocation4 + $0xb8] sm:$0xff]
      %v6046 = vld [vmem:[#allocation4 + $0xc0] sm:$0xff]
      %v6047 = vld [vmem:[#allocation4 + $0xc8] sm:$0xff]
      %v6048 = vld [vmem:[#allocation4 + $0xd0] sm:$0xff]
      %v6049 = vld [vmem:[#allocation4 + $0xd8] sm:$0xff]
      %v6050 = vld [vmem:[#allocation4 + $0xe0] sm:$0xff]
      %v6051 = vld [vmem:[#allocation4 + $0xe8] sm:$0xff]
      %v6052 = vld [vmem:[#allocation4 + $0xf0] sm:$0xff]
      %v6053 = vld [vmem:[#allocation4 + $0xf8] sm:$0xff]
      %s6054 = scalar_lea.vmem %s3, 24
      %v6055 = vld [vmem:[%s6054] sm:$0xff]
      %v6057 = vsel %vm269, %v5990, 0
      %v6060 = vsel %vm269, %v5991, 0
      %v6063 = vsel %vm269, %v5992, 0
      %v6066 = vsel %vm269, %v5993, 0
      %v6069 = vsel %vm269, %v5994, 0
      %v6072 = vsel %vm269, %v5995, 0
      %v6075 = vsel %vm269, %v5996, 0
      %v6078 = vsel %vm269, %v5997, 0
      %v6081 = vsel %vm269, %v5998, 0
      %v6084 = vsel %vm269, %v5999, 0
      %v6087 = vsel %vm269, %v6000, 0
      %v6090 = vsel %vm269, %v6001, 0
      %v6093 = vsel %vm269, %v6002, 0
      %v6096 = vsel %vm269, %v6003, 0
      %v6099 = vsel %vm269, %v6004, 0
      %v6102 = vsel %vm269, %v6005, 0
      %v6105 = vsel %vm269, %v6006, 0
      %v6108 = vsel %vm269, %v6007, 0
      %v6111 = vsel %vm269, %v6008, 0
      %v6114 = vsel %vm269, %v6009, 0
      %v6117 = vsel %vm269, %v6010, 0
      %v6120 = vsel %vm269, %v6011, 0
      %v6123 = vsel %vm269, %v6012, 0
      %v6126 = vsel %vm269, %v6013, 0
      %v6129 = vsel %vm269, %v6014, 0
      %v6132 = vsel %vm269, %v6015, 0
      %v6135 = vsel %vm269, %v6016, 0
      %v6138 = vsel %vm269, %v6017, 0
      %v6141 = vsel %vm269, %v6018, 0
      %v6144 = vsel %vm269, %v6019, 0
      %v6147 = vsel %vm269, %v6020, 0
      %v6150 = vsel %vm269, %v6021, 0
      %6152 = vmatprep.subr.mxu0 0.0
      %6153 = vmatpush1.msra.mxu0 %v6055
      %6154 = vmatprep.subr.mxu0 0.0
      %6155 = vmatpush1.msra.mxu0 0.0
      %6156 = vmatprep.subr.mxu0 0.0
      %6157 = vmatpush1.msra.mxu0 0.0
      %6158 = vmatprep.subr.mxu0 0.0
      %6159 = vmatpush1.msra.mxu0 0.0
      %6160 = vmatprep.subr.mxu0 0.0
      %6161 = vmatpush1.msra.mxu0 0.0
      %6162 = vmatprep.subr.mxu0 0.0
      %6163 = vmatpush1.msra.mxu0 0.0
      %6164 = vmatprep.subr.mxu0 0.0
      %6165 = vmatpush1.msra.mxu0 0.0
      %6166 = vmatprep.subr.mxu0 0.0
      %6167 = vmatpush1.msra.mxu0 0.0
      %6168 = vmatprep.subr.mxu0 0.0
      %6169 = vmatpush1.msra.mxu0 0.0
      %6170 = vmatprep.subr.mxu0 0.0
      %6171 = vmatpush1.msra.mxu0 0.0
      %6172 = vmatprep.subr.mxu0 0.0
      %6173 = vmatpush1.msra.mxu0 0.0
      %6174 = vmatprep.subr.mxu0 0.0
      %6175 = vmatpush1.msra.mxu0 0.0
      %6176 = vmatprep.subr.mxu0 0.0
      %6177 = vmatpush1.msra.mxu0 0.0
      %6178 = vmatprep.subr.mxu0 0.0
      %6179 = vmatpush1.msra.mxu0 0.0
      %6180 = vmatprep.subr.mxu0 0.0
      %6181 = vmatpush1.msra.mxu0 0.0
      %6182 = vmatprep.subr.mxu0 0.0
      %6183 = vmatpush1.msra.mxu0 0.0
      %6184 = vmatprep.subr.mxu0 0.0
      %6185 = vmatpush1.msra.mxu0 0.0
      %6186 = vmatprep.subr.mxu0 0.0
      %6187 = vmatpush1.msra.mxu0 0.0
      %6188 = vmatprep.subr.mxu0 0.0
      %6189 = vmatpush1.msra.mxu0 0.0
      %6190 = vmatprep.subr.mxu0 0.0
      %6191 = vmatpush1.msra.mxu0 0.0
      %6192 = vmatprep.subr.mxu0 0.0
      %6193 = vmatpush1.msra.mxu0 0.0
      %6194 = vmatprep.subr.mxu0 0.0
      %6195 = vmatpush1.msra.mxu0 0.0
      %6196 = vmatprep.subr.mxu0 0.0
      %6197 = vmatpush1.msra.mxu0 0.0
      %6198 = vmatprep.subr.mxu0 0.0
      %6199 = vmatpush1.msra.mxu0 0.0
      %6200 = vmatprep.subr.mxu0 0.0
      %6201 = vmatpush1.msra.mxu0 0.0
      %6202 = vmatprep.subr.mxu0 0.0
      %6203 = vmatpush1.msra.mxu0 0.0
      %6204 = vmatprep.subr.mxu0 0.0
      %6205 = vmatpush1.msra.mxu0 0.0
      %6206 = vmatprep.subr.mxu0 0.0
      %6207 = vmatpush1.msra.mxu0 0.0
      %6208 = vmatprep.subr.mxu0 0.0
      %6209 = vmatpush1.msra.mxu0 0.0
      %6210 = vmatprep.subr.mxu0 0.0
      %6211 = vmatpush1.msra.mxu0 0.0
      %6212 = vmatprep.subr.mxu0 0.0
      %6213 = vmatpush1.msra.mxu0 0.0
      %6214 = vmatprep.subr.mxu0 0.0
      %6215 = vmatpush1.msra.mxu0 0.0
      %6216 = vmatprep.mubr.f32.mxu0 0.0
      %6217 = vmatmul.mubr.f32.gmra.mrb[0].mxu0 %v6057
      %v6218 = vpop.f32.mrb[0].mxu0
      %v6219 = vadd.f32 0.0, %v6218
      %v6220 = vpop.f32.mrb[0].mxu0
      %6221 = vmatprep.mubr.f32.mxu0 0.0
      %6222 = vmatmul.mubr.f32.gmra.mrb[0].mxu0 %v6060
      %v6223 = vpop.f32.mrb[0].mxu0
      %v6224 = vadd.f32 0.0, %v6223
      %v6225 = vpop.f32.mrb[0].mxu0
      %6226 = vmatprep.mubr.f32.mxu0 0.0
      %6227 = vmatmul.mubr.f32.gmra.mrb[0].mxu0 %v6063
      %v6228 = vpop.f32.mrb[0].mxu0
      %v6229 = vadd.f32 0.0, %v6228
      %v6230 = vpop.f32.mrb[0].mxu0
      %6231 = vmatprep.mubr.f32.mxu0 0.0
      %6232 = vmatmul.mubr.f32.gmra.mrb[0].mxu0 %v6066
      %v6233 = vpop.f32.mrb[0].mxu0
      %v6234 = vadd.f32 0.0, %v6233
      %v6235 = vpop.f32.mrb[0].mxu0
      %6236 = vmatprep.mubr.f32.mxu0 0.0
      %6237 = vmatmul.mubr.f32.gmra.mrb[0].mxu0 %v6069
      %v6238 = vpop.f32.mrb[0].mxu0
      %v6239 = vadd.f32 0.0, %v6238
      %v6240 = vpop.f32.mrb[0].mxu0
      %6241 = vmatprep.mubr.f32.mxu0 0.0
      %6242 = vmatmul.mubr.f32.gmra.mrb[0].mxu0 %v6072
      %v6243 = vpop.f32.mrb[0].mxu0
      %v6244 = vadd.f32 0.0, %v6243
      %v6245 = vpop.f32.mrb[0].mxu0
      %6246 = vmatprep.mubr.f32.mxu0 0.0
      %6247 = vmatmul.mubr.f32.gmra.mrb[0].mxu0 %v6075
      %v6248 = vpop.f32.mrb[0].mxu0
      %v6249 = vadd.f32 0.0, %v6248
      %v6250 = vpop.f32.mrb[0].mxu0
      %6251 = vmatprep.mubr.f32.mxu0 0.0
      %6252 = vmatmul.mubr.f32.gmra.mrb[0].mxu0 %v6078
      %v6253 = vpop.f32.mrb[0].mxu0
      %v6254 = vadd.f32 0.0, %v6253
      %v6255 = vpop.f32.mrb[0].mxu0
      %6256 = vmatprep.mubr.f32.mxu0 0.0
      %6257 = vmatmul.mubr.f32.gmra.mrb[0].mxu0 %v6081
      %v6258 = vpop.f32.mrb[0].mxu0
      %v6259 = vadd.f32 0.0, %v6258
      %v6260 = vpop.f32.mrb[0].mxu0
      %6261 = vmatprep.mubr.f32.mxu0 0.0
      %6262 = vmatmul.mubr.f32.gmra.mrb[0].mxu0 %v6084
      %v6263 = vpop.f32.mrb[0].mxu0
      %v6264 = vadd.f32 0.0, %v6263
      %v6265 = vpop.f32.mrb[0].mxu0
      %6266 = vmatprep.mubr.f32.mxu0 0.0
      %6267 = vmatmul.mubr.f32.gmra.mrb[0].mxu0 %v6087
      %v6268 = vpop.f32.mrb[0].mxu0
      %v6269 = vadd.f32 0.0, %v6268
      %v6270 = vpop.f32.mrb[0].mxu0
      %6271 = vmatprep.mubr.f32.mxu0 0.0
      %6272 = vmatmul.mubr.f32.gmra.mrb[0].mxu0 %v6090
      %v6273 = vpop.f32.mrb[0].mxu0
      %v6274 = vadd.f32 0.0, %v6273
      %v6275 = vpop.f32.mrb[0].mxu0
      %6276 = vmatprep.mubr.f32.mxu0 0.0
      %6277 = vmatmul.mubr.f32.gmra.mrb[0].mxu0 %v6093
      %v6278 = vpop.f32.mrb[0].mxu0
      %v6279 = vadd.f32 0.0, %v6278
      %v6280 = vpop.f32.mrb[0].mxu0
      %6281 = vmatprep.mubr.f32.mxu0 0.0
      %6282 = vmatmul.mubr.f32.gmra.mrb[0].mxu0 %v6096
      %v6283 = vpop.f32.mrb[0].mxu0
      %v6284 = vadd.f32 0.0, %v6283
      %v6285 = vpop.f32.mrb[0].mxu0
      %6286 = vmatprep.mubr.f32.mxu0 0.0
      %6287 = vmatmul.mubr.f32.gmra.mrb[0].mxu0 %v6099
      %v6288 = vpop.f32.mrb[0].mxu0
      %v6289 = vadd.f32 0.0, %v6288
      %v6290 = vpop.f32.mrb[0].mxu0
      %6291 = vmatprep.mubr.f32.mxu0 0.0
      %6292 = vmatmul.mubr.f32.gmra.mrb[0].mxu0 %v6102
      %v6293 = vpop.f32.mrb[0].mxu0
      %v6294 = vadd.f32 0.0, %v6293
      %v6295 = vpop.f32.mrb[0].mxu0
      %6296 = vmatprep.mubr.f32.mxu0 0.0
      %6297 = vmatmul.mubr.f32.gmra.mrb[0].mxu0 %v6105
      %v6298 = vpop.f32.mrb[0].mxu0
      %v6299 = vadd.f32 0.0, %v6298
      %v6300 = vpop.f32.mrb[0].mxu0
      %6301 = vmatprep.mubr.f32.mxu0 0.0
      %6302 = vmatmul.mubr.f32.gmra.mrb[0].mxu0 %v6108
      %v6303 = vpop.f32.mrb[0].mxu0
      %v6304 = vadd.f32 0.0, %v6303
      %v6305 = vpop.f32.mrb[0].mxu0
      %6306 = vmatprep.mubr.f32.mxu0 0.0
      %6307 = vmatmul.mubr.f32.gmra.mrb[0].mxu0 %v6111
      %v6308 = vpop.f32.mrb[0].mxu0
      %v6309 = vadd.f32 0.0, %v6308
      %v6310 = vpop.f32.mrb[0].mxu0
      %6311 = vmatprep.mubr.f32.mxu0 0.0
      %6312 = vmatmul.mubr.f32.gmra.mrb[0].mxu0 %v6114
      %v6313 = vpop.f32.mrb[0].mxu0
      %v6314 = vadd.f32 0.0, %v6313
      %v6315 = vpop.f32.mrb[0].mxu0
      %6316 = vmatprep.mubr.f32.mxu0 0.0
      %6317 = vmatmul.mubr.f32.gmra.mrb[0].mxu0 %v6117
      %v6318 = vpop.f32.mrb[0].mxu0
      %v6319 = vadd.f32 0.0, %v6318
      %v6320 = vpop.f32.mrb[0].mxu0
      %6321 = vmatprep.mubr.f32.mxu0 0.0
      %6322 = vmatmul.mubr.f32.gmra.mrb[0].mxu0 %v6120
      %v6323 = vpop.f32.mrb[0].mxu0
      %v6324 = vadd.f32 0.0, %v6323
      %v6325 = vpop.f32.mrb[0].mxu0
      %6326 = vmatprep.mubr.f32.mxu0 0.0
      %6327 = vmatmul.mubr.f32.gmra.mrb[0].mxu0 %v6123
      %v6328 = vpop.f32.mrb[0].mxu0
      %v6329 = vadd.f32 0.0, %v6328
      %v6330 = vpop.f32.mrb[0].mxu0
      %6331 = vmatprep.mubr.f32.mxu0 0.0
      %6332 = vmatmul.mubr.f32.gmra.mrb[0].mxu0 %v6126
      %v6333 = vpop.f32.mrb[0].mxu0
      %v6334 = vadd.f32 0.0, %v6333
      %v6335 = vpop.f32.mrb[0].mxu0
      %6336 = vmatprep.mubr.f32.mxu0 0.0
      %6337 = vmatmul.mubr.f32.gmra.mrb[0].mxu0 %v6129
      %v6338 = vpop.f32.mrb[0].mxu0
      %v6339 = vadd.f32 0.0, %v6338
      %v6340 = vpop.f32.mrb[0].mxu0
      %6341 = vmatprep.mubr.f32.mxu0 0.0
      %6342 = vmatmul.mubr.f32.gmra.mrb[0].mxu0 %v6132
      %v6343 = vpop.f32.mrb[0].mxu0
      %v6344 = vadd.f32 0.0, %v6343
      %v6345 = vpop.f32.mrb[0].mxu0
      %6346 = vmatprep.mubr.f32.mxu0 0.0
      %6347 = vmatmul.mubr.f32.gmra.mrb[0].mxu0 %v6135
      %v6348 = vpop.f32.mrb[0].mxu0
      %v6349 = vadd.f32 0.0, %v6348
      %v6350 = vpop.f32.mrb[0].mxu0
      %6351 = vmatprep.mubr.f32.mxu0 0.0
      %6352 = vmatmul.mubr.f32.gmra.mrb[0].mxu0 %v6138
      %v6353 = vpop.f32.mrb[0].mxu0
      %v6354 = vadd.f32 0.0, %v6353
      %v6355 = vpop.f32.mrb[0].mxu0
      %6356 = vmatprep.mubr.f32.mxu0 0.0
      %6357 = vmatmul.mubr.f32.gmra.mrb[0].mxu0 %v6141
      %v6358 = vpop.f32.mrb[0].mxu0
      %v6359 = vadd.f32 0.0, %v6358
      %v6360 = vpop.f32.mrb[0].mxu0
      %6361 = vmatprep.mubr.f32.mxu0 0.0
      %6362 = vmatmul.mubr.f32.gmra.mrb[0].mxu0 %v6144
      %v6363 = vpop.f32.mrb[0].mxu0
      %v6364 = vadd.f32 0.0, %v6363
      %v6365 = vpop.f32.mrb[0].mxu0
      %6366 = vmatprep.mubr.f32.mxu0 0.0
      %6367 = vmatmul.mubr.f32.gmra.mrb[0].mxu0 %v6147
      %v6368 = vpop.f32.mrb[0].mxu0
      %v6369 = vadd.f32 0.0, %v6368
      %v6370 = vpop.f32.mrb[0].mxu0
      %6371 = vmatprep.mubr.f32.mxu0 0.0
      %6372 = vmatmul.mubr.f32.gmra.mrb[0].mxu0 %v6150
      %v6373 = vpop.f32.mrb[0].mxu0
      %v6374 = vadd.f32 0.0, %v6373
      %v6375 = vpop.f32.mrb[0].mxu0
      %6376 = vdwg.mxu0
      %v6377 = vadd.f32 %v6022, %v6219
      %v6378 = vadd.f32 %v6023, %v6224
      %v6379 = vadd.f32 %v6024, %v6229
      %v6380 = vadd.f32 %v6025, %v6234
      %v6381 = vadd.f32 %v6026, %v6239
      %v6382 = vadd.f32 %v6027, %v6244
      %v6383 = vadd.f32 %v6028, %v6249
      %v6384 = vadd.f32 %v6029, %v6254
      %v6385 = vadd.f32 %v6030, %v6259
      %v6386 = vadd.f32 %v6031, %v6264
      %v6387 = vadd.f32 %v6032, %v6269
      %v6388 = vadd.f32 %v6033, %v6274
      %v6389 = vadd.f32 %v6034, %v6279
      %v6390 = vadd.f32 %v6035, %v6284
      %v6391 = vadd.f32 %v6036, %v6289
      %v6392 = vadd.f32 %v6037, %v6294
      %v6393 = vadd.f32 %v6038, %v6299
      %v6394 = vadd.f32 %v6039, %v6304
      %v6395 = vadd.f32 %v6040, %v6309
      %v6396 = vadd.f32 %v6041, %v6314
      %v6397 = vadd.f32 %v6042, %v6319
      %v6398 = vadd.f32 %v6043, %v6324
      %v6399 = vadd.f32 %v6044, %v6329
      %v6400 = vadd.f32 %v6045, %v6334
      %v6401 = vadd.f32 %v6046, %v6339
      %v6402 = vadd.f32 %v6047, %v6344
      %v6403 = vadd.f32 %v6048, %v6349
      %v6404 = vadd.f32 %v6049, %v6354
      %v6405 = vadd.f32 %v6050, %v6359
      %v6406 = vadd.f32 %v6051, %v6364
      %v6407 = vadd.f32 %v6052, %v6369
      %v6408 = vadd.f32 %v6053, %v6374
      %6409 = vst.msk [vmem:[#allocation4] sm:$0xff] %vm269, %v6377
      %6410 = vst.msk [vmem:[#allocation4 + $0x8] sm:$0xff] %vm269, %v6378
      %6411 = vst.msk [vmem:[#allocation4 + $0x10] sm:$0xff] %vm269, %v6379
      %6412 = vst.msk [vmem:[#allocation4 + $0x18] sm:$0xff] %vm269, %v6380
      %6413 = vst.msk [vmem:[#allocation4 + $0x20] sm:$0xff] %vm269, %v6381
      %6414 = vst.msk [vmem:[#allocation4 + $0x28] sm:$0xff] %vm269, %v6382
      %6415 = vst.msk [vmem:[#allocation4 + $0x30] sm:$0xff] %vm269, %v6383
      %6416 = vst.msk [vmem:[#allocation4 + $0x38] sm:$0xff] %vm269, %v6384
      %6417 = vst.msk [vmem:[#allocation4 + $0x40] sm:$0xff] %vm269, %v6385
      %6418 = vst.msk [vmem:[#allocation4 + $0x48] sm:$0xff] %vm269, %v6386
      %6419 = vst.msk [vmem:[#allocation4 + $0x50] sm:$0xff] %vm269, %v6387
      %6420 = vst.msk [vmem:[#allocation4 + $0x58] sm:$0xff] %vm269, %v6388
      %6421 = vst.msk [vmem:[#allocation4 + $0x60] sm:$0xff] %vm269, %v6389
      %6422 = vst.msk [vmem:[#allocation4 + $0x68] sm:$0xff] %vm269, %v6390
      %6423 = vst.msk [vmem:[#allocation4 + $0x70] sm:$0xff] %vm269, %v6391
      %6424 = vst.msk [vmem:[#allocation4 + $0x78] sm:$0xff] %vm269, %v6392
      %6425 = vst.msk [vmem:[#allocation4 + $0x80] sm:$0xff] %vm269, %v6393
      %6426 = vst.msk [vmem:[#allocation4 + $0x88] sm:$0xff] %vm269, %v6394
      %6427 = vst.msk [vmem:[#allocation4 + $0x90] sm:$0xff] %vm269, %v6395
      %6428 = vst.msk [vmem:[#allocation4 + $0x98] sm:$0xff] %vm269, %v6396
      %6429 = vst.msk [vmem:[#allocation4 + $0xa0] sm:$0xff] %vm269, %v6397
      %6430 = vst.msk [vmem:[#allocation4 + $0xa8] sm:$0xff] %vm269, %v6398
      %6431 = vst.msk [vmem:[#allocation4 + $0xb0] sm:$0xff] %vm269, %v6399
      %6432 = vst.msk [vmem:[#allocation4 + $0xb8] sm:$0xff] %vm269, %v6400
      %6433 = vst.msk [vmem:[#allocation4 + $0xc0] sm:$0xff] %vm269, %v6401
      %6434 = vst.msk [vmem:[#allocation4 + $0xc8] sm:$0xff] %vm269, %v6402
      %6435 = vst.msk [vmem:[#allocation4 + $0xd0] sm:$0xff] %vm269, %v6403
      %6436 = vst.msk [vmem:[#allocation4 + $0xd8] sm:$0xff] %vm269, %v6404
      %6437 = vst.msk [vmem:[#allocation4 + $0xe0] sm:$0xff] %vm269, %v6405
      %6438 = vst.msk [vmem:[#allocation4 + $0xe8] sm:$0xff] %vm269, %v6406
      %6439 = vst.msk [vmem:[#allocation4 + $0xf0] sm:$0xff] %vm269, %v6407
      %6440 = vst.msk [vmem:[#allocation4 + $0xf8] sm:$0xff] %vm269, %v6408
      %v6441 = vld [vmem:[%s280 + $0x8] sm:$0xff]
      %v6442 = vld [vmem:[%s280 + $0x10] sm:$0xff]
      %v6443 = vld [vmem:[%s280 + $0x28] sm:$0xff]
      %v6444 = vld [vmem:[%s280 + $0x30] sm:$0xff]
      %v6445 = vld [vmem:[%s280 + $0x48] sm:$0xff]
      %v6446 = vld [vmem:[%s280 + $0x50] sm:$0xff]
      %v6447 = vld [vmem:[%s280 + $0x68] sm:$0xff]
      %v6448 = vld [vmem:[%s280 + $0x70] sm:$0xff]
      %v6449 = vld [vmem:[%s280 + $0x88] sm:$0xff]
      %v6450 = vld [vmem:[%s280 + $0x90] sm:$0xff]
      %v6451 = vld [vmem:[%s280 + $0xa8] sm:$0xff]
      %v6452 = vld [vmem:[%s280 + $0xb0] sm:$0xff]
      %v6453 = vld [vmem:[%s280 + $0xc8] sm:$0xff]
      %v6454 = vld [vmem:[%s280 + $0xd0] sm:$0xff]
      %v6455 = vld [vmem:[%s280 + $0xe8] sm:$0xff]
      %v6456 = vld [vmem:[%s280 + $0xf0] sm:$0xff]
      %v6457 = vld [vmem:[%s280 + $0x108] sm:$0xff]
      %v6458 = vld [vmem:[%s280 + $0x110] sm:$0xff]
      %v6459 = vld [vmem:[%s280 + $0x128] sm:$0xff]
      %v6460 = vld [vmem:[%s280 + $0x130] sm:$0xff]
      %v6461 = vld [vmem:[%s280 + $0x148] sm:$0xff]
      %v6462 = vld [vmem:[%s280 + $0x150] sm:$0xff]
      %v6463 = vld [vmem:[%s280 + $0x168] sm:$0xff]
      %v6464 = vld [vmem:[%s280 + $0x170] sm:$0xff]
      %v6465 = vld [vmem:[%s280 + $0x188] sm:$0xff]
      %v6466 = vld [vmem:[%s280 + $0x190] sm:$0xff]
      %v6467 = vld [vmem:[%s280 + $0x1a8] sm:$0xff]
      %v6468 = vld [vmem:[%s280 + $0x1b0] sm:$0xff]
      %v6469 = vld [vmem:[%s280 + $0x1c8] sm:$0xff]
      %v6470 = vld [vmem:[%s280 + $0x1d0] sm:$0xff]
      %v6471 = vld [vmem:[%s280 + $0x1e8] sm:$0xff]
      %v6472 = vld [vmem:[%s280 + $0x1f0] sm:$0xff]
      %v6473 = vld [vmem:[#allocation4] sm:$0xff]
      %v6474 = vld [vmem:[#allocation4 + $0x8] sm:$0xff]
      %v6475 = vld [vmem:[#allocation4 + $0x10] sm:$0xff]
      %v6476 = vld [vmem:[#allocation4 + $0x18] sm:$0xff]
      %v6477 = vld [vmem:[#allocation4 + $0x20] sm:$0xff]
      %v6478 = vld [vmem:[#allocation4 + $0x28] sm:$0xff]
      %v6479 = vld [vmem:[#allocation4 + $0x30] sm:$0xff]
      %v6480 = vld [vmem:[#allocation4 + $0x38] sm:$0xff]
      %v6481 = vld [vmem:[#allocation4 + $0x40] sm:$0xff]
      %v6482 = vld [vmem:[#allocation4 + $0x48] sm:$0xff]
      %v6483 = vld [vmem:[#allocation4 + $0x50] sm:$0xff]
      %v6484 = vld [vmem:[#allocation4 + $0x58] sm:$0xff]
      %v6485 = vld [vmem:[#allocation4 + $0x60] sm:$0xff]
      %v6486 = vld [vmem:[#allocation4 + $0x68] sm:$0xff]
      %v6487 = vld [vmem:[#allocation4 + $0x70] sm:$0xff]
      %v6488 = vld [vmem:[#allocation4 + $0x78] sm:$0xff]
      %v6489 = vld [vmem:[#allocation4 + $0x80] sm:$0xff]
      %v6490 = vld [vmem:[#allocation4 + $0x88] sm:$0xff]
      %v6491 = vld [vmem:[#allocation4 + $0x90] sm:$0xff]
      %v6492 = vld [vmem:[#allocation4 + $0x98] sm:$0xff]
      %v6493 = vld [vmem:[#allocation4 + $0xa0] sm:$0xff]
      %v6494 = vld [vmem:[#allocation4 + $0xa8] sm:$0xff]
      %v6495 = vld [vmem:[#allocation4 + $0xb0] sm:$0xff]
      %v6496 = vld [vmem:[#allocation4 + $0xb8] sm:$0xff]
      %v6497 = vld [vmem:[#allocation4 + $0xc0] sm:$0xff]
      %v6498 = vld [vmem:[#allocation4 + $0xc8] sm:$0xff]
      %v6499 = vld [vmem:[#allocation4 + $0xd0] sm:$0xff]
      %v6500 = vld [vmem:[#allocation4 + $0xd8] sm:$0xff]
      %v6501 = vld [vmem:[#allocation4 + $0xe0] sm:$0xff]
      %v6502 = vld [vmem:[#allocation4 + $0xe8] sm:$0xff]
      %v6503 = vld [vmem:[#allocation4 + $0xf0] sm:$0xff]
      %v6504 = vld [vmem:[#allocation4 + $0xf8] sm:$0xff]
      %s6505 = scalar_lea.vmem %s3, 32
      %v6506 = vld [vmem:[%s6505] sm:$0xff]
      %v6508 = vsel %vm269, %v6441, 0
      %v6511 = vsel %vm269, %v6442, 0
      %v6514 = vsel %vm269, %v6443, 0
      %v6517 = vsel %vm269, %v6444, 0
      %v6520 = vsel %vm269, %v6445, 0
      %v6523 = vsel %vm269, %v6446, 0
      %v6526 = vsel %vm269, %v6447, 0
      %v6529 = vsel %vm269, %v6448, 0
      %v6532 = vsel %vm269, %v6449, 0
      %v6535 = vsel %vm269, %v6450, 0
      %v6538 = vsel %vm269, %v6451, 0
      %v6541 = vsel %vm269, %v6452, 0
      %v6544 = vsel %vm269, %v6453, 0
      %v6547 = vsel %vm269, %v6454, 0
      %v6550 = vsel %vm269, %v6455, 0
      %v6553 = vsel %vm269, %v6456, 0
      %v6556 = vsel %vm269, %v6457, 0
      %v6559 = vsel %vm269, %v6458, 0
      %v6562 = vsel %vm269, %v6459, 0
      %v6565 = vsel %vm269, %v6460, 0
      %v6568 = vsel %vm269, %v6461, 0
      %v6571 = vsel %vm269, %v6462, 0
      %v6574 = vsel %vm269, %v6463, 0
      %v6577 = vsel %vm269, %v6464, 0
      %v6580 = vsel %vm269, %v6465, 0
      %v6583 = vsel %vm269, %v6466, 0
      %v6586 = vsel %vm269, %v6467, 0
      %v6589 = vsel %vm269, %v6468, 0
      %v6592 = vsel %vm269, %v6469, 0
      %v6595 = vsel %vm269, %v6470, 0
      %v6598 = vsel %vm269, %v6471, 0
      %v6601 = vsel %vm269, %v6472, 0
      %6603 = vmatprep.subr.mxu0 0.0
      %6604 = vmatpush1.msra.mxu0 %v6506
      %6605 = vmatprep.subr.mxu0 0.0
      %6606 = vmatpush1.msra.mxu0 0.0
      %6607 = vmatprep.subr.mxu0 0.0
      %6608 = vmatpush1.msra.mxu0 0.0
      %6609 = vmatprep.subr.mxu0 0.0
      %6610 = vmatpush1.msra.mxu0 0.0
      %6611 = vmatprep.subr.mxu0 0.0
      %6612 = vmatpush1.msra.mxu0 0.0
      %6613 = vmatprep.subr.mxu0 0.0
      %6614 = vmatpush1.msra.mxu0 0.0
      %6615 = vmatprep.subr.mxu0 0.0
      %6616 = vmatpush1.msra.mxu0 0.0
      %6617 = vmatprep.subr.mxu0 0.0
      %6618 = vmatpush1.msra.mxu0 0.0
      %6619 = vmatprep.subr.mxu0 0.0
      %6620 = vmatpush1.msra.mxu0 0.0
      %6621 = vmatprep.subr.mxu0 0.0
      %6622 = vmatpush1.msra.mxu0 0.0
      %6623 = vmatprep.subr.mxu0 0.0
      %6624 = vmatpush1.msra.mxu0 0.0
      %6625 = vmatprep.subr.mxu0 0.0
      %6626 = vmatpush1.msra.mxu0 0.0
      %6627 = vmatprep.subr.mxu0 0.0
      %6628 = vmatpush1.msra.mxu0 0.0
      %6629 = vmatprep.subr.mxu0 0.0
      %6630 = vmatpush1.msra.mxu0 0.0
      %6631 = vmatprep.subr.mxu0 0.0
      %6632 = vmatpush1.msra.mxu0 0.0
      %6633 = vmatprep.subr.mxu0 0.0
      %6634 = vmatpush1.msra.mxu0 0.0
      %6635 = vmatprep.subr.mxu0 0.0
      %6636 = vmatpush1.msra.mxu0 0.0
      %6637 = vmatprep.subr.mxu0 0.0
      %6638 = vmatpush1.msra.mxu0 0.0
      %6639 = vmatprep.subr.mxu0 0.0
      %6640 = vmatpush1.msra.mxu0 0.0
      %6641 = vmatprep.subr.mxu0 0.0
      %6642 = vmatpush1.msra.mxu0 0.0
      %6643 = vmatprep.subr.mxu0 0.0
      %6644 = vmatpush1.msra.mxu0 0.0
      %6645 = vmatprep.subr.mxu0 0.0
      %6646 = vmatpush1.msra.mxu0 0.0
      %6647 = vmatprep.subr.mxu0 0.0
      %6648 = vmatpush1.msra.mxu0 0.0
      %6649 = vmatprep.subr.mxu0 0.0
      %6650 = vmatpush1.msra.mxu0 0.0
      %6651 = vmatprep.subr.mxu0 0.0
      %6652 = vmatpush1.msra.mxu0 0.0
      %6653 = vmatprep.subr.mxu0 0.0
      %6654 = vmatpush1.msra.mxu0 0.0
      %6655 = vmatprep.subr.mxu0 0.0
      %6656 = vmatpush1.msra.mxu0 0.0
      %6657 = vmatprep.subr.mxu0 0.0
      %6658 = vmatpush1.msra.mxu0 0.0
      %6659 = vmatprep.subr.mxu0 0.0
      %6660 = vmatpush1.msra.mxu0 0.0
      %6661 = vmatprep.subr.mxu0 0.0
      %6662 = vmatpush1.msra.mxu0 0.0
      %6663 = vmatprep.subr.mxu0 0.0
      %6664 = vmatpush1.msra.mxu0 0.0
      %6665 = vmatprep.subr.mxu0 0.0
      %6666 = vmatpush1.msra.mxu0 0.0
      %6667 = vmatprep.mubr.f32.mxu0 0.0
      %6668 = vmatmul.mubr.f32.gmra.mrb[0].mxu0 %v6508
      %v6669 = vpop.f32.mrb[0].mxu0
      %v6670 = vadd.f32 0.0, %v6669
      %v6671 = vpop.f32.mrb[0].mxu0
      %6672 = vmatprep.mubr.f32.mxu0 0.0
      %6673 = vmatmul.mubr.f32.gmra.mrb[0].mxu0 %v6511
      %v6674 = vpop.f32.mrb[0].mxu0
      %v6675 = vadd.f32 0.0, %v6674
      %v6676 = vpop.f32.mrb[0].mxu0
      %6677 = vmatprep.mubr.f32.mxu0 0.0
      %6678 = vmatmul.mubr.f32.gmra.mrb[0].mxu0 %v6514
      %v6679 = vpop.f32.mrb[0].mxu0
      %v6680 = vadd.f32 0.0, %v6679
      %v6681 = vpop.f32.mrb[0].mxu0
      %6682 = vmatprep.mubr.f32.mxu0 0.0
      %6683 = vmatmul.mubr.f32.gmra.mrb[0].mxu0 %v6517
      %v6684 = vpop.f32.mrb[0].mxu0
      %v6685 = vadd.f32 0.0, %v6684
      %v6686 = vpop.f32.mrb[0].mxu0
      %6687 = vmatprep.mubr.f32.mxu0 0.0
      %6688 = vmatmul.mubr.f32.gmra.mrb[0].mxu0 %v6520
      %v6689 = vpop.f32.mrb[0].mxu0
      %v6690 = vadd.f32 0.0, %v6689
      %v6691 = vpop.f32.mrb[0].mxu0
      %6692 = vmatprep.mubr.f32.mxu0 0.0
      %6693 = vmatmul.mubr.f32.gmra.mrb[0].mxu0 %v6523
      %v6694 = vpop.f32.mrb[0].mxu0
      %v6695 = vadd.f32 0.0, %v6694
      %v6696 = vpop.f32.mrb[0].mxu0
      %6697 = vmatprep.mubr.f32.mxu0 0.0
      %6698 = vmatmul.mubr.f32.gmra.mrb[0].mxu0 %v6526
      %v6699 = vpop.f32.mrb[0].mxu0
      %v6700 = vadd.f32 0.0, %v6699
      %v6701 = vpop.f32.mrb[0].mxu0
      %6702 = vmatprep.mubr.f32.mxu0 0.0
      %6703 = vmatmul.mubr.f32.gmra.mrb[0].mxu0 %v6529
      %v6704 = vpop.f32.mrb[0].mxu0
      %v6705 = vadd.f32 0.0, %v6704
      %v6706 = vpop.f32.mrb[0].mxu0
      %6707 = vmatprep.mubr.f32.mxu0 0.0
      %6708 = vmatmul.mubr.f32.gmra.mrb[0].mxu0 %v6532
      %v6709 = vpop.f32.mrb[0].mxu0
      %v6710 = vadd.f32 0.0, %v6709
      %v6711 = vpop.f32.mrb[0].mxu0
      %6712 = vmatprep.mubr.f32.mxu0 0.0
      %6713 = vmatmul.mubr.f32.gmra.mrb[0].mxu0 %v6535
      %v6714 = vpop.f32.mrb[0].mxu0
      %v6715 = vadd.f32 0.0, %v6714
      %v6716 = vpop.f32.mrb[0].mxu0
      %6717 = vmatprep.mubr.f32.mxu0 0.0
      %6718 = vmatmul.mubr.f32.gmra.mrb[0].mxu0 %v6538
      %v6719 = vpop.f32.mrb[0].mxu0
      %v6720 = vadd.f32 0.0, %v6719
      %v6721 = vpop.f32.mrb[0].mxu0
      %6722 = vmatprep.mubr.f32.mxu0 0.0
      %6723 = vmatmul.mubr.f32.gmra.mrb[0].mxu0 %v6541
      %v6724 = vpop.f32.mrb[0].mxu0
      %v6725 = vadd.f32 0.0, %v6724
      %v6726 = vpop.f32.mrb[0].mxu0
      %6727 = vmatprep.mubr.f32.mxu0 0.0
      %6728 = vmatmul.mubr.f32.gmra.mrb[0].mxu0 %v6544
      %v6729 = vpop.f32.mrb[0].mxu0
      %v6730 = vadd.f32 0.0, %v6729
      %v6731 = vpop.f32.mrb[0].mxu0
      %6732 = vmatprep.mubr.f32.mxu0 0.0
      %6733 = vmatmul.mubr.f32.gmra.mrb[0].mxu0 %v6547
      %v6734 = vpop.f32.mrb[0].mxu0
      %v6735 = vadd.f32 0.0, %v6734
      %v6736 = vpop.f32.mrb[0].mxu0
      %6737 = vmatprep.mubr.f32.mxu0 0.0
      %6738 = vmatmul.mubr.f32.gmra.mrb[0].mxu0 %v6550
      %v6739 = vpop.f32.mrb[0].mxu0
      %v6740 = vadd.f32 0.0, %v6739
      %v6741 = vpop.f32.mrb[0].mxu0
      %6742 = vmatprep.mubr.f32.mxu0 0.0
      %6743 = vmatmul.mubr.f32.gmra.mrb[0].mxu0 %v6553
      %v6744 = vpop.f32.mrb[0].mxu0
      %v6745 = vadd.f32 0.0, %v6744
      %v6746 = vpop.f32.mrb[0].mxu0
      %6747 = vmatprep.mubr.f32.mxu0 0.0
      %6748 = vmatmul.mubr.f32.gmra.mrb[0].mxu0 %v6556
      %v6749 = vpop.f32.mrb[0].mxu0
      %v6750 = vadd.f32 0.0, %v6749
      %v6751 = vpop.f32.mrb[0].mxu0
      %6752 = vmatprep.mubr.f32.mxu0 0.0
      %6753 = vmatmul.mubr.f32.gmra.mrb[0].mxu0 %v6559
      %v6754 = vpop.f32.mrb[0].mxu0
      %v6755 = vadd.f32 0.0, %v6754
      %v6756 = vpop.f32.mrb[0].mxu0
      %6757 = vmatprep.mubr.f32.mxu0 0.0
      %6758 = vmatmul.mubr.f32.gmra.mrb[0].mxu0 %v6562
      %v6759 = vpop.f32.mrb[0].mxu0
      %v6760 = vadd.f32 0.0, %v6759
      %v6761 = vpop.f32.mrb[0].mxu0
      %6762 = vmatprep.mubr.f32.mxu0 0.0
      %6763 = vmatmul.mubr.f32.gmra.mrb[0].mxu0 %v6565
      %v6764 = vpop.f32.mrb[0].mxu0
      %v6765 = vadd.f32 0.0, %v6764
      %v6766 = vpop.f32.mrb[0].mxu0
      %6767 = vmatprep.mubr.f32.mxu0 0.0
      %6768 = vmatmul.mubr.f32.gmra.mrb[0].mxu0 %v6568
      %v6769 = vpop.f32.mrb[0].mxu0
      %v6770 = vadd.f32 0.0, %v6769
      %v6771 = vpop.f32.mrb[0].mxu0
      %6772 = vmatprep.mubr.f32.mxu0 0.0
      %6773 = vmatmul.mubr.f32.gmra.mrb[0].mxu0 %v6571
      %v6774 = vpop.f32.mrb[0].mxu0
      %v6775 = vadd.f32 0.0, %v6774
      %v6776 = vpop.f32.mrb[0].mxu0
      %6777 = vmatprep.mubr.f32.mxu0 0.0
      %6778 = vmatmul.mubr.f32.gmra.mrb[0].mxu0 %v6574
      %v6779 = vpop.f32.mrb[0].mxu0
      %v6780 = vadd.f32 0.0, %v6779
      %v6781 = vpop.f32.mrb[0].mxu0
      %6782 = vmatprep.mubr.f32.mxu0 0.0
      %6783 = vmatmul.mubr.f32.gmra.mrb[0].mxu0 %v6577
      %v6784 = vpop.f32.mrb[0].mxu0
      %v6785 = vadd.f32 0.0, %v6784
      %v6786 = vpop.f32.mrb[0].mxu0
      %6787 = vmatprep.mubr.f32.mxu0 0.0
      %6788 = vmatmul.mubr.f32.gmra.mrb[0].mxu0 %v6580
      %v6789 = vpop.f32.mrb[0].mxu0
      %v6790 = vadd.f32 0.0, %v6789
      %v6791 = vpop.f32.mrb[0].mxu0
      %6792 = vmatprep.mubr.f32.mxu0 0.0
      %6793 = vmatmul.mubr.f32.gmra.mrb[0].mxu0 %v6583
      %v6794 = vpop.f32.mrb[0].mxu0
      %v6795 = vadd.f32 0.0, %v6794
      %v6796 = vpop.f32.mrb[0].mxu0
      %6797 = vmatprep.mubr.f32.mxu0 0.0
      %6798 = vmatmul.mubr.f32.gmra.mrb[0].mxu0 %v6586
      %v6799 = vpop.f32.mrb[0].mxu0
      %v6800 = vadd.f32 0.0, %v6799
      %v6801 = vpop.f32.mrb[0].mxu0
      %6802 = vmatprep.mubr.f32.mxu0 0.0
      %6803 = vmatmul.mubr.f32.gmra.mrb[0].mxu0 %v6589
      %v6804 = vpop.f32.mrb[0].mxu0
      %v6805 = vadd.f32 0.0, %v6804
      %v6806 = vpop.f32.mrb[0].mxu0
      %6807 = vmatprep.mubr.f32.mxu0 0.0
      %6808 = vmatmul.mubr.f32.gmra.mrb[0].mxu0 %v6592
      %v6809 = vpop.f32.mrb[0].mxu0
      %v6810 = vadd.f32 0.0, %v6809
      %v6811 = vpop.f32.mrb[0].mxu0
      %6812 = vmatprep.mubr.f32.mxu0 0.0
      %6813 = vmatmul.mubr.f32.gmra.mrb[0].mxu0 %v6595
      %v6814 = vpop.f32.mrb[0].mxu0
      %v6815 = vadd.f32 0.0, %v6814
      %v6816 = vpop.f32.mrb[0].mxu0
      %6817 = vmatprep.mubr.f32.mxu0 0.0
      %6818 = vmatmul.mubr.f32.gmra.mrb[0].mxu0 %v6598
      %v6819 = vpop.f32.mrb[0].mxu0
      %v6820 = vadd.f32 0.0, %v6819
      %v6821 = vpop.f32.mrb[0].mxu0
      %6822 = vmatprep.mubr.f32.mxu0 0.0
      %6823 = vmatmul.mubr.f32.gmra.mrb[0].mxu0 %v6601
      %v6824 = vpop.f32.mrb[0].mxu0
      %v6825 = vadd.f32 0.0, %v6824
      %v6826 = vpop.f32.mrb[0].mxu0
      %6827 = vdwg.mxu0
      %v6828 = vadd.f32 %v6473, %v6670
      %v6829 = vadd.f32 %v6474, %v6675
      %v6830 = vadd.f32 %v6475, %v6680
      %v6831 = vadd.f32 %v6476, %v6685
      %v6832 = vadd.f32 %v6477, %v6690
      %v6833 = vadd.f32 %v6478, %v6695
      %v6834 = vadd.f32 %v6479, %v6700
      %v6835 = vadd.f32 %v6480, %v6705
      %v6836 = vadd.f32 %v6481, %v6710
      %v6837 = vadd.f32 %v6482, %v6715
      %v6838 = vadd.f32 %v6483, %v6720
      %v6839 = vadd.f32 %v6484, %v6725
      %v6840 = vadd.f32 %v6485, %v6730
      %v6841 = vadd.f32 %v6486, %v6735
      %v6842 = vadd.f32 %v6487, %v6740
      %v6843 = vadd.f32 %v6488, %v6745
      %v6844 = vadd.f32 %v6489, %v6750
      %v6845 = vadd.f32 %v6490, %v6755
      %v6846 = vadd.f32 %v6491, %v6760
      %v6847 = vadd.f32 %v6492, %v6765
      %v6848 = vadd.f32 %v6493, %v6770
      %v6849 = vadd.f32 %v6494, %v6775
      %v6850 = vadd.f32 %v6495, %v6780
      %v6851 = vadd.f32 %v6496, %v6785
      %v6852 = vadd.f32 %v6497, %v6790
      %v6853 = vadd.f32 %v6498, %v6795
      %v6854 = vadd.f32 %v6499, %v6800
      %v6855 = vadd.f32 %v6500, %v6805
      %v6856 = vadd.f32 %v6501, %v6810
      %v6857 = vadd.f32 %v6502, %v6815
      %v6858 = vadd.f32 %v6503, %v6820
      %v6859 = vadd.f32 %v6504, %v6825
      %6860 = vst.msk [vmem:[#allocation4] sm:$0xff] %vm269, %v6828
      %6861 = vst.msk [vmem:[#allocation4 + $0x8] sm:$0xff] %vm269, %v6829
      %6862 = vst.msk [vmem:[#allocation4 + $0x10] sm:$0xff] %vm269, %v6830
      %6863 = vst.msk [vmem:[#allocation4 + $0x18] sm:$0xff] %vm269, %v6831
      %6864 = vst.msk [vmem:[#allocation4 + $0x20] sm:$0xff] %vm269, %v6832
      %6865 = vst.msk [vmem:[#allocation4 + $0x28] sm:$0xff] %vm269, %v6833
      %6866 = vst.msk [vmem:[#allocation4 + $0x30] sm:$0xff] %vm269, %v6834
      %6867 = vst.msk [vmem:[#allocation4 + $0x38] sm:$0xff] %vm269, %v6835
      %6868 = vst.msk [vmem:[#allocation4 + $0x40] sm:$0xff] %vm269, %v6836
      %6869 = vst.msk [vmem:[#allocation4 + $0x48] sm:$0xff] %vm269, %v6837
      %6870 = vst.msk [vmem:[#allocation4 + $0x50] sm:$0xff] %vm269, %v6838
      %6871 = vst.msk [vmem:[#allocation4 + $0x58] sm:$0xff] %vm269, %v6839
      %6872 = vst.msk [vmem:[#allocation4 + $0x60] sm:$0xff] %vm269, %v6840
      %6873 = vst.msk [vmem:[#allocation4 + $0x68] sm:$0xff] %vm269, %v6841
      %6874 = vst.msk [vmem:[#allocation4 + $0x70] sm:$0xff] %vm269, %v6842
      %6875 = vst.msk [vmem:[#allocation4 + $0x78] sm:$0xff] %vm269, %v6843
      %6876 = vst.msk [vmem:[#allocation4 + $0x80] sm:$0xff] %vm269, %v6844
      %6877 = vst.msk [vmem:[#allocation4 + $0x88] sm:$0xff] %vm269, %v6845
      %6878 = vst.msk [vmem:[#allocation4 + $0x90] sm:$0xff] %vm269, %v6846
      %6879 = vst.msk [vmem:[#allocation4 + $0x98] sm:$0xff] %vm269, %v6847
      %6880 = vst.msk [vmem:[#allocation4 + $0xa0] sm:$0xff] %vm269, %v6848
      %6881 = vst.msk [vmem:[#allocation4 + $0xa8] sm:$0xff] %vm269, %v6849
      %6882 = vst.msk [vmem:[#allocation4 + $0xb0] sm:$0xff] %vm269, %v6850
      %6883 = vst.msk [vmem:[#allocation4 + $0xb8] sm:$0xff] %vm269, %v6851
      %6884 = vst.msk [vmem:[#allocation4 + $0xc0] sm:$0xff] %vm269, %v6852
      %6885 = vst.msk [vmem:[#allocation4 + $0xc8] sm:$0xff] %vm269, %v6853
      %6886 = vst.msk [vmem:[#allocation4 + $0xd0] sm:$0xff] %vm269, %v6854
      %6887 = vst.msk [vmem:[#allocation4 + $0xd8] sm:$0xff] %vm269, %v6855
      %6888 = vst.msk [vmem:[#allocation4 + $0xe0] sm:$0xff] %vm269, %v6856
      %6889 = vst.msk [vmem:[#allocation4 + $0xe8] sm:$0xff] %vm269, %v6857
      %6890 = vst.msk [vmem:[#allocation4 + $0xf0] sm:$0xff] %vm269, %v6858
      %6891 = vst.msk [vmem:[#allocation4 + $0xf8] sm:$0xff] %vm269, %v6859
      %v6892 = vld [vmem:[%s280 + $0x9] sm:$0xff]
      %v6893 = vld [vmem:[%s280 + $0x11] sm:$0xff]
      %v6894 = vld [vmem:[%s280 + $0x29] sm:$0xff]
      %v6895 = vld [vmem:[%s280 + $0x31] sm:$0xff]
      %v6896 = vld [vmem:[%s280 + $0x49] sm:$0xff]
      %v6897 = vld [vmem:[%s280 + $0x51] sm:$0xff]
      %v6898 = vld [vmem:[%s280 + $0x69] sm:$0xff]
      %v6899 = vld [vmem:[%s280 + $0x71] sm:$0xff]
      %v6900 = vld [vmem:[%s280 + $0x89] sm:$0xff]
      %v6901 = vld [vmem:[%s280 + $0x91] sm:$0xff]
      %v6902 = vld [vmem:[%s280 + $0xa9] sm:$0xff]
      %v6903 = vld [vmem:[%s280 + $0xb1] sm:$0xff]
      %v6904 = vld [vmem:[%s280 + $0xc9] sm:$0xff]
      %v6905 = vld [vmem:[%s280 + $0xd1] sm:$0xff]
      %v6906 = vld [vmem:[%s280 + $0xe9] sm:$0xff]
      %v6907 = vld [vmem:[%s280 + $0xf1] sm:$0xff]
      %v6908 = vld [vmem:[%s280 + $0x109] sm:$0xff]
      %v6909 = vld [vmem:[%s280 + $0x111] sm:$0xff]
      %v6910 = vld [vmem:[%s280 + $0x129] sm:$0xff]
      %v6911 = vld [vmem:[%s280 + $0x131] sm:$0xff]
      %v6912 = vld [vmem:[%s280 + $0x149] sm:$0xff]
      %v6913 = vld [vmem:[%s280 + $0x151] sm:$0xff]
      %v6914 = vld [vmem:[%s280 + $0x169] sm:$0xff]
      %v6915 = vld [vmem:[%s280 + $0x171] sm:$0xff]
      %v6916 = vld [vmem:[%s280 + $0x189] sm:$0xff]
      %v6917 = vld [vmem:[%s280 + $0x191] sm:$0xff]
      %v6918 = vld [vmem:[%s280 + $0x1a9] sm:$0xff]
      %v6919 = vld [vmem:[%s280 + $0x1b1] sm:$0xff]
      %v6920 = vld [vmem:[%s280 + $0x1c9] sm:$0xff]
      %v6921 = vld [vmem:[%s280 + $0x1d1] sm:$0xff]
      %v6922 = vld [vmem:[%s280 + $0x1e9] sm:$0xff]
      %v6923 = vld [vmem:[%s280 + $0x1f1] sm:$0xff]
      %v6924 = vld [vmem:[#allocation4] sm:$0xff]
      %v6925 = vld [vmem:[#allocation4 + $0x8] sm:$0xff]
      %v6926 = vld [vmem:[#allocation4 + $0x10] sm:$0xff]
      %v6927 = vld [vmem:[#allocation4 + $0x18] sm:$0xff]
      %v6928 = vld [vmem:[#allocation4 + $0x20] sm:$0xff]
      %v6929 = vld [vmem:[#allocation4 + $0x28] sm:$0xff]
      %v6930 = vld [vmem:[#allocation4 + $0x30] sm:$0xff]
      %v6931 = vld [vmem:[#allocation4 + $0x38] sm:$0xff]
      %v6932 = vld [vmem:[#allocation4 + $0x40] sm:$0xff]
      %v6933 = vld [vmem:[#allocation4 + $0x48] sm:$0xff]
      %v6934 = vld [vmem:[#allocation4 + $0x50] sm:$0xff]
      %v6935 = vld [vmem:[#allocation4 + $0x58] sm:$0xff]
      %v6936 = vld [vmem:[#allocation4 + $0x60] sm:$0xff]
      %v6937 = vld [vmem:[#allocation4 + $0x68] sm:$0xff]
      %v6938 = vld [vmem:[#allocation4 + $0x70] sm:$0xff]
      %v6939 = vld [vmem:[#allocation4 + $0x78] sm:$0xff]
      %v6940 = vld [vmem:[#allocation4 + $0x80] sm:$0xff]
      %v6941 = vld [vmem:[#allocation4 + $0x88] sm:$0xff]
      %v6942 = vld [vmem:[#allocation4 + $0x90] sm:$0xff]
      %v6943 = vld [vmem:[#allocation4 + $0x98] sm:$0xff]
      %v6944 = vld [vmem:[#allocation4 + $0xa0] sm:$0xff]
      %v6945 = vld [vmem:[#allocation4 + $0xa8] sm:$0xff]
      %v6946 = vld [vmem:[#allocation4 + $0xb0] sm:$0xff]
      %v6947 = vld [vmem:[#allocation4 + $0xb8] sm:$0xff]
      %v6948 = vld [vmem:[#allocation4 + $0xc0] sm:$0xff]
      %v6949 = vld [vmem:[#allocation4 + $0xc8] sm:$0xff]
      %v6950 = vld [vmem:[#allocation4 + $0xd0] sm:$0xff]
      %v6951 = vld [vmem:[#allocation4 + $0xd8] sm:$0xff]
      %v6952 = vld [vmem:[#allocation4 + $0xe0] sm:$0xff]
      %v6953 = vld [vmem:[#allocation4 + $0xe8] sm:$0xff]
      %v6954 = vld [vmem:[#allocation4 + $0xf0] sm:$0xff]
      %v6955 = vld [vmem:[#allocation4 + $0xf8] sm:$0xff]
      %s6956 = scalar_lea.vmem %s3, 40
      %v6957 = vld [vmem:[%s6956] sm:$0xff]
      %v6959 = vsel %vm269, %v6892, 0
      %v6962 = vsel %vm269, %v6893, 0
      %v6965 = vsel %vm269, %v6894, 0
      %v6968 = vsel %vm269, %v6895, 0
      %v6971 = vsel %vm269, %v6896, 0
      %v6974 = vsel %vm269, %v6897, 0
      %v6977 = vsel %vm269, %v6898, 0
      %v6980 = vsel %vm269, %v6899, 0
      %v6983 = vsel %vm269, %v6900, 0
      %v6986 = vsel %vm269, %v6901, 0
      %v6989 = vsel %vm269, %v6902, 0
      %v6992 = vsel %vm269, %v6903, 0
      %v6995 = vsel %vm269, %v6904, 0
      %v6998 = vsel %vm269, %v6905, 0
      %v7001 = vsel %vm269, %v6906, 0
      %v7004 = vsel %vm269, %v6907, 0
      %v7007 = vsel %vm269, %v6908, 0
      %v7010 = vsel %vm269, %v6909, 0
      %v7013 = vsel %vm269, %v6910, 0
      %v7016 = vsel %vm269, %v6911, 0
      %v7019 = vsel %vm269, %v6912, 0
      %v7022 = vsel %vm269, %v6913, 0
      %v7025 = vsel %vm269, %v6914, 0
      %v7028 = vsel %vm269, %v6915, 0
      %v7031 = vsel %vm269, %v6916, 0
      %v7034 = vsel %vm269, %v6917, 0
      %v7037 = vsel %vm269, %v6918, 0
      %v7040 = vsel %vm269, %v6919, 0
      %v7043 = vsel %vm269, %v6920, 0
      %v7046 = vsel %vm269, %v6921, 0
      %v7049 = vsel %vm269, %v6922, 0
      %v7052 = vsel %vm269, %v6923, 0
      %7054 = vmatprep.subr.mxu0 0.0
      %7055 = vmatpush1.msra.mxu0 %v6957
      %7056 = vmatprep.subr.mxu0 0.0
      %7057 = vmatpush1.msra.mxu0 0.0
      %7058 = vmatprep.subr.mxu0 0.0
      %7059 = vmatpush1.msra.mxu0 0.0
      %7060 = vmatprep.subr.mxu0 0.0
      %7061 = vmatpush1.msra.mxu0 0.0
      %7062 = vmatprep.subr.mxu0 0.0
      %7063 = vmatpush1.msra.mxu0 0.0
      %7064 = vmatprep.subr.mxu0 0.0
      %7065 = vmatpush1.msra.mxu0 0.0
      %7066 = vmatprep.subr.mxu0 0.0
      %7067 = vmatpush1.msra.mxu0 0.0
      %7068 = vmatprep.subr.mxu0 0.0
      %7069 = vmatpush1.msra.mxu0 0.0
      %7070 = vmatprep.subr.mxu0 0.0
      %7071 = vmatpush1.msra.mxu0 0.0
      %7072 = vmatprep.subr.mxu0 0.0
      %7073 = vmatpush1.msra.mxu0 0.0
      %7074 = vmatprep.subr.mxu0 0.0
      %7075 = vmatpush1.msra.mxu0 0.0
      %7076 = vmatprep.subr.mxu0 0.0
      %7077 = vmatpush1.msra.mxu0 0.0
      %7078 = vmatprep.subr.mxu0 0.0
      %7079 = vmatpush1.msra.mxu0 0.0
      %7080 = vmatprep.subr.mxu0 0.0
      %7081 = vmatpush1.msra.mxu0 0.0
      %7082 = vmatprep.subr.mxu0 0.0
      %7083 = vmatpush1.msra.mxu0 0.0
      %7084 = vmatprep.subr.mxu0 0.0
      %7085 = vmatpush1.msra.mxu0 0.0
      %7086 = vmatprep.subr.mxu0 0.0
      %7087 = vmatpush1.msra.mxu0 0.0
      %7088 = vmatprep.subr.mxu0 0.0
      %7089 = vmatpush1.msra.mxu0 0.0
      %7090 = vmatprep.subr.mxu0 0.0
      %7091 = vmatpush1.msra.mxu0 0.0
      %7092 = vmatprep.subr.mxu0 0.0
      %7093 = vmatpush1.msra.mxu0 0.0
      %7094 = vmatprep.subr.mxu0 0.0
      %7095 = vmatpush1.msra.mxu0 0.0
      %7096 = vmatprep.subr.mxu0 0.0
      %7097 = vmatpush1.msra.mxu0 0.0
      %7098 = vmatprep.subr.mxu0 0.0
      %7099 = vmatpush1.msra.mxu0 0.0
      %7100 = vmatprep.subr.mxu0 0.0
      %7101 = vmatpush1.msra.mxu0 0.0
      %7102 = vmatprep.subr.mxu0 0.0
      %7103 = vmatpush1.msra.mxu0 0.0
      %7104 = vmatprep.subr.mxu0 0.0
      %7105 = vmatpush1.msra.mxu0 0.0
      %7106 = vmatprep.subr.mxu0 0.0
      %7107 = vmatpush1.msra.mxu0 0.0
      %7108 = vmatprep.subr.mxu0 0.0
      %7109 = vmatpush1.msra.mxu0 0.0
      %7110 = vmatprep.subr.mxu0 0.0
      %7111 = vmatpush1.msra.mxu0 0.0
      %7112 = vmatprep.subr.mxu0 0.0
      %7113 = vmatpush1.msra.mxu0 0.0
      %7114 = vmatprep.subr.mxu0 0.0
      %7115 = vmatpush1.msra.mxu0 0.0
      %7116 = vmatprep.subr.mxu0 0.0
      %7117 = vmatpush1.msra.mxu0 0.0
      %7118 = vmatprep.mubr.f32.mxu0 0.0
      %7119 = vmatmul.mubr.f32.gmra.mrb[0].mxu0 %v6959
      %v7120 = vpop.f32.mrb[0].mxu0
      %v7121 = vadd.f32 0.0, %v7120
      %v7122 = vpop.f32.mrb[0].mxu0
      %7123 = vmatprep.mubr.f32.mxu0 0.0
      %7124 = vmatmul.mubr.f32.gmra.mrb[0].mxu0 %v6962
      %v7125 = vpop.f32.mrb[0].mxu0
      %v7126 = vadd.f32 0.0, %v7125
      %v7127 = vpop.f32.mrb[0].mxu0
      %7128 = vmatprep.mubr.f32.mxu0 0.0
      %7129 = vmatmul.mubr.f32.gmra.mrb[0].mxu0 %v6965
      %v7130 = vpop.f32.mrb[0].mxu0
      %v7131 = vadd.f32 0.0, %v7130
      %v7132 = vpop.f32.mrb[0].mxu0
      %7133 = vmatprep.mubr.f32.mxu0 0.0
      %7134 = vmatmul.mubr.f32.gmra.mrb[0].mxu0 %v6968
      %v7135 = vpop.f32.mrb[0].mxu0
      %v7136 = vadd.f32 0.0, %v7135
      %v7137 = vpop.f32.mrb[0].mxu0
      %7138 = vmatprep.mubr.f32.mxu0 0.0
      %7139 = vmatmul.mubr.f32.gmra.mrb[0].mxu0 %v6971
      %v7140 = vpop.f32.mrb[0].mxu0
      %v7141 = vadd.f32 0.0, %v7140
      %v7142 = vpop.f32.mrb[0].mxu0
      %7143 = vmatprep.mubr.f32.mxu0 0.0
      %7144 = vmatmul.mubr.f32.gmra.mrb[0].mxu0 %v6974
      %v7145 = vpop.f32.mrb[0].mxu0
      %v7146 = vadd.f32 0.0, %v7145
      %v7147 = vpop.f32.mrb[0].mxu0
      %7148 = vmatprep.mubr.f32.mxu0 0.0
      %7149 = vmatmul.mubr.f32.gmra.mrb[0].mxu0 %v6977
      %v7150 = vpop.f32.mrb[0].mxu0
      %v7151 = vadd.f32 0.0, %v7150
      %v7152 = vpop.f32.mrb[0].mxu0
      %7153 = vmatprep.mubr.f32.mxu0 0.0
      %7154 = vmatmul.mubr.f32.gmra.mrb[0].mxu0 %v6980
      %v7155 = vpop.f32.mrb[0].mxu0
      %v7156 = vadd.f32 0.0, %v7155
      %v7157 = vpop.f32.mrb[0].mxu0
      %7158 = vmatprep.mubr.f32.mxu0 0.0
      %7159 = vmatmul.mubr.f32.gmra.mrb[0].mxu0 %v6983
      %v7160 = vpop.f32.mrb[0].mxu0
      %v7161 = vadd.f32 0.0, %v7160
      %v7162 = vpop.f32.mrb[0].mxu0
      %7163 = vmatprep.mubr.f32.mxu0 0.0
      %7164 = vmatmul.mubr.f32.gmra.mrb[0].mxu0 %v6986
      %v7165 = vpop.f32.mrb[0].mxu0
      %v7166 = vadd.f32 0.0, %v7165
      %v7167 = vpop.f32.mrb[0].mxu0
      %7168 = vmatprep.mubr.f32.mxu0 0.0
      %7169 = vmatmul.mubr.f32.gmra.mrb[0].mxu0 %v6989
      %v7170 = vpop.f32.mrb[0].mxu0
      %v7171 = vadd.f32 0.0, %v7170
      %v7172 = vpop.f32.mrb[0].mxu0
      %7173 = vmatprep.mubr.f32.mxu0 0.0
      %7174 = vmatmul.mubr.f32.gmra.mrb[0].mxu0 %v6992
      %v7175 = vpop.f32.mrb[0].mxu0
      %v7176 = vadd.f32 0.0, %v7175
      %v7177 = vpop.f32.mrb[0].mxu0
      %7178 = vmatprep.mubr.f32.mxu0 0.0
      %7179 = vmatmul.mubr.f32.gmra.mrb[0].mxu0 %v6995
      %v7180 = vpop.f32.mrb[0].mxu0
      %v7181 = vadd.f32 0.0, %v7180
      %v7182 = vpop.f32.mrb[0].mxu0
      %7183 = vmatprep.mubr.f32.mxu0 0.0
      %7184 = vmatmul.mubr.f32.gmra.mrb[0].mxu0 %v6998
      %v7185 = vpop.f32.mrb[0].mxu0
      %v7186 = vadd.f32 0.0, %v7185
      %v7187 = vpop.f32.mrb[0].mxu0
      %7188 = vmatprep.mubr.f32.mxu0 0.0
      %7189 = vmatmul.mubr.f32.gmra.mrb[0].mxu0 %v7001
      %v7190 = vpop.f32.mrb[0].mxu0
      %v7191 = vadd.f32 0.0, %v7190
      %v7192 = vpop.f32.mrb[0].mxu0
      %7193 = vmatprep.mubr.f32.mxu0 0.0
      %7194 = vmatmul.mubr.f32.gmra.mrb[0].mxu0 %v7004
      %v7195 = vpop.f32.mrb[0].mxu0
      %v7196 = vadd.f32 0.0, %v7195
      %v7197 = vpop.f32.mrb[0].mxu0
      %7198 = vmatprep.mubr.f32.mxu0 0.0
      %7199 = vmatmul.mubr.f32.gmra.mrb[0].mxu0 %v7007
      %v7200 = vpop.f32.mrb[0].mxu0
      %v7201 = vadd.f32 0.0, %v7200
      %v7202 = vpop.f32.mrb[0].mxu0
      %7203 = vmatprep.mubr.f32.mxu0 0.0
      %7204 = vmatmul.mubr.f32.gmra.mrb[0].mxu0 %v7010
      %v7205 = vpop.f32.mrb[0].mxu0
      %v7206 = vadd.f32 0.0, %v7205
      %v7207 = vpop.f32.mrb[0].mxu0
      %7208 = vmatprep.mubr.f32.mxu0 0.0
      %7209 = vmatmul.mubr.f32.gmra.mrb[0].mxu0 %v7013
      %v7210 = vpop.f32.mrb[0].mxu0
      %v7211 = vadd.f32 0.0, %v7210
      %v7212 = vpop.f32.mrb[0].mxu0
      %7213 = vmatprep.mubr.f32.mxu0 0.0
      %7214 = vmatmul.mubr.f32.gmra.mrb[0].mxu0 %v7016
      %v7215 = vpop.f32.mrb[0].mxu0
      %v7216 = vadd.f32 0.0, %v7215
      %v7217 = vpop.f32.mrb[0].mxu0
      %7218 = vmatprep.mubr.f32.mxu0 0.0
      %7219 = vmatmul.mubr.f32.gmra.mrb[0].mxu0 %v7019
      %v7220 = vpop.f32.mrb[0].mxu0
      %v7221 = vadd.f32 0.0, %v7220
      %v7222 = vpop.f32.mrb[0].mxu0
      %7223 = vmatprep.mubr.f32.mxu0 0.0
      %7224 = vmatmul.mubr.f32.gmra.mrb[0].mxu0 %v7022
      %v7225 = vpop.f32.mrb[0].mxu0
      %v7226 = vadd.f32 0.0, %v7225
      %v7227 = vpop.f32.mrb[0].mxu0
      %7228 = vmatprep.mubr.f32.mxu0 0.0
      %7229 = vmatmul.mubr.f32.gmra.mrb[0].mxu0 %v7025
      %v7230 = vpop.f32.mrb[0].mxu0
      %v7231 = vadd.f32 0.0, %v7230
      %v7232 = vpop.f32.mrb[0].mxu0
      %7233 = vmatprep.mubr.f32.mxu0 0.0
      %7234 = vmatmul.mubr.f32.gmra.mrb[0].mxu0 %v7028
      %v7235 = vpop.f32.mrb[0].mxu0
      %v7236 = vadd.f32 0.0, %v7235
      %v7237 = vpop.f32.mrb[0].mxu0
      %7238 = vmatprep.mubr.f32.mxu0 0.0
      %7239 = vmatmul.mubr.f32.gmra.mrb[0].mxu0 %v7031
      %v7240 = vpop.f32.mrb[0].mxu0
      %v7241 = vadd.f32 0.0, %v7240
      %v7242 = vpop.f32.mrb[0].mxu0
      %7243 = vmatprep.mubr.f32.mxu0 0.0
      %7244 = vmatmul.mubr.f32.gmra.mrb[0].mxu0 %v7034
      %v7245 = vpop.f32.mrb[0].mxu0
      %v7246 = vadd.f32 0.0, %v7245
      %v7247 = vpop.f32.mrb[0].mxu0
      %7248 = vmatprep.mubr.f32.mxu0 0.0
      %7249 = vmatmul.mubr.f32.gmra.mrb[0].mxu0 %v7037
      %v7250 = vpop.f32.mrb[0].mxu0
      %v7251 = vadd.f32 0.0, %v7250
      %v7252 = vpop.f32.mrb[0].mxu0
      %7253 = vmatprep.mubr.f32.mxu0 0.0
      %7254 = vmatmul.mubr.f32.gmra.mrb[0].mxu0 %v7040
      %v7255 = vpop.f32.mrb[0].mxu0
      %v7256 = vadd.f32 0.0, %v7255
      %v7257 = vpop.f32.mrb[0].mxu0
      %7258 = vmatprep.mubr.f32.mxu0 0.0
      %7259 = vmatmul.mubr.f32.gmra.mrb[0].mxu0 %v7043
      %v7260 = vpop.f32.mrb[0].mxu0
      %v7261 = vadd.f32 0.0, %v7260
      %v7262 = vpop.f32.mrb[0].mxu0
      %7263 = vmatprep.mubr.f32.mxu0 0.0
      %7264 = vmatmul.mubr.f32.gmra.mrb[0].mxu0 %v7046
      %v7265 = vpop.f32.mrb[0].mxu0
      %v7266 = vadd.f32 0.0, %v7265
      %v7267 = vpop.f32.mrb[0].mxu0
      %7268 = vmatprep.mubr.f32.mxu0 0.0
      %7269 = vmatmul.mubr.f32.gmra.mrb[0].mxu0 %v7049
      %v7270 = vpop.f32.mrb[0].mxu0
      %v7271 = vadd.f32 0.0, %v7270
      %v7272 = vpop.f32.mrb[0].mxu0
      %7273 = vmatprep.mubr.f32.mxu0 0.0
      %7274 = vmatmul.mubr.f32.gmra.mrb[0].mxu0 %v7052
      %v7275 = vpop.f32.mrb[0].mxu0
      %v7276 = vadd.f32 0.0, %v7275
      %v7277 = vpop.f32.mrb[0].mxu0
      %7278 = vdwg.mxu0
      %v7279 = vadd.f32 %v6924, %v7121
      %v7280 = vadd.f32 %v6925, %v7126
      %v7281 = vadd.f32 %v6926, %v7131
      %v7282 = vadd.f32 %v6927, %v7136
      %v7283 = vadd.f32 %v6928, %v7141
      %v7284 = vadd.f32 %v6929, %v7146
      %v7285 = vadd.f32 %v6930, %v7151
      %v7286 = vadd.f32 %v6931, %v7156
      %v7287 = vadd.f32 %v6932, %v7161
      %v7288 = vadd.f32 %v6933, %v7166
      %v7289 = vadd.f32 %v6934, %v7171
      %v7290 = vadd.f32 %v6935, %v7176
      %v7291 = vadd.f32 %v6936, %v7181
      %v7292 = vadd.f32 %v6937, %v7186
      %v7293 = vadd.f32 %v6938, %v7191
      %v7294 = vadd.f32 %v6939, %v7196
      %v7295 = vadd.f32 %v6940, %v7201
      %v7296 = vadd.f32 %v6941, %v7206
      %v7297 = vadd.f32 %v6942, %v7211
      %v7298 = vadd.f32 %v6943, %v7216
      %v7299 = vadd.f32 %v6944, %v7221
      %v7300 = vadd.f32 %v6945, %v7226
      %v7301 = vadd.f32 %v6946, %v7231
      %v7302 = vadd.f32 %v6947, %v7236
      %v7303 = vadd.f32 %v6948, %v7241
      %v7304 = vadd.f32 %v6949, %v7246
      %v7305 = vadd.f32 %v6950, %v7251
      %v7306 = vadd.f32 %v6951, %v7256
      %v7307 = vadd.f32 %v6952, %v7261
      %v7308 = vadd.f32 %v6953, %v7266
      %v7309 = vadd.f32 %v6954, %v7271
      %v7310 = vadd.f32 %v6955, %v7276
      %7311 = vst.msk [vmem:[#allocation4] sm:$0xff] %vm269, %v7279
      %7312 = vst.msk [vmem:[#allocation4 + $0x8] sm:$0xff] %vm269, %v7280
      %7313 = vst.msk [vmem:[#allocation4 + $0x10] sm:$0xff] %vm269, %v7281
      %7314 = vst.msk [vmem:[#allocation4 + $0x18] sm:$0xff] %vm269, %v7282
      %7315 = vst.msk [vmem:[#allocation4 + $0x20] sm:$0xff] %vm269, %v7283
      %7316 = vst.msk [vmem:[#allocation4 + $0x28] sm:$0xff] %vm269, %v7284
      %7317 = vst.msk [vmem:[#allocation4 + $0x30] sm:$0xff] %vm269, %v7285
      %7318 = vst.msk [vmem:[#allocation4 + $0x38] sm:$0xff] %vm269, %v7286
      %7319 = vst.msk [vmem:[#allocation4 + $0x40] sm:$0xff] %vm269, %v7287
      %7320 = vst.msk [vmem:[#allocation4 + $0x48] sm:$0xff] %vm269, %v7288
      %7321 = vst.msk [vmem:[#allocation4 + $0x50] sm:$0xff] %vm269, %v7289
      %7322 = vst.msk [vmem:[#allocation4 + $0x58] sm:$0xff] %vm269, %v7290
      %7323 = vst.msk [vmem:[#allocation4 + $0x60] sm:$0xff] %vm269, %v7291
      %7324 = vst.msk [vmem:[#allocation4 + $0x68] sm:$0xff] %vm269, %v7292
      %7325 = vst.msk [vmem:[#allocation4 + $0x70] sm:$0xff] %vm269, %v7293
      %7326 = vst.msk [vmem:[#allocation4 + $0x78] sm:$0xff] %vm269, %v7294
      %7327 = vst.msk [vmem:[#allocation4 + $0x80] sm:$0xff] %vm269, %v7295
      %7328 = vst.msk [vmem:[#allocation4 + $0x88] sm:$0xff] %vm269, %v7296
      %7329 = vst.msk [vmem:[#allocation4 + $0x90] sm:$0xff] %vm269, %v7297
      %7330 = vst.msk [vmem:[#allocation4 + $0x98] sm:$0xff] %vm269, %v7298
      %7331 = vst.msk [vmem:[#allocation4 + $0xa0] sm:$0xff] %vm269, %v7299
      %7332 = vst.msk [vmem:[#allocation4 + $0xa8] sm:$0xff] %vm269, %v7300
      %7333 = vst.msk [vmem:[#allocation4 + $0xb0] sm:$0xff] %vm269, %v7301
      %7334 = vst.msk [vmem:[#allocation4 + $0xb8] sm:$0xff] %vm269, %v7302
      %7335 = vst.msk [vmem:[#allocation4 + $0xc0] sm:$0xff] %vm269, %v7303
      %7336 = vst.msk [vmem:[#allocation4 + $0xc8] sm:$0xff] %vm269, %v7304
      %7337 = vst.msk [vmem:[#allocation4 + $0xd0] sm:$0xff] %vm269, %v7305
      %7338 = vst.msk [vmem:[#allocation4 + $0xd8] sm:$0xff] %vm269, %v7306
      %7339 = vst.msk [vmem:[#allocation4 + $0xe0] sm:$0xff] %vm269, %v7307
      %7340 = vst.msk [vmem:[#allocation4 + $0xe8] sm:$0xff] %vm269, %v7308
      %7341 = vst.msk [vmem:[#allocation4 + $0xf0] sm:$0xff] %vm269, %v7309
      %7342 = vst.msk [vmem:[#allocation4 + $0xf8] sm:$0xff] %vm269, %v7310
      %s7343 = scalar_lea.vmem [#allocation3], 64
      %v7344 = vld [vmem:[%s7343 + $0x7] sm:$0xff]
      %v7345 = vld [vmem:[%s7343 + $0xf] sm:$0xff]
      %v7346 = vld [vmem:[%s7343 + $0x27] sm:$0xff]
      %v7347 = vld [vmem:[%s7343 + $0x2f] sm:$0xff]
      %v7348 = vld [vmem:[%s7343 + $0x47] sm:$0xff]
      %v7349 = vld [vmem:[%s7343 + $0x4f] sm:$0xff]
      %v7350 = vld [vmem:[%s7343 + $0x67] sm:$0xff]
      %v7351 = vld [vmem:[%s7343 + $0x6f] sm:$0xff]
      %v7352 = vld [vmem:[%s7343 + $0x87] sm:$0xff]
      %v7353 = vld [vmem:[%s7343 + $0x8f] sm:$0xff]
      %v7354 = vld [vmem:[%s7343 + $0xa7] sm:$0xff]
      %v7355 = vld [vmem:[%s7343 + $0xaf] sm:$0xff]
      %v7356 = vld [vmem:[%s7343 + $0xc7] sm:$0xff]
      %v7357 = vld [vmem:[%s7343 + $0xcf] sm:$0xff]
      %v7358 = vld [vmem:[%s7343 + $0xe7] sm:$0xff]
      %v7359 = vld [vmem:[%s7343 + $0xef] sm:$0xff]
      %v7360 = vld [vmem:[%s7343 + $0x107] sm:$0xff]
      %v7361 = vld [vmem:[%s7343 + $0x10f] sm:$0xff]
      %v7362 = vld [vmem:[%s7343 + $0x127] sm:$0xff]
      %v7363 = vld [vmem:[%s7343 + $0x12f] sm:$0xff]
      %v7364 = vld [vmem:[%s7343 + $0x147] sm:$0xff]
      %v7365 = vld [vmem:[%s7343 + $0x14f] sm:$0xff]
      %v7366 = vld [vmem:[%s7343 + $0x167] sm:$0xff]
      %v7367 = vld [vmem:[%s7343 + $0x16f] sm:$0xff]
      %v7368 = vld [vmem:[%s7343 + $0x187] sm:$0xff]
      %v7369 = vld [vmem:[%s7343 + $0x18f] sm:$0xff]
      %v7370 = vld [vmem:[%s7343 + $0x1a7] sm:$0xff]
      %v7371 = vld [vmem:[%s7343 + $0x1af] sm:$0xff]
      %v7372 = vld [vmem:[%s7343 + $0x1c7] sm:$0xff]
      %v7373 = vld [vmem:[%s7343 + $0x1cf] sm:$0xff]
      %v7374 = vld [vmem:[%s7343 + $0x1e7] sm:$0xff]
      %v7375 = vld [vmem:[%s7343 + $0x1ef] sm:$0xff]
      %v7376 = vld [vmem:[#allocation4] sm:$0xff]
      %v7377 = vld [vmem:[#allocation4 + $0x8] sm:$0xff]
      %v7378 = vld [vmem:[#allocation4 + $0x10] sm:$0xff]
      %v7379 = vld [vmem:[#allocation4 + $0x18] sm:$0xff]
      %v7380 = vld [vmem:[#allocation4 + $0x20] sm:$0xff]
      %v7381 = vld [vmem:[#allocation4 + $0x28] sm:$0xff]
      %v7382 = vld [vmem:[#allocation4 + $0x30] sm:$0xff]
      %v7383 = vld [vmem:[#allocation4 + $0x38] sm:$0xff]
      %v7384 = vld [vmem:[#allocation4 + $0x40] sm:$0xff]
      %v7385 = vld [vmem:[#allocation4 + $0x48] sm:$0xff]
      %v7386 = vld [vmem:[#allocation4 + $0x50] sm:$0xff]
      %v7387 = vld [vmem:[#allocation4 + $0x58] sm:$0xff]
      %v7388 = vld [vmem:[#allocation4 + $0x60] sm:$0xff]
      %v7389 = vld [vmem:[#allocation4 + $0x68] sm:$0xff]
      %v7390 = vld [vmem:[#allocation4 + $0x70] sm:$0xff]
      %v7391 = vld [vmem:[#allocation4 + $0x78] sm:$0xff]
      %v7392 = vld [vmem:[#allocation4 + $0x80] sm:$0xff]
      %v7393 = vld [vmem:[#allocation4 + $0x88] sm:$0xff]
      %v7394 = vld [vmem:[#allocation4 + $0x90] sm:$0xff]
      %v7395 = vld [vmem:[#allocation4 + $0x98] sm:$0xff]
      %v7396 = vld [vmem:[#allocation4 + $0xa0] sm:$0xff]
      %v7397 = vld [vmem:[#allocation4 + $0xa8] sm:$0xff]
      %v7398 = vld [vmem:[#allocation4 + $0xb0] sm:$0xff]
      %v7399 = vld [vmem:[#allocation4 + $0xb8] sm:$0xff]
      %v7400 = vld [vmem:[#allocation4 + $0xc0] sm:$0xff]
      %v7401 = vld [vmem:[#allocation4 + $0xc8] sm:$0xff]
      %v7402 = vld [vmem:[#allocation4 + $0xd0] sm:$0xff]
      %v7403 = vld [vmem:[#allocation4 + $0xd8] sm:$0xff]
      %v7404 = vld [vmem:[#allocation4 + $0xe0] sm:$0xff]
      %v7405 = vld [vmem:[#allocation4 + $0xe8] sm:$0xff]
      %v7406 = vld [vmem:[#allocation4 + $0xf0] sm:$0xff]
      %v7407 = vld [vmem:[#allocation4 + $0xf8] sm:$0xff]
      %s7408 = scalar_lea.vmem %s3, 48
      %v7409 = vld [vmem:[%s7408] sm:$0xff]
      %v7411 = vsel %vm269, %v7344, 0
      %v7414 = vsel %vm269, %v7345, 0
      %v7417 = vsel %vm269, %v7346, 0
      %v7420 = vsel %vm269, %v7347, 0
      %v7423 = vsel %vm269, %v7348, 0
      %v7426 = vsel %vm269, %v7349, 0
      %v7429 = vsel %vm269, %v7350, 0
      %v7432 = vsel %vm269, %v7351, 0
      %v7435 = vsel %vm269, %v7352, 0
      %v7438 = vsel %vm269, %v7353, 0
      %v7441 = vsel %vm269, %v7354, 0
      %v7444 = vsel %vm269, %v7355, 0
      %v7447 = vsel %vm269, %v7356, 0
      %v7450 = vsel %vm269, %v7357, 0
      %v7453 = vsel %vm269, %v7358, 0
      %v7456 = vsel %vm269, %v7359, 0
      %v7459 = vsel %vm269, %v7360, 0
      %v7462 = vsel %vm269, %v7361, 0
      %v7465 = vsel %vm269, %v7362, 0
      %v7468 = vsel %vm269, %v7363, 0
      %v7471 = vsel %vm269, %v7364, 0
      %v7474 = vsel %vm269, %v7365, 0
      %v7477 = vsel %vm269, %v7366, 0
      %v7480 = vsel %vm269, %v7367, 0
      %v7483 = vsel %vm269, %v7368, 0
      %v7486 = vsel %vm269, %v7369, 0
      %v7489 = vsel %vm269, %v7370, 0
      %v7492 = vsel %vm269, %v7371, 0
      %v7495 = vsel %vm269, %v7372, 0
      %v7498 = vsel %vm269, %v7373, 0
      %v7501 = vsel %vm269, %v7374, 0
      %v7504 = vsel %vm269, %v7375, 0
      %7506 = vmatprep.subr.mxu0 0.0
      %7507 = vmatpush1.msra.mxu0 %v7409
      %7508 = vmatprep.subr.mxu0 0.0
      %7509 = vmatpush1.msra.mxu0 0.0
      %7510 = vmatprep.subr.mxu0 0.0
      %7511 = vmatpush1.msra.mxu0 0.0
      %7512 = vmatprep.subr.mxu0 0.0
      %7513 = vmatpush1.msra.mxu0 0.0
      %7514 = vmatprep.subr.mxu0 0.0
      %7515 = vmatpush1.msra.mxu0 0.0
      %7516 = vmatprep.subr.mxu0 0.0
      %7517 = vmatpush1.msra.mxu0 0.0
      %7518 = vmatprep.subr.mxu0 0.0
      %7519 = vmatpush1.msra.mxu0 0.0
      %7520 = vmatprep.subr.mxu0 0.0
      %7521 = vmatpush1.msra.mxu0 0.0
      %7522 = vmatprep.subr.mxu0 0.0
      %7523 = vmatpush1.msra.mxu0 0.0
      %7524 = vmatprep.subr.mxu0 0.0
      %7525 = vmatpush1.msra.mxu0 0.0
      %7526 = vmatprep.subr.mxu0 0.0
      %7527 = vmatpush1.msra.mxu0 0.0
      %7528 = vmatprep.subr.mxu0 0.0
      %7529 = vmatpush1.msra.mxu0 0.0
      %7530 = vmatprep.subr.mxu0 0.0
      %7531 = vmatpush1.msra.mxu0 0.0
      %7532 = vmatprep.subr.mxu0 0.0
      %7533 = vmatpush1.msra.mxu0 0.0
      %7534 = vmatprep.subr.mxu0 0.0
      %7535 = vmatpush1.msra.mxu0 0.0
      %7536 = vmatprep.subr.mxu0 0.0
      %7537 = vmatpush1.msra.mxu0 0.0
      %7538 = vmatprep.subr.mxu0 0.0
      %7539 = vmatpush1.msra.mxu0 0.0
      %7540 = vmatprep.subr.mxu0 0.0
      %7541 = vmatpush1.msra.mxu0 0.0
      %7542 = vmatprep.subr.mxu0 0.0
      %7543 = vmatpush1.msra.mxu0 0.0
      %7544 = vmatprep.subr.mxu0 0.0
      %7545 = vmatpush1.msra.mxu0 0.0
      %7546 = vmatprep.subr.mxu0 0.0
      %7547 = vmatpush1.msra.mxu0 0.0
      %7548 = vmatprep.subr.mxu0 0.0
      %7549 = vmatpush1.msra.mxu0 0.0
      %7550 = vmatprep.subr.mxu0 0.0
      %7551 = vmatpush1.msra.mxu0 0.0
      %7552 = vmatprep.subr.mxu0 0.0
      %7553 = vmatpush1.msra.mxu0 0.0
      %7554 = vmatprep.subr.mxu0 0.0
      %7555 = vmatpush1.msra.mxu0 0.0
      %7556 = vmatprep.subr.mxu0 0.0
      %7557 = vmatpush1.msra.mxu0 0.0
      %7558 = vmatprep.subr.mxu0 0.0
      %7559 = vmatpush1.msra.mxu0 0.0
      %7560 = vmatprep.subr.mxu0 0.0
      %7561 = vmatpush1.msra.mxu0 0.0
      %7562 = vmatprep.subr.mxu0 0.0
      %7563 = vmatpush1.msra.mxu0 0.0
      %7564 = vmatprep.subr.mxu0 0.0
      %7565 = vmatpush1.msra.mxu0 0.0
      %7566 = vmatprep.subr.mxu0 0.0
      %7567 = vmatpush1.msra.mxu0 0.0
      %7568 = vmatprep.subr.mxu0 0.0
      %7569 = vmatpush1.msra.mxu0 0.0
      %7570 = vmatprep.mubr.f32.mxu0 0.0
      %7571 = vmatmul.mubr.f32.gmra.mrb[0].mxu0 %v7411
      %v7572 = vpop.f32.mrb[0].mxu0
      %v7573 = vadd.f32 0.0, %v7572
      %v7574 = vpop.f32.mrb[0].mxu0
      %7575 = vmatprep.mubr.f32.mxu0 0.0
      %7576 = vmatmul.mubr.f32.gmra.mrb[0].mxu0 %v7414
      %v7577 = vpop.f32.mrb[0].mxu0
      %v7578 = vadd.f32 0.0, %v7577
      %v7579 = vpop.f32.mrb[0].mxu0
      %7580 = vmatprep.mubr.f32.mxu0 0.0
      %7581 = vmatmul.mubr.f32.gmra.mrb[0].mxu0 %v7417
      %v7582 = vpop.f32.mrb[0].mxu0
      %v7583 = vadd.f32 0.0, %v7582
      %v7584 = vpop.f32.mrb[0].mxu0
      %7585 = vmatprep.mubr.f32.mxu0 0.0
      %7586 = vmatmul.mubr.f32.gmra.mrb[0].mxu0 %v7420
      %v7587 = vpop.f32.mrb[0].mxu0
      %v7588 = vadd.f32 0.0, %v7587
      %v7589 = vpop.f32.mrb[0].mxu0
      %7590 = vmatprep.mubr.f32.mxu0 0.0
      %7591 = vmatmul.mubr.f32.gmra.mrb[0].mxu0 %v7423
      %v7592 = vpop.f32.mrb[0].mxu0
      %v7593 = vadd.f32 0.0, %v7592
      %v7594 = vpop.f32.mrb[0].mxu0
      %7595 = vmatprep.mubr.f32.mxu0 0.0
      %7596 = vmatmul.mubr.f32.gmra.mrb[0].mxu0 %v7426
      %v7597 = vpop.f32.mrb[0].mxu0
      %v7598 = vadd.f32 0.0, %v7597
      %v7599 = vpop.f32.mrb[0].mxu0
      %7600 = vmatprep.mubr.f32.mxu0 0.0
      %7601 = vmatmul.mubr.f32.gmra.mrb[0].mxu0 %v7429
      %v7602 = vpop.f32.mrb[0].mxu0
      %v7603 = vadd.f32 0.0, %v7602
      %v7604 = vpop.f32.mrb[0].mxu0
      %7605 = vmatprep.mubr.f32.mxu0 0.0
      %7606 = vmatmul.mubr.f32.gmra.mrb[0].mxu0 %v7432
      %v7607 = vpop.f32.mrb[0].mxu0
      %v7608 = vadd.f32 0.0, %v7607
      %v7609 = vpop.f32.mrb[0].mxu0
      %7610 = vmatprep.mubr.f32.mxu0 0.0
      %7611 = vmatmul.mubr.f32.gmra.mrb[0].mxu0 %v7435
      %v7612 = vpop.f32.mrb[0].mxu0
      %v7613 = vadd.f32 0.0, %v7612
      %v7614 = vpop.f32.mrb[0].mxu0
      %7615 = vmatprep.mubr.f32.mxu0 0.0
      %7616 = vmatmul.mubr.f32.gmra.mrb[0].mxu0 %v7438
      %v7617 = vpop.f32.mrb[0].mxu0
      %v7618 = vadd.f32 0.0, %v7617
      %v7619 = vpop.f32.mrb[0].mxu0
      %7620 = vmatprep.mubr.f32.mxu0 0.0
      %7621 = vmatmul.mubr.f32.gmra.mrb[0].mxu0 %v7441
      %v7622 = vpop.f32.mrb[0].mxu0
      %v7623 = vadd.f32 0.0, %v7622
      %v7624 = vpop.f32.mrb[0].mxu0
      %7625 = vmatprep.mubr.f32.mxu0 0.0
      %7626 = vmatmul.mubr.f32.gmra.mrb[0].mxu0 %v7444
      %v7627 = vpop.f32.mrb[0].mxu0
      %v7628 = vadd.f32 0.0, %v7627
      %v7629 = vpop.f32.mrb[0].mxu0
      %7630 = vmatprep.mubr.f32.mxu0 0.0
      %7631 = vmatmul.mubr.f32.gmra.mrb[0].mxu0 %v7447
      %v7632 = vpop.f32.mrb[0].mxu0
      %v7633 = vadd.f32 0.0, %v7632
      %v7634 = vpop.f32.mrb[0].mxu0
      %7635 = vmatprep.mubr.f32.mxu0 0.0
      %7636 = vmatmul.mubr.f32.gmra.mrb[0].mxu0 %v7450
      %v7637 = vpop.f32.mrb[0].mxu0
      %v7638 = vadd.f32 0.0, %v7637
      %v7639 = vpop.f32.mrb[0].mxu0
      %7640 = vmatprep.mubr.f32.mxu0 0.0
      %7641 = vmatmul.mubr.f32.gmra.mrb[0].mxu0 %v7453
      %v7642 = vpop.f32.mrb[0].mxu0
      %v7643 = vadd.f32 0.0, %v7642
      %v7644 = vpop.f32.mrb[0].mxu0
      %7645 = vmatprep.mubr.f32.mxu0 0.0
      %7646 = vmatmul.mubr.f32.gmra.mrb[0].mxu0 %v7456
      %v7647 = vpop.f32.mrb[0].mxu0
      %v7648 = vadd.f32 0.0, %v7647
      %v7649 = vpop.f32.mrb[0].mxu0
      %7650 = vmatprep.mubr.f32.mxu0 0.0
      %7651 = vmatmul.mubr.f32.gmra.mrb[0].mxu0 %v7459
      %v7652 = vpop.f32.mrb[0].mxu0
      %v7653 = vadd.f32 0.0, %v7652
      %v7654 = vpop.f32.mrb[0].mxu0
      %7655 = vmatprep.mubr.f32.mxu0 0.0
      %7656 = vmatmul.mubr.f32.gmra.mrb[0].mxu0 %v7462
      %v7657 = vpop.f32.mrb[0].mxu0
      %v7658 = vadd.f32 0.0, %v7657
      %v7659 = vpop.f32.mrb[0].mxu0
      %7660 = vmatprep.mubr.f32.mxu0 0.0
      %7661 = vmatmul.mubr.f32.gmra.mrb[0].mxu0 %v7465
      %v7662 = vpop.f32.mrb[0].mxu0
      %v7663 = vadd.f32 0.0, %v7662
      %v7664 = vpop.f32.mrb[0].mxu0
      %7665 = vmatprep.mubr.f32.mxu0 0.0
      %7666 = vmatmul.mubr.f32.gmra.mrb[0].mxu0 %v7468
      %v7667 = vpop.f32.mrb[0].mxu0
      %v7668 = vadd.f32 0.0, %v7667
      %v7669 = vpop.f32.mrb[0].mxu0
      %7670 = vmatprep.mubr.f32.mxu0 0.0
      %7671 = vmatmul.mubr.f32.gmra.mrb[0].mxu0 %v7471
      %v7672 = vpop.f32.mrb[0].mxu0
      %v7673 = vadd.f32 0.0, %v7672
      %v7674 = vpop.f32.mrb[0].mxu0
      %7675 = vmatprep.mubr.f32.mxu0 0.0
      %7676 = vmatmul.mubr.f32.gmra.mrb[0].mxu0 %v7474
      %v7677 = vpop.f32.mrb[0].mxu0
      %v7678 = vadd.f32 0.0, %v7677
      %v7679 = vpop.f32.mrb[0].mxu0
      %7680 = vmatprep.mubr.f32.mxu0 0.0
      %7681 = vmatmul.mubr.f32.gmra.mrb[0].mxu0 %v7477
      %v7682 = vpop.f32.mrb[0].mxu0
      %v7683 = vadd.f32 0.0, %v7682
      %v7684 = vpop.f32.mrb[0].mxu0
      %7685 = vmatprep.mubr.f32.mxu0 0.0
      %7686 = vmatmul.mubr.f32.gmra.mrb[0].mxu0 %v7480
      %v7687 = vpop.f32.mrb[0].mxu0
      %v7688 = vadd.f32 0.0, %v7687
      %v7689 = vpop.f32.mrb[0].mxu0
      %7690 = vmatprep.mubr.f32.mxu0 0.0
      %7691 = vmatmul.mubr.f32.gmra.mrb[0].mxu0 %v7483
      %v7692 = vpop.f32.mrb[0].mxu0
      %v7693 = vadd.f32 0.0, %v7692
      %v7694 = vpop.f32.mrb[0].mxu0
      %7695 = vmatprep.mubr.f32.mxu0 0.0
      %7696 = vmatmul.mubr.f32.gmra.mrb[0].mxu0 %v7486
      %v7697 = vpop.f32.mrb[0].mxu0
      %v7698 = vadd.f32 0.0, %v7697
      %v7699 = vpop.f32.mrb[0].mxu0
      %7700 = vmatprep.mubr.f32.mxu0 0.0
      %7701 = vmatmul.mubr.f32.gmra.mrb[0].mxu0 %v7489
      %v7702 = vpop.f32.mrb[0].mxu0
      %v7703 = vadd.f32 0.0, %v7702
      %v7704 = vpop.f32.mrb[0].mxu0
      %7705 = vmatprep.mubr.f32.mxu0 0.0
      %7706 = vmatmul.mubr.f32.gmra.mrb[0].mxu0 %v7492
      %v7707 = vpop.f32.mrb[0].mxu0
      %v7708 = vadd.f32 0.0, %v7707
      %v7709 = vpop.f32.mrb[0].mxu0
      %7710 = vmatprep.mubr.f32.mxu0 0.0
      %7711 = vmatmul.mubr.f32.gmra.mrb[0].mxu0 %v7495
      %v7712 = vpop.f32.mrb[0].mxu0
      %v7713 = vadd.f32 0.0, %v7712
      %v7714 = vpop.f32.mrb[0].mxu0
      %7715 = vmatprep.mubr.f32.mxu0 0.0
      %7716 = vmatmul.mubr.f32.gmra.mrb[0].mxu0 %v7498
      %v7717 = vpop.f32.mrb[0].mxu0
      %v7718 = vadd.f32 0.0, %v7717
      %v7719 = vpop.f32.mrb[0].mxu0
      %7720 = vmatprep.mubr.f32.mxu0 0.0
      %7721 = vmatmul.mubr.f32.gmra.mrb[0].mxu0 %v7501
      %v7722 = vpop.f32.mrb[0].mxu0
      %v7723 = vadd.f32 0.0, %v7722
      %v7724 = vpop.f32.mrb[0].mxu0
      %7725 = vmatprep.mubr.f32.mxu0 0.0
      %7726 = vmatmul.mubr.f32.gmra.mrb[0].mxu0 %v7504
      %v7727 = vpop.f32.mrb[0].mxu0
      %v7728 = vadd.f32 0.0, %v7727
      %v7729 = vpop.f32.mrb[0].mxu0
      %7730 = vdwg.mxu0
      %v7731 = vadd.f32 %v7376, %v7573
      %v7732 = vadd.f32 %v7377, %v7578
      %v7733 = vadd.f32 %v7378, %v7583
      %v7734 = vadd.f32 %v7379, %v7588
      %v7735 = vadd.f32 %v7380, %v7593
      %v7736 = vadd.f32 %v7381, %v7598
      %v7737 = vadd.f32 %v7382, %v7603
      %v7738 = vadd.f32 %v7383, %v7608
      %v7739 = vadd.f32 %v7384, %v7613
      %v7740 = vadd.f32 %v7385, %v7618
      %v7741 = vadd.f32 %v7386, %v7623
      %v7742 = vadd.f32 %v7387, %v7628
      %v7743 = vadd.f32 %v7388, %v7633
      %v7744 = vadd.f32 %v7389, %v7638
      %v7745 = vadd.f32 %v7390, %v7643
      %v7746 = vadd.f32 %v7391, %v7648
      %v7747 = vadd.f32 %v7392, %v7653
      %v7748 = vadd.f32 %v7393, %v7658
      %v7749 = vadd.f32 %v7394, %v7663
      %v7750 = vadd.f32 %v7395, %v7668
      %v7751 = vadd.f32 %v7396, %v7673
      %v7752 = vadd.f32 %v7397, %v7678
      %v7753 = vadd.f32 %v7398, %v7683
      %v7754 = vadd.f32 %v7399, %v7688
      %v7755 = vadd.f32 %v7400, %v7693
      %v7756 = vadd.f32 %v7401, %v7698
      %v7757 = vadd.f32 %v7402, %v7703
      %v7758 = vadd.f32 %v7403, %v7708
      %v7759 = vadd.f32 %v7404, %v7713
      %v7760 = vadd.f32 %v7405, %v7718
      %v7761 = vadd.f32 %v7406, %v7723
      %v7762 = vadd.f32 %v7407, %v7728
      %7763 = vst.msk [vmem:[#allocation4] sm:$0xff] %vm269, %v7731
      %7764 = vst.msk [vmem:[#allocation4 + $0x8] sm:$0xff] %vm269, %v7732
      %7765 = vst.msk [vmem:[#allocation4 + $0x10] sm:$0xff] %vm269, %v7733
      %7766 = vst.msk [vmem:[#allocation4 + $0x18] sm:$0xff] %vm269, %v7734
      %7767 = vst.msk [vmem:[#allocation4 + $0x20] sm:$0xff] %vm269, %v7735
      %7768 = vst.msk [vmem:[#allocation4 + $0x28] sm:$0xff] %vm269, %v7736
      %7769 = vst.msk [vmem:[#allocation4 + $0x30] sm:$0xff] %vm269, %v7737
      %7770 = vst.msk [vmem:[#allocation4 + $0x38] sm:$0xff] %vm269, %v7738
      %7771 = vst.msk [vmem:[#allocation4 + $0x40] sm:$0xff] %vm269, %v7739
      %7772 = vst.msk [vmem:[#allocation4 + $0x48] sm:$0xff] %vm269, %v7740
      %7773 = vst.msk [vmem:[#allocation4 + $0x50] sm:$0xff] %vm269, %v7741
      %7774 = vst.msk [vmem:[#allocation4 + $0x58] sm:$0xff] %vm269, %v7742
      %7775 = vst.msk [vmem:[#allocation4 + $0x60] sm:$0xff] %vm269, %v7743
      %7776 = vst.msk [vmem:[#allocation4 + $0x68] sm:$0xff] %vm269, %v7744
      %7777 = vst.msk [vmem:[#allocation4 + $0x70] sm:$0xff] %vm269, %v7745
      %7778 = vst.msk [vmem:[#allocation4 + $0x78] sm:$0xff] %vm269, %v7746
      %7779 = vst.msk [vmem:[#allocation4 + $0x80] sm:$0xff] %vm269, %v7747
      %7780 = vst.msk [vmem:[#allocation4 + $0x88] sm:$0xff] %vm269, %v7748
      %7781 = vst.msk [vmem:[#allocation4 + $0x90] sm:$0xff] %vm269, %v7749
      %7782 = vst.msk [vmem:[#allocation4 + $0x98] sm:$0xff] %vm269, %v7750
      %7783 = vst.msk [vmem:[#allocation4 + $0xa0] sm:$0xff] %vm269, %v7751
      %7784 = vst.msk [vmem:[#allocation4 + $0xa8] sm:$0xff] %vm269, %v7752
      %7785 = vst.msk [vmem:[#allocation4 + $0xb0] sm:$0xff] %vm269, %v7753
      %7786 = vst.msk [vmem:[#allocation4 + $0xb8] sm:$0xff] %vm269, %v7754
      %7787 = vst.msk [vmem:[#allocation4 + $0xc0] sm:$0xff] %vm269, %v7755
      %7788 = vst.msk [vmem:[#allocation4 + $0xc8] sm:$0xff] %vm269, %v7756
      %7789 = vst.msk [vmem:[#allocation4 + $0xd0] sm:$0xff] %vm269, %v7757
      %7790 = vst.msk [vmem:[#allocation4 + $0xd8] sm:$0xff] %vm269, %v7758
      %7791 = vst.msk [vmem:[#allocation4 + $0xe0] sm:$0xff] %vm269, %v7759
      %7792 = vst.msk [vmem:[#allocation4 + $0xe8] sm:$0xff] %vm269, %v7760
      %7793 = vst.msk [vmem:[#allocation4 + $0xf0] sm:$0xff] %vm269, %v7761
      %7794 = vst.msk [vmem:[#allocation4 + $0xf8] sm:$0xff] %vm269, %v7762
      %v7795 = vld [vmem:[%s7343 + $0x8] sm:$0xff]
      %v7796 = vld [vmem:[%s7343 + $0x10] sm:$0xff]
      %v7797 = vld [vmem:[%s7343 + $0x28] sm:$0xff]
      %v7798 = vld [vmem:[%s7343 + $0x30] sm:$0xff]
      %v7799 = vld [vmem:[%s7343 + $0x48] sm:$0xff]
      %v7800 = vld [vmem:[%s7343 + $0x50] sm:$0xff]
      %v7801 = vld [vmem:[%s7343 + $0x68] sm:$0xff]
      %v7802 = vld [vmem:[%s7343 + $0x70] sm:$0xff]
      %v7803 = vld [vmem:[%s7343 + $0x88] sm:$0xff]
      %v7804 = vld [vmem:[%s7343 + $0x90] sm:$0xff]
      %v7805 = vld [vmem:[%s7343 + $0xa8] sm:$0xff]
      %v7806 = vld [vmem:[%s7343 + $0xb0] sm:$0xff]
      %v7807 = vld [vmem:[%s7343 + $0xc8] sm:$0xff]
      %v7808 = vld [vmem:[%s7343 + $0xd0] sm:$0xff]
      %v7809 = vld [vmem:[%s7343 + $0xe8] sm:$0xff]
      %v7810 = vld [vmem:[%s7343 + $0xf0] sm:$0xff]
      %v7811 = vld [vmem:[%s7343 + $0x108] sm:$0xff]
      %v7812 = vld [vmem:[%s7343 + $0x110] sm:$0xff]
      %v7813 = vld [vmem:[%s7343 + $0x128] sm:$0xff]
      %v7814 = vld [vmem:[%s7343 + $0x130] sm:$0xff]
      %v7815 = vld [vmem:[%s7343 + $0x148] sm:$0xff]
      %v7816 = vld [vmem:[%s7343 + $0x150] sm:$0xff]
      %v7817 = vld [vmem:[%s7343 + $0x168] sm:$0xff]
      %v7818 = vld [vmem:[%s7343 + $0x170] sm:$0xff]
      %v7819 = vld [vmem:[%s7343 + $0x188] sm:$0xff]
      %v7820 = vld [vmem:[%s7343 + $0x190] sm:$0xff]
      %v7821 = vld [vmem:[%s7343 + $0x1a8] sm:$0xff]
      %v7822 = vld [vmem:[%s7343 + $0x1b0] sm:$0xff]
      %v7823 = vld [vmem:[%s7343 + $0x1c8] sm:$0xff]
      %v7824 = vld [vmem:[%s7343 + $0x1d0] sm:$0xff]
      %v7825 = vld [vmem:[%s7343 + $0x1e8] sm:$0xff]
      %v7826 = vld [vmem:[%s7343 + $0x1f0] sm:$0xff]
      %v7827 = vld [vmem:[#allocation4] sm:$0xff]
      %v7828 = vld [vmem:[#allocation4 + $0x8] sm:$0xff]
      %v7829 = vld [vmem:[#allocation4 + $0x10] sm:$0xff]
      %v7830 = vld [vmem:[#allocation4 + $0x18] sm:$0xff]
      %v7831 = vld [vmem:[#allocation4 + $0x20] sm:$0xff]
      %v7832 = vld [vmem:[#allocation4 + $0x28] sm:$0xff]
      %v7833 = vld [vmem:[#allocation4 + $0x30] sm:$0xff]
      %v7834 = vld [vmem:[#allocation4 + $0x38] sm:$0xff]
      %v7835 = vld [vmem:[#allocation4 + $0x40] sm:$0xff]
      %v7836 = vld [vmem:[#allocation4 + $0x48] sm:$0xff]
      %v7837 = vld [vmem:[#allocation4 + $0x50] sm:$0xff]
      %v7838 = vld [vmem:[#allocation4 + $0x58] sm:$0xff]
      %v7839 = vld [vmem:[#allocation4 + $0x60] sm:$0xff]
      %v7840 = vld [vmem:[#allocation4 + $0x68] sm:$0xff]
      %v7841 = vld [vmem:[#allocation4 + $0x70] sm:$0xff]
      %v7842 = vld [vmem:[#allocation4 + $0x78] sm:$0xff]
      %v7843 = vld [vmem:[#allocation4 + $0x80] sm:$0xff]
      %v7844 = vld [vmem:[#allocation4 + $0x88] sm:$0xff]
      %v7845 = vld [vmem:[#allocation4 + $0x90] sm:$0xff]
      %v7846 = vld [vmem:[#allocation4 + $0x98] sm:$0xff]
      %v7847 = vld [vmem:[#allocation4 + $0xa0] sm:$0xff]
      %v7848 = vld [vmem:[#allocation4 + $0xa8] sm:$0xff]
      %v7849 = vld [vmem:[#allocation4 + $0xb0] sm:$0xff]
      %v7850 = vld [vmem:[#allocation4 + $0xb8] sm:$0xff]
      %v7851 = vld [vmem:[#allocation4 + $0xc0] sm:$0xff]
      %v7852 = vld [vmem:[#allocation4 + $0xc8] sm:$0xff]
      %v7853 = vld [vmem:[#allocation4 + $0xd0] sm:$0xff]
      %v7854 = vld [vmem:[#allocation4 + $0xd8] sm:$0xff]
      %v7855 = vld [vmem:[#allocation4 + $0xe0] sm:$0xff]
      %v7856 = vld [vmem:[#allocation4 + $0xe8] sm:$0xff]
      %v7857 = vld [vmem:[#allocation4 + $0xf0] sm:$0xff]
      %v7858 = vld [vmem:[#allocation4 + $0xf8] sm:$0xff]
      %s7859 = scalar_lea.vmem %s3, 56
      %v7860 = vld [vmem:[%s7859] sm:$0xff]
      %v7862 = vsel %vm269, %v7795, 0
      %v7865 = vsel %vm269, %v7796, 0
      %v7868 = vsel %vm269, %v7797, 0
      %v7871 = vsel %vm269, %v7798, 0
      %v7874 = vsel %vm269, %v7799, 0
      %v7877 = vsel %vm269, %v7800, 0
      %v7880 = vsel %vm269, %v7801, 0
      %v7883 = vsel %vm269, %v7802, 0
      %v7886 = vsel %vm269, %v7803, 0
      %v7889 = vsel %vm269, %v7804, 0
      %v7892 = vsel %vm269, %v7805, 0
      %v7895 = vsel %vm269, %v7806, 0
      %v7898 = vsel %vm269, %v7807, 0
      %v7901 = vsel %vm269, %v7808, 0
      %v7904 = vsel %vm269, %v7809, 0
      %v7907 = vsel %vm269, %v7810, 0
      %v7910 = vsel %vm269, %v7811, 0
      %v7913 = vsel %vm269, %v7812, 0
      %v7916 = vsel %vm269, %v7813, 0
      %v7919 = vsel %vm269, %v7814, 0
      %v7922 = vsel %vm269, %v7815, 0
      %v7925 = vsel %vm269, %v7816, 0
      %v7928 = vsel %vm269, %v7817, 0
      %v7931 = vsel %vm269, %v7818, 0
      %v7934 = vsel %vm269, %v7819, 0
      %v7937 = vsel %vm269, %v7820, 0
      %v7940 = vsel %vm269, %v7821, 0
      %v7943 = vsel %vm269, %v7822, 0
      %v7946 = vsel %vm269, %v7823, 0
      %v7949 = vsel %vm269, %v7824, 0
      %v7952 = vsel %vm269, %v7825, 0
      %v7955 = vsel %vm269, %v7826, 0
      %7957 = vmatprep.subr.mxu0 0.0
      %7958 = vmatpush1.msra.mxu0 %v7860
      %7959 = vmatprep.subr.mxu0 0.0
      %7960 = vmatpush1.msra.mxu0 0.0
      %7961 = vmatprep.subr.mxu0 0.0
      %7962 = vmatpush1.msra.mxu0 0.0
      %7963 = vmatprep.subr.mxu0 0.0
      %7964 = vmatpush1.msra.mxu0 0.0
      %7965 = vmatprep.subr.mxu0 0.0
      %7966 = vmatpush1.msra.mxu0 0.0
      %7967 = vmatprep.subr.mxu0 0.0
      %7968 = vmatpush1.msra.mxu0 0.0
      %7969 = vmatprep.subr.mxu0 0.0
      %7970 = vmatpush1.msra.mxu0 0.0
      %7971 = vmatprep.subr.mxu0 0.0
      %7972 = vmatpush1.msra.mxu0 0.0
      %7973 = vmatprep.subr.mxu0 0.0
      %7974 = vmatpush1.msra.mxu0 0.0
      %7975 = vmatprep.subr.mxu0 0.0
      %7976 = vmatpush1.msra.mxu0 0.0
      %7977 = vmatprep.subr.mxu0 0.0
      %7978 = vmatpush1.msra.mxu0 0.0
      %7979 = vmatprep.subr.mxu0 0.0
      %7980 = vmatpush1.msra.mxu0 0.0
      %7981 = vmatprep.subr.mxu0 0.0
      %7982 = vmatpush1.msra.mxu0 0.0
      %7983 = vmatprep.subr.mxu0 0.0
      %7984 = vmatpush1.msra.mxu0 0.0
      %7985 = vmatprep.subr.mxu0 0.0
      %7986 = vmatpush1.msra.mxu0 0.0
      %7987 = vmatprep.subr.mxu0 0.0
      %7988 = vmatpush1.msra.mxu0 0.0
      %7989 = vmatprep.subr.mxu0 0.0
      %7990 = vmatpush1.msra.mxu0 0.0
      %7991 = vmatprep.subr.mxu0 0.0
      %7992 = vmatpush1.msra.mxu0 0.0
      %7993 = vmatprep.subr.mxu0 0.0
      %7994 = vmatpush1.msra.mxu0 0.0
      %7995 = vmatprep.subr.mxu0 0.0
      %7996 = vmatpush1.msra.mxu0 0.0
      %7997 = vmatprep.subr.mxu0 0.0
      %7998 = vmatpush1.msra.mxu0 0.0
      %7999 = vmatprep.subr.mxu0 0.0
      %8000 = vmatpush1.msra.mxu0 0.0
      %8001 = vmatprep.subr.mxu0 0.0
      %8002 = vmatpush1.msra.mxu0 0.0
      %8003 = vmatprep.subr.mxu0 0.0
      %8004 = vmatpush1.msra.mxu0 0.0
      %8005 = vmatprep.subr.mxu0 0.0
      %8006 = vmatpush1.msra.mxu0 0.0
      %8007 = vmatprep.subr.mxu0 0.0
      %8008 = vmatpush1.msra.mxu0 0.0
      %8009 = vmatprep.subr.mxu0 0.0
      %8010 = vmatpush1.msra.mxu0 0.0
      %8011 = vmatprep.subr.mxu0 0.0
      %8012 = vmatpush1.msra.mxu0 0.0
      %8013 = vmatprep.subr.mxu0 0.0
      %8014 = vmatpush1.msra.mxu0 0.0
      %8015 = vmatprep.subr.mxu0 0.0
      %8016 = vmatpush1.msra.mxu0 0.0
      %8017 = vmatprep.subr.mxu0 0.0
      %8018 = vmatpush1.msra.mxu0 0.0
      %8019 = vmatprep.subr.mxu0 0.0
      %8020 = vmatpush1.msra.mxu0 0.0
      %8021 = vmatprep.mubr.f32.mxu0 0.0
      %8022 = vmatmul.mubr.f32.gmra.mrb[0].mxu0 %v7862
      %v8023 = vpop.f32.mrb[0].mxu0
      %v8024 = vadd.f32 0.0, %v8023
      %v8025 = vpop.f32.mrb[0].mxu0
      %8026 = vmatprep.mubr.f32.mxu0 0.0
      %8027 = vmatmul.mubr.f32.gmra.mrb[0].mxu0 %v7865
      %v8028 = vpop.f32.mrb[0].mxu0
      %v8029 = vadd.f32 0.0, %v8028
      %v8030 = vpop.f32.mrb[0].mxu0
      %8031 = vmatprep.mubr.f32.mxu0 0.0
      %8032 = vmatmul.mubr.f32.gmra.mrb[0].mxu0 %v7868
      %v8033 = vpop.f32.mrb[0].mxu0
      %v8034 = vadd.f32 0.0, %v8033
      %v8035 = vpop.f32.mrb[0].mxu0
      %8036 = vmatprep.mubr.f32.mxu0 0.0
      %8037 = vmatmul.mubr.f32.gmra.mrb[0].mxu0 %v7871
      %v8038 = vpop.f32.mrb[0].mxu0
      %v8039 = vadd.f32 0.0, %v8038
      %v8040 = vpop.f32.mrb[0].mxu0
      %8041 = vmatprep.mubr.f32.mxu0 0.0
      %8042 = vmatmul.mubr.f32.gmra.mrb[0].mxu0 %v7874
      %v8043 = vpop.f32.mrb[0].mxu0
      %v8044 = vadd.f32 0.0, %v8043
      %v8045 = vpop.f32.mrb[0].mxu0
      %8046 = vmatprep.mubr.f32.mxu0 0.0
      %8047 = vmatmul.mubr.f32.gmra.mrb[0].mxu0 %v7877
      %v8048 = vpop.f32.mrb[0].mxu0
      %v8049 = vadd.f32 0.0, %v8048
      %v8050 = vpop.f32.mrb[0].mxu0
      %8051 = vmatprep.mubr.f32.mxu0 0.0
      %8052 = vmatmul.mubr.f32.gmra.mrb[0].mxu0 %v7880
      %v8053 = vpop.f32.mrb[0].mxu0
      %v8054 = vadd.f32 0.0, %v8053
      %v8055 = vpop.f32.mrb[0].mxu0
      %8056 = vmatprep.mubr.f32.mxu0 0.0
      %8057 = vmatmul.mubr.f32.gmra.mrb[0].mxu0 %v7883
      %v8058 = vpop.f32.mrb[0].mxu0
      %v8059 = vadd.f32 0.0, %v8058
      %v8060 = vpop.f32.mrb[0].mxu0
      %8061 = vmatprep.mubr.f32.mxu0 0.0
      %8062 = vmatmul.mubr.f32.gmra.mrb[0].mxu0 %v7886
      %v8063 = vpop.f32.mrb[0].mxu0
      %v8064 = vadd.f32 0.0, %v8063
      %v8065 = vpop.f32.mrb[0].mxu0
      %8066 = vmatprep.mubr.f32.mxu0 0.0
      %8067 = vmatmul.mubr.f32.gmra.mrb[0].mxu0 %v7889
      %v8068 = vpop.f32.mrb[0].mxu0
      %v8069 = vadd.f32 0.0, %v8068
      %v8070 = vpop.f32.mrb[0].mxu0
      %8071 = vmatprep.mubr.f32.mxu0 0.0
      %8072 = vmatmul.mubr.f32.gmra.mrb[0].mxu0 %v7892
      %v8073 = vpop.f32.mrb[0].mxu0
      %v8074 = vadd.f32 0.0, %v8073
      %v8075 = vpop.f32.mrb[0].mxu0
      %8076 = vmatprep.mubr.f32.mxu0 0.0
      %8077 = vmatmul.mubr.f32.gmra.mrb[0].mxu0 %v7895
      %v8078 = vpop.f32.mrb[0].mxu0
      %v8079 = vadd.f32 0.0, %v8078
      %v8080 = vpop.f32.mrb[0].mxu0
      %8081 = vmatprep.mubr.f32.mxu0 0.0
      %8082 = vmatmul.mubr.f32.gmra.mrb[0].mxu0 %v7898
      %v8083 = vpop.f32.mrb[0].mxu0
      %v8084 = vadd.f32 0.0, %v8083
      %v8085 = vpop.f32.mrb[0].mxu0
      %8086 = vmatprep.mubr.f32.mxu0 0.0
      %8087 = vmatmul.mubr.f32.gmra.mrb[0].mxu0 %v7901
      %v8088 = vpop.f32.mrb[0].mxu0
      %v8089 = vadd.f32 0.0, %v8088
      %v8090 = vpop.f32.mrb[0].mxu0
      %8091 = vmatprep.mubr.f32.mxu0 0.0
      %8092 = vmatmul.mubr.f32.gmra.mrb[0].mxu0 %v7904
      %v8093 = vpop.f32.mrb[0].mxu0
      %v8094 = vadd.f32 0.0, %v8093
      %v8095 = vpop.f32.mrb[0].mxu0
      %8096 = vmatprep.mubr.f32.mxu0 0.0
      %8097 = vmatmul.mubr.f32.gmra.mrb[0].mxu0 %v7907
      %v8098 = vpop.f32.mrb[0].mxu0
      %v8099 = vadd.f32 0.0, %v8098
      %v8100 = vpop.f32.mrb[0].mxu0
      %8101 = vmatprep.mubr.f32.mxu0 0.0
      %8102 = vmatmul.mubr.f32.gmra.mrb[0].mxu0 %v7910
      %v8103 = vpop.f32.mrb[0].mxu0
      %v8104 = vadd.f32 0.0, %v8103
      %v8105 = vpop.f32.mrb[0].mxu0
      %8106 = vmatprep.mubr.f32.mxu0 0.0
      %8107 = vmatmul.mubr.f32.gmra.mrb[0].mxu0 %v7913
      %v8108 = vpop.f32.mrb[0].mxu0
      %v8109 = vadd.f32 0.0, %v8108
      %v8110 = vpop.f32.mrb[0].mxu0
      %8111 = vmatprep.mubr.f32.mxu0 0.0
      %8112 = vmatmul.mubr.f32.gmra.mrb[0].mxu0 %v7916
      %v8113 = vpop.f32.mrb[0].mxu0
      %v8114 = vadd.f32 0.0, %v8113
      %v8115 = vpop.f32.mrb[0].mxu0
      %8116 = vmatprep.mubr.f32.mxu0 0.0
      %8117 = vmatmul.mubr.f32.gmra.mrb[0].mxu0 %v7919
      %v8118 = vpop.f32.mrb[0].mxu0
      %v8119 = vadd.f32 0.0, %v8118
      %v8120 = vpop.f32.mrb[0].mxu0
      %8121 = vmatprep.mubr.f32.mxu0 0.0
      %8122 = vmatmul.mubr.f32.gmra.mrb[0].mxu0 %v7922
      %v8123 = vpop.f32.mrb[0].mxu0
      %v8124 = vadd.f32 0.0, %v8123
      %v8125 = vpop.f32.mrb[0].mxu0
      %8126 = vmatprep.mubr.f32.mxu0 0.0
      %8127 = vmatmul.mubr.f32.gmra.mrb[0].mxu0 %v7925
      %v8128 = vpop.f32.mrb[0].mxu0
      %v8129 = vadd.f32 0.0, %v8128
      %v8130 = vpop.f32.mrb[0].mxu0
      %8131 = vmatprep.mubr.f32.mxu0 0.0
      %8132 = vmatmul.mubr.f32.gmra.mrb[0].mxu0 %v7928
      %v8133 = vpop.f32.mrb[0].mxu0
      %v8134 = vadd.f32 0.0, %v8133
      %v8135 = vpop.f32.mrb[0].mxu0
      %8136 = vmatprep.mubr.f32.mxu0 0.0
      %8137 = vmatmul.mubr.f32.gmra.mrb[0].mxu0 %v7931
      %v8138 = vpop.f32.mrb[0].mxu0
      %v8139 = vadd.f32 0.0, %v8138
      %v8140 = vpop.f32.mrb[0].mxu0
      %8141 = vmatprep.mubr.f32.mxu0 0.0
      %8142 = vmatmul.mubr.f32.gmra.mrb[0].mxu0 %v7934
      %v8143 = vpop.f32.mrb[0].mxu0
      %v8144 = vadd.f32 0.0, %v8143
      %v8145 = vpop.f32.mrb[0].mxu0
      %8146 = vmatprep.mubr.f32.mxu0 0.0
      %8147 = vmatmul.mubr.f32.gmra.mrb[0].mxu0 %v7937
      %v8148 = vpop.f32.mrb[0].mxu0
      %v8149 = vadd.f32 0.0, %v8148
      %v8150 = vpop.f32.mrb[0].mxu0
      %8151 = vmatprep.mubr.f32.mxu0 0.0
      %8152 = vmatmul.mubr.f32.gmra.mrb[0].mxu0 %v7940
      %v8153 = vpop.f32.mrb[0].mxu0
      %v8154 = vadd.f32 0.0, %v8153
      %v8155 = vpop.f32.mrb[0].mxu0
      %8156 = vmatprep.mubr.f32.mxu0 0.0
      %8157 = vmatmul.mubr.f32.gmra.mrb[0].mxu0 %v7943
      %v8158 = vpop.f32.mrb[0].mxu0
      %v8159 = vadd.f32 0.0, %v8158
      %v8160 = vpop.f32.mrb[0].mxu0
      %8161 = vmatprep.mubr.f32.mxu0 0.0
      %8162 = vmatmul.mubr.f32.gmra.mrb[0].mxu0 %v7946
      %v8163 = vpop.f32.mrb[0].mxu0
      %v8164 = vadd.f32 0.0, %v8163
      %v8165 = vpop.f32.mrb[0].mxu0
      %8166 = vmatprep.mubr.f32.mxu0 0.0
      %8167 = vmatmul.mubr.f32.gmra.mrb[0].mxu0 %v7949
      %v8168 = vpop.f32.mrb[0].mxu0
      %v8169 = vadd.f32 0.0, %v8168
      %v8170 = vpop.f32.mrb[0].mxu0
      %8171 = vmatprep.mubr.f32.mxu0 0.0
      %8172 = vmatmul.mubr.f32.gmra.mrb[0].mxu0 %v7952
      %v8173 = vpop.f32.mrb[0].mxu0
      %v8174 = vadd.f32 0.0, %v8173
      %v8175 = vpop.f32.mrb[0].mxu0
      %8176 = vmatprep.mubr.f32.mxu0 0.0
      %8177 = vmatmul.mubr.f32.gmra.mrb[0].mxu0 %v7955
      %v8178 = vpop.f32.mrb[0].mxu0
      %v8179 = vadd.f32 0.0, %v8178
      %v8180 = vpop.f32.mrb[0].mxu0
      %8181 = vdwg.mxu0
      %v8182 = vadd.f32 %v7827, %v8024
      %v8183 = vadd.f32 %v7828, %v8029
      %v8184 = vadd.f32 %v7829, %v8034
      %v8185 = vadd.f32 %v7830, %v8039
      %v8186 = vadd.f32 %v7831, %v8044
      %v8187 = vadd.f32 %v7832, %v8049
      %v8188 = vadd.f32 %v7833, %v8054
      %v8189 = vadd.f32 %v7834, %v8059
      %v8190 = vadd.f32 %v7835, %v8064
      %v8191 = vadd.f32 %v7836, %v8069
      %v8192 = vadd.f32 %v7837, %v8074
      %v8193 = vadd.f32 %v7838, %v8079
      %v8194 = vadd.f32 %v7839, %v8084
      %v8195 = vadd.f32 %v7840, %v8089
      %v8196 = vadd.f32 %v7841, %v8094
      %v8197 = vadd.f32 %v7842, %v8099
      %v8198 = vadd.f32 %v7843, %v8104
      %v8199 = vadd.f32 %v7844, %v8109
      %v8200 = vadd.f32 %v7845, %v8114
      %v8201 = vadd.f32 %v7846, %v8119
      %v8202 = vadd.f32 %v7847, %v8124
      %v8203 = vadd.f32 %v7848, %v8129
      %v8204 = vadd.f32 %v7849, %v8134
      %v8205 = vadd.f32 %v7850, %v8139
      %v8206 = vadd.f32 %v7851, %v8144
      %v8207 = vadd.f32 %v7852, %v8149
      %v8208 = vadd.f32 %v7853, %v8154
      %v8209 = vadd.f32 %v7854, %v8159
      %v8210 = vadd.f32 %v7855, %v8164
      %v8211 = vadd.f32 %v7856, %v8169
      %v8212 = vadd.f32 %v7857, %v8174
      %v8213 = vadd.f32 %v7858, %v8179
      %8214 = vst.msk [vmem:[#allocation4] sm:$0xff] %vm269, %v8182
      %8215 = vst.msk [vmem:[#allocation4 + $0x8] sm:$0xff] %vm269, %v8183
      %8216 = vst.msk [vmem:[#allocation4 + $0x10] sm:$0xff] %vm269, %v8184
      %8217 = vst.msk [vmem:[#allocation4 + $0x18] sm:$0xff] %vm269, %v8185
      %8218 = vst.msk [vmem:[#allocation4 + $0x20] sm:$0xff] %vm269, %v8186
      %8219 = vst.msk [vmem:[#allocation4 + $0x28] sm:$0xff] %vm269, %v8187
      %8220 = vst.msk [vmem:[#allocation4 + $0x30] sm:$0xff] %vm269, %v8188
      %8221 = vst.msk [vmem:[#allocation4 + $0x38] sm:$0xff] %vm269, %v8189
      %8222 = vst.msk [vmem:[#allocation4 + $0x40] sm:$0xff] %vm269, %v8190
      %8223 = vst.msk [vmem:[#allocation4 + $0x48] sm:$0xff] %vm269, %v8191
      %8224 = vst.msk [vmem:[#allocation4 + $0x50] sm:$0xff] %vm269, %v8192
      %8225 = vst.msk [vmem:[#allocation4 + $0x58] sm:$0xff] %vm269, %v8193
      %8226 = vst.msk [vmem:[#allocation4 + $0x60] sm:$0xff] %vm269, %v8194
      %8227 = vst.msk [vmem:[#allocation4 + $0x68] sm:$0xff] %vm269, %v8195
      %8228 = vst.msk [vmem:[#allocation4 + $0x70] sm:$0xff] %vm269, %v8196
      %8229 = vst.msk [vmem:[#allocation4 + $0x78] sm:$0xff] %vm269, %v8197
      %8230 = vst.msk [vmem:[#allocation4 + $0x80] sm:$0xff] %vm269, %v8198
      %8231 = vst.msk [vmem:[#allocation4 + $0x88] sm:$0xff] %vm269, %v8199
      %8232 = vst.msk [vmem:[#allocation4 + $0x90] sm:$0xff] %vm269, %v8200
      %8233 = vst.msk [vmem:[#allocation4 + $0x98] sm:$0xff] %vm269, %v8201
      %8234 = vst.msk [vmem:[#allocation4 + $0xa0] sm:$0xff] %vm269, %v8202
      %8235 = vst.msk [vmem:[#allocation4 + $0xa8] sm:$0xff] %vm269, %v8203
      %8236 = vst.msk [vmem:[#allocation4 + $0xb0] sm:$0xff] %vm269, %v8204
      %8237 = vst.msk [vmem:[#allocation4 + $0xb8] sm:$0xff] %vm269, %v8205
      %8238 = vst.msk [vmem:[#allocation4 + $0xc0] sm:$0xff] %vm269, %v8206
      %8239 = vst.msk [vmem:[#allocation4 + $0xc8] sm:$0xff] %vm269, %v8207
      %8240 = vst.msk [vmem:[#allocation4 + $0xd0] sm:$0xff] %vm269, %v8208
      %8241 = vst.msk [vmem:[#allocation4 + $0xd8] sm:$0xff] %vm269, %v8209
      %8242 = vst.msk [vmem:[#allocation4 + $0xe0] sm:$0xff] %vm269, %v8210
      %8243 = vst.msk [vmem:[#allocation4 + $0xe8] sm:$0xff] %vm269, %v8211
      %8244 = vst.msk [vmem:[#allocation4 + $0xf0] sm:$0xff] %vm269, %v8212
      %8245 = vst.msk [vmem:[#allocation4 + $0xf8] sm:$0xff] %vm269, %v8213
      %v8246 = vld [vmem:[%s7343 + $0x9] sm:$0xff]
      %v8247 = vld [vmem:[%s7343 + $0x11] sm:$0xff]
      %v8248 = vld [vmem:[%s7343 + $0x29] sm:$0xff]
      %v8249 = vld [vmem:[%s7343 + $0x31] sm:$0xff]
      %v8250 = vld [vmem:[%s7343 + $0x49] sm:$0xff]
      %v8251 = vld [vmem:[%s7343 + $0x51] sm:$0xff]
      %v8252 = vld [vmem:[%s7343 + $0x69] sm:$0xff]
      %v8253 = vld [vmem:[%s7343 + $0x71] sm:$0xff]
      %v8254 = vld [vmem:[%s7343 + $0x89] sm:$0xff]
      %v8255 = vld [vmem:[%s7343 + $0x91] sm:$0xff]
      %v8256 = vld [vmem:[%s7343 + $0xa9] sm:$0xff]
      %v8257 = vld [vmem:[%s7343 + $0xb1] sm:$0xff]
      %v8258 = vld [vmem:[%s7343 + $0xc9] sm:$0xff]
      %v8259 = vld [vmem:[%s7343 + $0xd1] sm:$0xff]
      %v8260 = vld [vmem:[%s7343 + $0xe9] sm:$0xff]
      %v8261 = vld [vmem:[%s7343 + $0xf1] sm:$0xff]
      %v8262 = vld [vmem:[%s7343 + $0x109] sm:$0xff]
      %v8263 = vld [vmem:[%s7343 + $0x111] sm:$0xff]
      %v8264 = vld [vmem:[%s7343 + $0x129] sm:$0xff]
      %v8265 = vld [vmem:[%s7343 + $0x131] sm:$0xff]
      %v8266 = vld [vmem:[%s7343 + $0x149] sm:$0xff]
      %v8267 = vld [vmem:[%s7343 + $0x151] sm:$0xff]
      %v8268 = vld [vmem:[%s7343 + $0x169] sm:$0xff]
      %v8269 = vld [vmem:[%s7343 + $0x171] sm:$0xff]
      %v8270 = vld [vmem:[%s7343 + $0x189] sm:$0xff]
      %v8271 = vld [vmem:[%s7343 + $0x191] sm:$0xff]
      %v8272 = vld [vmem:[%s7343 + $0x1a9] sm:$0xff]
      %v8273 = vld [vmem:[%s7343 + $0x1b1] sm:$0xff]
      %v8274 = vld [vmem:[%s7343 + $0x1c9] sm:$0xff]
      %v8275 = vld [vmem:[%s7343 + $0x1d1] sm:$0xff]
      %v8276 = vld [vmem:[%s7343 + $0x1e9] sm:$0xff]
      %v8277 = vld [vmem:[%s7343 + $0x1f1] sm:$0xff]
      %v8278 = vld [vmem:[#allocation4] sm:$0xff]
      %v8279 = vld [vmem:[#allocation4 + $0x8] sm:$0xff]
      %v8280 = vld [vmem:[#allocation4 + $0x10] sm:$0xff]
      %v8281 = vld [vmem:[#allocation4 + $0x18] sm:$0xff]
      %v8282 = vld [vmem:[#allocation4 + $0x20] sm:$0xff]
      %v8283 = vld [vmem:[#allocation4 + $0x28] sm:$0xff]
      %v8284 = vld [vmem:[#allocation4 + $0x30] sm:$0xff]
      %v8285 = vld [vmem:[#allocation4 + $0x38] sm:$0xff]
      %v8286 = vld [vmem:[#allocation4 + $0x40] sm:$0xff]
      %v8287 = vld [vmem:[#allocation4 + $0x48] sm:$0xff]
      %v8288 = vld [vmem:[#allocation4 + $0x50] sm:$0xff]
      %v8289 = vld [vmem:[#allocation4 + $0x58] sm:$0xff]
      %v8290 = vld [vmem:[#allocation4 + $0x60] sm:$0xff]
      %v8291 = vld [vmem:[#allocation4 + $0x68] sm:$0xff]
      %v8292 = vld [vmem:[#allocation4 + $0x70] sm:$0xff]
      %v8293 = vld [vmem:[#allocation4 + $0x78] sm:$0xff]
      %v8294 = vld [vmem:[#allocation4 + $0x80] sm:$0xff]
      %v8295 = vld [vmem:[#allocation4 + $0x88] sm:$0xff]
      %v8296 = vld [vmem:[#allocation4 + $0x90] sm:$0xff]
      %v8297 = vld [vmem:[#allocation4 + $0x98] sm:$0xff]
      %v8298 = vld [vmem:[#allocation4 + $0xa0] sm:$0xff]
      %v8299 = vld [vmem:[#allocation4 + $0xa8] sm:$0xff]
      %v8300 = vld [vmem:[#allocation4 + $0xb0] sm:$0xff]
      %v8301 = vld [vmem:[#allocation4 + $0xb8] sm:$0xff]
      %v8302 = vld [vmem:[#allocation4 + $0xc0] sm:$0xff]
      %v8303 = vld [vmem:[#allocation4 + $0xc8] sm:$0xff]
      %v8304 = vld [vmem:[#allocation4 + $0xd0] sm:$0xff]
      %v8305 = vld [vmem:[#allocation4 + $0xd8] sm:$0xff]
      %v8306 = vld [vmem:[#allocation4 + $0xe0] sm:$0xff]
      %v8307 = vld [vmem:[#allocation4 + $0xe8] sm:$0xff]
      %v8308 = vld [vmem:[#allocation4 + $0xf0] sm:$0xff]
      %v8309 = vld [vmem:[#allocation4 + $0xf8] sm:$0xff]
      %s8310 = scalar_lea.vmem %s3, 64
      %v8311 = vld [vmem:[%s8310] sm:$0xff]
      %v8313 = vsel %vm269, %v8246, 0
      %v8316 = vsel %vm269, %v8247, 0
      %v8319 = vsel %vm269, %v8248, 0
      %v8322 = vsel %vm269, %v8249, 0
      %v8325 = vsel %vm269, %v8250, 0
      %v8328 = vsel %vm269, %v8251, 0
      %v8331 = vsel %vm269, %v8252, 0
      %v8334 = vsel %vm269, %v8253, 0
      %v8337 = vsel %vm269, %v8254, 0
      %v8340 = vsel %vm269, %v8255, 0
      %v8343 = vsel %vm269, %v8256, 0
      %v8346 = vsel %vm269, %v8257, 0
      %v8349 = vsel %vm269, %v8258, 0
      %v8352 = vsel %vm269, %v8259, 0
      %v8355 = vsel %vm269, %v8260, 0
      %v8358 = vsel %vm269, %v8261, 0
      %v8361 = vsel %vm269, %v8262, 0
      %v8364 = vsel %vm269, %v8263, 0
      %v8367 = vsel %vm269, %v8264, 0
      %v8370 = vsel %vm269, %v8265, 0
      %v8373 = vsel %vm269, %v8266, 0
      %v8376 = vsel %vm269, %v8267, 0
      %v8379 = vsel %vm269, %v8268, 0
      %v8382 = vsel %vm269, %v8269, 0
      %v8385 = vsel %vm269, %v8270, 0
      %v8388 = vsel %vm269, %v8271, 0
      %v8391 = vsel %vm269, %v8272, 0
      %v8394 = vsel %vm269, %v8273, 0
      %v8397 = vsel %vm269, %v8274, 0
      %v8400 = vsel %vm269, %v8275, 0
      %v8403 = vsel %vm269, %v8276, 0
      %v8406 = vsel %vm269, %v8277, 0
      %8408 = vmatprep.subr.mxu0 0.0
      %8409 = vmatpush1.msra.mxu0 %v8311
      %8410 = vmatprep.subr.mxu0 0.0
      %8411 = vmatpush1.msra.mxu0 0.0
      %8412 = vmatprep.subr.mxu0 0.0
      %8413 = vmatpush1.msra.mxu0 0.0
      %8414 = vmatprep.subr.mxu0 0.0
      %8415 = vmatpush1.msra.mxu0 0.0
      %8416 = vmatprep.subr.mxu0 0.0
      %8417 = vmatpush1.msra.mxu0 0.0
      %8418 = vmatprep.subr.mxu0 0.0
      %8419 = vmatpush1.msra.mxu0 0.0
      %8420 = vmatprep.subr.mxu0 0.0
      %8421 = vmatpush1.msra.mxu0 0.0
      %8422 = vmatprep.subr.mxu0 0.0
      %8423 = vmatpush1.msra.mxu0 0.0
      %8424 = vmatprep.subr.mxu0 0.0
      %8425 = vmatpush1.msra.mxu0 0.0
      %8426 = vmatprep.subr.mxu0 0.0
      %8427 = vmatpush1.msra.mxu0 0.0
      %8428 = vmatprep.subr.mxu0 0.0
      %8429 = vmatpush1.msra.mxu0 0.0
      %8430 = vmatprep.subr.mxu0 0.0
      %8431 = vmatpush1.msra.mxu0 0.0
      %8432 = vmatprep.subr.mxu0 0.0
      %8433 = vmatpush1.msra.mxu0 0.0
      %8434 = vmatprep.subr.mxu0 0.0
      %8435 = vmatpush1.msra.mxu0 0.0
      %8436 = vmatprep.subr.mxu0 0.0
      %8437 = vmatpush1.msra.mxu0 0.0
      %8438 = vmatprep.subr.mxu0 0.0
      %8439 = vmatpush1.msra.mxu0 0.0
      %8440 = vmatprep.subr.mxu0 0.0
      %8441 = vmatpush1.msra.mxu0 0.0
      %8442 = vmatprep.subr.mxu0 0.0
      %8443 = vmatpush1.msra.mxu0 0.0
      %8444 = vmatprep.subr.mxu0 0.0
      %8445 = vmatpush1.msra.mxu0 0.0
      %8446 = vmatprep.subr.mxu0 0.0
      %8447 = vmatpush1.msra.mxu0 0.0
      %8448 = vmatprep.subr.mxu0 0.0
      %8449 = vmatpush1.msra.mxu0 0.0
      %8450 = vmatprep.subr.mxu0 0.0
      %8451 = vmatpush1.msra.mxu0 0.0
      %8452 = vmatprep.subr.mxu0 0.0
      %8453 = vmatpush1.msra.mxu0 0.0
      %8454 = vmatprep.subr.mxu0 0.0
      %8455 = vmatpush1.msra.mxu0 0.0
      %8456 = vmatprep.subr.mxu0 0.0
      %8457 = vmatpush1.msra.mxu0 0.0
      %8458 = vmatprep.subr.mxu0 0.0
      %8459 = vmatpush1.msra.mxu0 0.0
      %8460 = vmatprep.subr.mxu0 0.0
      %8461 = vmatpush1.msra.mxu0 0.0
      %8462 = vmatprep.subr.mxu0 0.0
      %8463 = vmatpush1.msra.mxu0 0.0
      %8464 = vmatprep.subr.mxu0 0.0
      %8465 = vmatpush1.msra.mxu0 0.0
      %8466 = vmatprep.subr.mxu0 0.0
      %8467 = vmatpush1.msra.mxu0 0.0
      %8468 = vmatprep.subr.mxu0 0.0
      %8469 = vmatpush1.msra.mxu0 0.0
      %8470 = vmatprep.subr.mxu0 0.0
      %8471 = vmatpush1.msra.mxu0 0.0
      %8472 = vmatprep.mubr.f32.mxu0 0.0
      %8473 = vmatmul.mubr.f32.gmra.mrb[0].mxu0 %v8313
      %v8474 = vpop.f32.mrb[0].mxu0
      %v8475 = vadd.f32 0.0, %v8474
      %v8476 = vpop.f32.mrb[0].mxu0
      %8477 = vmatprep.mubr.f32.mxu0 0.0
      %8478 = vmatmul.mubr.f32.gmra.mrb[0].mxu0 %v8316
      %v8479 = vpop.f32.mrb[0].mxu0
      %v8480 = vadd.f32 0.0, %v8479
      %v8481 = vpop.f32.mrb[0].mxu0
      %8482 = vmatprep.mubr.f32.mxu0 0.0
      %8483 = vmatmul.mubr.f32.gmra.mrb[0].mxu0 %v8319
      %v8484 = vpop.f32.mrb[0].mxu0
      %v8485 = vadd.f32 0.0, %v8484
      %v8486 = vpop.f32.mrb[0].mxu0
      %8487 = vmatprep.mubr.f32.mxu0 0.0
      %8488 = vmatmul.mubr.f32.gmra.mrb[0].mxu0 %v8322
      %v8489 = vpop.f32.mrb[0].mxu0
      %v8490 = vadd.f32 0.0, %v8489
      %v8491 = vpop.f32.mrb[0].mxu0
      %8492 = vmatprep.mubr.f32.mxu0 0.0
      %8493 = vmatmul.mubr.f32.gmra.mrb[0].mxu0 %v8325
      %v8494 = vpop.f32.mrb[0].mxu0
      %v8495 = vadd.f32 0.0, %v8494
      %v8496 = vpop.f32.mrb[0].mxu0
      %8497 = vmatprep.mubr.f32.mxu0 0.0
      %8498 = vmatmul.mubr.f32.gmra.mrb[0].mxu0 %v8328
      %v8499 = vpop.f32.mrb[0].mxu0
      %v8500 = vadd.f32 0.0, %v8499
      %v8501 = vpop.f32.mrb[0].mxu0
      %8502 = vmatprep.mubr.f32.mxu0 0.0
      %8503 = vmatmul.mubr.f32.gmra.mrb[0].mxu0 %v8331
      %v8504 = vpop.f32.mrb[0].mxu0
      %v8505 = vadd.f32 0.0, %v8504
      %v8506 = vpop.f32.mrb[0].mxu0
      %8507 = vmatprep.mubr.f32.mxu0 0.0
      %8508 = vmatmul.mubr.f32.gmra.mrb[0].mxu0 %v8334
      %v8509 = vpop.f32.mrb[0].mxu0
      %v8510 = vadd.f32 0.0, %v8509
      %v8511 = vpop.f32.mrb[0].mxu0
      %8512 = vmatprep.mubr.f32.mxu0 0.0
      %8513 = vmatmul.mubr.f32.gmra.mrb[0].mxu0 %v8337
      %v8514 = vpop.f32.mrb[0].mxu0
      %v8515 = vadd.f32 0.0, %v8514
      %v8516 = vpop.f32.mrb[0].mxu0
      %8517 = vmatprep.mubr.f32.mxu0 0.0
      %8518 = vmatmul.mubr.f32.gmra.mrb[0].mxu0 %v8340
      %v8519 = vpop.f32.mrb[0].mxu0
      %v8520 = vadd.f32 0.0, %v8519
      %v8521 = vpop.f32.mrb[0].mxu0
      %8522 = vmatprep.mubr.f32.mxu0 0.0
      %8523 = vmatmul.mubr.f32.gmra.mrb[0].mxu0 %v8343
      %v8524 = vpop.f32.mrb[0].mxu0
      %v8525 = vadd.f32 0.0, %v8524
      %v8526 = vpop.f32.mrb[0].mxu0
      %8527 = vmatprep.mubr.f32.mxu0 0.0
      %8528 = vmatmul.mubr.f32.gmra.mrb[0].mxu0 %v8346
      %v8529 = vpop.f32.mrb[0].mxu0
      %v8530 = vadd.f32 0.0, %v8529
      %v8531 = vpop.f32.mrb[0].mxu0
      %8532 = vmatprep.mubr.f32.mxu0 0.0
      %8533 = vmatmul.mubr.f32.gmra.mrb[0].mxu0 %v8349
      %v8534 = vpop.f32.mrb[0].mxu0
      %v8535 = vadd.f32 0.0, %v8534
      %v8536 = vpop.f32.mrb[0].mxu0
      %8537 = vmatprep.mubr.f32.mxu0 0.0
      %8538 = vmatmul.mubr.f32.gmra.mrb[0].mxu0 %v8352
      %v8539 = vpop.f32.mrb[0].mxu0
      %v8540 = vadd.f32 0.0, %v8539
      %v8541 = vpop.f32.mrb[0].mxu0
      %8542 = vmatprep.mubr.f32.mxu0 0.0
      %8543 = vmatmul.mubr.f32.gmra.mrb[0].mxu0 %v8355
      %v8544 = vpop.f32.mrb[0].mxu0
      %v8545 = vadd.f32 0.0, %v8544
      %v8546 = vpop.f32.mrb[0].mxu0
      %8547 = vmatprep.mubr.f32.mxu0 0.0
      %8548 = vmatmul.mubr.f32.gmra.mrb[0].mxu0 %v8358
      %v8549 = vpop.f32.mrb[0].mxu0
      %v8550 = vadd.f32 0.0, %v8549
      %v8551 = vpop.f32.mrb[0].mxu0
      %8552 = vmatprep.mubr.f32.mxu0 0.0
      %8553 = vmatmul.mubr.f32.gmra.mrb[0].mxu0 %v8361
      %v8554 = vpop.f32.mrb[0].mxu0
      %v8555 = vadd.f32 0.0, %v8554
      %v8556 = vpop.f32.mrb[0].mxu0
      %8557 = vmatprep.mubr.f32.mxu0 0.0
      %8558 = vmatmul.mubr.f32.gmra.mrb[0].mxu0 %v8364
      %v8559 = vpop.f32.mrb[0].mxu0
      %v8560 = vadd.f32 0.0, %v8559
      %v8561 = vpop.f32.mrb[0].mxu0
      %8562 = vmatprep.mubr.f32.mxu0 0.0
      %8563 = vmatmul.mubr.f32.gmra.mrb[0].mxu0 %v8367
      %v8564 = vpop.f32.mrb[0].mxu0
      %v8565 = vadd.f32 0.0, %v8564
      %v8566 = vpop.f32.mrb[0].mxu0
      %8567 = vmatprep.mubr.f32.mxu0 0.0
      %8568 = vmatmul.mubr.f32.gmra.mrb[0].mxu0 %v8370
      %v8569 = vpop.f32.mrb[0].mxu0
      %v8570 = vadd.f32 0.0, %v8569
      %v8571 = vpop.f32.mrb[0].mxu0
      %8572 = vmatprep.mubr.f32.mxu0 0.0
      %8573 = vmatmul.mubr.f32.gmra.mrb[0].mxu0 %v8373
      %v8574 = vpop.f32.mrb[0].mxu0
      %v8575 = vadd.f32 0.0, %v8574
      %v8576 = vpop.f32.mrb[0].mxu0
      %8577 = vmatprep.mubr.f32.mxu0 0.0
      %8578 = vmatmul.mubr.f32.gmra.mrb[0].mxu0 %v8376
      %v8579 = vpop.f32.mrb[0].mxu0
      %v8580 = vadd.f32 0.0, %v8579
      %v8581 = vpop.f32.mrb[0].mxu0
      %8582 = vmatprep.mubr.f32.mxu0 0.0
      %8583 = vmatmul.mubr.f32.gmra.mrb[0].mxu0 %v8379
      %v8584 = vpop.f32.mrb[0].mxu0
      %v8585 = vadd.f32 0.0, %v8584
      %v8586 = vpop.f32.mrb[0].mxu0
      %8587 = vmatprep.mubr.f32.mxu0 0.0
      %8588 = vmatmul.mubr.f32.gmra.mrb[0].mxu0 %v8382
      %v8589 = vpop.f32.mrb[0].mxu0
      %v8590 = vadd.f32 0.0, %v8589
      %v8591 = vpop.f32.mrb[0].mxu0
      %8592 = vmatprep.mubr.f32.mxu0 0.0
      %8593 = vmatmul.mubr.f32.gmra.mrb[0].mxu0 %v8385
      %v8594 = vpop.f32.mrb[0].mxu0
      %v8595 = vadd.f32 0.0, %v8594
      %v8596 = vpop.f32.mrb[0].mxu0
      %8597 = vmatprep.mubr.f32.mxu0 0.0
      %8598 = vmatmul.mubr.f32.gmra.mrb[0].mxu0 %v8388
      %v8599 = vpop.f32.mrb[0].mxu0
      %v8600 = vadd.f32 0.0, %v8599
      %v8601 = vpop.f32.mrb[0].mxu0
      %8602 = vmatprep.mubr.f32.mxu0 0.0
      %8603 = vmatmul.mubr.f32.gmra.mrb[0].mxu0 %v8391
      %v8604 = vpop.f32.mrb[0].mxu0
      %v8605 = vadd.f32 0.0, %v8604
      %v8606 = vpop.f32.mrb[0].mxu0
      %8607 = vmatprep.mubr.f32.mxu0 0.0
      %8608 = vmatmul.mubr.f32.gmra.mrb[0].mxu0 %v8394
      %v8609 = vpop.f32.mrb[0].mxu0
      %v8610 = vadd.f32 0.0, %v8609
      %v8611 = vpop.f32.mrb[0].mxu0
      %8612 = vmatprep.mubr.f32.mxu0 0.0
      %8613 = vmatmul.mubr.f32.gmra.mrb[0].mxu0 %v8397
      %v8614 = vpop.f32.mrb[0].mxu0
      %v8615 = vadd.f32 0.0, %v8614
      %v8616 = vpop.f32.mrb[0].mxu0
      %8617 = vmatprep.mubr.f32.mxu0 0.0
      %8618 = vmatmul.mubr.f32.gmra.mrb[0].mxu0 %v8400
      %v8619 = vpop.f32.mrb[0].mxu0
      %v8620 = vadd.f32 0.0, %v8619
      %v8621 = vpop.f32.mrb[0].mxu0
      %8622 = vmatprep.mubr.f32.mxu0 0.0
      %8623 = vmatmul.mubr.f32.gmra.mrb[0].mxu0 %v8403
      %v8624 = vpop.f32.mrb[0].mxu0
      %v8625 = vadd.f32 0.0, %v8624
      %v8626 = vpop.f32.mrb[0].mxu0
      %8627 = vmatprep.mubr.f32.mxu0 0.0
      %8628 = vmatmul.mubr.f32.gmra.mrb[0].mxu0 %v8406
      %v8629 = vpop.f32.mrb[0].mxu0
      %v8630 = vadd.f32 0.0, %v8629
      %v8631 = vpop.f32.mrb[0].mxu0
      %8632 = vdwg.mxu0
      %v8633 = vadd.f32 %v8278, %v8475
      %v8634 = vadd.f32 %v8279, %v8480
      %v8635 = vadd.f32 %v8280, %v8485
      %v8636 = vadd.f32 %v8281, %v8490
      %v8637 = vadd.f32 %v8282, %v8495
      %v8638 = vadd.f32 %v8283, %v8500
      %v8639 = vadd.f32 %v8284, %v8505
      %v8640 = vadd.f32 %v8285, %v8510
      %v8641 = vadd.f32 %v8286, %v8515
      %v8642 = vadd.f32 %v8287, %v8520
      %v8643 = vadd.f32 %v8288, %v8525
      %v8644 = vadd.f32 %v8289, %v8530
      %v8645 = vadd.f32 %v8290, %v8535
      %v8646 = vadd.f32 %v8291, %v8540
      %v8647 = vadd.f32 %v8292, %v8545
      %v8648 = vadd.f32 %v8293, %v8550
      %v8649 = vadd.f32 %v8294, %v8555
      %v8650 = vadd.f32 %v8295, %v8560
      %v8651 = vadd.f32 %v8296, %v8565
      %v8652 = vadd.f32 %v8297, %v8570
      %v8653 = vadd.f32 %v8298, %v8575
      %v8654 = vadd.f32 %v8299, %v8580
      %v8655 = vadd.f32 %v8300, %v8585
      %v8656 = vadd.f32 %v8301, %v8590
      %v8657 = vadd.f32 %v8302, %v8595
      %v8658 = vadd.f32 %v8303, %v8600
      %v8659 = vadd.f32 %v8304, %v8605
      %v8660 = vadd.f32 %v8305, %v8610
      %v8661 = vadd.f32 %v8306, %v8615
      %v8662 = vadd.f32 %v8307, %v8620
      %v8663 = vadd.f32 %v8308, %v8625
      %v8664 = vadd.f32 %v8309, %v8630
      %8665 = vst.msk [vmem:[#allocation4] sm:$0xff] %vm269, %v8633
      %8666 = vst.msk [vmem:[#allocation4 + $0x8] sm:$0xff] %vm269, %v8634
      %8667 = vst.msk [vmem:[#allocation4 + $0x10] sm:$0xff] %vm269, %v8635
      %8668 = vst.msk [vmem:[#allocation4 + $0x18] sm:$0xff] %vm269, %v8636
      %8669 = vst.msk [vmem:[#allocation4 + $0x20] sm:$0xff] %vm269, %v8637
      %8670 = vst.msk [vmem:[#allocation4 + $0x28] sm:$0xff] %vm269, %v8638
      %8671 = vst.msk [vmem:[#allocation4 + $0x30] sm:$0xff] %vm269, %v8639
      %8672 = vst.msk [vmem:[#allocation4 + $0x38] sm:$0xff] %vm269, %v8640
      %8673 = vst.msk [vmem:[#allocation4 + $0x40] sm:$0xff] %vm269, %v8641
      %8674 = vst.msk [vmem:[#allocation4 + $0x48] sm:$0xff] %vm269, %v8642
      %8675 = vst.msk [vmem:[#allocation4 + $0x50] sm:$0xff] %vm269, %v8643
      %8676 = vst.msk [vmem:[#allocation4 + $0x58] sm:$0xff] %vm269, %v8644
      %8677 = vst.msk [vmem:[#allocation4 + $0x60] sm:$0xff] %vm269, %v8645
      %8678 = vst.msk [vmem:[#allocation4 + $0x68] sm:$0xff] %vm269, %v8646
      %8679 = vst.msk [vmem:[#allocation4 + $0x70] sm:$0xff] %vm269, %v8647
      %8680 = vst.msk [vmem:[#allocation4 + $0x78] sm:$0xff] %vm269, %v8648
      %8681 = vst.msk [vmem:[#allocation4 + $0x80] sm:$0xff] %vm269, %v8649
      %8682 = vst.msk [vmem:[#allocation4 + $0x88] sm:$0xff] %vm269, %v8650
      %8683 = vst.msk [vmem:[#allocation4 + $0x90] sm:$0xff] %vm269, %v8651
      %8684 = vst.msk [vmem:[#allocation4 + $0x98] sm:$0xff] %vm269, %v8652
      %8685 = vst.msk [vmem:[#allocation4 + $0xa0] sm:$0xff] %vm269, %v8653
      %8686 = vst.msk [vmem:[#allocation4 + $0xa8] sm:$0xff] %vm269, %v8654
      %8687 = vst.msk [vmem:[#allocation4 + $0xb0] sm:$0xff] %vm269, %v8655
      %8688 = vst.msk [vmem:[#allocation4 + $0xb8] sm:$0xff] %vm269, %v8656
      %8689 = vst.msk [vmem:[#allocation4 + $0xc0] sm:$0xff] %vm269, %v8657
      %8690 = vst.msk [vmem:[#allocation4 + $0xc8] sm:$0xff] %vm269, %v8658
      %8691 = vst.msk [vmem:[#allocation4 + $0xd0] sm:$0xff] %vm269, %v8659
      %8692 = vst.msk [vmem:[#allocation4 + $0xd8] sm:$0xff] %vm269, %v8660
      %8693 = vst.msk [vmem:[#allocation4 + $0xe0] sm:$0xff] %vm269, %v8661
      %8694 = vst.msk [vmem:[#allocation4 + $0xe8] sm:$0xff] %vm269, %v8662
      %8695 = vst.msk [vmem:[#allocation4 + $0xf0] sm:$0xff] %vm269, %v8663
      %8696 = vst.msk [vmem:[#allocation4 + $0xf8] sm:$0xff] %vm269, %v8664
      %v8697 = vld [vmem:[#allocation4] sm:$0xff]
      %v8698 = vld [vmem:[#allocation4 + $0x8] sm:$0xff]
      %v8699 = vld [vmem:[#allocation4 + $0x10] sm:$0xff]
      %v8700 = vld [vmem:[#allocation4 + $0x18] sm:$0xff]
      %v8701 = vld [vmem:[#allocation4 + $0x20] sm:$0xff]
      %v8702 = vld [vmem:[#allocation4 + $0x28] sm:$0xff]
      %v8703 = vld [vmem:[#allocation4 + $0x30] sm:$0xff]
      %v8704 = vld [vmem:[#allocation4 + $0x38] sm:$0xff]
      %v8705 = vld [vmem:[#allocation4 + $0x40] sm:$0xff]
      %v8706 = vld [vmem:[#allocation4 + $0x48] sm:$0xff]
      %v8707 = vld [vmem:[#allocation4 + $0x50] sm:$0xff]
      %v8708 = vld [vmem:[#allocation4 + $0x58] sm:$0xff]
      %v8709 = vld [vmem:[#allocation4 + $0x60] sm:$0xff]
      %v8710 = vld [vmem:[#allocation4 + $0x68] sm:$0xff]
      %v8711 = vld [vmem:[#allocation4 + $0x70] sm:$0xff]
      %v8712 = vld [vmem:[#allocation4 + $0x78] sm:$0xff]
      %v8713 = vld [vmem:[#allocation4 + $0x80] sm:$0xff]
      %v8714 = vld [vmem:[#allocation4 + $0x88] sm:$0xff]
      %v8715 = vld [vmem:[#allocation4 + $0x90] sm:$0xff]
      %v8716 = vld [vmem:[#allocation4 + $0x98] sm:$0xff]
      %v8717 = vld [vmem:[#allocation4 + $0xa0] sm:$0xff]
      %v8718 = vld [vmem:[#allocation4 + $0xa8] sm:$0xff]
      %v8719 = vld [vmem:[#allocation4 + $0xb0] sm:$0xff]
      %v8720 = vld [vmem:[#allocation4 + $0xb8] sm:$0xff]
      %v8721 = vld [vmem:[#allocation4 + $0xc0] sm:$0xff]
      %v8722 = vld [vmem:[#allocation4 + $0xc8] sm:$0xff]
      %v8723 = vld [vmem:[#allocation4 + $0xd0] sm:$0xff]
      %v8724 = vld [vmem:[#allocation4 + $0xd8] sm:$0xff]
      %v8725 = vld [vmem:[#allocation4 + $0xe0] sm:$0xff]
      %v8726 = vld [vmem:[#allocation4 + $0xe8] sm:$0xff]
      %v8727 = vld [vmem:[#allocation4 + $0xf0] sm:$0xff]
      %v8728 = vld [vmem:[#allocation4 + $0xf8] sm:$0xff]
      %v8729 = vmax.f32 %v8697, 0.0
      %v8730 = vmax.f32 %v8698, 0.0
      %v8731 = vmax.f32 %v8699, 0.0
      %v8732 = vmax.f32 %v8700, 0.0
      %v8733 = vmax.f32 %v8701, 0.0
      %v8734 = vmax.f32 %v8702, 0.0
      %v8735 = vmax.f32 %v8703, 0.0
      %v8736 = vmax.f32 %v8704, 0.0
      %v8737 = vmax.f32 %v8705, 0.0
      %v8738 = vmax.f32 %v8706, 0.0
      %v8739 = vmax.f32 %v8707, 0.0
      %v8740 = vmax.f32 %v8708, 0.0
      %v8741 = vmax.f32 %v8709, 0.0
      %v8742 = vmax.f32 %v8710, 0.0
      %v8743 = vmax.f32 %v8711, 0.0
      %v8744 = vmax.f32 %v8712, 0.0
      %v8745 = vmax.f32 %v8713, 0.0
      %v8746 = vmax.f32 %v8714, 0.0
      %v8747 = vmax.f32 %v8715, 0.0
      %v8748 = vmax.f32 %v8716, 0.0
      %v8749 = vmax.f32 %v8717, 0.0
      %v8750 = vmax.f32 %v8718, 0.0
      %v8751 = vmax.f32 %v8719, 0.0
      %v8752 = vmax.f32 %v8720, 0.0
      %v8753 = vmax.f32 %v8721, 0.0
      %v8754 = vmax.f32 %v8722, 0.0
      %v8755 = vmax.f32 %v8723, 0.0
      %v8756 = vmax.f32 %v8724, 0.0
      %v8757 = vmax.f32 %v8725, 0.0
      %v8758 = vmax.f32 %v8726, 0.0
      %v8759 = vmax.f32 %v8727, 0.0
      %v8760 = vmax.f32 %v8728, 0.0
      %8761 = vst.msk [vmem:[%s224] sm:$0xff] %vm269, %v8729
      %8762 = vst.msk [vmem:[%s224 + $0x8] sm:$0xff] %vm269, %v8730
      %8763 = vst.msk [vmem:[%s224 + $0x10] sm:$0xff] %vm269, %v8731
      %8764 = vst.msk [vmem:[%s224 + $0x18] sm:$0xff] %vm269, %v8732
      %8765 = vst.msk [vmem:[%s224 + $0x20] sm:$0xff] %vm269, %v8733
      %8766 = vst.msk [vmem:[%s224 + $0x28] sm:$0xff] %vm269, %v8734
      %8767 = vst.msk [vmem:[%s224 + $0x30] sm:$0xff] %vm269, %v8735
      %8768 = vst.msk [vmem:[%s224 + $0x38] sm:$0xff] %vm269, %v8736
      %8769 = vst.msk [vmem:[%s224 + $0x40] sm:$0xff] %vm269, %v8737
      %8770 = vst.msk [vmem:[%s224 + $0x48] sm:$0xff] %vm269, %v8738
      %8771 = vst.msk [vmem:[%s224 + $0x50] sm:$0xff] %vm269, %v8739
      %8772 = vst.msk [vmem:[%s224 + $0x58] sm:$0xff] %vm269, %v8740
      %8773 = vst.msk [vmem:[%s224 + $0x60] sm:$0xff] %vm269, %v8741
      %8774 = vst.msk [vmem:[%s224 + $0x68] sm:$0xff] %vm269, %v8742
      %8775 = vst.msk [vmem:[%s224 + $0x70] sm:$0xff] %vm269, %v8743
      %8776 = vst.msk [vmem:[%s224 + $0x78] sm:$0xff] %vm269, %v8744
      %8777 = vst.msk [vmem:[%s224 + $0x80] sm:$0xff] %vm269, %v8745
      %8778 = vst.msk [vmem:[%s224 + $0x88] sm:$0xff] %vm269, %v8746
      %8779 = vst.msk [vmem:[%s224 + $0x90] sm:$0xff] %vm269, %v8747
      %8780 = vst.msk [vmem:[%s224 + $0x98] sm:$0xff] %vm269, %v8748
      %8781 = vst.msk [vmem:[%s224 + $0xa0] sm:$0xff] %vm269, %v8749
      %8782 = vst.msk [vmem:[%s224 + $0xa8] sm:$0xff] %vm269, %v8750
      %8783 = vst.msk [vmem:[%s224 + $0xb0] sm:$0xff] %vm269, %v8751
      %8784 = vst.msk [vmem:[%s224 + $0xb8] sm:$0xff] %vm269, %v8752
      %8785 = vst.msk [vmem:[%s224 + $0xc0] sm:$0xff] %vm269, %v8753
      %8786 = vst.msk [vmem:[%s224 + $0xc8] sm:$0xff] %vm269, %v8754
      %8787 = vst.msk [vmem:[%s224 + $0xd0] sm:$0xff] %vm269, %v8755
      %8788 = vst.msk [vmem:[%s224 + $0xd8] sm:$0xff] %vm269, %v8756
      %8789 = vst.msk [vmem:[%s224 + $0xe0] sm:$0xff] %vm269, %v8757
      %8790 = vst.msk [vmem:[%s224 + $0xe8] sm:$0xff] %vm269, %v8758
      %8791 = vst.msk [vmem:[%s224 + $0xf0] sm:$0xff] %vm269, %v8759
      %8792 = vst.msk [vmem:[%s224 + $0xf8] sm:$0xff] %vm269, %v8760
      %p8793 = scmp.lt.s32.totalorder %s16, 1
      %s8794 = scalar_select %p8793, %s16, 1
      %s8795 = smul.addr %s8794, 32
      %s8796 = smul.addr %s8795, 8
      %s8797 = scalar_lea.vmem %s5, %s8796
      // Predicated region
      $region41: #{tpu_custom_call.1} parent=39 // pred_check
        %p8798 = pneg %p144
      $region42: #{tpu_custom_call.1} parent=39 // pred_check_branch
        %8800 = sbr.rel (%p8798) target = $region44
      $region43: #{tpu_custom_call.1} parent=39 // pred_region
        _
      $region44: #{tpu_custom_call.1} parent=39 // pred_fallthru
        _
    $region40: #{tpu_custom_call.1} parent=5 // pred_fallthru
      _
    %p8801 = scmp.le.s32.totalorder 2, %s11
    // Predicated region
    $region45: #{tpu_custom_call.1} parent=5 // pred_check
      %p8802 = pneg %p8801
    $region46: #{tpu_custom_call.1} parent=5 // pred_check_branch
      %8804 = sbr.rel (%p8802) target = $region48
    $region47: #{tpu_custom_call.1} parent=5 // pred_region
      %s8805 = ssub.s32 %s11, 2
      // Predicated region
      $region49: #{tpu_custom_call.1} parent=47 // pred_check
        %p8806 = pneg %p150
      $region50: #{tpu_custom_call.1} parent=47 // pred_check_branch
        %8808 = sbr.rel (%p8806) target = $region52
      $region51: #{tpu_custom_call.1} parent=47 // pred_region
        %p8809 = scmp.lt.s32.totalorder %s17, 1
        %s8810 = scalar_select %p8809, %s17, 1
        %s8811 = smul.addr %s8810, 32
        %s8812 = smul.addr %s8811, 8
        %s8813 = scalar_lea.vmem %s5, %s8812
      $region52: #{tpu_custom_call.1} parent=47 // pred_fallthru
        _
    $region48: #{tpu_custom_call.1} parent=5 // pred_fallthru
      _
  $region6: #{tpu_custom_call.1} parent=0 // loop_footer
    %s15 = sadd.s32 1, %s11
  $region7: #{tpu_custom_call.1} parent=0 // loop_footer_branch
    %10 = sbr.rel target = $region3
  $region8: #{tpu_custom_call.1} parent=0 // loop_exit
    _

</llo_original>
